<compile_context>
chip_gen: v7x
topology: tpu7x:2x2x1
jax: 0.10.0
libtpu: 0.0.40
codegen_flags: <defaults>
</compile_context>

<pallas_src>
import functools

import jax
import jax.numpy as jnp
from jax import lax
from jax.experimental import pallas as pl
from jax.experimental.pallas import tpu as pltpu


# -----------------------------------------------------------------------------
# The single fused kernel (one batch element per grid step)
# -----------------------------------------------------------------------------
def _crosslevel_kernel(x_ref, w_in_ref, w_proj_ref, w_out_ref, v256_ref,
                       v128_ref, out_ref, slab_ref, padf_ref, *, h, w, pad_o):
    f32 = jnp.float32
    bf16 = jnp.bfloat16
    hw = h * w

    def fill_slab(src_ref, lead, c):
        # In-kernel im2col: the 9 (masked) row-shifted taps of a 3x3 conv are
        # written side by side along lanes -> (hw, 9*c) slab, so the conv
        # becomes ONE large-K matmul instead of 9 small-K accumulating ones.
        # Vertical zero-padding comes from the zero rows in `src_ref`; the
        # horizontal image borders are handled with two full-shape iota masks
        # (the flattened-pixel layout wraps across image rows otherwise).
        colc = lax.broadcasted_iota(jnp.int32, (hw, c), 0) % w
        mask_l = colc > 0            # tap reads source pixel (h', w'-1)
        mask_r = colc < (w - 1)      # tap reads source pixel (h', w'+1)
        for t in range(9):
            dh, dw = divmod(t, 3)
            start = dh * w + dw + (lead - w - 1)
            tap = src_ref[start:start + hw, :]
            if dw == 0:
                tap = jnp.where(mask_l, tap, 0.0)
            elif dw == 2:
                tap = jnp.where(mask_r, tap, 0.0)
            slab_ref[:, t * c:(t + 1) * c] = tap

    # ---- conv1_1 + conv1_2 fused into one big-K block-diagonal matmul -------
    cin = x_ref.shape[-1]                         # 64 = [lr_face|landmarks|pad]
    fill_slab(x_ref, w + 1, cin)
    cs = jnp.dot(slab_ref[...], w_in_ref[...],
                 preferred_element_type=f32)                      # (hw, 256)
    # folded eval-mode BN (+ conv bias) and ReLU
    cs = jnp.maximum(cs * v256_ref[0:1, :] + v256_ref[1:2, :], 0.0)
    # cs[:, 0:128] == conv1_1(lr_face) ("content")
    # cs[:, 128:256] == conv1_2(landmarks) ("style")

    # ---- SANet: all four 1x1 projections in a single matmul -----------------
    proj = jnp.dot(cs.astype(bf16), w_proj_ref[...],
                   preferred_element_type=f32) + v128_ref[0:1, :]  # (hw, 128)
    F0 = proj[:, 0:32]       # f(content)
    G0 = proj[:, 32:64]      # g(style)
    Vh = proj[:, 64:96]      # h(content)
    Vk = proj[:, 96:128]     # k(style)

    # ---- cross attention: single softmax, no transposed recompute -----------
    # S[i, j] = softmax_j( <F0[i, :], G0[j, :]> )   (softmax math in f32)
    logits = lax.dot_general(F0.astype(bf16), G0.astype(bf16),
                             (((1,), (1,)), ((), ())),
                             preferred_element_type=f32)          # (hw, hw)
    m = jnp.max(logits, axis=-1, keepdims=True)
    e = jnp.exp(logits - m)                                       # one exp pass
    inv = 1.0 / jnp.sum(e, axis=-1, keepdims=True)                # (hw, 1)

    # enhanced_facefeatures = bmm(Vk, S^T) + F0  ==  (S @ Vk) + F0
    face = jnp.dot(e.astype(bf16), Vk.astype(bf16),
                   preferred_element_type=f32) * inv + F0         # (hw, 32)
    # enhanced_landmarks = bmm(Vh, S) + G0  ==  (S^T @ Vh) + G0.
    # Reuse e via one tile-aligned f32 transpose and fold the softmax
    # row-normalizer into Vh (exactly equivalent to the PyTorch path).
    land = jnp.dot(e.T.astype(bf16), (Vh * inv).astype(bf16),
                   preferred_element_type=f32) + G0               # (hw, 32)

    # ---- output 3x3 convs (packed block-diagonally) --------------------------
    cmid = padf_ref.shape[-1]                                     # 64
    zpad = jnp.zeros((pad_o, cmid), bf16)
    padf_ref[0:pad_o, :] = zpad                                   # border rows only
    padf_ref[pad_o + hw:pad_o + hw + pad_o, :] = zpad
    padf_ref[pad_o:pad_o + hw, 0:32] = face.astype(bf16)
    padf_ref[pad_o:pad_o + hw, 32:64] = land.astype(bf16)

    fill_slab(padf_ref, pad_o, cmid)
    y = jnp.dot(slab_ref[...], w_out_ref[...],
                preferred_element_type=f32) + v128_ref[1:2, :]    # (hw, 128)
    # tanh(x) = 2*sigmoid(2x) - 1 with the inner 2x folded into w_out / b_out;
    # lanes 0:3 use gain=2 / off=-1 (tanh), lanes 3:45 gain=1 / off=0 (sigmoid).
    out_ref[...] = (v128_ref[2:3, :] * jax.nn.sigmoid(y)
                    + v128_ref[3:4, :]).astype(out_ref.dtype)


# -----------------------------------------------------------------------------
# Wrapper: layout plumbing + weight packing (plain JAX, constant-folded by XLA)
# -----------------------------------------------------------------------------
def crosslevel_net2(lr_face_nchw, landmarks_nchw, params):
    """Forward pass. Inputs NCHW: lr_face (B,3,H,W), landmarks (B,42,H,W).
    Returns (lr_face_out_1 (B,3,H,W), landmarks_en_out_1 (B,42,H,W))."""
    f32 = jnp.float32
    bf16 = jnp.bfloat16
    x1 = jnp.transpose(lr_face_nchw, (0, 2, 3, 1)).astype(f32)     # (B,H,W,3)
    x2 = jnp.transpose(landmarks_nchw, (0, 2, 3, 1)).astype(f32)   # (B,H,W,42)
    b, h, w, c1 = x1.shape
    c2 = x2.shape[-1]
    hw = h * w
    cin = 64                                  # [x1 | x2 | zero pad] channels
    assert c1 + c2 <= cin
    lead_in = w + 1
    hwp_in = hw + 2 * lead_in
    pad_o = ((w + 1 + 15) // 16) * 16         # sublane-aligned vertical pad
    hwp_o = hw + 2 * pad_o

    # Inputs: concat channels, pad to 64 lanes, flatten pixels, add the vertical
    # zero rows, pre-cast to bf16 (halves the HBM->VMEM DMA per grid step).
    x = jnp.concatenate([x1, x2], axis=-1)
    x = jnp.pad(x, ((0, 0), (0, 0), (0, 0), (0, cin - c1 - c2)))
    x = x.reshape(b, hw, cin)
    x = jnp.pad(x, ((0, 0), (lead_in, lead_in), (0, 0))).astype(bf16)

    # Fused conv1_1 + conv1_2 im2col weight: (9*64, 256), block-diagonal
    # (x1 channels -> cols 0:128 = content, x2 channels -> cols 128:256 = style).
    w_in = jnp.zeros((9, cin, 256), f32)
    w_in = w_in.at[:, 0:c1, 0:128].set(params["c11_w"].reshape(9, c1, 128))
    w_in = w_in.at[:, c1:c1 + c2, 128:256].set(params["c12_w"].reshape(9, c2, 128))
    w_in = w_in.reshape(9 * cin, 256).astype(bf16)

    # Eval-mode BN + conv bias folded: y = acc*scale + (bias*scale + shift).
    scale = jnp.concatenate([params["c11_scale"], params["c12_scale"]])
    shift = jnp.concatenate([
        params["c11_b"] * params["c11_scale"] + params["c11_shift"],
        params["c12_b"] * params["c12_scale"] + params["c12_shift"]])
    v256 = jnp.stack([scale, shift], axis=0)                       # (2, 256) f32

    # SANet 1x1 projections packed block-diagonally so one matmul of
    # [content|style] (hw,256) yields [F0 | G0 | Vh | Vk] (hw,128).
    sa = params["sanet"]
    w_proj = jnp.zeros((256, 128), f32)
    w_proj = w_proj.at[0:128, 0:32].set(sa["wf"])       # F0 = f(content)
    w_proj = w_proj.at[128:256, 32:64].set(sa["wg"])    # G0 = g(style)
    w_proj = w_proj.at[0:128, 64:96].set(sa["wh"])      # Vh = h(content)
    w_proj = w_proj.at[128:256, 96:128].set(sa["wk"])   # Vk = k(style)
    w_proj = w_proj.astype(bf16)
    b_proj = jnp.concatenate([sa["bf"], sa["bg"], sa["bh"], sa["bk"]])

    # Output 3x3 convs packed block-diagonally into one 128-lane slab:
    # face rows -> cols 0:3 (tanh path, with the 2x of tanh(x)=2*sigmoid(2x)-1
    # folded into the weight/bias), land rows -> cols 3:45 (sigmoid path).
    w_out = jnp.zeros((9, 64, 128), f32)
    w_out = w_out.at[:, 0:32, 0:3].set(params["o11_w"].reshape(9, 32, 3) * 2.0)
    w_out = w_out.at[:, 32:64, 3:45].set(params["o12_w"].reshape(9, 32, 42))
    w_out = w_out.reshape(9 * 64, 128).astype(bf16)
    b_out = (jnp.zeros((128,), f32)
             .at[0:3].set(2.0 * params["o11_b"])
             .at[3:45].set(params["o12_b"]))
    gain = jnp.ones((128,), f32).at[0:3].set(2.0)
    off = jnp.zeros((128,), f32).at[0:3].set(-1.0)
    v128 = jnp.stack([b_proj, b_out, gain, off], axis=0)           # (4, 128) f32

    full2 = lambda bb: (0, 0)
    out = pl.pallas_call(
        functools.partial(_crosslevel_kernel, h=h, w=w, pad_o=pad_o),
        out_shape=jax.ShapeDtypeStruct((b, hw, 128), f32),
        grid_spec=pltpu.PrefetchScalarGridSpec(
            num_scalar_prefetch=0,
            grid=(b,),
            in_specs=[
                pl.BlockSpec((None, hwp_in, cin), lambda bb: (bb, 0, 0)),
                pl.BlockSpec((9 * cin, 256), full2),
                pl.BlockSpec((256, 128), full2),
                pl.BlockSpec((9 * 64, 128), full2),
                pl.BlockSpec((2, 256), full2),
                pl.BlockSpec((4, 128), full2),
            ],
            out_specs=pl.BlockSpec((None, hw, 128), lambda bb: (bb, 0, 0)),
            scratch_shapes=[
                pltpu.VMEM((hw, 9 * 64), bf16),    # shared im2col slab (both convs)
                pltpu.VMEM((hwp_o, 64), bf16),     # vertically padded [face|land]
            ],
        ),
        compiler_params=pltpu.CompilerParams(
            dimension_semantics=("parallel",)),
    )(x, w_in, w_proj, w_out, v256, v128)

    out_nhwc = out.reshape(b, h, w, 128)
    lr_face_out = jnp.transpose(out_nhwc[..., 0:3], (0, 3, 1, 2))      # tanh path
    landmarks_out = jnp.transpose(out_nhwc[..., 3:45], (0, 3, 1, 2))   # sigmoid path
    return lr_face_out, landmarks_out


# -----------------------------------------------------------------------------
# Parameters (deterministic synthetic init)
# -----------------------------------------------------------------------------
def init_params(key):
    ks = iter(jax.random.split(key, 16))
    wgt = lambda k, shape: (0.05 * jax.random.normal(k, shape, jnp.float32))
    bia = lambda k, n: (0.01 * jax.random.normal(k, (n,), jnp.float32))

    eps = 1e-5
    # eval-mode BN with default stats (mean=0, var=1, gamma=1, beta=0) folded.
    bn_scale = jnp.full((128,), 1.0 / jnp.sqrt(1.0 + eps), jnp.float32)
    bn_shift = jnp.zeros((128,), jnp.float32)

    params = {
        "c11_w": wgt(next(ks), (3, 3, 3, 128)),   "c11_b": bia(next(ks), 128),
        "c11_scale": bn_scale, "c11_shift": bn_shift,
        "c12_w": wgt(next(ks), (3, 3, 42, 128)),  "c12_b": bia(next(ks), 128),
        "c12_scale": bn_scale, "c12_shift": bn_shift,
        "sanet": {
            "wf": wgt(next(ks), (128, 32)), "bf": bia(next(ks), 32),
            "wg": wgt(next(ks), (128, 32)), "bg": bia(next(ks), 32),
            "wh": wgt(next(ks), (128, 32)), "bh": bia(next(ks), 32),
            "wk": wgt(next(ks), (128, 32)), "bk": bia(next(ks), 32),
            # NOTE: SANet.out_face / SANet.out_land are defined in __init__ but
            # never used in forward(), so they are omitted here.
        },
        "o11_w": wgt(next(ks), (3, 3, 32, 3)),    "o11_b": bia(next(ks), 3),
        "o12_w": wgt(next(ks), (3, 3, 32, 42)),   "o12_b": bia(next(ks), 42),
    }
    return params


if __name__ == "__main__":
    params = init_params(jax.random.PRNGKey(0))

    k1, k2 = jax.random.split(jax.random.PRNGKey(0), 2)
    B, H, W = 2, 16, 16
    lr_face = jax.random.normal(k1, (B, 3, H, W), jnp.float32)
    landmarks = jax.random.normal(k2, (B, 42, H, W), jnp.float32)

    fwd = jax.jit(lambda a, b: crosslevel_net2(a, b, params))
    lr_face_out, landmarks_out = fwd(lr_face, landmarks)
    jax.block_until_ready((lr_face_out, landmarks_out))

    assert lr_face_out.shape == (B, 3, H, W), lr_face_out.shape
    assert landmarks_out.shape == (B, 42, H, W), landmarks_out.shape
    assert bool(jnp.all(jnp.isfinite(lr_face_out)))
    assert bool(jnp.all(jnp.isfinite(landmarks_out)))
    # tanh / sigmoid ranges as a cheap semantic sanity check
    assert bool(jnp.all(jnp.abs(lr_face_out) <= 1.0))
    assert bool(jnp.all((landmarks_out >= 0.0) & (landmarks_out <= 1.0)))
    print("KERNEL_OK")
</pallas_src>

<mosaic_0001>
module attributes {stable_mosaic.version = 11 : i64} {
  func.func @_crosslevel_kernel(%arg0: i32, %arg1: memref<1x290x64xbf16, #tpu.memory_space<vmem>>, %arg2: memref<576x256xbf16, #tpu.memory_space<vmem>>, %arg3: memref<256x128xbf16, #tpu.memory_space<vmem>>, %arg4: memref<576x128xbf16, #tpu.memory_space<vmem>>, %arg5: memref<2x256xf32, #tpu.memory_space<vmem>>, %arg6: memref<4x128xf32, #tpu.memory_space<vmem>>, %arg7: memref<1x256x128xf32, #tpu.memory_space<vmem>>, %arg8: memref<256x576xbf16, #tpu.memory_space<vmem>>, %arg9: memref<320x64xbf16, #tpu.memory_space<vmem>>) attributes {dimension_semantics = [#tpu.dimension_semantics<parallel>], iteration_bounds = array<i64: 2>, scalar_prefetch = 0 : i64, scratch_operands = 2 : i64, tpu.core_type = #tpu.core_type<tc>, window_params = [{transform_indices = @transform_0, window_bounds = array<i64: 1, 290, 64>}, {pipeline_mode = #tpu.pipeline_mode<synchronous>, transform_indices = @transform_1, window_bounds = array<i64: 576, 256>}, {pipeline_mode = #tpu.pipeline_mode<synchronous>, transform_indices = @transform_2, window_bounds = array<i64: 256, 128>}, {pipeline_mode = #tpu.pipeline_mode<synchronous>, transform_indices = @transform_3, window_bounds = array<i64: 576, 128>}, {pipeline_mode = #tpu.pipeline_mode<synchronous>, transform_indices = @transform_4, window_bounds = array<i64: 2, 256>}, {pipeline_mode = #tpu.pipeline_mode<synchronous>, transform_indices = @transform_5, window_bounds = array<i64: 4, 128>}, {transform_indices = @transform_6, window_bounds = array<i64: 1, 256, 128>}]} {
    %0 = tpu.iota {dimensions = array<i32: 0>} : vector<256x64xi32>
    %c16_i32 = arith.constant 16 : i32
    %c0_i32 = arith.constant 0 : i32
    %1 = arith.cmpi eq, %c16_i32, %c0_i32 : i32
    %c1_i32 = arith.constant 1 : i32
    %2 = arith.select %1, %c1_i32, %c16_i32 : i32
    %3 = vector.broadcast %2 : i32 to vector<256x64xi32>
    %4 = arith.remsi %0, %3 : vector<256x64xi32>
    %c0_i32_0 = arith.constant 0 : i32
    %5 = vector.broadcast %c0_i32_0 : i32 to vector<256x64xi32>
    %6 = arith.cmpi ne, %4, %5 : vector<256x64xi32>
    %c0_i32_1 = arith.constant 0 : i32
    %7 = vector.broadcast %c0_i32_1 : i32 to vector<256x64xi32>
    %8 = arith.cmpi slt, %4, %7 : vector<256x64xi32>
    %c0_i32_2 = arith.constant 0 : i32
    %9 = arith.cmpi slt, %2, %c0_i32_2 : i32
    %10 = vector.broadcast %9 : i1 to vector<256x64xi1>
    %11 = vector.broadcast %10 : vector<256x64xi1> to vector<256x64xi1>
    %12 = arith.xori %8, %11 : vector<256x64xi1>
    %13 = arith.andi %12, %6 : vector<256x64xi1>
    %14 = vector.broadcast %2 : i32 to vector<256x64xi32>
    %15 = arith.addi %4, %14 : vector<256x64xi32>
    %16 = arith.select %13, %15, %4 : vector<256x64xi1>, vector<256x64xi32>
    %c0_i32_3 = arith.constant 0 : i32
    %17 = vector.broadcast %c0_i32_3 : i32 to vector<256x64xi32>
    %18 = arith.cmpi sgt, %16, %17 : vector<256x64xi32>
    %c15_i32 = arith.constant 15 : i32
    %19 = vector.broadcast %c15_i32 : i32 to vector<256x64xi32>
    %20 = arith.cmpi slt, %16, %19 : vector<256x64xi32>
    %c0 = arith.constant 0 : index
    %c0_4 = arith.constant 0 : index
    %c0_5 = arith.constant 0 : index
    %21 = vector.load %arg1[%c0, %c0_4, %c0_5] : memref<1x290x64xbf16, #tpu.memory_space<vmem>>, vector<1x256x64xbf16>
    %22 = vector.shape_cast %21 : vector<1x256x64xbf16> to vector<256x64xbf16>
    %cst = arith.constant 0.000000e+00 : f32
    %23 = arith.truncf %cst : f32 to bf16
    %24 = vector.broadcast %23 : bf16 to vector<256x64xbf16>
    %25 = arith.select %18, %22, %24 : vector<256x64xi1>, vector<256x64xbf16>
    %c0_6 = arith.constant 0 : index
    %c0_7 = arith.constant 0 : index
    %26 = vector.load %arg8[%c0_6, %c0_7] : memref<256x576xbf16, #tpu.memory_space<vmem>>, vector<256x64xbf16>
    tpu.vector_store %arg8[%c0_6, %c0_7], %25 {strides = array<i32>} : memref<256x576xbf16, #tpu.memory_space<vmem>>, vector<256x64xbf16>,
    %c0_8 = arith.constant 0 : index
    %c1 = arith.constant 1 : index
    %c0_9 = arith.constant 0 : index
    %27 = vector.load %arg1[%c0_8, %c1, %c0_9] : memref<1x290x64xbf16, #tpu.memory_space<vmem>>, vector<1x256x64xbf16>
    %28 = vector.shape_cast %27 : vector<1x256x64xbf16> to vector<256x64xbf16>
    %c0_10 = arith.constant 0 : index
    %c64 = arith.constant 64 : index
    %29 = vector.load %arg8[%c0_10, %c64] : memref<256x576xbf16, #tpu.memory_space<vmem>>, vector<256x64xbf16>
    tpu.vector_store %arg8[%c0_10, %c64], %28 {strides = array<i32>} : memref<256x576xbf16, #tpu.memory_space<vmem>>, vector<256x64xbf16>,
    %c0_11 = arith.constant 0 : index
    %c2 = arith.constant 2 : index
    %c0_12 = arith.constant 0 : index
    %30 = vector.load %arg1[%c0_11, %c2, %c0_12] : memref<1x290x64xbf16, #tpu.memory_space<vmem>>, vector<1x256x64xbf16>
    %31 = vector.shape_cast %30 : vector<1x256x64xbf16> to vector<256x64xbf16>
    %cst_13 = arith.constant 0.000000e+00 : f32
    %32 = arith.truncf %cst_13 : f32 to bf16
    %33 = vector.broadcast %32 : bf16 to vector<256x64xbf16>
    %34 = arith.select %20, %31, %33 : vector<256x64xi1>, vector<256x64xbf16>
    %c0_14 = arith.constant 0 : index
    %c128 = arith.constant 128 : index
    %35 = vector.load %arg8[%c0_14, %c128] : memref<256x576xbf16, #tpu.memory_space<vmem>>, vector<256x64xbf16>
    tpu.vector_store %arg8[%c0_14, %c128], %34 {strides = array<i32>} : memref<256x576xbf16, #tpu.memory_space<vmem>>, vector<256x64xbf16>,
    %c0_15 = arith.constant 0 : index
    %c16 = arith.constant 16 : index
    %c0_16 = arith.constant 0 : index
    %36 = vector.load %arg1[%c0_15, %c16, %c0_16] : memref<1x290x64xbf16, #tpu.memory_space<vmem>>, vector<1x256x64xbf16>
    %37 = vector.shape_cast %36 : vector<1x256x64xbf16> to vector<256x64xbf16>
    %cst_17 = arith.constant 0.000000e+00 : f32
    %38 = arith.truncf %cst_17 : f32 to bf16
    %39 = vector.broadcast %38 : bf16 to vector<256x64xbf16>
    %40 = arith.select %18, %37, %39 : vector<256x64xi1>, vector<256x64xbf16>
    %c0_18 = arith.constant 0 : index
    %c192 = arith.constant 192 : index
    %41 = vector.load %arg8[%c0_18, %c192] : memref<256x576xbf16, #tpu.memory_space<vmem>>, vector<256x64xbf16>
    tpu.vector_store %arg8[%c0_18, %c192], %40 {strides = array<i32>} : memref<256x576xbf16, #tpu.memory_space<vmem>>, vector<256x64xbf16>,
    %c0_19 = arith.constant 0 : index
    %c17 = arith.constant 17 : index
    %c0_20 = arith.constant 0 : index
    %42 = vector.load %arg1[%c0_19, %c17, %c0_20] : memref<1x290x64xbf16, #tpu.memory_space<vmem>>, vector<1x256x64xbf16>
    %43 = vector.shape_cast %42 : vector<1x256x64xbf16> to vector<256x64xbf16>
    %c0_21 = arith.constant 0 : index
    %c256 = arith.constant 256 : index
    %44 = vector.load %arg8[%c0_21, %c256] : memref<256x576xbf16, #tpu.memory_space<vmem>>, vector<256x64xbf16>
    tpu.vector_store %arg8[%c0_21, %c256], %43 {strides = array<i32>} : memref<256x576xbf16, #tpu.memory_space<vmem>>, vector<256x64xbf16>,
    %c0_22 = arith.constant 0 : index
    %c18 = arith.constant 18 : index
    %c0_23 = arith.constant 0 : index
    %45 = vector.load %arg1[%c0_22, %c18, %c0_23] : memref<1x290x64xbf16, #tpu.memory_space<vmem>>, vector<1x256x64xbf16>
    %46 = vector.shape_cast %45 : vector<1x256x64xbf16> to vector<256x64xbf16>
    %cst_24 = arith.constant 0.000000e+00 : f32
    %47 = arith.truncf %cst_24 : f32 to bf16
    %48 = vector.broadcast %47 : bf16 to vector<256x64xbf16>
    %49 = arith.select %20, %46, %48 : vector<256x64xi1>, vector<256x64xbf16>
    %c0_25 = arith.constant 0 : index
    %c320 = arith.constant 320 : index
    %50 = vector.load %arg8[%c0_25, %c320] : memref<256x576xbf16, #tpu.memory_space<vmem>>, vector<256x64xbf16>
    tpu.vector_store %arg8[%c0_25, %c320], %49 {strides = array<i32>} : memref<256x576xbf16, #tpu.memory_space<vmem>>, vector<256x64xbf16>,
    %c0_26 = arith.constant 0 : index
    %c32 = arith.constant 32 : index
    %c0_27 = arith.constant 0 : index
    %51 = vector.load %arg1[%c0_26, %c32, %c0_27] : memref<1x290x64xbf16, #tpu.memory_space<vmem>>, vector<1x256x64xbf16>
    %52 = vector.shape_cast %51 : vector<1x256x64xbf16> to vector<256x64xbf16>
    %cst_28 = arith.constant 0.000000e+00 : f32
    %53 = arith.truncf %cst_28 : f32 to bf16
    %54 = vector.broadcast %53 : bf16 to vector<256x64xbf16>
    %55 = arith.select %18, %52, %54 : vector<256x64xi1>, vector<256x64xbf16>
    %c0_29 = arith.constant 0 : index
    %c384 = arith.constant 384 : index
    %56 = vector.load %arg8[%c0_29, %c384] : memref<256x576xbf16, #tpu.memory_space<vmem>>, vector<256x64xbf16>
    tpu.vector_store %arg8[%c0_29, %c384], %55 {strides = array<i32>} : memref<256x576xbf16, #tpu.memory_space<vmem>>, vector<256x64xbf16>,
    %c0_30 = arith.constant 0 : index
    %c33 = arith.constant 33 : index
    %c0_31 = arith.constant 0 : index
    %57 = vector.load %arg1[%c0_30, %c33, %c0_31] : memref<1x290x64xbf16, #tpu.memory_space<vmem>>, vector<1x256x64xbf16>
    %58 = vector.shape_cast %57 : vector<1x256x64xbf16> to vector<256x64xbf16>
    %c0_32 = arith.constant 0 : index
    %c448 = arith.constant 448 : index
    %59 = vector.load %arg8[%c0_32, %c448] : memref<256x576xbf16, #tpu.memory_space<vmem>>, vector<256x64xbf16>
    tpu.vector_store %arg8[%c0_32, %c448], %58 {strides = array<i32>} : memref<256x576xbf16, #tpu.memory_space<vmem>>, vector<256x64xbf16>,
    %c0_33 = arith.constant 0 : index
    %c34 = arith.constant 34 : index
    %c0_34 = arith.constant 0 : index
    %60 = vector.load %arg1[%c0_33, %c34, %c0_34] : memref<1x290x64xbf16, #tpu.memory_space<vmem>>, vector<1x256x64xbf16>
    %61 = vector.shape_cast %60 : vector<1x256x64xbf16> to vector<256x64xbf16>
    %cst_35 = arith.constant 0.000000e+00 : f32
    %62 = arith.truncf %cst_35 : f32 to bf16
    %63 = vector.broadcast %62 : bf16 to vector<256x64xbf16>
    %64 = arith.select %20, %61, %63 : vector<256x64xi1>, vector<256x64xbf16>
    %c0_36 = arith.constant 0 : index
    %c512 = arith.constant 512 : index
    %65 = vector.load %arg8[%c0_36, %c512] : memref<256x576xbf16, #tpu.memory_space<vmem>>, vector<256x64xbf16>
    tpu.vector_store %arg8[%c0_36, %c512], %64 {strides = array<i32>} : memref<256x576xbf16, #tpu.memory_space<vmem>>, vector<256x64xbf16>,
    %c0_37 = arith.constant 0 : index
    %c0_38 = arith.constant 0 : index
    %66 = vector.load %arg8[%c0_37, %c0_38] : memref<256x576xbf16, #tpu.memory_space<vmem>>, vector<256x576xbf16>
    %c0_39 = arith.constant 0 : index
    %c0_40 = arith.constant 0 : index
    %67 = vector.load %arg2[%c0_39, %c0_40] : memref<576x256xbf16, #tpu.memory_space<vmem>>, vector<576x256xbf16>
    %cst_41 = arith.constant dense<0.000000e+00> : vector<256x256xf32>
    %68 = tpu.matmul %66, %67, %cst_41 {dimension_numbers = #tpu.dot_dimension_numbers<[1], [0], [0], [1], [0, 0, 1, 1], [], []>} : vector<256x576xbf16>, vector<576x256xbf16>, vector<256x256xf32> -> vector<256x256xf32>
    %c0_42 = arith.constant 0 : index
    %c0_43 = arith.constant 0 : index
    %69 = vector.load %arg5[%c0_42, %c0_43] : memref<2x256xf32, #tpu.memory_space<vmem>>, vector<1x256xf32>
    %70 = vector.broadcast %69 : vector<1x256xf32> to vector<256x256xf32>
    %71 = arith.mulf %68, %70 : vector<256x256xf32>
    %c1_44 = arith.constant 1 : index
    %c0_45 = arith.constant 0 : index
    %72 = vector.load %arg5[%c1_44, %c0_45] : memref<2x256xf32, #tpu.memory_space<vmem>>, vector<1x256xf32>
    %73 = vector.broadcast %72 : vector<1x256xf32> to vector<256x256xf32>
    %74 = arith.addf %71, %73 : vector<256x256xf32>
    %cst_46 = arith.constant 0.000000e+00 : f32
    %75 = vector.broadcast %cst_46 : f32 to vector<256x256xf32>
    %76 = arith.maximumf %74, %75 : vector<256x256xf32>
    %77 = arith.truncf %76 : vector<256x256xf32> to vector<256x256xbf16>
    %c0_47 = arith.constant 0 : index
    %c0_48 = arith.constant 0 : index
    %78 = vector.load %arg3[%c0_47, %c0_48] : memref<256x128xbf16, #tpu.memory_space<vmem>>, vector<256x128xbf16>
    %cst_49 = arith.constant dense<0.000000e+00> : vector<256x128xf32>
    %79 = tpu.matmul %77, %78, %cst_49 {dimension_numbers = #tpu.dot_dimension_numbers<[1], [0], [0], [1], [0, 0, 1, 1], [], []>} : vector<256x256xbf16>, vector<256x128xbf16>, vector<256x128xf32> -> vector<256x128xf32>
    %c0_50 = arith.constant 0 : index
    %c0_51 = arith.constant 0 : index
    %80 = vector.load %arg6[%c0_50, %c0_51] : memref<4x128xf32, #tpu.memory_space<vmem>>, vector<1x128xf32>
    %81 = vector.broadcast %80 : vector<1x128xf32> to vector<256x128xf32>
    %82 = arith.addf %79, %81 : vector<256x128xf32>
    %83 = vector.extract_strided_slice %82 {offsets = [0, 0], sizes = [256, 32], strides = [1, 1]} : vector<256x128xf32> to vector<256x32xf32>
    %84 = vector.extract_strided_slice %82 {offsets = [0, 32], sizes = [256, 32], strides = [1, 1]} : vector<256x128xf32> to vector<256x32xf32>
    %85 = vector.extract_strided_slice %82 {offsets = [0, 64], sizes = [256, 32], strides = [1, 1]} : vector<256x128xf32> to vector<256x32xf32>
    %86 = vector.extract_strided_slice %82 {offsets = [0, 96], sizes = [256, 32], strides = [1, 1]} : vector<256x128xf32> to vector<256x32xf32>
    %87 = arith.truncf %83 : vector<256x32xf32> to vector<256x32xbf16>
    %88 = arith.truncf %84 : vector<256x32xf32> to vector<256x32xbf16>
    %cst_52 = arith.constant dense<0.000000e+00> : vector<256x256xf32>
    %89 = tpu.matmul %87, %88, %cst_52 {dimension_numbers = #tpu.dot_dimension_numbers<[1], [1], [0], [0], [0, 0, 1, 0], [], []>} : vector<256x32xbf16>, vector<256x32xbf16>, vector<256x256xf32> -> vector<256x256xf32>
    %cst_53 = arith.constant dense<0xFF800000> : vector<256xf32>
    %90 = vector.multi_reduction <maximumf>, %89, %cst_53 [1] : vector<256x256xf32> to vector<256xf32>
    %91 = vector.shape_cast %90 : vector<256xf32> to vector<256x1xf32>
    %92 = vector.broadcast %91 : vector<256x1xf32> to vector<256x256xf32>
    %93 = arith.subf %89, %92 : vector<256x256xf32>
    %94 = math.exp %93 : vector<256x256xf32>
    %cst_54 = arith.constant dense<0.000000e+00> : vector<256xf32>
    %95 = vector.multi_reduction <add>, %94, %cst_54 [1] : vector<256x256xf32> to vector<256xf32>
    %96 = vector.shape_cast %95 : vector<256xf32> to vector<256x1xf32>
    %cst_55 = arith.constant 1.000000e+00 : f32
    %97 = vector.broadcast %cst_55 : f32 to vector<256x1xf32>
    %98 = arith.divf %97, %96 : vector<256x1xf32>
    %99 = arith.truncf %94 : vector<256x256xf32> to vector<256x256xbf16>
    %100 = arith.truncf %86 : vector<256x32xf32> to vector<256x32xbf16>
    %cst_56 = arith.constant dense<0.000000e+00> : vector<256x32xf32>
    %101 = tpu.matmul %99, %100, %cst_56 {dimension_numbers = #tpu.dot_dimension_numbers<[1], [0], [0], [1], [0, 0, 1, 1], [], []>} : vector<256x256xbf16>, vector<256x32xbf16>, vector<256x32xf32> -> vector<256x32xf32>
    %102 = vector.broadcast %98 : vector<256x1xf32> to vector<256x32xf32>
    %103 = arith.mulf %101, %102 : vector<256x32xf32>
    %104 = arith.addf %103, %83 : vector<256x32xf32>
    %105 = tpu.transpose %94, [1, 0] : vector<256x256xf32> -> vector<256x256xf32>
    %106 = arith.truncf %105 : vector<256x256xf32> to vector<256x256xbf16>
    %107 = vector.broadcast %98 : vector<256x1xf32> to vector<256x32xf32>
    %108 = arith.mulf %85, %107 : vector<256x32xf32>
    %109 = arith.truncf %108 : vector<256x32xf32> to vector<256x32xbf16>
    %cst_57 = arith.constant dense<0.000000e+00> : vector<256x32xf32>
    %110 = tpu.matmul %106, %109, %cst_57 {dimension_numbers = #tpu.dot_dimension_numbers<[1], [0], [0], [1], [0, 0, 1, 1], [], []>} : vector<256x256xbf16>, vector<256x32xbf16>, vector<256x32xf32> -> vector<256x32xf32>
    %111 = arith.addf %110, %84 : vector<256x32xf32>
    %cst_58 = arith.constant 0.000000e+00 : bf16
    %112 = vector.broadcast %cst_58 : bf16 to vector<32x64xbf16>
    %c0_59 = arith.constant 0 : index
    %c0_60 = arith.constant 0 : index
    %113 = vector.load %arg9[%c0_59, %c0_60] : memref<320x64xbf16, #tpu.memory_space<vmem>>, vector<32x64xbf16>
    tpu.vector_store %arg9[%c0_59, %c0_60], %112 {strides = array<i32>} : memref<320x64xbf16, #tpu.memory_space<vmem>>, vector<32x64xbf16>,
    %c288 = arith.constant 288 : index
    %c0_61 = arith.constant 0 : index
    %114 = vector.load %arg9[%c288, %c0_61] : memref<320x64xbf16, #tpu.memory_space<vmem>>, vector<32x64xbf16>
    tpu.vector_store %arg9[%c288, %c0_61], %112 {strides = array<i32>} : memref<320x64xbf16, #tpu.memory_space<vmem>>, vector<32x64xbf16>,
    %115 = arith.truncf %104 : vector<256x32xf32> to vector<256x32xbf16>
    %c32_62 = arith.constant 32 : index
    %c0_63 = arith.constant 0 : index
    %116 = vector.load %arg9[%c32_62, %c0_63] : memref<320x64xbf16, #tpu.memory_space<vmem>>, vector<256x32xbf16>
    tpu.vector_store %arg9[%c32_62, %c0_63], %115 {strides = array<i32>} : memref<320x64xbf16, #tpu.memory_space<vmem>>, vector<256x32xbf16>,
    %117 = arith.truncf %111 : vector<256x32xf32> to vector<256x32xbf16>
    %c32_64 = arith.constant 32 : index
    %c32_65 = arith.constant 32 : index
    %118 = vector.load %arg9[%c32_64, %c32_65] : memref<320x64xbf16, #tpu.memory_space<vmem>>, vector<256x32xbf16>
    tpu.vector_store %arg9[%c32_64, %c32_65], %117 {strides = array<i32>} : memref<320x64xbf16, #tpu.memory_space<vmem>>, vector<256x32xbf16>,
    %119 = tpu.iota {dimensions = array<i32: 0>} : vector<256x64xi32>
    %c16_i32_66 = arith.constant 16 : i32
    %c0_i32_67 = arith.constant 0 : i32
    %120 = arith.cmpi eq, %c16_i32_66, %c0_i32_67 : i32
    %c1_i32_68 = arith.constant 1 : i32
    %121 = arith.select %120, %c1_i32_68, %c16_i32_66 : i32
    %122 = vector.broadcast %121 : i32 to vector<256x64xi32>
    %123 = arith.remsi %119, %122 : vector<256x64xi32>
    %c0_i32_69 = arith.constant 0 : i32
    %124 = vector.broadcast %c0_i32_69 : i32 to vector<256x64xi32>
    %125 = arith.cmpi ne, %123, %124 : vector<256x64xi32>
    %c0_i32_70 = arith.constant 0 : i32
    %126 = vector.broadcast %c0_i32_70 : i32 to vector<256x64xi32>
    %127 = arith.cmpi slt, %123, %126 : vector<256x64xi32>
    %c0_i32_71 = arith.constant 0 : i32
    %128 = arith.cmpi slt, %121, %c0_i32_71 : i32
    %129 = vector.broadcast %128 : i1 to vector<256x64xi1>
    %130 = vector.broadcast %129 : vector<256x64xi1> to vector<256x64xi1>
    %131 = arith.xori %127, %130 : vector<256x64xi1>
    %132 = arith.andi %131, %125 : vector<256x64xi1>
    %133 = vector.broadcast %121 : i32 to vector<256x64xi32>
    %134 = arith.addi %123, %133 : vector<256x64xi32>
    %135 = arith.select %132, %134, %123 : vector<256x64xi1>, vector<256x64xi32>
    %c0_i32_72 = arith.constant 0 : i32
    %136 = vector.broadcast %c0_i32_72 : i32 to vector<256x64xi32>
    %137 = arith.cmpi sgt, %135, %136 : vector<256x64xi32>
    %c15_i32_73 = arith.constant 15 : i32
    %138 = vector.broadcast %c15_i32_73 : i32 to vector<256x64xi32>
    %139 = arith.cmpi slt, %135, %138 : vector<256x64xi32>
    %c15 = arith.constant 15 : index
    %c0_74 = arith.constant 0 : index
    %140 = vector.load %arg9[%c15, %c0_74] : memref<320x64xbf16, #tpu.memory_space<vmem>>, vector<256x64xbf16>
    %cst_75 = arith.constant 0.000000e+00 : f32
    %141 = arith.truncf %cst_75 : f32 to bf16
    %142 = vector.broadcast %141 : bf16 to vector<256x64xbf16>
    %143 = arith.select %137, %140, %142 : vector<256x64xi1>, vector<256x64xbf16>
    %c0_76 = arith.constant 0 : index
    %c0_77 = arith.constant 0 : index
    %144 = vector.load %arg8[%c0_76, %c0_77] : memref<256x576xbf16, #tpu.memory_space<vmem>>, vector<256x64xbf16>
    tpu.vector_store %arg8[%c0_76, %c0_77], %143 {strides = array<i32>} : memref<256x576xbf16, #tpu.memory_space<vmem>>, vector<256x64xbf16>,
    %c16_78 = arith.constant 16 : index
    %c0_79 = arith.constant 0 : index
    %145 = vector.load %arg9[%c16_78, %c0_79] : memref<320x64xbf16, #tpu.memory_space<vmem>>, vector<256x64xbf16>
    %c0_80 = arith.constant 0 : index
    %c64_81 = arith.constant 64 : index
    %146 = vector.load %arg8[%c0_80, %c64_81] : memref<256x576xbf16, #tpu.memory_space<vmem>>, vector<256x64xbf16>
    tpu.vector_store %arg8[%c0_80, %c64_81], %145 {strides = array<i32>} : memref<256x576xbf16, #tpu.memory_space<vmem>>, vector<256x64xbf16>,
    %c17_82 = arith.constant 17 : index
    %c0_83 = arith.constant 0 : index
    %147 = vector.load %arg9[%c17_82, %c0_83] : memref<320x64xbf16, #tpu.memory_space<vmem>>, vector<256x64xbf16>
    %cst_84 = arith.constant 0.000000e+00 : f32
    %148 = arith.truncf %cst_84 : f32 to bf16
    %149 = vector.broadcast %148 : bf16 to vector<256x64xbf16>
    %150 = arith.select %139, %147, %149 : vector<256x64xi1>, vector<256x64xbf16>
    %c0_85 = arith.constant 0 : index
    %c128_86 = arith.constant 128 : index
    %151 = vector.load %arg8[%c0_85, %c128_86] : memref<256x576xbf16, #tpu.memory_space<vmem>>, vector<256x64xbf16>
    tpu.vector_store %arg8[%c0_85, %c128_86], %150 {strides = array<i32>} : memref<256x576xbf16, #tpu.memory_space<vmem>>, vector<256x64xbf16>,
    %c31 = arith.constant 31 : index
    %c0_87 = arith.constant 0 : index
    %152 = vector.load %arg9[%c31, %c0_87] : memref<320x64xbf16, #tpu.memory_space<vmem>>, vector<256x64xbf16>
    %cst_88 = arith.constant 0.000000e+00 : f32
    %153 = arith.truncf %cst_88 : f32 to bf16
    %154 = vector.broadcast %153 : bf16 to vector<256x64xbf16>
    %155 = arith.select %137, %152, %154 : vector<256x64xi1>, vector<256x64xbf16>
    %c0_89 = arith.constant 0 : index
    %c192_90 = arith.constant 192 : index
    %156 = vector.load %arg8[%c0_89, %c192_90] : memref<256x576xbf16, #tpu.memory_space<vmem>>, vector<256x64xbf16>
    tpu.vector_store %arg8[%c0_89, %c192_90], %155 {strides = array<i32>} : memref<256x576xbf16, #tpu.memory_space<vmem>>, vector<256x64xbf16>,
    %c32_91 = arith.constant 32 : index
    %c0_92 = arith.constant 0 : index
    %157 = vector.load %arg9[%c32_91, %c0_92] : memref<320x64xbf16, #tpu.memory_space<vmem>>, vector<256x64xbf16>
    %c0_93 = arith.constant 0 : index
    %c256_94 = arith.constant 256 : index
    %158 = vector.load %arg8[%c0_93, %c256_94] : memref<256x576xbf16, #tpu.memory_space<vmem>>, vector<256x64xbf16>
    tpu.vector_store %arg8[%c0_93, %c256_94], %157 {strides = array<i32>} : memref<256x576xbf16, #tpu.memory_space<vmem>>, vector<256x64xbf16>,
    %c33_95 = arith.constant 33 : index
    %c0_96 = arith.constant 0 : index
    %159 = vector.load %arg9[%c33_95, %c0_96] : memref<320x64xbf16, #tpu.memory_space<vmem>>, vector<256x64xbf16>
    %cst_97 = arith.constant 0.000000e+00 : f32
    %160 = arith.truncf %cst_97 : f32 to bf16
    %161 = vector.broadcast %160 : bf16 to vector<256x64xbf16>
    %162 = arith.select %139, %159, %161 : vector<256x64xi1>, vector<256x64xbf16>
    %c0_98 = arith.constant 0 : index
    %c320_99 = arith.constant 320 : index
    %163 = vector.load %arg8[%c0_98, %c320_99] : memref<256x576xbf16, #tpu.memory_space<vmem>>, vector<256x64xbf16>
    tpu.vector_store %arg8[%c0_98, %c320_99], %162 {strides = array<i32>} : memref<256x576xbf16, #tpu.memory_space<vmem>>, vector<256x64xbf16>,
    %c47 = arith.constant 47 : index
    %c0_100 = arith.constant 0 : index
    %164 = vector.load %arg9[%c47, %c0_100] : memref<320x64xbf16, #tpu.memory_space<vmem>>, vector<256x64xbf16>
    %cst_101 = arith.constant 0.000000e+00 : f32
    %165 = arith.truncf %cst_101 : f32 to bf16
    %166 = vector.broadcast %165 : bf16 to vector<256x64xbf16>
    %167 = arith.select %137, %164, %166 : vector<256x64xi1>, vector<256x64xbf16>
    %c0_102 = arith.constant 0 : index
    %c384_103 = arith.constant 384 : index
    %168 = vector.load %arg8[%c0_102, %c384_103] : memref<256x576xbf16, #tpu.memory_space<vmem>>, vector<256x64xbf16>
    tpu.vector_store %arg8[%c0_102, %c384_103], %167 {strides = array<i32>} : memref<256x576xbf16, #tpu.memory_space<vmem>>, vector<256x64xbf16>,
    %c48 = arith.constant 48 : index
    %c0_104 = arith.constant 0 : index
    %169 = vector.load %arg9[%c48, %c0_104] : memref<320x64xbf16, #tpu.memory_space<vmem>>, vector<256x64xbf16>
    %c0_105 = arith.constant 0 : index
    %c448_106 = arith.constant 448 : index
    %170 = vector.load %arg8[%c0_105, %c448_106] : memref<256x576xbf16, #tpu.memory_space<vmem>>, vector<256x64xbf16>
    tpu.vector_store %arg8[%c0_105, %c448_106], %169 {strides = array<i32>} : memref<256x576xbf16, #tpu.memory_space<vmem>>, vector<256x64xbf16>,
    %c49 = arith.constant 49 : index
    %c0_107 = arith.constant 0 : index
    %171 = vector.load %arg9[%c49, %c0_107] : memref<320x64xbf16, #tpu.memory_space<vmem>>, vector<256x64xbf16>
    %cst_108 = arith.constant 0.000000e+00 : f32
    %172 = arith.truncf %cst_108 : f32 to bf16
    %173 = vector.broadcast %172 : bf16 to vector<256x64xbf16>
    %174 = arith.select %139, %171, %173 : vector<256x64xi1>, vector<256x64xbf16>
    %c0_109 = arith.constant 0 : index
    %c512_110 = arith.constant 512 : index
    %175 = vector.load %arg8[%c0_109, %c512_110] : memref<256x576xbf16, #tpu.memory_space<vmem>>, vector<256x64xbf16>
    tpu.vector_store %arg8[%c0_109, %c512_110], %174 {strides = array<i32>} : memref<256x576xbf16, #tpu.memory_space<vmem>>, vector<256x64xbf16>,
    %c0_111 = arith.constant 0 : index
    %c0_112 = arith.constant 0 : index
    %176 = vector.load %arg8[%c0_111, %c0_112] : memref<256x576xbf16, #tpu.memory_space<vmem>>, vector<256x576xbf16>
    %c0_113 = arith.constant 0 : index
    %c0_114 = arith.constant 0 : index
    %177 = vector.load %arg4[%c0_113, %c0_114] : memref<576x128xbf16, #tpu.memory_space<vmem>>, vector<576x128xbf16>
    %cst_115 = arith.constant dense<0.000000e+00> : vector<256x128xf32>
    %178 = tpu.matmul %176, %177, %cst_115 {dimension_numbers = #tpu.dot_dimension_numbers<[1], [0], [0], [1], [0, 0, 1, 1], [], []>} : vector<256x576xbf16>, vector<576x128xbf16>, vector<256x128xf32> -> vector<256x128xf32>
    %c1_116 = arith.constant 1 : index
    %c0_117 = arith.constant 0 : index
    %179 = vector.load %arg6[%c1_116, %c0_117] : memref<4x128xf32, #tpu.memory_space<vmem>>, vector<1x128xf32>
    %180 = vector.broadcast %179 : vector<1x128xf32> to vector<256x128xf32>
    %181 = arith.addf %178, %180 : vector<256x128xf32>
    %c2_118 = arith.constant 2 : index
    %c0_119 = arith.constant 0 : index
    %182 = vector.load %arg6[%c2_118, %c0_119] : memref<4x128xf32, #tpu.memory_space<vmem>>, vector<1x128xf32>
    %183 = arith.negf %181 : vector<256x128xf32>
    %184 = math.exp %183 : vector<256x128xf32>
    %cst_120 = arith.constant 1.000000e+00 : f32
    %185 = vector.broadcast %cst_120 : f32 to vector<256x128xf32>
    %186 = arith.addf %185, %184 : vector<256x128xf32>
    %187 = arith.divf %185, %186 : vector<256x128xf32>
    %188 = vector.broadcast %182 : vector<1x128xf32> to vector<256x128xf32>
    %189 = arith.mulf %188, %187 : vector<256x128xf32>
    %c3 = arith.constant 3 : index
    %c0_121 = arith.constant 0 : index
    %190 = vector.load %arg6[%c3, %c0_121] : memref<4x128xf32, #tpu.memory_space<vmem>>, vector<1x128xf32>
    %191 = vector.broadcast %190 : vector<1x128xf32> to vector<256x128xf32>
    %192 = arith.addf %189, %191 : vector<256x128xf32>
    %c0_122 = arith.constant 0 : index
    %c0_123 = arith.constant 0 : index
    %c0_124 = arith.constant 0 : index
    %193 = vector.load %arg7[%c0_122, %c0_123, %c0_124] : memref<1x256x128xf32, #tpu.memory_space<vmem>>, vector<1x256x128xf32>
    %194 = vector.shape_cast %193 : vector<1x256x128xf32> to vector<256x128xf32>
    %195 = vector.shape_cast %192 : vector<256x128xf32> to vector<1x256x128xf32>
    tpu.vector_store %arg7[%c0_122, %c0_123, %c0_124], %195 {strides = array<i32>} : memref<1x256x128xf32, #tpu.memory_space<vmem>>, vector<1x256x128xf32>,
    return
  }
  func.func @transform_0(%arg0: i32) -> (i32, i32, i32) {
    %c0_i32 = arith.constant 0 : i32
    %c0_i32_0 = arith.constant 0 : i32
    %c0_i32_1 = arith.constant 0 : i32
    return %arg0, %c0_i32, %c0_i32_0 : i32, i32, i32
  }
  func.func @transform_1(%arg0: i32) -> (i32, i32) {
    %c0_i32 = arith.constant 0 : i32
    %c0_i32_0 = arith.constant 0 : i32
    %c0_i32_1 = arith.constant 0 : i32
    return %c0_i32, %c0_i32_0 : i32, i32
  }
  func.func @transform_2(%arg0: i32) -> (i32, i32) {
    %c0_i32 = arith.constant 0 : i32
    %c0_i32_0 = arith.constant 0 : i32
    %c0_i32_1 = arith.constant 0 : i32
    return %c0_i32, %c0_i32_0 : i32, i32
  }
  func.func @transform_3(%arg0: i32) -> (i32, i32) {
    %c0_i32 = arith.constant 0 : i32
    %c0_i32_0 = arith.constant 0 : i32
    %c0_i32_1 = arith.constant 0 : i32
    return %c0_i32, %c0_i32_0 : i32, i32
  }
  func.func @transform_4(%arg0: i32) -> (i32, i32) {
    %c0_i32 = arith.constant 0 : i32
    %c0_i32_0 = arith.constant 0 : i32
    %c0_i32_1 = arith.constant 0 : i32
    return %c0_i32, %c0_i32_0 : i32, i32
  }
  func.func @transform_5(%arg0: i32) -> (i32, i32) {
    %c0_i32 = arith.constant 0 : i32
    %c0_i32_0 = arith.constant 0 : i32
    %c0_i32_1 = arith.constant 0 : i32
    return %c0_i32, %c0_i32_0 : i32, i32
  }
  func.func @transform_6(%arg0: i32) -> (i32, i32, i32) {
    %c0_i32 = arith.constant 0 : i32
    %c0_i32_0 = arith.constant 0 : i32
    %c0_i32_1 = arith.constant 0 : i32
    return %arg0, %c0_i32, %c0_i32_0 : i32, i32, i32
  }
}

</mosaic_0001>

<llo_original>
// kernel: _lambda_.1
$region0: #{_lambda_.1}
  #allocation0 [shape = 'u32[]', space=smem, size = 0x4, offset = 0x4, fixed_abs, tag = 'smem constant byte address 0x4 - core index']
  #allocation1 [shape = 'u32[144,128]{1,0:T(1,128)}', space=vmem, size = 0x12000, scoped, tag = 'internal scratch']
  #allocation2 [shape = 'bf16[256,576]{1,0:T(16,128)(2,1)}', space=vmem, size = 0x50000, scoped, tag = 'scratch operand']
  #allocation3 [shape = 'bf16[320,64]{1,0:T(16,128)(2,1)}', space=vmem, size = 0x14000, scoped, tag = 'scratch operand']
  %s0 = inlined_call_operand.vmem [shape: bf16[2,290,64], index: 0, kind: input, shape index: {}]
  %s1 = inlined_call_operand.vmem [shape: bf16[576,256], index: 1, kind: input, shape index: {}]
  %s2 = inlined_call_operand.vmem [shape: bf16[256,128], index: 2, kind: input, shape index: {}]
  %s3 = inlined_call_operand.vmem [shape: bf16[576,128], index: 3, kind: input, shape index: {}]
  %s4 = inlined_call_operand.vmem [shape: f32[2,256], index: 4, kind: input, shape index: {}]
  %s5 = inlined_call_operand.vmem [shape: f32[4,128], index: 5, kind: input, shape index: {}]
  %s6 = inlined_call_operand.vmem [shape: f32[2,256,128], index: 6, kind: output, shape index: {}]
  %s7 = sld [smem:[#allocation0]]
  $region57: #{_lambda_.1} parent=0
    _
  %s9 = ssub.s32 1, %s7
  %s10 = scalar_select 0, %s9, %s7
  loop: start=0, step=1, limit=4
  $region2: #{_lambda_.1} parent=0 // loop_pre_header
    _
  $region3: #{_lambda_.1} parent=0 // loop_header
    %s12 = sphi 0, %s16
    %p13 = scmp.ge.s32.totalorder %s12, 4
    %s22 = sphi 0, %s24
    %s25 = sphi 0, %s22
    %s26 = sphi 0, %s25
    %s42 = sphi 0, %s26
    %s46 = sphi 0, %s46
    %s48 = sphi 0, %s46
    %s49 = sphi 0, %s48
    %s63 = sphi 0, %s49
    %s67 = sphi 0, %s67
    %s69 = sphi 0, %s67
    %s70 = sphi 0, %s69
    %s84 = sphi 0, %s70
    %s88 = sphi 0, %s88
    %s90 = sphi 0, %s88
    %s91 = sphi 0, %s90
    %s105 = sphi 0, %s91
    %s109 = sphi 0, %s109
    %s111 = sphi 0, %s109
    %s112 = sphi 0, %s111
    %s126 = sphi 0, %s112
    %s130 = sphi 0, %s130
    %s132 = sphi 0, %s130
    %s133 = sphi 0, %s132
    %s147 = sphi 0, %s133
    %s153 = sphi 0, %s155
    %s156 = sphi 0, %s153
    %s157 = sphi 0, %s156
    %s173 = sphi 0, %s157
  $region4: #{_lambda_.1} parent=0 // loop_header_branch
    %15 = sbr.rel (%p13) target = $region8
  $region5: #{_lambda_.1} parent=0 // loop_body
    %s17 = ssub.s32 %s12, 1
    %s18 = ssub.s32 %s12, 2
    %s19 = sadd.s32 %s12, 1
    %s20 = ssub.s32 %s12, %s19
    %p21 = scmp.eq.s32.totalorder %s20, 0
    %s23 = sadd.s32 %s22, 1
    %s24 = scalar_select %p21, %s22, %s23
    %p27 = pneg %p21
    %p28 = scmp.eq.s32.totalorder %s12, 1
    %p29 = por %p27, %p28
    %p30 = scmp.ne.s32.totalorder %s22, %s25
    %p31 = scmp.eq.s32.totalorder %s12, 0
    %p32 = por %p30, %p31
    %p33 = scmp.ne.s32.totalorder %s22, %s25
    %p34 = scmp.eq.s32.totalorder %s17, 1
    %p35 = por %p33, %p34
    %p36 = scmp.ne.s32.totalorder %s25, %s26
    %p37 = scmp.eq.s32.totalorder %s17, 0
    %p38 = por %p36, %p37
    %p39 = scmp.ne.s32.totalorder %s25, %s26
    %p40 = scmp.eq.s32.totalorder %s18, 1
    %p41 = por %p39, %p40
    %p43 = scmp.ne.s32.totalorder %s26, %s42
    %p44 = scmp.eq.s32.totalorder %s18, 0
    %p45 = por %p43, %p44
    %s47 = sadd.s32 %s46, 1
    %p50 = scmp.eq.s32.totalorder %s12, 1
    %p51 = scmp.ne.s32.totalorder %s46, %s48
    %p52 = scmp.eq.s32.totalorder %s12, 0
    %p53 = por %p51, %p52
    %p54 = scmp.ne.s32.totalorder %s46, %s48
    %p55 = scmp.eq.s32.totalorder %s17, 1
    %p56 = por %p54, %p55
    %p57 = scmp.ne.s32.totalorder %s48, %s49
    %p58 = scmp.eq.s32.totalorder %s17, 0
    %p59 = por %p57, %p58
    %p60 = scmp.ne.s32.totalorder %s48, %s49
    %p61 = scmp.eq.s32.totalorder %s18, 1
    %p62 = por %p60, %p61
    %p64 = scmp.ne.s32.totalorder %s49, %s63
    %p65 = scmp.eq.s32.totalorder %s18, 0
    %p66 = por %p64, %p65
    %s68 = sadd.s32 %s67, 1
    %p71 = scmp.eq.s32.totalorder %s12, 1
    %p72 = scmp.ne.s32.totalorder %s67, %s69
    %p73 = scmp.eq.s32.totalorder %s12, 0
    %p74 = por %p72, %p73
    %p75 = scmp.ne.s32.totalorder %s67, %s69
    %p76 = scmp.eq.s32.totalorder %s17, 1
    %p77 = por %p75, %p76
    %p78 = scmp.ne.s32.totalorder %s69, %s70
    %p79 = scmp.eq.s32.totalorder %s17, 0
    %p80 = por %p78, %p79
    %p81 = scmp.ne.s32.totalorder %s69, %s70
    %p82 = scmp.eq.s32.totalorder %s18, 1
    %p83 = por %p81, %p82
    %p85 = scmp.ne.s32.totalorder %s70, %s84
    %p86 = scmp.eq.s32.totalorder %s18, 0
    %p87 = por %p85, %p86
    %s89 = sadd.s32 %s88, 1
    %p92 = scmp.eq.s32.totalorder %s12, 1
    %p93 = scmp.ne.s32.totalorder %s88, %s90
    %p94 = scmp.eq.s32.totalorder %s12, 0
    %p95 = por %p93, %p94
    %p96 = scmp.ne.s32.totalorder %s88, %s90
    %p97 = scmp.eq.s32.totalorder %s17, 1
    %p98 = por %p96, %p97
    %p99 = scmp.ne.s32.totalorder %s90, %s91
    %p100 = scmp.eq.s32.totalorder %s17, 0
    %p101 = por %p99, %p100
    %p102 = scmp.ne.s32.totalorder %s90, %s91
    %p103 = scmp.eq.s32.totalorder %s18, 1
    %p104 = por %p102, %p103
    %p106 = scmp.ne.s32.totalorder %s91, %s105
    %p107 = scmp.eq.s32.totalorder %s18, 0
    %p108 = por %p106, %p107
    %s110 = sadd.s32 %s109, 1
    %p113 = scmp.eq.s32.totalorder %s12, 1
    %p114 = scmp.ne.s32.totalorder %s109, %s111
    %p115 = scmp.eq.s32.totalorder %s12, 0
    %p116 = por %p114, %p115
    %p117 = scmp.ne.s32.totalorder %s109, %s111
    %p118 = scmp.eq.s32.totalorder %s17, 1
    %p119 = por %p117, %p118
    %p120 = scmp.ne.s32.totalorder %s111, %s112
    %p121 = scmp.eq.s32.totalorder %s17, 0
    %p122 = por %p120, %p121
    %p123 = scmp.ne.s32.totalorder %s111, %s112
    %p124 = scmp.eq.s32.totalorder %s18, 1
    %p125 = por %p123, %p124
    %p127 = scmp.ne.s32.totalorder %s112, %s126
    %p128 = scmp.eq.s32.totalorder %s18, 0
    %p129 = por %p127, %p128
    %s131 = sadd.s32 %s130, 1
    %p134 = scmp.eq.s32.totalorder %s12, 1
    %p135 = scmp.ne.s32.totalorder %s130, %s132
    %p136 = scmp.eq.s32.totalorder %s12, 0
    %p137 = por %p135, %p136
    %p138 = scmp.ne.s32.totalorder %s130, %s132
    %p139 = scmp.eq.s32.totalorder %s17, 1
    %p140 = por %p138, %p139
    %p141 = scmp.ne.s32.totalorder %s132, %s133
    %p142 = scmp.eq.s32.totalorder %s17, 0
    %p143 = por %p141, %p142
    %p144 = scmp.ne.s32.totalorder %s132, %s133
    %p145 = scmp.eq.s32.totalorder %s18, 1
    %p146 = por %p144, %p145
    %p148 = scmp.ne.s32.totalorder %s133, %s147
    %p149 = scmp.eq.s32.totalorder %s18, 0
    %p150 = por %p148, %p149
    %s151 = ssub.s32 %s12, %s19
    %p152 = scmp.eq.s32.totalorder %s151, 0
    %s154 = sadd.s32 %s153, 1
    %s155 = scalar_select %p152, %s153, %s154
    %p158 = pneg %p152
    %p159 = scmp.eq.s32.totalorder %s12, 1
    %p160 = por %p158, %p159
    %p161 = scmp.ne.s32.totalorder %s153, %s156
    %p162 = scmp.eq.s32.totalorder %s12, 0
    %p163 = por %p161, %p162
    %p164 = scmp.ne.s32.totalorder %s153, %s156
    %p165 = scmp.eq.s32.totalorder %s17, 1
    %p166 = por %p164, %p165
    %p167 = scmp.ne.s32.totalorder %s156, %s157
    %p168 = scmp.eq.s32.totalorder %s17, 0
    %p169 = por %p167, %p168
    %p170 = scmp.ne.s32.totalorder %s156, %s157
    %p171 = scmp.eq.s32.totalorder %s18, 1
    %p172 = por %p170, %p171
    %p174 = scmp.ne.s32.totalorder %s157, %s173
    %p175 = scmp.eq.s32.totalorder %s18, 0
    %p176 = por %p174, %p175
    %p177 = scmp.le.s32.totalorder 1, %s12
    %p178 = scmp.lt.s32.totalorder %s12, 3
    %p179 = pnand %p177, %p178
    %p180 = pneg %p179
    // Predicated region
    $region9: #{_lambda_.1} parent=5 // pred_check
      _
    $region10: #{_lambda_.1} parent=5 // pred_check_branch
      %182 = sbr.rel (%p179) target = $region12
    $region11: #{_lambda_.1} parent=5 // pred_region
      %s183 = ssub.s32 %s12, 1
      // Predicated region
      $region13: #{_lambda_.1} parent=11 // pred_check
        %p184 = pneg %p59
      $region14: #{_lambda_.1} parent=11 // pred_check_branch
        %186 = sbr.rel (%p184) target = $region16
      $region15: #{_lambda_.1} parent=11 // pred_region
        _
      $region16: #{_lambda_.1} parent=11 // pred_fallthru
        _
      // Predicated region
      $region17: #{_lambda_.1} parent=11 // pred_check
        %p187 = pneg %p80
      $region18: #{_lambda_.1} parent=11 // pred_check_branch
        %189 = sbr.rel (%p187) target = $region20
      $region19: #{_lambda_.1} parent=11 // pred_region
        _
      $region20: #{_lambda_.1} parent=11 // pred_fallthru
        _
      // Predicated region
      $region21: #{_lambda_.1} parent=11 // pred_check
        %p190 = pneg %p101
      $region22: #{_lambda_.1} parent=11 // pred_check_branch
        %192 = sbr.rel (%p190) target = $region24
      $region23: #{_lambda_.1} parent=11 // pred_region
        _
      $region24: #{_lambda_.1} parent=11 // pred_fallthru
        _
      // Predicated region
      $region25: #{_lambda_.1} parent=11 // pred_check
        %p193 = pneg %p122
      $region26: #{_lambda_.1} parent=11 // pred_check_branch
        %195 = sbr.rel (%p193) target = $region28
      $region27: #{_lambda_.1} parent=11 // pred_region
        _
      $region28: #{_lambda_.1} parent=11 // pred_fallthru
        _
      // Predicated region
      $region29: #{_lambda_.1} parent=11 // pred_check
        %p196 = pneg %p143
      $region30: #{_lambda_.1} parent=11 // pred_check_branch
        %198 = sbr.rel (%p196) target = $region32
      $region31: #{_lambda_.1} parent=11 // pred_region
        _
      $region32: #{_lambda_.1} parent=11 // pred_fallthru
        _
    $region12: #{_lambda_.1} parent=5 // pred_fallthru
      _
    %p199 = scmp.lt.s32.totalorder %s12, 2
    // Predicated region
    $region33: #{_lambda_.1} parent=5 // pred_check
      %p200 = pneg %p199
    $region34: #{_lambda_.1} parent=5 // pred_check_branch
      %202 = sbr.rel (%p200) target = $region36
    $region35: #{_lambda_.1} parent=5 // pred_region
      // Predicated region
      $region37: #{_lambda_.1} parent=35 // pred_check
        %p203 = pneg %p32
      $region38: #{_lambda_.1} parent=35 // pred_check_branch
        %205 = sbr.rel (%p203) target = $region40
      $region39: #{_lambda_.1} parent=35 // pred_region
        %p206 = scmp.lt.s32.totalorder %s12, 1
        %s207 = scalar_select %p206, %s12, 1
        %s208 = smul.addr %s207, 37
        %s209 = smul.addr %s208, 4
        %s210 = scalar_lea.vmem %s0, %s209
      $region40: #{_lambda_.1} parent=35 // pred_fallthru
        _
    $region36: #{_lambda_.1} parent=5 // pred_fallthru
      _
    %p211 = scmp.le.s32.totalorder 1, %s12
    %p212 = scmp.lt.s32.totalorder %s12, 3
    %p213 = pnand %p211, %p212
    %p214 = pneg %p213
    // Predicated region
    $region41: #{_lambda_.1} parent=5 // pred_check
      _
    $region42: #{_lambda_.1} parent=5 // pred_check_branch
      %216 = sbr.rel (%p213) target = $region44
    $region43: #{_lambda_.1} parent=5 // pred_region
      %s217 = ssub.s32 %s12, 1
      %p218 = scmp.lt.s32.totalorder %s17, 1
      %s219 = scalar_select %p218, %s17, 1
      %s220 = smul.addr %s219, 37
      %s221 = smul.addr %s220, 4
      %s222 = scalar_lea.vmem %s0, %s221
      %p223 = pneg %p38
      %p224 = pneg %p35
      %p225 = pneg %p59
      %p226 = pneg %p56
      %p227 = pneg %p80
      %p228 = pneg %p77
      %p229 = pneg %p101
      %p230 = pneg %p98
      %p231 = pneg %p122
      %p232 = pneg %p119
      %p233 = pneg %p143
      %p234 = pneg %p140
      %p235 = pneg %p169
      %p236 = pneg %p166
      %p237 = scmp.lt.s32.totalorder %s17, 1
      %s238 = scalar_select %p237, %s17, 1
      %s239 = smul.addr %s238, 32
      %s240 = smul.addr %s239, 8
      %s241 = scalar_lea.vmem %s6, %s240
      %p242 = scmp.lt.s32.totalorder %s17, 1
      %s243 = scalar_select %p242, %s17, 1
      %s244 = smul.addr %s243, 37
      %s245 = smul.addr %s244, 4
      %s246 = scalar_lea.vmem %s0, %s245
      %p247 = scmp.lt.s32.totalorder %s17, 1
      %s248 = scalar_select %p247, %s17, 1
      %s249 = smul.addr %s248, 32
      %s250 = smul.addr %s249, 8
      %s251 = scalar_lea.vmem %s6, %s250
      %v255 = vlaneseq
      %v256 = vshrl.u32 %v255, 7
      %v257 = vadd.s32 %v256, 8
      %v258 = vadd.s32 %v256, 16
      %v259 = vadd.s32 %v256, 24
      %v260 = vadd.s32 %v256, 32
      %v261 = vadd.s32 %v256, 40
      %v262 = vadd.s32 %v256, 48
      %v263 = vadd.s32 %v256, 56
      %v264 = vadd.s32 %v256, 64
      %v265 = vadd.s32 %v256, 72
      %v266 = vadd.s32 %v256, 80
      %v267 = vadd.s32 %v256, 88
      %v268 = vadd.s32 %v256, 96
      %v269 = vadd.s32 %v256, 104
      %v270 = vadd.s32 %v256, 112
      %v271 = vadd.s32 %v256, 120
      %v272 = vadd.s32 %v256, 128
      %v273 = vadd.s32 %v256, 136
      %v274 = vadd.s32 %v256, 144
      %v275 = vadd.s32 %v256, 152
      %v276 = vadd.s32 %v256, 160
      %v277 = vadd.s32 %v256, 168
      %v278 = vadd.s32 %v256, 176
      %v279 = vadd.s32 %v256, 184
      %v280 = vadd.s32 %v256, 192
      %v281 = vadd.s32 %v256, 200
      %v282 = vadd.s32 %v256, 208
      %v283 = vadd.s32 %v256, 216
      %v284 = vadd.s32 %v256, 224
      %v285 = vadd.s32 %v256, 232
      %v286 = vadd.s32 %v256, 240
      %v287 = vadd.s32 %v256, 248
      %vm288 = vcmp.lt.s32.totalorder %v256, 0
      %v289 = vsub.s32 0, %v256
      %v290 = vsel %vm288, %v289, %v256
      %v291 = vshrl.u32 %v290, 4
      %v292 = vand.u32 %v290, 15
      %v293 = vsub.s32 0, %v292
      %v294 = vsel %vm288, %v293, %v292
      %vm295 = vcmp.lt.s32.totalorder %v257, 0
      %v296 = vsub.s32 0, %v257
      %v297 = vsel %vm295, %v296, %v257
      %v298 = vshrl.u32 %v297, 4
      %v299 = vand.u32 %v297, 15
      %v300 = vsub.s32 0, %v299
      %v301 = vsel %vm295, %v300, %v299
      %vm302 = vcmp.lt.s32.totalorder %v258, 0
      %v303 = vsub.s32 0, %v258
      %v304 = vsel %vm302, %v303, %v258
      %v305 = vshrl.u32 %v304, 4
      %v306 = vand.u32 %v304, 15
      %v307 = vsub.s32 0, %v306
      %v308 = vsel %vm302, %v307, %v306
      %vm309 = vcmp.lt.s32.totalorder %v259, 0
      %v310 = vsub.s32 0, %v259
      %v311 = vsel %vm309, %v310, %v259
      %v312 = vshrl.u32 %v311, 4
      %v313 = vand.u32 %v311, 15
      %v314 = vsub.s32 0, %v313
      %v315 = vsel %vm309, %v314, %v313
      %vm316 = vcmp.lt.s32.totalorder %v260, 0
      %v317 = vsub.s32 0, %v260
      %v318 = vsel %vm316, %v317, %v260
      %v319 = vshrl.u32 %v318, 4
      %v320 = vand.u32 %v318, 15
      %v321 = vsub.s32 0, %v320
      %v322 = vsel %vm316, %v321, %v320
      %vm323 = vcmp.lt.s32.totalorder %v261, 0
      %v324 = vsub.s32 0, %v261
      %v325 = vsel %vm323, %v324, %v261
      %v326 = vshrl.u32 %v325, 4
      %v327 = vand.u32 %v325, 15
      %v328 = vsub.s32 0, %v327
      %v329 = vsel %vm323, %v328, %v327
      %vm330 = vcmp.lt.s32.totalorder %v262, 0
      %v331 = vsub.s32 0, %v262
      %v332 = vsel %vm330, %v331, %v262
      %v333 = vshrl.u32 %v332, 4
      %v334 = vand.u32 %v332, 15
      %v335 = vsub.s32 0, %v334
      %v336 = vsel %vm330, %v335, %v334
      %vm337 = vcmp.lt.s32.totalorder %v263, 0
      %v338 = vsub.s32 0, %v263
      %v339 = vsel %vm337, %v338, %v263
      %v340 = vshrl.u32 %v339, 4
      %v341 = vand.u32 %v339, 15
      %v342 = vsub.s32 0, %v341
      %v343 = vsel %vm337, %v342, %v341
      %vm344 = vcmp.lt.s32.totalorder %v264, 0
      %v345 = vsub.s32 0, %v264
      %v346 = vsel %vm344, %v345, %v264
      %v347 = vshrl.u32 %v346, 4
      %v348 = vand.u32 %v346, 15
      %v349 = vsub.s32 0, %v348
      %v350 = vsel %vm344, %v349, %v348
      %vm351 = vcmp.lt.s32.totalorder %v265, 0
      %v352 = vsub.s32 0, %v265
      %v353 = vsel %vm351, %v352, %v265
      %v354 = vshrl.u32 %v353, 4
      %v355 = vand.u32 %v353, 15
      %v356 = vsub.s32 0, %v355
      %v357 = vsel %vm351, %v356, %v355
      %vm358 = vcmp.lt.s32.totalorder %v266, 0
      %v359 = vsub.s32 0, %v266
      %v360 = vsel %vm358, %v359, %v266
      %v361 = vshrl.u32 %v360, 4
      %v362 = vand.u32 %v360, 15
      %v363 = vsub.s32 0, %v362
      %v364 = vsel %vm358, %v363, %v362
      %vm365 = vcmp.lt.s32.totalorder %v267, 0
      %v366 = vsub.s32 0, %v267
      %v367 = vsel %vm365, %v366, %v267
      %v368 = vshrl.u32 %v367, 4
      %v369 = vand.u32 %v367, 15
      %v370 = vsub.s32 0, %v369
      %v371 = vsel %vm365, %v370, %v369
      %vm372 = vcmp.lt.s32.totalorder %v268, 0
      %v373 = vsub.s32 0, %v268
      %v374 = vsel %vm372, %v373, %v268
      %v375 = vshrl.u32 %v374, 4
      %v376 = vand.u32 %v374, 15
      %v377 = vsub.s32 0, %v376
      %v378 = vsel %vm372, %v377, %v376
      %vm379 = vcmp.lt.s32.totalorder %v269, 0
      %v380 = vsub.s32 0, %v269
      %v381 = vsel %vm379, %v380, %v269
      %v382 = vshrl.u32 %v381, 4
      %v383 = vand.u32 %v381, 15
      %v384 = vsub.s32 0, %v383
      %v385 = vsel %vm379, %v384, %v383
      %vm386 = vcmp.lt.s32.totalorder %v270, 0
      %v387 = vsub.s32 0, %v270
      %v388 = vsel %vm386, %v387, %v270
      %v389 = vshrl.u32 %v388, 4
      %v390 = vand.u32 %v388, 15
      %v391 = vsub.s32 0, %v390
      %v392 = vsel %vm386, %v391, %v390
      %vm393 = vcmp.lt.s32.totalorder %v271, 0
      %v394 = vsub.s32 0, %v271
      %v395 = vsel %vm393, %v394, %v271
      %v396 = vshrl.u32 %v395, 4
      %v397 = vand.u32 %v395, 15
      %v398 = vsub.s32 0, %v397
      %v399 = vsel %vm393, %v398, %v397
      %vm400 = vcmp.lt.s32.totalorder %v272, 0
      %v401 = vsub.s32 0, %v272
      %v402 = vsel %vm400, %v401, %v272
      %v403 = vshrl.u32 %v402, 4
      %v404 = vand.u32 %v402, 15
      %v405 = vsub.s32 0, %v404
      %v406 = vsel %vm400, %v405, %v404
      %vm407 = vcmp.lt.s32.totalorder %v273, 0
      %v408 = vsub.s32 0, %v273
      %v409 = vsel %vm407, %v408, %v273
      %v410 = vshrl.u32 %v409, 4
      %v411 = vand.u32 %v409, 15
      %v412 = vsub.s32 0, %v411
      %v413 = vsel %vm407, %v412, %v411
      %vm414 = vcmp.lt.s32.totalorder %v274, 0
      %v415 = vsub.s32 0, %v274
      %v416 = vsel %vm414, %v415, %v274
      %v417 = vshrl.u32 %v416, 4
      %v418 = vand.u32 %v416, 15
      %v419 = vsub.s32 0, %v418
      %v420 = vsel %vm414, %v419, %v418
      %vm421 = vcmp.lt.s32.totalorder %v275, 0
      %v422 = vsub.s32 0, %v275
      %v423 = vsel %vm421, %v422, %v275
      %v424 = vshrl.u32 %v423, 4
      %v425 = vand.u32 %v423, 15
      %v426 = vsub.s32 0, %v425
      %v427 = vsel %vm421, %v426, %v425
      %vm428 = vcmp.lt.s32.totalorder %v276, 0
      %v429 = vsub.s32 0, %v276
      %v430 = vsel %vm428, %v429, %v276
      %v431 = vshrl.u32 %v430, 4
      %v432 = vand.u32 %v430, 15
      %v433 = vsub.s32 0, %v432
      %v434 = vsel %vm428, %v433, %v432
      %vm435 = vcmp.lt.s32.totalorder %v277, 0
      %v436 = vsub.s32 0, %v277
      %v437 = vsel %vm435, %v436, %v277
      %v438 = vshrl.u32 %v437, 4
      %v439 = vand.u32 %v437, 15
      %v440 = vsub.s32 0, %v439
      %v441 = vsel %vm435, %v440, %v439
      %vm442 = vcmp.lt.s32.totalorder %v278, 0
      %v443 = vsub.s32 0, %v278
      %v444 = vsel %vm442, %v443, %v278
      %v445 = vshrl.u32 %v444, 4
      %v446 = vand.u32 %v444, 15
      %v447 = vsub.s32 0, %v446
      %v448 = vsel %vm442, %v447, %v446
      %vm449 = vcmp.lt.s32.totalorder %v279, 0
      %v450 = vsub.s32 0, %v279
      %v451 = vsel %vm449, %v450, %v279
      %v452 = vshrl.u32 %v451, 4
      %v453 = vand.u32 %v451, 15
      %v454 = vsub.s32 0, %v453
      %v455 = vsel %vm449, %v454, %v453
      %vm456 = vcmp.lt.s32.totalorder %v280, 0
      %v457 = vsub.s32 0, %v280
      %v458 = vsel %vm456, %v457, %v280
      %v459 = vshrl.u32 %v458, 4
      %v460 = vand.u32 %v458, 15
      %v461 = vsub.s32 0, %v460
      %v462 = vsel %vm456, %v461, %v460
      %vm463 = vcmp.lt.s32.totalorder %v281, 0
      %v464 = vsub.s32 0, %v281
      %v465 = vsel %vm463, %v464, %v281
      %v466 = vshrl.u32 %v465, 4
      %v467 = vand.u32 %v465, 15
      %v468 = vsub.s32 0, %v467
      %v469 = vsel %vm463, %v468, %v467
      %vm470 = vcmp.lt.s32.totalorder %v282, 0
      %v471 = vsub.s32 0, %v282
      %v472 = vsel %vm470, %v471, %v282
      %v473 = vshrl.u32 %v472, 4
      %v474 = vand.u32 %v472, 15
      %v475 = vsub.s32 0, %v474
      %v476 = vsel %vm470, %v475, %v474
      %vm477 = vcmp.lt.s32.totalorder %v283, 0
      %v478 = vsub.s32 0, %v283
      %v479 = vsel %vm477, %v478, %v283
      %v480 = vshrl.u32 %v479, 4
      %v481 = vand.u32 %v479, 15
      %v482 = vsub.s32 0, %v481
      %v483 = vsel %vm477, %v482, %v481
      %vm484 = vcmp.lt.s32.totalorder %v284, 0
      %v485 = vsub.s32 0, %v284
      %v486 = vsel %vm484, %v485, %v284
      %v487 = vshrl.u32 %v486, 4
      %v488 = vand.u32 %v486, 15
      %v489 = vsub.s32 0, %v488
      %v490 = vsel %vm484, %v489, %v488
      %vm491 = vcmp.lt.s32.totalorder %v285, 0
      %v492 = vsub.s32 0, %v285
      %v493 = vsel %vm491, %v492, %v285
      %v494 = vshrl.u32 %v493, 4
      %v495 = vand.u32 %v493, 15
      %v496 = vsub.s32 0, %v495
      %v497 = vsel %vm491, %v496, %v495
      %vm498 = vcmp.lt.s32.totalorder %v286, 0
      %v499 = vsub.s32 0, %v286
      %v500 = vsel %vm498, %v499, %v286
      %v501 = vshrl.u32 %v500, 4
      %v502 = vand.u32 %v500, 15
      %v503 = vsub.s32 0, %v502
      %v504 = vsel %vm498, %v503, %v502
      %vm505 = vcmp.lt.s32.totalorder %v287, 0
      %v506 = vsub.s32 0, %v287
      %v507 = vsel %vm505, %v506, %v287
      %v508 = vshrl.u32 %v507, 4
      %v509 = vand.u32 %v507, 15
      %v510 = vsub.s32 0, %v509
      %v511 = vsel %vm505, %v510, %v509
      %vm512 = vcmp.ne.s32.totalorder %v294, 0
      %vm513 = vcmp.ne.s32.totalorder %v301, 0
      %vm514 = vcmp.ne.s32.totalorder %v308, 0
      %vm515 = vcmp.ne.s32.totalorder %v315, 0
      %vm516 = vcmp.ne.s32.totalorder %v322, 0
      %vm517 = vcmp.ne.s32.totalorder %v329, 0
      %vm518 = vcmp.ne.s32.totalorder %v336, 0
      %vm519 = vcmp.ne.s32.totalorder %v343, 0
      %vm520 = vcmp.ne.s32.totalorder %v350, 0
      %vm521 = vcmp.ne.s32.totalorder %v357, 0
      %vm522 = vcmp.ne.s32.totalorder %v364, 0
      %vm523 = vcmp.ne.s32.totalorder %v371, 0
      %vm524 = vcmp.ne.s32.totalorder %v378, 0
      %vm525 = vcmp.ne.s32.totalorder %v385, 0
      %vm526 = vcmp.ne.s32.totalorder %v392, 0
      %vm527 = vcmp.ne.s32.totalorder %v399, 0
      %vm528 = vcmp.ne.s32.totalorder %v406, 0
      %vm529 = vcmp.ne.s32.totalorder %v413, 0
      %vm530 = vcmp.ne.s32.totalorder %v420, 0
      %vm531 = vcmp.ne.s32.totalorder %v427, 0
      %vm532 = vcmp.ne.s32.totalorder %v434, 0
      %vm533 = vcmp.ne.s32.totalorder %v441, 0
      %vm534 = vcmp.ne.s32.totalorder %v448, 0
      %vm535 = vcmp.ne.s32.totalorder %v455, 0
      %vm536 = vcmp.ne.s32.totalorder %v462, 0
      %vm537 = vcmp.ne.s32.totalorder %v469, 0
      %vm538 = vcmp.ne.s32.totalorder %v476, 0
      %vm539 = vcmp.ne.s32.totalorder %v483, 0
      %vm540 = vcmp.ne.s32.totalorder %v490, 0
      %vm541 = vcmp.ne.s32.totalorder %v497, 0
      %vm542 = vcmp.ne.s32.totalorder %v504, 0
      %vm543 = vcmp.ne.s32.totalorder %v511, 0
      %vm544 = vcmp.lt.s32.totalorder %v294, 0
      %vm545 = vcmp.lt.s32.totalorder %v301, 0
      %vm546 = vcmp.lt.s32.totalorder %v308, 0
      %vm547 = vcmp.lt.s32.totalorder %v315, 0
      %vm548 = vcmp.lt.s32.totalorder %v322, 0
      %vm549 = vcmp.lt.s32.totalorder %v329, 0
      %vm550 = vcmp.lt.s32.totalorder %v336, 0
      %vm551 = vcmp.lt.s32.totalorder %v343, 0
      %vm552 = vcmp.lt.s32.totalorder %v350, 0
      %vm553 = vcmp.lt.s32.totalorder %v357, 0
      %vm554 = vcmp.lt.s32.totalorder %v364, 0
      %vm555 = vcmp.lt.s32.totalorder %v371, 0
      %vm556 = vcmp.lt.s32.totalorder %v378, 0
      %vm557 = vcmp.lt.s32.totalorder %v385, 0
      %vm558 = vcmp.lt.s32.totalorder %v392, 0
      %vm559 = vcmp.lt.s32.totalorder %v399, 0
      %vm560 = vcmp.lt.s32.totalorder %v406, 0
      %vm561 = vcmp.lt.s32.totalorder %v413, 0
      %vm562 = vcmp.lt.s32.totalorder %v420, 0
      %vm563 = vcmp.lt.s32.totalorder %v427, 0
      %vm564 = vcmp.lt.s32.totalorder %v434, 0
      %vm565 = vcmp.lt.s32.totalorder %v441, 0
      %vm566 = vcmp.lt.s32.totalorder %v448, 0
      %vm567 = vcmp.lt.s32.totalorder %v455, 0
      %vm568 = vcmp.lt.s32.totalorder %v462, 0
      %vm569 = vcmp.lt.s32.totalorder %v469, 0
      %vm570 = vcmp.lt.s32.totalorder %v476, 0
      %vm571 = vcmp.lt.s32.totalorder %v483, 0
      %vm572 = vcmp.lt.s32.totalorder %v490, 0
      %vm573 = vcmp.lt.s32.totalorder %v497, 0
      %vm574 = vcmp.lt.s32.totalorder %v504, 0
      %vm575 = vcmp.lt.s32.totalorder %v511, 0
      %vm576 = vmand %vm544, %vm512
      %vm577 = vmand %vm545, %vm513
      %vm578 = vmand %vm546, %vm514
      %vm579 = vmand %vm547, %vm515
      %vm580 = vmand %vm548, %vm516
      %vm581 = vmand %vm549, %vm517
      %vm582 = vmand %vm550, %vm518
      %vm583 = vmand %vm551, %vm519
      %vm584 = vmand %vm552, %vm520
      %vm585 = vmand %vm553, %vm521
      %vm586 = vmand %vm554, %vm522
      %vm587 = vmand %vm555, %vm523
      %vm588 = vmand %vm556, %vm524
      %vm589 = vmand %vm557, %vm525
      %vm590 = vmand %vm558, %vm526
      %vm591 = vmand %vm559, %vm527
      %vm592 = vmand %vm560, %vm528
      %vm593 = vmand %vm561, %vm529
      %vm594 = vmand %vm562, %vm530
      %vm595 = vmand %vm563, %vm531
      %vm596 = vmand %vm564, %vm532
      %vm597 = vmand %vm565, %vm533
      %vm598 = vmand %vm566, %vm534
      %vm599 = vmand %vm567, %vm535
      %vm600 = vmand %vm568, %vm536
      %vm601 = vmand %vm569, %vm537
      %vm602 = vmand %vm570, %vm538
      %vm603 = vmand %vm571, %vm539
      %vm604 = vmand %vm572, %vm540
      %vm605 = vmand %vm573, %vm541
      %vm606 = vmand %vm574, %vm542
      %vm607 = vmand %vm575, %vm543
      %v608 = vadd.s32 %v294, 16
      %v609 = vadd.s32 %v301, 16
      %v610 = vadd.s32 %v308, 16
      %v611 = vadd.s32 %v315, 16
      %v612 = vadd.s32 %v322, 16
      %v613 = vadd.s32 %v329, 16
      %v614 = vadd.s32 %v336, 16
      %v615 = vadd.s32 %v343, 16
      %v616 = vadd.s32 %v350, 16
      %v617 = vadd.s32 %v357, 16
      %v618 = vadd.s32 %v364, 16
      %v619 = vadd.s32 %v371, 16
      %v620 = vadd.s32 %v378, 16
      %v621 = vadd.s32 %v385, 16
      %v622 = vadd.s32 %v392, 16
      %v623 = vadd.s32 %v399, 16
      %v624 = vadd.s32 %v406, 16
      %v625 = vadd.s32 %v413, 16
      %v626 = vadd.s32 %v420, 16
      %v627 = vadd.s32 %v427, 16
      %v628 = vadd.s32 %v434, 16
      %v629 = vadd.s32 %v441, 16
      %v630 = vadd.s32 %v448, 16
      %v631 = vadd.s32 %v455, 16
      %v632 = vadd.s32 %v462, 16
      %v633 = vadd.s32 %v469, 16
      %v634 = vadd.s32 %v476, 16
      %v635 = vadd.s32 %v483, 16
      %v636 = vadd.s32 %v490, 16
      %v637 = vadd.s32 %v497, 16
      %v638 = vadd.s32 %v504, 16
      %v639 = vadd.s32 %v511, 16
      %v640 = vsel %vm576, %v608, %v294
      %v641 = vsel %vm577, %v609, %v301
      %v642 = vsel %vm578, %v610, %v308
      %v643 = vsel %vm579, %v611, %v315
      %v644 = vsel %vm580, %v612, %v322
      %v645 = vsel %vm581, %v613, %v329
      %v646 = vsel %vm582, %v614, %v336
      %v647 = vsel %vm583, %v615, %v343
      %v648 = vsel %vm584, %v616, %v350
      %v649 = vsel %vm585, %v617, %v357
      %v650 = vsel %vm586, %v618, %v364
      %v651 = vsel %vm587, %v619, %v371
      %v652 = vsel %vm588, %v620, %v378
      %v653 = vsel %vm589, %v621, %v385
      %v654 = vsel %vm590, %v622, %v392
      %v655 = vsel %vm591, %v623, %v399
      %v656 = vsel %vm592, %v624, %v406
      %v657 = vsel %vm593, %v625, %v413
      %v658 = vsel %vm594, %v626, %v420
      %v659 = vsel %vm595, %v627, %v427
      %v660 = vsel %vm596, %v628, %v434
      %v661 = vsel %vm597, %v629, %v441
      %v662 = vsel %vm598, %v630, %v448
      %v663 = vsel %vm599, %v631, %v455
      %v664 = vsel %vm600, %v632, %v462
      %v665 = vsel %vm601, %v633, %v469
      %v666 = vsel %vm602, %v634, %v476
      %v667 = vsel %vm603, %v635, %v483
      %v668 = vsel %vm604, %v636, %v490
      %v669 = vsel %vm605, %v637, %v497
      %v670 = vsel %vm606, %v638, %v504
      %v671 = vsel %vm607, %v639, %v511
      %vm672 = vcmp.gt.s32.totalorder %v640, 0
      %vm673 = vcmp.gt.s32.totalorder %v641, 0
      %vm674 = vcmp.gt.s32.totalorder %v642, 0
      %vm675 = vcmp.gt.s32.totalorder %v643, 0
      %vm676 = vcmp.gt.s32.totalorder %v644, 0
      %vm677 = vcmp.gt.s32.totalorder %v645, 0
      %vm678 = vcmp.gt.s32.totalorder %v646, 0
      %vm679 = vcmp.gt.s32.totalorder %v647, 0
      %vm680 = vcmp.gt.s32.totalorder %v648, 0
      %vm681 = vcmp.gt.s32.totalorder %v649, 0
      %vm682 = vcmp.gt.s32.totalorder %v650, 0
      %vm683 = vcmp.gt.s32.totalorder %v651, 0
      %vm684 = vcmp.gt.s32.totalorder %v652, 0
      %vm685 = vcmp.gt.s32.totalorder %v653, 0
      %vm686 = vcmp.gt.s32.totalorder %v654, 0
      %vm687 = vcmp.gt.s32.totalorder %v655, 0
      %vm688 = vcmp.gt.s32.totalorder %v656, 0
      %vm689 = vcmp.gt.s32.totalorder %v657, 0
      %vm690 = vcmp.gt.s32.totalorder %v658, 0
      %vm691 = vcmp.gt.s32.totalorder %v659, 0
      %vm692 = vcmp.gt.s32.totalorder %v660, 0
      %vm693 = vcmp.gt.s32.totalorder %v661, 0
      %vm694 = vcmp.gt.s32.totalorder %v662, 0
      %vm695 = vcmp.gt.s32.totalorder %v663, 0
      %vm696 = vcmp.gt.s32.totalorder %v664, 0
      %vm697 = vcmp.gt.s32.totalorder %v665, 0
      %vm698 = vcmp.gt.s32.totalorder %v666, 0
      %vm699 = vcmp.gt.s32.totalorder %v667, 0
      %vm700 = vcmp.gt.s32.totalorder %v668, 0
      %vm701 = vcmp.gt.s32.totalorder %v669, 0
      %vm702 = vcmp.gt.s32.totalorder %v670, 0
      %vm703 = vcmp.gt.s32.totalorder %v671, 0
      %vm704 = vcmp.lt.s32.totalorder %v640, 15
      %vm705 = vcmp.lt.s32.totalorder %v641, 15
      %vm706 = vcmp.lt.s32.totalorder %v642, 15
      %vm707 = vcmp.lt.s32.totalorder %v643, 15
      %vm708 = vcmp.lt.s32.totalorder %v644, 15
      %vm709 = vcmp.lt.s32.totalorder %v645, 15
      %vm710 = vcmp.lt.s32.totalorder %v646, 15
      %vm711 = vcmp.lt.s32.totalorder %v647, 15
      %vm712 = vcmp.lt.s32.totalorder %v648, 15
      %vm713 = vcmp.lt.s32.totalorder %v649, 15
      %vm714 = vcmp.lt.s32.totalorder %v650, 15
      %vm715 = vcmp.lt.s32.totalorder %v651, 15
      %vm716 = vcmp.lt.s32.totalorder %v652, 15
      %vm717 = vcmp.lt.s32.totalorder %v653, 15
      %vm718 = vcmp.lt.s32.totalorder %v654, 15
      %vm719 = vcmp.lt.s32.totalorder %v655, 15
      %vm720 = vcmp.lt.s32.totalorder %v656, 15
      %vm721 = vcmp.lt.s32.totalorder %v657, 15
      %vm722 = vcmp.lt.s32.totalorder %v658, 15
      %vm723 = vcmp.lt.s32.totalorder %v659, 15
      %vm724 = vcmp.lt.s32.totalorder %v660, 15
      %vm725 = vcmp.lt.s32.totalorder %v661, 15
      %vm726 = vcmp.lt.s32.totalorder %v662, 15
      %vm727 = vcmp.lt.s32.totalorder %v663, 15
      %vm728 = vcmp.lt.s32.totalorder %v664, 15
      %vm729 = vcmp.lt.s32.totalorder %v665, 15
      %vm730 = vcmp.lt.s32.totalorder %v666, 15
      %vm731 = vcmp.lt.s32.totalorder %v667, 15
      %vm732 = vcmp.lt.s32.totalorder %v668, 15
      %vm733 = vcmp.lt.s32.totalorder %v669, 15
      %vm734 = vcmp.lt.s32.totalorder %v670, 15
      %vm735 = vcmp.lt.s32.totalorder %v671, 15
      %v736 = vld [vmem:[%s246] sm:$0xf]
      %v737 = vld [vmem:[%s246 + $0x4] sm:$0xf]
      %v738 = vld [vmem:[%s246 + $0x8] sm:$0xf]
      %v739 = vld [vmem:[%s246 + $0xc] sm:$0xf]
      %v740 = vld [vmem:[%s246 + $0x10] sm:$0xf]
      %v741 = vld [vmem:[%s246 + $0x14] sm:$0xf]
      %v742 = vld [vmem:[%s246 + $0x18] sm:$0xf]
      %v743 = vld [vmem:[%s246 + $0x1c] sm:$0xf]
      %v744 = vld [vmem:[%s246 + $0x20] sm:$0xf]
      %v745 = vld [vmem:[%s246 + $0x24] sm:$0xf]
      %v746 = vld [vmem:[%s246 + $0x28] sm:$0xf]
      %v747 = vld [vmem:[%s246 + $0x2c] sm:$0xf]
      %v748 = vld [vmem:[%s246 + $0x30] sm:$0xf]
      %v749 = vld [vmem:[%s246 + $0x34] sm:$0xf]
      %v750 = vld [vmem:[%s246 + $0x38] sm:$0xf]
      %v751 = vld [vmem:[%s246 + $0x3c] sm:$0xf]
      %v752 = vld [vmem:[%s246 + $0x40] sm:$0xf]
      %v753 = vld [vmem:[%s246 + $0x44] sm:$0xf]
      %v754 = vld [vmem:[%s246 + $0x48] sm:$0xf]
      %v755 = vld [vmem:[%s246 + $0x4c] sm:$0xf]
      %v756 = vld [vmem:[%s246 + $0x50] sm:$0xf]
      %v757 = vld [vmem:[%s246 + $0x54] sm:$0xf]
      %v758 = vld [vmem:[%s246 + $0x58] sm:$0xf]
      %v759 = vld [vmem:[%s246 + $0x5c] sm:$0xf]
      %v760 = vld [vmem:[%s246 + $0x60] sm:$0xf]
      %v761 = vld [vmem:[%s246 + $0x64] sm:$0xf]
      %v762 = vld [vmem:[%s246 + $0x68] sm:$0xf]
      %v763 = vld [vmem:[%s246 + $0x6c] sm:$0xf]
      %v764 = vld [vmem:[%s246 + $0x70] sm:$0xf]
      %v765 = vld [vmem:[%s246 + $0x74] sm:$0xf]
      %v766 = vld [vmem:[%s246 + $0x78] sm:$0xf]
      %v767 = vld [vmem:[%s246 + $0x7c] sm:$0xf]
      %vm768 = vmpackc.low %vm672, %vm672
      %vm769 = vmpackc.low %vm673, %vm673
      %vm770 = vmpackc.low %vm674, %vm674
      %vm771 = vmpackc.low %vm675, %vm675
      %vm772 = vmpackc.low %vm676, %vm676
      %vm773 = vmpackc.low %vm677, %vm677
      %vm774 = vmpackc.low %vm678, %vm678
      %vm775 = vmpackc.low %vm679, %vm679
      %vm776 = vmpackc.low %vm680, %vm680
      %vm777 = vmpackc.low %vm681, %vm681
      %vm778 = vmpackc.low %vm682, %vm682
      %vm779 = vmpackc.low %vm683, %vm683
      %vm780 = vmpackc.low %vm684, %vm684
      %vm781 = vmpackc.low %vm685, %vm685
      %vm782 = vmpackc.low %vm686, %vm686
      %vm783 = vmpackc.low %vm687, %vm687
      %vm784 = vmpackc.low %vm688, %vm688
      %vm785 = vmpackc.low %vm689, %vm689
      %vm786 = vmpackc.low %vm690, %vm690
      %vm787 = vmpackc.low %vm691, %vm691
      %vm788 = vmpackc.low %vm692, %vm692
      %vm789 = vmpackc.low %vm693, %vm693
      %vm790 = vmpackc.low %vm694, %vm694
      %vm791 = vmpackc.low %vm695, %vm695
      %vm792 = vmpackc.low %vm696, %vm696
      %vm793 = vmpackc.low %vm697, %vm697
      %vm794 = vmpackc.low %vm698, %vm698
      %vm795 = vmpackc.low %vm699, %vm699
      %vm796 = vmpackc.low %vm700, %vm700
      %vm797 = vmpackc.low %vm701, %vm701
      %vm798 = vmpackc.low %vm702, %vm702
      %vm799 = vmpackc.low %vm703, %vm703
      %v800 = vsel %vm768, %v736, 0
      %v801 = vsel %vm769, %v737, 0
      %v802 = vsel %vm770, %v738, 0
      %v803 = vsel %vm771, %v739, 0
      %v804 = vsel %vm772, %v740, 0
      %v805 = vsel %vm773, %v741, 0
      %v806 = vsel %vm774, %v742, 0
      %v807 = vsel %vm775, %v743, 0
      %v808 = vsel %vm776, %v744, 0
      %v809 = vsel %vm777, %v745, 0
      %v810 = vsel %vm778, %v746, 0
      %v811 = vsel %vm779, %v747, 0
      %v812 = vsel %vm780, %v748, 0
      %v813 = vsel %vm781, %v749, 0
      %v814 = vsel %vm782, %v750, 0
      %v815 = vsel %vm783, %v751, 0
      %v816 = vsel %vm784, %v752, 0
      %v817 = vsel %vm785, %v753, 0
      %v818 = vsel %vm786, %v754, 0
      %v819 = vsel %vm787, %v755, 0
      %v820 = vsel %vm788, %v756, 0
      %v821 = vsel %vm789, %v757, 0
      %v822 = vsel %vm790, %v758, 0
      %v823 = vsel %vm791, %v759, 0
      %v824 = vsel %vm792, %v760, 0
      %v825 = vsel %vm793, %v761, 0
      %v826 = vsel %vm794, %v762, 0
      %v827 = vsel %vm795, %v763, 0
      %v828 = vsel %vm796, %v764, 0
      %v829 = vsel %vm797, %v765, 0
      %v830 = vsel %vm798, %v766, 0
      %v831 = vsel %vm799, %v767, 0
      %v864 = vunpack.c.l.b16 %v800
      %v865 = vunpack.c.l.b16 %v801
      %v866 = vunpack.c.l.b16 %v802
      %v867 = vunpack.c.l.b16 %v803
      %v868 = vunpack.c.l.b16 %v804
      %v869 = vunpack.c.l.b16 %v805
      %v870 = vunpack.c.l.b16 %v806
      %v871 = vunpack.c.l.b16 %v807
      %v872 = vunpack.c.l.b16 %v808
      %v873 = vunpack.c.l.b16 %v809
      %v874 = vunpack.c.l.b16 %v810
      %v875 = vunpack.c.l.b16 %v811
      %v876 = vunpack.c.l.b16 %v812
      %v877 = vunpack.c.l.b16 %v813
      %v878 = vunpack.c.l.b16 %v814
      %v879 = vunpack.c.l.b16 %v815
      %v880 = vunpack.c.l.b16 %v816
      %v881 = vunpack.c.l.b16 %v817
      %v882 = vunpack.c.l.b16 %v818
      %v883 = vunpack.c.l.b16 %v819
      %v884 = vunpack.c.l.b16 %v820
      %v885 = vunpack.c.l.b16 %v821
      %v886 = vunpack.c.l.b16 %v822
      %v887 = vunpack.c.l.b16 %v823
      %v888 = vunpack.c.l.b16 %v824
      %v889 = vunpack.c.l.b16 %v825
      %v890 = vunpack.c.l.b16 %v826
      %v891 = vunpack.c.l.b16 %v827
      %v892 = vunpack.c.l.b16 %v828
      %v893 = vunpack.c.l.b16 %v829
      %v894 = vunpack.c.l.b16 %v830
      %v895 = vunpack.c.l.b16 %v831
      %v896 = vpack.c.b16 %v865, %v864
      %v897 = vpack.c.b16 %v867, %v866
      %v898 = vpack.c.b16 %v869, %v868
      %v899 = vpack.c.b16 %v871, %v870
      %v900 = vpack.c.b16 %v873, %v872
      %v901 = vpack.c.b16 %v875, %v874
      %v902 = vpack.c.b16 %v877, %v876
      %v903 = vpack.c.b16 %v879, %v878
      %v904 = vpack.c.b16 %v881, %v880
      %v905 = vpack.c.b16 %v883, %v882
      %v906 = vpack.c.b16 %v885, %v884
      %v907 = vpack.c.b16 %v887, %v886
      %v908 = vpack.c.b16 %v889, %v888
      %v909 = vpack.c.b16 %v891, %v890
      %v910 = vpack.c.b16 %v893, %v892
      %v911 = vpack.c.b16 %v895, %v894
      %vm928 = vcmask 523264
      %929 = vst.msk [vmem:[#allocation2] sm:$0xff] %vm928, %v896
      %930 = vst.msk [vmem:[#allocation2 + $0x28] sm:$0xff] %vm928, %v897
      %931 = vst.msk [vmem:[#allocation2 + $0x50] sm:$0xff] %vm928, %v898
      %932 = vst.msk [vmem:[#allocation2 + $0x78] sm:$0xff] %vm928, %v899
      %933 = vst.msk [vmem:[#allocation2 + $0xa0] sm:$0xff] %vm928, %v900
      %934 = vst.msk [vmem:[#allocation2 + $0xc8] sm:$0xff] %vm928, %v901
      %935 = vst.msk [vmem:[#allocation2 + $0xf0] sm:$0xff] %vm928, %v902
      %936 = vst.msk [vmem:[#allocation2 + $0x118] sm:$0xff] %vm928, %v903
      %937 = vst.msk [vmem:[#allocation2 + $0x140] sm:$0xff] %vm928, %v904
      %938 = vst.msk [vmem:[#allocation2 + $0x168] sm:$0xff] %vm928, %v905
      %939 = vst.msk [vmem:[#allocation2 + $0x190] sm:$0xff] %vm928, %v906
      %940 = vst.msk [vmem:[#allocation2 + $0x1b8] sm:$0xff] %vm928, %v907
      %941 = vst.msk [vmem:[#allocation2 + $0x1e0] sm:$0xff] %vm928, %v908
      %942 = vst.msk [vmem:[#allocation2 + $0x208] sm:$0xff] %vm928, %v909
      %943 = vst.msk [vmem:[#allocation2 + $0x230] sm:$0xff] %vm928, %v910
      %944 = vst.msk [vmem:[#allocation2 + $0x258] sm:$0xff] %vm928, %v911
      %v945 = vld [vmem:[%s246] sm:$0xf]
      %v946 = vld [vmem:[%s246 + $0x4] sm:$0xf]
      %v947 = vld [vmem:[%s246 + $0x8] sm:$0xf]
      %v948 = vld [vmem:[%s246 + $0xc] sm:$0xf]
      %v949 = vld [vmem:[%s246 + $0x10] sm:$0xf]
      %v950 = vld [vmem:[%s246 + $0x14] sm:$0xf]
      %v951 = vld [vmem:[%s246 + $0x18] sm:$0xf]
      %v952 = vld [vmem:[%s246 + $0x1c] sm:$0xf]
      %v953 = vld [vmem:[%s246 + $0x20] sm:$0xf]
      %v954 = vld [vmem:[%s246 + $0x24] sm:$0xf]
      %v955 = vld [vmem:[%s246 + $0x28] sm:$0xf]
      %v956 = vld [vmem:[%s246 + $0x2c] sm:$0xf]
      %v957 = vld [vmem:[%s246 + $0x30] sm:$0xf]
      %v958 = vld [vmem:[%s246 + $0x34] sm:$0xf]
      %v959 = vld [vmem:[%s246 + $0x38] sm:$0xf]
      %v960 = vld [vmem:[%s246 + $0x3c] sm:$0xf]
      %v961 = vld [vmem:[%s246 + $0x40] sm:$0xf]
      %v962 = vld [vmem:[%s246 + $0x44] sm:$0xf]
      %v963 = vld [vmem:[%s246 + $0x48] sm:$0xf]
      %v964 = vld [vmem:[%s246 + $0x4c] sm:$0xf]
      %v965 = vld [vmem:[%s246 + $0x50] sm:$0xf]
      %v966 = vld [vmem:[%s246 + $0x54] sm:$0xf]
      %v967 = vld [vmem:[%s246 + $0x58] sm:$0xf]
      %v968 = vld [vmem:[%s246 + $0x5c] sm:$0xf]
      %v969 = vld [vmem:[%s246 + $0x60] sm:$0xf]
      %v970 = vld [vmem:[%s246 + $0x64] sm:$0xf]
      %v971 = vld [vmem:[%s246 + $0x68] sm:$0xf]
      %v972 = vld [vmem:[%s246 + $0x6c] sm:$0xf]
      %v973 = vld [vmem:[%s246 + $0x70] sm:$0xf]
      %v974 = vld [vmem:[%s246 + $0x74] sm:$0xf]
      %v975 = vld [vmem:[%s246 + $0x78] sm:$0xf]
      %v976 = vld [vmem:[%s246 + $0x7c] sm:$0xf]
      %v977 = vld [vmem:[%s246 + $0x80] sm:$0x1]
      %v1011 = vunpack.c.l.b16 %v945
      %v1012 = vunpack.c.l.b16 %v946
      %v1013 = vunpack.c.l.b16 %v947
      %v1014 = vunpack.c.l.b16 %v948
      %v1015 = vunpack.c.l.b16 %v949
      %v1016 = vunpack.c.l.b16 %v950
      %v1017 = vunpack.c.l.b16 %v951
      %v1018 = vunpack.c.l.b16 %v952
      %v1019 = vunpack.c.l.b16 %v953
      %v1020 = vunpack.c.l.b16 %v954
      %v1021 = vunpack.c.l.b16 %v955
      %v1022 = vunpack.c.l.b16 %v956
      %v1023 = vunpack.c.l.b16 %v957
      %v1024 = vunpack.c.l.b16 %v958
      %v1025 = vunpack.c.l.b16 %v959
      %v1026 = vunpack.c.l.b16 %v960
      %v1027 = vunpack.c.l.b16 %v961
      %v1028 = vunpack.c.l.b16 %v962
      %v1029 = vunpack.c.l.b16 %v963
      %v1030 = vunpack.c.l.b16 %v964
      %v1031 = vunpack.c.l.b16 %v965
      %v1032 = vunpack.c.l.b16 %v966
      %v1033 = vunpack.c.l.b16 %v967
      %v1034 = vunpack.c.l.b16 %v968
      %v1035 = vunpack.c.l.b16 %v969
      %v1036 = vunpack.c.l.b16 %v970
      %v1037 = vunpack.c.l.b16 %v971
      %v1038 = vunpack.c.l.b16 %v972
      %v1039 = vunpack.c.l.b16 %v973
      %v1040 = vunpack.c.l.b16 %v974
      %v1041 = vunpack.c.l.b16 %v975
      %v1042 = vunpack.c.l.b16 %v976
      %v1043 = vunpack.c.l.b16 %v977
      %v1044 = vpack.c.b16 %v1012, %v1011
      %v1045 = vpack.c.b16 %v1014, %v1013
      %v1046 = vpack.c.b16 %v1016, %v1015
      %v1047 = vpack.c.b16 %v1018, %v1017
      %v1048 = vpack.c.b16 %v1020, %v1019
      %v1049 = vpack.c.b16 %v1022, %v1021
      %v1050 = vpack.c.b16 %v1024, %v1023
      %v1051 = vpack.c.b16 %v1026, %v1025
      %v1052 = vpack.c.b16 %v1028, %v1027
      %v1053 = vpack.c.b16 %v1030, %v1029
      %v1054 = vpack.c.b16 %v1032, %v1031
      %v1055 = vpack.c.b16 %v1034, %v1033
      %v1056 = vpack.c.b16 %v1036, %v1035
      %v1057 = vpack.c.b16 %v1038, %v1037
      %v1058 = vpack.c.b16 %v1040, %v1039
      %v1059 = vpack.c.b16 %v1042, %v1041
      %v1060 = vpack.c.b16 %v1043, %v1043
      %vm1061 = vsmask.f32 7424
      %v1063 = vshrl.u32 %v1044, 16
      %v1065 = vshll.u32 %v1044, 16
      %v1067 = vrot.slane %v1065, 1
      %v1068 = vor.u32 %v1063, %v1067
      %v1070 = vshll.u32 %v1045, 16
      %v1072 = vrot.slane %v1070, 1
      %v1073 = vsel %vm1061, %v1068, %v1072
      %v1074 = vshrl.u32 %v1045, 16
      %v1076 = vor.u32 %v1074, %v1072
      %v1078 = vshll.u32 %v1046, 16
      %v1080 = vrot.slane %v1078, 1
      %v1081 = vsel %vm1061, %v1076, %v1080
      %v1082 = vshrl.u32 %v1046, 16
      %v1084 = vor.u32 %v1082, %v1080
      %v1086 = vshll.u32 %v1047, 16
      %v1088 = vrot.slane %v1086, 1
      %v1089 = vsel %vm1061, %v1084, %v1088
      %v1090 = vshrl.u32 %v1047, 16
      %v1092 = vor.u32 %v1090, %v1088
      %v1094 = vshll.u32 %v1048, 16
      %v1096 = vrot.slane %v1094, 1
      %v1097 = vsel %vm1061, %v1092, %v1096
      %v1098 = vshrl.u32 %v1048, 16
      %v1100 = vor.u32 %v1098, %v1096
      %v1102 = vshll.u32 %v1049, 16
      %v1104 = vrot.slane %v1102, 1
      %v1105 = vsel %vm1061, %v1100, %v1104
      %v1106 = vshrl.u32 %v1049, 16
      %v1108 = vor.u32 %v1106, %v1104
      %v1110 = vshll.u32 %v1050, 16
      %v1112 = vrot.slane %v1110, 1
      %v1113 = vsel %vm1061, %v1108, %v1112
      %v1114 = vshrl.u32 %v1050, 16
      %v1116 = vor.u32 %v1114, %v1112
      %v1118 = vshll.u32 %v1051, 16
      %v1120 = vrot.slane %v1118, 1
      %v1121 = vsel %vm1061, %v1116, %v1120
      %v1122 = vshrl.u32 %v1051, 16
      %v1124 = vor.u32 %v1122, %v1120
      %v1126 = vshll.u32 %v1052, 16
      %v1128 = vrot.slane %v1126, 1
      %v1129 = vsel %vm1061, %v1124, %v1128
      %v1130 = vshrl.u32 %v1052, 16
      %v1132 = vor.u32 %v1130, %v1128
      %v1134 = vshll.u32 %v1053, 16
      %v1136 = vrot.slane %v1134, 1
      %v1137 = vsel %vm1061, %v1132, %v1136
      %v1138 = vshrl.u32 %v1053, 16
      %v1140 = vor.u32 %v1138, %v1136
      %v1142 = vshll.u32 %v1054, 16
      %v1144 = vrot.slane %v1142, 1
      %v1145 = vsel %vm1061, %v1140, %v1144
      %v1146 = vshrl.u32 %v1054, 16
      %v1148 = vor.u32 %v1146, %v1144
      %v1150 = vshll.u32 %v1055, 16
      %v1152 = vrot.slane %v1150, 1
      %v1153 = vsel %vm1061, %v1148, %v1152
      %v1154 = vshrl.u32 %v1055, 16
      %v1156 = vor.u32 %v1154, %v1152
      %v1158 = vshll.u32 %v1056, 16
      %v1160 = vrot.slane %v1158, 1
      %v1161 = vsel %vm1061, %v1156, %v1160
      %v1162 = vshrl.u32 %v1056, 16
      %v1164 = vor.u32 %v1162, %v1160
      %v1166 = vshll.u32 %v1057, 16
      %v1168 = vrot.slane %v1166, 1
      %v1169 = vsel %vm1061, %v1164, %v1168
      %v1170 = vshrl.u32 %v1057, 16
      %v1172 = vor.u32 %v1170, %v1168
      %v1174 = vshll.u32 %v1058, 16
      %v1176 = vrot.slane %v1174, 1
      %v1177 = vsel %vm1061, %v1172, %v1176
      %v1178 = vshrl.u32 %v1058, 16
      %v1180 = vor.u32 %v1178, %v1176
      %v1182 = vshll.u32 %v1059, 16
      %v1184 = vrot.slane %v1182, 1
      %v1185 = vsel %vm1061, %v1180, %v1184
      %v1186 = vshrl.u32 %v1059, 16
      %v1188 = vor.u32 %v1186, %v1184
      %v1190 = vshll.u32 %v1060, 16
      %v1192 = vrot.slane %v1190, 1
      %v1193 = vsel %vm1061, %v1188, %v1192
      %1194 = vrot.lane.b32.xlu0 %v1073, 64
      %v1195 = vpop.permute.xlu0 %1194
      %1196 = vrot.lane.b32.xlu0 %v1081, 64
      %v1197 = vpop.permute.xlu0 %1196
      %1198 = vrot.lane.b32.xlu0 %v1089, 64
      %v1199 = vpop.permute.xlu0 %1198
      %1200 = vrot.lane.b32.xlu0 %v1097, 64
      %v1201 = vpop.permute.xlu0 %1200
      %1202 = vrot.lane.b32.xlu0 %v1105, 64
      %v1203 = vpop.permute.xlu0 %1202
      %1204 = vrot.lane.b32.xlu0 %v1113, 64
      %v1205 = vpop.permute.xlu0 %1204
      %1206 = vrot.lane.b32.xlu0 %v1121, 64
      %v1207 = vpop.permute.xlu0 %1206
      %1208 = vrot.lane.b32.xlu0 %v1129, 64
      %v1209 = vpop.permute.xlu0 %1208
      %1210 = vrot.lane.b32.xlu0 %v1137, 64
      %v1211 = vpop.permute.xlu0 %1210
      %1212 = vrot.lane.b32.xlu0 %v1145, 64
      %v1213 = vpop.permute.xlu0 %1212
      %1214 = vrot.lane.b32.xlu0 %v1153, 64
      %v1215 = vpop.permute.xlu0 %1214
      %1216 = vrot.lane.b32.xlu0 %v1161, 64
      %v1217 = vpop.permute.xlu0 %1216
      %1218 = vrot.lane.b32.xlu0 %v1169, 64
      %v1219 = vpop.permute.xlu0 %1218
      %1220 = vrot.lane.b32.xlu0 %v1177, 64
      %v1221 = vpop.permute.xlu0 %1220
      %1222 = vrot.lane.b32.xlu0 %v1185, 64
      %v1223 = vpop.permute.xlu0 %1222
      %1224 = vrot.lane.b32.xlu0 %v1193, 64
      %v1225 = vpop.permute.xlu0 %1224
      %vm1242 = vcmask 1048064
      %1243 = vst.msk [vmem:[#allocation2] sm:$0xff] %vm1242, %v1195
      %1244 = vst.msk [vmem:[#allocation2 + $0x28] sm:$0xff] %vm1242, %v1197
      %1245 = vst.msk [vmem:[#allocation2 + $0x50] sm:$0xff] %vm1242, %v1199
      %1246 = vst.msk [vmem:[#allocation2 + $0x78] sm:$0xff] %vm1242, %v1201
      %1247 = vst.msk [vmem:[#allocation2 + $0xa0] sm:$0xff] %vm1242, %v1203
      %1248 = vst.msk [vmem:[#allocation2 + $0xc8] sm:$0xff] %vm1242, %v1205
      %1249 = vst.msk [vmem:[#allocation2 + $0xf0] sm:$0xff] %vm1242, %v1207
      %1250 = vst.msk [vmem:[#allocation2 + $0x118] sm:$0xff] %vm1242, %v1209
      %1251 = vst.msk [vmem:[#allocation2 + $0x140] sm:$0xff] %vm1242, %v1211
      %1252 = vst.msk [vmem:[#allocation2 + $0x168] sm:$0xff] %vm1242, %v1213
      %1253 = vst.msk [vmem:[#allocation2 + $0x190] sm:$0xff] %vm1242, %v1215
      %1254 = vst.msk [vmem:[#allocation2 + $0x1b8] sm:$0xff] %vm1242, %v1217
      %1255 = vst.msk [vmem:[#allocation2 + $0x1e0] sm:$0xff] %vm1242, %v1219
      %1256 = vst.msk [vmem:[#allocation2 + $0x208] sm:$0xff] %vm1242, %v1221
      %1257 = vst.msk [vmem:[#allocation2 + $0x230] sm:$0xff] %vm1242, %v1223
      %1258 = vst.msk [vmem:[#allocation2 + $0x258] sm:$0xff] %vm1242, %v1225
      %v1259 = vld [vmem:[%s246] sm:$0xe]
      %v1260 = vld [vmem:[%s246 + $0x4] sm:$0xf]
      %v1261 = vld [vmem:[%s246 + $0x8] sm:$0xf]
      %v1262 = vld [vmem:[%s246 + $0xc] sm:$0xf]
      %v1263 = vld [vmem:[%s246 + $0x10] sm:$0xf]
      %v1264 = vld [vmem:[%s246 + $0x14] sm:$0xf]
      %v1265 = vld [vmem:[%s246 + $0x18] sm:$0xf]
      %v1266 = vld [vmem:[%s246 + $0x1c] sm:$0xf]
      %v1267 = vld [vmem:[%s246 + $0x20] sm:$0xf]
      %v1268 = vld [vmem:[%s246 + $0x24] sm:$0xf]
      %v1269 = vld [vmem:[%s246 + $0x28] sm:$0xf]
      %v1270 = vld [vmem:[%s246 + $0x2c] sm:$0xf]
      %v1271 = vld [vmem:[%s246 + $0x30] sm:$0xf]
      %v1272 = vld [vmem:[%s246 + $0x34] sm:$0xf]
      %v1273 = vld [vmem:[%s246 + $0x38] sm:$0xf]
      %v1274 = vld [vmem:[%s246 + $0x3c] sm:$0xf]
      %v1275 = vld [vmem:[%s246 + $0x40] sm:$0xf]
      %v1276 = vld [vmem:[%s246 + $0x44] sm:$0xf]
      %v1277 = vld [vmem:[%s246 + $0x48] sm:$0xf]
      %v1278 = vld [vmem:[%s246 + $0x4c] sm:$0xf]
      %v1279 = vld [vmem:[%s246 + $0x50] sm:$0xf]
      %v1280 = vld [vmem:[%s246 + $0x54] sm:$0xf]
      %v1281 = vld [vmem:[%s246 + $0x58] sm:$0xf]
      %v1282 = vld [vmem:[%s246 + $0x5c] sm:$0xf]
      %v1283 = vld [vmem:[%s246 + $0x60] sm:$0xf]
      %v1284 = vld [vmem:[%s246 + $0x64] sm:$0xf]
      %v1285 = vld [vmem:[%s246 + $0x68] sm:$0xf]
      %v1286 = vld [vmem:[%s246 + $0x6c] sm:$0xf]
      %v1287 = vld [vmem:[%s246 + $0x70] sm:$0xf]
      %v1288 = vld [vmem:[%s246 + $0x74] sm:$0xf]
      %v1289 = vld [vmem:[%s246 + $0x78] sm:$0xf]
      %v1290 = vld [vmem:[%s246 + $0x7c] sm:$0xf]
      %v1291 = vld [vmem:[%s246 + $0x80] sm:$0x1]
      %vm1292 = vmpackc.low %vm704, %vm704
      %vm1293 = vmpackc.low %vm705, %vm705
      %vm1294 = vmpackc.low %vm706, %vm706
      %vm1295 = vmpackc.low %vm707, %vm707
      %vm1296 = vmpackc.low %vm708, %vm708
      %vm1297 = vmpackc.low %vm709, %vm709
      %vm1298 = vmpackc.low %vm710, %vm710
      %vm1299 = vmpackc.low %vm711, %vm711
      %vm1300 = vmpackc.low %vm712, %vm712
      %vm1301 = vmpackc.low %vm713, %vm713
      %vm1302 = vmpackc.low %vm714, %vm714
      %vm1303 = vmpackc.low %vm715, %vm715
      %vm1304 = vmpackc.low %vm716, %vm716
      %vm1305 = vmpackc.low %vm717, %vm717
      %vm1306 = vmpackc.low %vm718, %vm718
      %vm1307 = vmpackc.low %vm719, %vm719
      %vm1308 = vmpackc.low %vm720, %vm720
      %vm1309 = vmpackc.low %vm721, %vm721
      %vm1310 = vmpackc.low %vm722, %vm722
      %vm1311 = vmpackc.low %vm723, %vm723
      %vm1312 = vmpackc.low %vm724, %vm724
      %vm1313 = vmpackc.low %vm725, %vm725
      %vm1314 = vmpackc.low %vm726, %vm726
      %vm1315 = vmpackc.low %vm727, %vm727
      %vm1316 = vmpackc.low %vm728, %vm728
      %vm1317 = vmpackc.low %vm729, %vm729
      %vm1318 = vmpackc.low %vm730, %vm730
      %vm1319 = vmpackc.low %vm731, %vm731
      %vm1320 = vmpackc.low %vm732, %vm732
      %vm1321 = vmpackc.low %vm733, %vm733
      %vm1322 = vmpackc.low %vm734, %vm734
      %vm1323 = vmpackc.low %vm735, %vm735
      %v1324 = vsel %vm1292, 65537, 0
      %v1325 = vsel %vm1293, 65537, 0
      %v1326 = vsel %vm1294, 65537, 0
      %v1327 = vsel %vm1295, 65537, 0
      %v1328 = vsel %vm1296, 65537, 0
      %v1329 = vsel %vm1297, 65537, 0
      %v1330 = vsel %vm1298, 65537, 0
      %v1331 = vsel %vm1299, 65537, 0
      %v1332 = vsel %vm1300, 65537, 0
      %v1333 = vsel %vm1301, 65537, 0
      %v1334 = vsel %vm1302, 65537, 0
      %v1335 = vsel %vm1303, 65537, 0
      %v1336 = vsel %vm1304, 65537, 0
      %v1337 = vsel %vm1305, 65537, 0
      %v1338 = vsel %vm1306, 65537, 0
      %v1339 = vsel %vm1307, 65537, 0
      %v1340 = vsel %vm1308, 65537, 0
      %v1341 = vsel %vm1309, 65537, 0
      %v1342 = vsel %vm1310, 65537, 0
      %v1343 = vsel %vm1311, 65537, 0
      %v1344 = vsel %vm1312, 65537, 0
      %v1345 = vsel %vm1313, 65537, 0
      %v1346 = vsel %vm1314, 65537, 0
      %v1347 = vsel %vm1315, 65537, 0
      %v1348 = vsel %vm1316, 65537, 0
      %v1349 = vsel %vm1317, 65537, 0
      %v1350 = vsel %vm1318, 65537, 0
      %v1351 = vsel %vm1319, 65537, 0
      %v1352 = vsel %vm1320, 65537, 0
      %v1353 = vsel %vm1321, 65537, 0
      %v1354 = vsel %vm1322, 65537, 0
      %v1355 = vsel %vm1323, 65537, 0
      %vm1356 = vcmask 1040384
      %vm1357 = vcmask 1044484
      %vm1358 = vmor %vm1356, %vm1357
      %v1359 = vrot.slane %v1324, 7
      %v1360 = vrot.slane %v1359, 4
      %v1361 = vrot.slane %v1325, 7
      %v1362 = vsel %vm1358, %v1360, %v1361
      %v1363 = vrot.slane %v1361, 4
      %v1364 = vrot.slane %v1326, 7
      %v1365 = vsel %vm1358, %v1363, %v1364
      %v1366 = vrot.slane %v1364, 4
      %v1367 = vrot.slane %v1327, 7
      %v1368 = vsel %vm1358, %v1366, %v1367
      %v1369 = vrot.slane %v1367, 4
      %v1370 = vrot.slane %v1328, 7
      %v1371 = vsel %vm1358, %v1369, %v1370
      %v1372 = vrot.slane %v1370, 4
      %v1373 = vrot.slane %v1329, 7
      %v1374 = vsel %vm1358, %v1372, %v1373
      %v1375 = vrot.slane %v1373, 4
      %v1376 = vrot.slane %v1330, 7
      %v1377 = vsel %vm1358, %v1375, %v1376
      %v1378 = vrot.slane %v1376, 4
      %v1379 = vrot.slane %v1331, 7
      %v1380 = vsel %vm1358, %v1378, %v1379
      %v1381 = vrot.slane %v1379, 4
      %v1382 = vrot.slane %v1332, 7
      %v1383 = vsel %vm1358, %v1381, %v1382
      %v1384 = vrot.slane %v1382, 4
      %v1385 = vrot.slane %v1333, 7
      %v1386 = vsel %vm1358, %v1384, %v1385
      %v1387 = vrot.slane %v1385, 4
      %v1388 = vrot.slane %v1334, 7
      %v1389 = vsel %vm1358, %v1387, %v1388
      %v1390 = vrot.slane %v1388, 4
      %v1391 = vrot.slane %v1335, 7
      %v1392 = vsel %vm1358, %v1390, %v1391
      %v1393 = vrot.slane %v1391, 4
      %v1394 = vrot.slane %v1336, 7
      %v1395 = vsel %vm1358, %v1393, %v1394
      %v1396 = vrot.slane %v1394, 4
      %v1397 = vrot.slane %v1337, 7
      %v1398 = vsel %vm1358, %v1396, %v1397
      %v1399 = vrot.slane %v1397, 4
      %v1400 = vrot.slane %v1338, 7
      %v1401 = vsel %vm1358, %v1399, %v1400
      %v1402 = vrot.slane %v1400, 4
      %v1403 = vrot.slane %v1339, 7
      %v1404 = vsel %vm1358, %v1402, %v1403
      %v1405 = vrot.slane %v1403, 4
      %v1406 = vrot.slane %v1340, 7
      %v1407 = vsel %vm1358, %v1405, %v1406
      %v1408 = vrot.slane %v1406, 4
      %v1409 = vrot.slane %v1341, 7
      %v1410 = vsel %vm1358, %v1408, %v1409
      %v1411 = vrot.slane %v1409, 4
      %v1412 = vrot.slane %v1342, 7
      %v1413 = vsel %vm1358, %v1411, %v1412
      %v1414 = vrot.slane %v1412, 4
      %v1415 = vrot.slane %v1343, 7
      %v1416 = vsel %vm1358, %v1414, %v1415
      %v1417 = vrot.slane %v1415, 4
      %v1418 = vrot.slane %v1344, 7
      %v1419 = vsel %vm1358, %v1417, %v1418
      %v1420 = vrot.slane %v1418, 4
      %v1421 = vrot.slane %v1345, 7
      %v1422 = vsel %vm1358, %v1420, %v1421
      %v1423 = vrot.slane %v1421, 4
      %v1424 = vrot.slane %v1346, 7
      %v1425 = vsel %vm1358, %v1423, %v1424
      %v1426 = vrot.slane %v1424, 4
      %v1427 = vrot.slane %v1347, 7
      %v1428 = vsel %vm1358, %v1426, %v1427
      %v1429 = vrot.slane %v1427, 4
      %v1430 = vrot.slane %v1348, 7
      %v1431 = vsel %vm1358, %v1429, %v1430
      %v1432 = vrot.slane %v1430, 4
      %v1433 = vrot.slane %v1349, 7
      %v1434 = vsel %vm1358, %v1432, %v1433
      %v1435 = vrot.slane %v1433, 4
      %v1436 = vrot.slane %v1350, 7
      %v1437 = vsel %vm1358, %v1435, %v1436
      %v1438 = vrot.slane %v1436, 4
      %v1439 = vrot.slane %v1351, 7
      %v1440 = vsel %vm1358, %v1438, %v1439
      %v1441 = vrot.slane %v1439, 4
      %v1442 = vrot.slane %v1352, 7
      %v1443 = vsel %vm1358, %v1441, %v1442
      %v1444 = vrot.slane %v1442, 4
      %v1445 = vrot.slane %v1353, 7
      %v1446 = vsel %vm1358, %v1444, %v1445
      %v1447 = vrot.slane %v1445, 4
      %v1448 = vrot.slane %v1354, 7
      %v1449 = vsel %vm1358, %v1447, %v1448
      %v1450 = vrot.slane %v1448, 4
      %v1451 = vrot.slane %v1355, 7
      %v1452 = vsel %vm1358, %v1450, %v1451
      %v1453 = vrot.slane %v1451, 4
      %vm1454 = vcmp.ne.s16.totalorder %v1359, 0
      %vm1455 = vcmp.ne.s16.totalorder %v1362, 0
      %vm1456 = vcmp.ne.s16.totalorder %v1365, 0
      %vm1457 = vcmp.ne.s16.totalorder %v1368, 0
      %vm1458 = vcmp.ne.s16.totalorder %v1371, 0
      %vm1459 = vcmp.ne.s16.totalorder %v1374, 0
      %vm1460 = vcmp.ne.s16.totalorder %v1377, 0
      %vm1461 = vcmp.ne.s16.totalorder %v1380, 0
      %vm1462 = vcmp.ne.s16.totalorder %v1383, 0
      %vm1463 = vcmp.ne.s16.totalorder %v1386, 0
      %vm1464 = vcmp.ne.s16.totalorder %v1389, 0
      %vm1465 = vcmp.ne.s16.totalorder %v1392, 0
      %vm1466 = vcmp.ne.s16.totalorder %v1395, 0
      %vm1467 = vcmp.ne.s16.totalorder %v1398, 0
      %vm1468 = vcmp.ne.s16.totalorder %v1401, 0
      %vm1469 = vcmp.ne.s16.totalorder %v1404, 0
      %vm1470 = vcmp.ne.s16.totalorder %v1407, 0
      %vm1471 = vcmp.ne.s16.totalorder %v1410, 0
      %vm1472 = vcmp.ne.s16.totalorder %v1413, 0
      %vm1473 = vcmp.ne.s16.totalorder %v1416, 0
      %vm1474 = vcmp.ne.s16.totalorder %v1419, 0
      %vm1475 = vcmp.ne.s16.totalorder %v1422, 0
      %vm1476 = vcmp.ne.s16.totalorder %v1425, 0
      %vm1477 = vcmp.ne.s16.totalorder %v1428, 0
      %vm1478 = vcmp.ne.s16.totalorder %v1431, 0
      %vm1479 = vcmp.ne.s16.totalorder %v1434, 0
      %vm1480 = vcmp.ne.s16.totalorder %v1437, 0
      %vm1481 = vcmp.ne.s16.totalorder %v1440, 0
      %vm1482 = vcmp.ne.s16.totalorder %v1443, 0
      %vm1483 = vcmp.ne.s16.totalorder %v1446, 0
      %vm1484 = vcmp.ne.s16.totalorder %v1449, 0
      %vm1485 = vcmp.ne.s16.totalorder %v1452, 0
      %vm1486 = vcmp.ne.s16.totalorder %v1453, 0
      %v1487 = vsel %vm1454, %v1259, 0
      %v1488 = vsel %vm1455, %v1260, 0
      %v1489 = vsel %vm1456, %v1261, 0
      %v1490 = vsel %vm1457, %v1262, 0
      %v1491 = vsel %vm1458, %v1263, 0
      %v1492 = vsel %vm1459, %v1264, 0
      %v1493 = vsel %vm1460, %v1265, 0
      %v1494 = vsel %vm1461, %v1266, 0
      %v1495 = vsel %vm1462, %v1267, 0
      %v1496 = vsel %vm1463, %v1268, 0
      %v1497 = vsel %vm1464, %v1269, 0
      %v1498 = vsel %vm1465, %v1270, 0
      %v1499 = vsel %vm1466, %v1271, 0
      %v1500 = vsel %vm1467, %v1272, 0
      %v1501 = vsel %vm1468, %v1273, 0
      %v1502 = vsel %vm1469, %v1274, 0
      %v1503 = vsel %vm1470, %v1275, 0
      %v1504 = vsel %vm1471, %v1276, 0
      %v1505 = vsel %vm1472, %v1277, 0
      %v1506 = vsel %vm1473, %v1278, 0
      %v1507 = vsel %vm1474, %v1279, 0
      %v1508 = vsel %vm1475, %v1280, 0
      %v1509 = vsel %vm1476, %v1281, 0
      %v1510 = vsel %vm1477, %v1282, 0
      %v1511 = vsel %vm1478, %v1283, 0
      %v1512 = vsel %vm1479, %v1284, 0
      %v1513 = vsel %vm1480, %v1285, 0
      %v1514 = vsel %vm1481, %v1286, 0
      %v1515 = vsel %vm1482, %v1287, 0
      %v1516 = vsel %vm1483, %v1288, 0
      %v1517 = vsel %vm1484, %v1289, 0
      %v1518 = vsel %vm1485, %v1290, 0
      %v1519 = vsel %vm1486, %v1291, 0
      %v1553 = vunpack.c.l.b16 %v1487
      %v1554 = vunpack.c.l.b16 %v1488
      %v1555 = vunpack.c.l.b16 %v1489
      %v1556 = vunpack.c.l.b16 %v1490
      %v1557 = vunpack.c.l.b16 %v1491
      %v1558 = vunpack.c.l.b16 %v1492
      %v1559 = vunpack.c.l.b16 %v1493
      %v1560 = vunpack.c.l.b16 %v1494
      %v1561 = vunpack.c.l.b16 %v1495
      %v1562 = vunpack.c.l.b16 %v1496
      %v1563 = vunpack.c.l.b16 %v1497
      %v1564 = vunpack.c.l.b16 %v1498
      %v1565 = vunpack.c.l.b16 %v1499
      %v1566 = vunpack.c.l.b16 %v1500
      %v1567 = vunpack.c.l.b16 %v1501
      %v1568 = vunpack.c.l.b16 %v1502
      %v1569 = vunpack.c.l.b16 %v1503
      %v1570 = vunpack.c.l.b16 %v1504
      %v1571 = vunpack.c.l.b16 %v1505
      %v1572 = vunpack.c.l.b16 %v1506
      %v1573 = vunpack.c.l.b16 %v1507
      %v1574 = vunpack.c.l.b16 %v1508
      %v1575 = vunpack.c.l.b16 %v1509
      %v1576 = vunpack.c.l.b16 %v1510
      %v1577 = vunpack.c.l.b16 %v1511
      %v1578 = vunpack.c.l.b16 %v1512
      %v1579 = vunpack.c.l.b16 %v1513
      %v1580 = vunpack.c.l.b16 %v1514
      %v1581 = vunpack.c.l.b16 %v1515
      %v1582 = vunpack.c.l.b16 %v1516
      %v1583 = vunpack.c.l.b16 %v1517
      %v1584 = vunpack.c.l.b16 %v1518
      %v1585 = vunpack.c.l.b16 %v1519
      %v1586 = vpack.c.b16 %v1554, %v1553
      %v1587 = vpack.c.b16 %v1556, %v1555
      %v1588 = vpack.c.b16 %v1558, %v1557
      %v1589 = vpack.c.b16 %v1560, %v1559
      %v1590 = vpack.c.b16 %v1562, %v1561
      %v1591 = vpack.c.b16 %v1564, %v1563
      %v1592 = vpack.c.b16 %v1566, %v1565
      %v1593 = vpack.c.b16 %v1568, %v1567
      %v1594 = vpack.c.b16 %v1570, %v1569
      %v1595 = vpack.c.b16 %v1572, %v1571
      %v1596 = vpack.c.b16 %v1574, %v1573
      %v1597 = vpack.c.b16 %v1576, %v1575
      %v1598 = vpack.c.b16 %v1578, %v1577
      %v1599 = vpack.c.b16 %v1580, %v1579
      %v1600 = vpack.c.b16 %v1582, %v1581
      %v1601 = vpack.c.b16 %v1584, %v1583
      %v1602 = vpack.c.b16 %v1585, %v1585
      %vm1603 = vcmask 1046528
      %v1604 = vrot.slane %v1586, 1
      %v1605 = vrot.slane %v1587, 1
      %v1606 = vsel %vm1603, %v1604, %v1605
      %v1607 = vrot.slane %v1588, 1
      %v1608 = vsel %vm1603, %v1605, %v1607
      %v1609 = vrot.slane %v1589, 1
      %v1610 = vsel %vm1603, %v1607, %v1609
      %v1611 = vrot.slane %v1590, 1
      %v1612 = vsel %vm1603, %v1609, %v1611
      %v1613 = vrot.slane %v1591, 1
      %v1614 = vsel %vm1603, %v1611, %v1613
      %v1615 = vrot.slane %v1592, 1
      %v1616 = vsel %vm1603, %v1613, %v1615
      %v1617 = vrot.slane %v1593, 1
      %v1618 = vsel %vm1603, %v1615, %v1617
      %v1619 = vrot.slane %v1594, 1
      %v1620 = vsel %vm1603, %v1617, %v1619
      %v1621 = vrot.slane %v1595, 1
      %v1622 = vsel %vm1603, %v1619, %v1621
      %v1623 = vrot.slane %v1596, 1
      %v1624 = vsel %vm1603, %v1621, %v1623
      %v1625 = vrot.slane %v1597, 1
      %v1626 = vsel %vm1603, %v1623, %v1625
      %v1627 = vrot.slane %v1598, 1
      %v1628 = vsel %vm1603, %v1625, %v1627
      %v1629 = vrot.slane %v1599, 1
      %v1630 = vsel %vm1603, %v1627, %v1629
      %v1631 = vrot.slane %v1600, 1
      %v1632 = vsel %vm1603, %v1629, %v1631
      %v1633 = vrot.slane %v1601, 1
      %v1634 = vsel %vm1603, %v1631, %v1633
      %v1635 = vrot.slane %v1602, 1
      %v1636 = vsel %vm1603, %v1633, %v1635
      %1653 = vst.msk [vmem:[#allocation2 + $0x8] sm:$0xff] %vm928, %v1606
      %1654 = vst.msk [vmem:[#allocation2 + $0x30] sm:$0xff] %vm928, %v1608
      %1655 = vst.msk [vmem:[#allocation2 + $0x58] sm:$0xff] %vm928, %v1610
      %1656 = vst.msk [vmem:[#allocation2 + $0x80] sm:$0xff] %vm928, %v1612
      %1657 = vst.msk [vmem:[#allocation2 + $0xa8] sm:$0xff] %vm928, %v1614
      %1658 = vst.msk [vmem:[#allocation2 + $0xd0] sm:$0xff] %vm928, %v1616
      %1659 = vst.msk [vmem:[#allocation2 + $0xf8] sm:$0xff] %vm928, %v1618
      %1660 = vst.msk [vmem:[#allocation2 + $0x120] sm:$0xff] %vm928, %v1620
      %1661 = vst.msk [vmem:[#allocation2 + $0x148] sm:$0xff] %vm928, %v1622
      %1662 = vst.msk [vmem:[#allocation2 + $0x170] sm:$0xff] %vm928, %v1624
      %1663 = vst.msk [vmem:[#allocation2 + $0x198] sm:$0xff] %vm928, %v1626
      %1664 = vst.msk [vmem:[#allocation2 + $0x1c0] sm:$0xff] %vm928, %v1628
      %1665 = vst.msk [vmem:[#allocation2 + $0x1e8] sm:$0xff] %vm928, %v1630
      %1666 = vst.msk [vmem:[#allocation2 + $0x210] sm:$0xff] %vm928, %v1632
      %1667 = vst.msk [vmem:[#allocation2 + $0x238] sm:$0xff] %vm928, %v1634
      %1668 = vst.msk [vmem:[#allocation2 + $0x260] sm:$0xff] %vm928, %v1636
      %v1669 = vld [vmem:[%s246 + $0x8] sm:$0xf]
      %v1670 = vld [vmem:[%s246 + $0xc] sm:$0xf]
      %v1671 = vld [vmem:[%s246 + $0x10] sm:$0xf]
      %v1672 = vld [vmem:[%s246 + $0x14] sm:$0xf]
      %v1673 = vld [vmem:[%s246 + $0x18] sm:$0xf]
      %v1674 = vld [vmem:[%s246 + $0x1c] sm:$0xf]
      %v1675 = vld [vmem:[%s246 + $0x20] sm:$0xf]
      %v1676 = vld [vmem:[%s246 + $0x24] sm:$0xf]
      %v1677 = vld [vmem:[%s246 + $0x28] sm:$0xf]
      %v1678 = vld [vmem:[%s246 + $0x2c] sm:$0xf]
      %v1679 = vld [vmem:[%s246 + $0x30] sm:$0xf]
      %v1680 = vld [vmem:[%s246 + $0x34] sm:$0xf]
      %v1681 = vld [vmem:[%s246 + $0x38] sm:$0xf]
      %v1682 = vld [vmem:[%s246 + $0x3c] sm:$0xf]
      %v1683 = vld [vmem:[%s246 + $0x40] sm:$0xf]
      %v1684 = vld [vmem:[%s246 + $0x44] sm:$0xf]
      %v1685 = vld [vmem:[%s246 + $0x48] sm:$0xf]
      %v1686 = vld [vmem:[%s246 + $0x4c] sm:$0xf]
      %v1687 = vld [vmem:[%s246 + $0x50] sm:$0xf]
      %v1688 = vld [vmem:[%s246 + $0x54] sm:$0xf]
      %v1689 = vld [vmem:[%s246 + $0x58] sm:$0xf]
      %v1690 = vld [vmem:[%s246 + $0x5c] sm:$0xf]
      %v1691 = vld [vmem:[%s246 + $0x60] sm:$0xf]
      %v1692 = vld [vmem:[%s246 + $0x64] sm:$0xf]
      %v1693 = vld [vmem:[%s246 + $0x68] sm:$0xf]
      %v1694 = vld [vmem:[%s246 + $0x6c] sm:$0xf]
      %v1695 = vld [vmem:[%s246 + $0x70] sm:$0xf]
      %v1696 = vld [vmem:[%s246 + $0x74] sm:$0xf]
      %v1697 = vld [vmem:[%s246 + $0x78] sm:$0xf]
      %v1698 = vld [vmem:[%s246 + $0x7c] sm:$0xf]
      %v1699 = vld [vmem:[%s246 + $0x80] sm:$0xf]
      %v1700 = vld [vmem:[%s246 + $0x84] sm:$0xf]
      %v1701 = vsel %vm768, %v1669, 0
      %v1702 = vsel %vm769, %v1670, 0
      %v1703 = vsel %vm770, %v1671, 0
      %v1704 = vsel %vm771, %v1672, 0
      %v1705 = vsel %vm772, %v1673, 0
      %v1706 = vsel %vm773, %v1674, 0
      %v1707 = vsel %vm774, %v1675, 0
      %v1708 = vsel %vm775, %v1676, 0
      %v1709 = vsel %vm776, %v1677, 0
      %v1710 = vsel %vm777, %v1678, 0
      %v1711 = vsel %vm778, %v1679, 0
      %v1712 = vsel %vm779, %v1680, 0
      %v1713 = vsel %vm780, %v1681, 0
      %v1714 = vsel %vm781, %v1682, 0
      %v1715 = vsel %vm782, %v1683, 0
      %v1716 = vsel %vm783, %v1684, 0
      %v1717 = vsel %vm784, %v1685, 0
      %v1718 = vsel %vm785, %v1686, 0
      %v1719 = vsel %vm786, %v1687, 0
      %v1720 = vsel %vm787, %v1688, 0
      %v1721 = vsel %vm788, %v1689, 0
      %v1722 = vsel %vm789, %v1690, 0
      %v1723 = vsel %vm790, %v1691, 0
      %v1724 = vsel %vm791, %v1692, 0
      %v1725 = vsel %vm792, %v1693, 0
      %v1726 = vsel %vm793, %v1694, 0
      %v1727 = vsel %vm794, %v1695, 0
      %v1728 = vsel %vm795, %v1696, 0
      %v1729 = vsel %vm796, %v1697, 0
      %v1730 = vsel %vm797, %v1698, 0
      %v1731 = vsel %vm798, %v1699, 0
      %v1732 = vsel %vm799, %v1700, 0
      %v1765 = vunpack.c.l.b16 %v1701
      %v1766 = vunpack.c.l.b16 %v1702
      %v1767 = vunpack.c.l.b16 %v1703
      %v1768 = vunpack.c.l.b16 %v1704
      %v1769 = vunpack.c.l.b16 %v1705
      %v1770 = vunpack.c.l.b16 %v1706
      %v1771 = vunpack.c.l.b16 %v1707
      %v1772 = vunpack.c.l.b16 %v1708
      %v1773 = vunpack.c.l.b16 %v1709
      %v1774 = vunpack.c.l.b16 %v1710
      %v1775 = vunpack.c.l.b16 %v1711
      %v1776 = vunpack.c.l.b16 %v1712
      %v1777 = vunpack.c.l.b16 %v1713
      %v1778 = vunpack.c.l.b16 %v1714
      %v1779 = vunpack.c.l.b16 %v1715
      %v1780 = vunpack.c.l.b16 %v1716
      %v1781 = vunpack.c.l.b16 %v1717
      %v1782 = vunpack.c.l.b16 %v1718
      %v1783 = vunpack.c.l.b16 %v1719
      %v1784 = vunpack.c.l.b16 %v1720
      %v1785 = vunpack.c.l.b16 %v1721
      %v1786 = vunpack.c.l.b16 %v1722
      %v1787 = vunpack.c.l.b16 %v1723
      %v1788 = vunpack.c.l.b16 %v1724
      %v1789 = vunpack.c.l.b16 %v1725
      %v1790 = vunpack.c.l.b16 %v1726
      %v1791 = vunpack.c.l.b16 %v1727
      %v1792 = vunpack.c.l.b16 %v1728
      %v1793 = vunpack.c.l.b16 %v1729
      %v1794 = vunpack.c.l.b16 %v1730
      %v1795 = vunpack.c.l.b16 %v1731
      %v1796 = vunpack.c.l.b16 %v1732
      %v1797 = vpack.c.b16 %v1766, %v1765
      %v1798 = vpack.c.b16 %v1768, %v1767
      %v1799 = vpack.c.b16 %v1770, %v1769
      %v1800 = vpack.c.b16 %v1772, %v1771
      %v1801 = vpack.c.b16 %v1774, %v1773
      %v1802 = vpack.c.b16 %v1776, %v1775
      %v1803 = vpack.c.b16 %v1778, %v1777
      %v1804 = vpack.c.b16 %v1780, %v1779
      %v1805 = vpack.c.b16 %v1782, %v1781
      %v1806 = vpack.c.b16 %v1784, %v1783
      %v1807 = vpack.c.b16 %v1786, %v1785
      %v1808 = vpack.c.b16 %v1788, %v1787
      %v1809 = vpack.c.b16 %v1790, %v1789
      %v1810 = vpack.c.b16 %v1792, %v1791
      %v1811 = vpack.c.b16 %v1794, %v1793
      %v1812 = vpack.c.b16 %v1796, %v1795
      %1813 = vrot.lane.b32.xlu0 %v1797, 64
      %v1814 = vpop.permute.xlu0 %1813
      %1815 = vrot.lane.b32.xlu0 %v1798, 64
      %v1816 = vpop.permute.xlu0 %1815
      %1817 = vrot.lane.b32.xlu0 %v1799, 64
      %v1818 = vpop.permute.xlu0 %1817
      %1819 = vrot.lane.b32.xlu0 %v1800, 64
      %v1820 = vpop.permute.xlu0 %1819
      %1821 = vrot.lane.b32.xlu0 %v1801, 64
      %v1822 = vpop.permute.xlu0 %1821
      %1823 = vrot.lane.b32.xlu0 %v1802, 64
      %v1824 = vpop.permute.xlu0 %1823
      %1825 = vrot.lane.b32.xlu0 %v1803, 64
      %v1826 = vpop.permute.xlu0 %1825
      %1827 = vrot.lane.b32.xlu0 %v1804, 64
      %v1828 = vpop.permute.xlu0 %1827
      %1829 = vrot.lane.b32.xlu0 %v1805, 64
      %v1830 = vpop.permute.xlu0 %1829
      %1831 = vrot.lane.b32.xlu0 %v1806, 64
      %v1832 = vpop.permute.xlu0 %1831
      %1833 = vrot.lane.b32.xlu0 %v1807, 64
      %v1834 = vpop.permute.xlu0 %1833
      %1835 = vrot.lane.b32.xlu0 %v1808, 64
      %v1836 = vpop.permute.xlu0 %1835
      %1837 = vrot.lane.b32.xlu0 %v1809, 64
      %v1838 = vpop.permute.xlu0 %1837
      %1839 = vrot.lane.b32.xlu0 %v1810, 64
      %v1840 = vpop.permute.xlu0 %1839
      %1841 = vrot.lane.b32.xlu0 %v1811, 64
      %v1842 = vpop.permute.xlu0 %1841
      %1843 = vrot.lane.b32.xlu0 %v1812, 64
      %v1844 = vpop.permute.xlu0 %1843
      %1861 = vst.msk [vmem:[#allocation2 + $0x8] sm:$0xff] %vm1242, %v1814
      %1862 = vst.msk [vmem:[#allocation2 + $0x30] sm:$0xff] %vm1242, %v1816
      %1863 = vst.msk [vmem:[#allocation2 + $0x58] sm:$0xff] %vm1242, %v1818
      %1864 = vst.msk [vmem:[#allocation2 + $0x80] sm:$0xff] %vm1242, %v1820
      %1865 = vst.msk [vmem:[#allocation2 + $0xa8] sm:$0xff] %vm1242, %v1822
      %1866 = vst.msk [vmem:[#allocation2 + $0xd0] sm:$0xff] %vm1242, %v1824
      %1867 = vst.msk [vmem:[#allocation2 + $0xf8] sm:$0xff] %vm1242, %v1826
      %1868 = vst.msk [vmem:[#allocation2 + $0x120] sm:$0xff] %vm1242, %v1828
      %1869 = vst.msk [vmem:[#allocation2 + $0x148] sm:$0xff] %vm1242, %v1830
      %1870 = vst.msk [vmem:[#allocation2 + $0x170] sm:$0xff] %vm1242, %v1832
      %1871 = vst.msk [vmem:[#allocation2 + $0x198] sm:$0xff] %vm1242, %v1834
      %1872 = vst.msk [vmem:[#allocation2 + $0x1c0] sm:$0xff] %vm1242, %v1836
      %1873 = vst.msk [vmem:[#allocation2 + $0x1e8] sm:$0xff] %vm1242, %v1838
      %1874 = vst.msk [vmem:[#allocation2 + $0x210] sm:$0xff] %vm1242, %v1840
      %1875 = vst.msk [vmem:[#allocation2 + $0x238] sm:$0xff] %vm1242, %v1842
      %1876 = vst.msk [vmem:[#allocation2 + $0x260] sm:$0xff] %vm1242, %v1844
      %v1877 = vld [vmem:[%s246 + $0x8] sm:$0xf]
      %v1878 = vld [vmem:[%s246 + $0xc] sm:$0xf]
      %v1879 = vld [vmem:[%s246 + $0x10] sm:$0xf]
      %v1880 = vld [vmem:[%s246 + $0x14] sm:$0xf]
      %v1881 = vld [vmem:[%s246 + $0x18] sm:$0xf]
      %v1882 = vld [vmem:[%s246 + $0x1c] sm:$0xf]
      %v1883 = vld [vmem:[%s246 + $0x20] sm:$0xf]
      %v1884 = vld [vmem:[%s246 + $0x24] sm:$0xf]
      %v1885 = vld [vmem:[%s246 + $0x28] sm:$0xf]
      %v1886 = vld [vmem:[%s246 + $0x2c] sm:$0xf]
      %v1887 = vld [vmem:[%s246 + $0x30] sm:$0xf]
      %v1888 = vld [vmem:[%s246 + $0x34] sm:$0xf]
      %v1889 = vld [vmem:[%s246 + $0x38] sm:$0xf]
      %v1890 = vld [vmem:[%s246 + $0x3c] sm:$0xf]
      %v1891 = vld [vmem:[%s246 + $0x40] sm:$0xf]
      %v1892 = vld [vmem:[%s246 + $0x44] sm:$0xf]
      %v1893 = vld [vmem:[%s246 + $0x48] sm:$0xf]
      %v1894 = vld [vmem:[%s246 + $0x4c] sm:$0xf]
      %v1895 = vld [vmem:[%s246 + $0x50] sm:$0xf]
      %v1896 = vld [vmem:[%s246 + $0x54] sm:$0xf]
      %v1897 = vld [vmem:[%s246 + $0x58] sm:$0xf]
      %v1898 = vld [vmem:[%s246 + $0x5c] sm:$0xf]
      %v1899 = vld [vmem:[%s246 + $0x60] sm:$0xf]
      %v1900 = vld [vmem:[%s246 + $0x64] sm:$0xf]
      %v1901 = vld [vmem:[%s246 + $0x68] sm:$0xf]
      %v1902 = vld [vmem:[%s246 + $0x6c] sm:$0xf]
      %v1903 = vld [vmem:[%s246 + $0x70] sm:$0xf]
      %v1904 = vld [vmem:[%s246 + $0x74] sm:$0xf]
      %v1905 = vld [vmem:[%s246 + $0x78] sm:$0xf]
      %v1906 = vld [vmem:[%s246 + $0x7c] sm:$0xf]
      %v1907 = vld [vmem:[%s246 + $0x80] sm:$0xf]
      %v1908 = vld [vmem:[%s246 + $0x84] sm:$0xf]
      %v1909 = vld [vmem:[%s246 + $0x88] sm:$0x1]
      %v1943 = vunpack.c.l.b16 %v1877
      %v1944 = vunpack.c.l.b16 %v1878
      %v1945 = vunpack.c.l.b16 %v1879
      %v1946 = vunpack.c.l.b16 %v1880
      %v1947 = vunpack.c.l.b16 %v1881
      %v1948 = vunpack.c.l.b16 %v1882
      %v1949 = vunpack.c.l.b16 %v1883
      %v1950 = vunpack.c.l.b16 %v1884
      %v1951 = vunpack.c.l.b16 %v1885
      %v1952 = vunpack.c.l.b16 %v1886
      %v1953 = vunpack.c.l.b16 %v1887
      %v1954 = vunpack.c.l.b16 %v1888
      %v1955 = vunpack.c.l.b16 %v1889
      %v1956 = vunpack.c.l.b16 %v1890
      %v1957 = vunpack.c.l.b16 %v1891
      %v1958 = vunpack.c.l.b16 %v1892
      %v1959 = vunpack.c.l.b16 %v1893
      %v1960 = vunpack.c.l.b16 %v1894
      %v1961 = vunpack.c.l.b16 %v1895
      %v1962 = vunpack.c.l.b16 %v1896
      %v1963 = vunpack.c.l.b16 %v1897
      %v1964 = vunpack.c.l.b16 %v1898
      %v1965 = vunpack.c.l.b16 %v1899
      %v1966 = vunpack.c.l.b16 %v1900
      %v1967 = vunpack.c.l.b16 %v1901
      %v1968 = vunpack.c.l.b16 %v1902
      %v1969 = vunpack.c.l.b16 %v1903
      %v1970 = vunpack.c.l.b16 %v1904
      %v1971 = vunpack.c.l.b16 %v1905
      %v1972 = vunpack.c.l.b16 %v1906
      %v1973 = vunpack.c.l.b16 %v1907
      %v1974 = vunpack.c.l.b16 %v1908
      %v1975 = vunpack.c.l.b16 %v1909
      %v1976 = vpack.c.b16 %v1944, %v1943
      %v1977 = vpack.c.b16 %v1946, %v1945
      %v1978 = vpack.c.b16 %v1948, %v1947
      %v1979 = vpack.c.b16 %v1950, %v1949
      %v1980 = vpack.c.b16 %v1952, %v1951
      %v1981 = vpack.c.b16 %v1954, %v1953
      %v1982 = vpack.c.b16 %v1956, %v1955
      %v1983 = vpack.c.b16 %v1958, %v1957
      %v1984 = vpack.c.b16 %v1960, %v1959
      %v1985 = vpack.c.b16 %v1962, %v1961
      %v1986 = vpack.c.b16 %v1964, %v1963
      %v1987 = vpack.c.b16 %v1966, %v1965
      %v1988 = vpack.c.b16 %v1968, %v1967
      %v1989 = vpack.c.b16 %v1970, %v1969
      %v1990 = vpack.c.b16 %v1972, %v1971
      %v1991 = vpack.c.b16 %v1974, %v1973
      %v1992 = vpack.c.b16 %v1975, %v1975
      %v1994 = vshrl.u32 %v1976, 16
      %v1996 = vshll.u32 %v1976, 16
      %v1998 = vrot.slane %v1996, 1
      %v1999 = vor.u32 %v1994, %v1998
      %v2001 = vshll.u32 %v1977, 16
      %v2003 = vrot.slane %v2001, 1
      %v2004 = vsel %vm1061, %v1999, %v2003
      %v2005 = vshrl.u32 %v1977, 16
      %v2007 = vor.u32 %v2005, %v2003
      %v2009 = vshll.u32 %v1978, 16
      %v2011 = vrot.slane %v2009, 1
      %v2012 = vsel %vm1061, %v2007, %v2011
      %v2013 = vshrl.u32 %v1978, 16
      %v2015 = vor.u32 %v2013, %v2011
      %v2017 = vshll.u32 %v1979, 16
      %v2019 = vrot.slane %v2017, 1
      %v2020 = vsel %vm1061, %v2015, %v2019
      %v2021 = vshrl.u32 %v1979, 16
      %v2023 = vor.u32 %v2021, %v2019
      %v2025 = vshll.u32 %v1980, 16
      %v2027 = vrot.slane %v2025, 1
      %v2028 = vsel %vm1061, %v2023, %v2027
      %v2029 = vshrl.u32 %v1980, 16
      %v2031 = vor.u32 %v2029, %v2027
      %v2033 = vshll.u32 %v1981, 16
      %v2035 = vrot.slane %v2033, 1
      %v2036 = vsel %vm1061, %v2031, %v2035
      %v2037 = vshrl.u32 %v1981, 16
      %v2039 = vor.u32 %v2037, %v2035
      %v2041 = vshll.u32 %v1982, 16
      %v2043 = vrot.slane %v2041, 1
      %v2044 = vsel %vm1061, %v2039, %v2043
      %v2045 = vshrl.u32 %v1982, 16
      %v2047 = vor.u32 %v2045, %v2043
      %v2049 = vshll.u32 %v1983, 16
      %v2051 = vrot.slane %v2049, 1
      %v2052 = vsel %vm1061, %v2047, %v2051
      %v2053 = vshrl.u32 %v1983, 16
      %v2055 = vor.u32 %v2053, %v2051
      %v2057 = vshll.u32 %v1984, 16
      %v2059 = vrot.slane %v2057, 1
      %v2060 = vsel %vm1061, %v2055, %v2059
      %v2061 = vshrl.u32 %v1984, 16
      %v2063 = vor.u32 %v2061, %v2059
      %v2065 = vshll.u32 %v1985, 16
      %v2067 = vrot.slane %v2065, 1
      %v2068 = vsel %vm1061, %v2063, %v2067
      %v2069 = vshrl.u32 %v1985, 16
      %v2071 = vor.u32 %v2069, %v2067
      %v2073 = vshll.u32 %v1986, 16
      %v2075 = vrot.slane %v2073, 1
      %v2076 = vsel %vm1061, %v2071, %v2075
      %v2077 = vshrl.u32 %v1986, 16
      %v2079 = vor.u32 %v2077, %v2075
      %v2081 = vshll.u32 %v1987, 16
      %v2083 = vrot.slane %v2081, 1
      %v2084 = vsel %vm1061, %v2079, %v2083
      %v2085 = vshrl.u32 %v1987, 16
      %v2087 = vor.u32 %v2085, %v2083
      %v2089 = vshll.u32 %v1988, 16
      %v2091 = vrot.slane %v2089, 1
      %v2092 = vsel %vm1061, %v2087, %v2091
      %v2093 = vshrl.u32 %v1988, 16
      %v2095 = vor.u32 %v2093, %v2091
      %v2097 = vshll.u32 %v1989, 16
      %v2099 = vrot.slane %v2097, 1
      %v2100 = vsel %vm1061, %v2095, %v2099
      %v2101 = vshrl.u32 %v1989, 16
      %v2103 = vor.u32 %v2101, %v2099
      %v2105 = vshll.u32 %v1990, 16
      %v2107 = vrot.slane %v2105, 1
      %v2108 = vsel %vm1061, %v2103, %v2107
      %v2109 = vshrl.u32 %v1990, 16
      %v2111 = vor.u32 %v2109, %v2107
      %v2113 = vshll.u32 %v1991, 16
      %v2115 = vrot.slane %v2113, 1
      %v2116 = vsel %vm1061, %v2111, %v2115
      %v2117 = vshrl.u32 %v1991, 16
      %v2119 = vor.u32 %v2117, %v2115
      %v2121 = vshll.u32 %v1992, 16
      %v2123 = vrot.slane %v2121, 1
      %v2124 = vsel %vm1061, %v2119, %v2123
      %2141 = vst.msk [vmem:[#allocation2 + $0x10] sm:$0xff] %vm928, %v2004
      %2142 = vst.msk [vmem:[#allocation2 + $0x38] sm:$0xff] %vm928, %v2012
      %2143 = vst.msk [vmem:[#allocation2 + $0x60] sm:$0xff] %vm928, %v2020
      %2144 = vst.msk [vmem:[#allocation2 + $0x88] sm:$0xff] %vm928, %v2028
      %2145 = vst.msk [vmem:[#allocation2 + $0xb0] sm:$0xff] %vm928, %v2036
      %2146 = vst.msk [vmem:[#allocation2 + $0xd8] sm:$0xff] %vm928, %v2044
      %2147 = vst.msk [vmem:[#allocation2 + $0x100] sm:$0xff] %vm928, %v2052
      %2148 = vst.msk [vmem:[#allocation2 + $0x128] sm:$0xff] %vm928, %v2060
      %2149 = vst.msk [vmem:[#allocation2 + $0x150] sm:$0xff] %vm928, %v2068
      %2150 = vst.msk [vmem:[#allocation2 + $0x178] sm:$0xff] %vm928, %v2076
      %2151 = vst.msk [vmem:[#allocation2 + $0x1a0] sm:$0xff] %vm928, %v2084
      %2152 = vst.msk [vmem:[#allocation2 + $0x1c8] sm:$0xff] %vm928, %v2092
      %2153 = vst.msk [vmem:[#allocation2 + $0x1f0] sm:$0xff] %vm928, %v2100
      %2154 = vst.msk [vmem:[#allocation2 + $0x218] sm:$0xff] %vm928, %v2108
      %2155 = vst.msk [vmem:[#allocation2 + $0x240] sm:$0xff] %vm928, %v2116
      %2156 = vst.msk [vmem:[#allocation2 + $0x268] sm:$0xff] %vm928, %v2124
      %v2157 = vld [vmem:[%s246 + $0x8] sm:$0xe]
      %v2158 = vld [vmem:[%s246 + $0xc] sm:$0xf]
      %v2159 = vld [vmem:[%s246 + $0x10] sm:$0xf]
      %v2160 = vld [vmem:[%s246 + $0x14] sm:$0xf]
      %v2161 = vld [vmem:[%s246 + $0x18] sm:$0xf]
      %v2162 = vld [vmem:[%s246 + $0x1c] sm:$0xf]
      %v2163 = vld [vmem:[%s246 + $0x20] sm:$0xf]
      %v2164 = vld [vmem:[%s246 + $0x24] sm:$0xf]
      %v2165 = vld [vmem:[%s246 + $0x28] sm:$0xf]
      %v2166 = vld [vmem:[%s246 + $0x2c] sm:$0xf]
      %v2167 = vld [vmem:[%s246 + $0x30] sm:$0xf]
      %v2168 = vld [vmem:[%s246 + $0x34] sm:$0xf]
      %v2169 = vld [vmem:[%s246 + $0x38] sm:$0xf]
      %v2170 = vld [vmem:[%s246 + $0x3c] sm:$0xf]
      %v2171 = vld [vmem:[%s246 + $0x40] sm:$0xf]
      %v2172 = vld [vmem:[%s246 + $0x44] sm:$0xf]
      %v2173 = vld [vmem:[%s246 + $0x48] sm:$0xf]
      %v2174 = vld [vmem:[%s246 + $0x4c] sm:$0xf]
      %v2175 = vld [vmem:[%s246 + $0x50] sm:$0xf]
      %v2176 = vld [vmem:[%s246 + $0x54] sm:$0xf]
      %v2177 = vld [vmem:[%s246 + $0x58] sm:$0xf]
      %v2178 = vld [vmem:[%s246 + $0x5c] sm:$0xf]
      %v2179 = vld [vmem:[%s246 + $0x60] sm:$0xf]
      %v2180 = vld [vmem:[%s246 + $0x64] sm:$0xf]
      %v2181 = vld [vmem:[%s246 + $0x68] sm:$0xf]
      %v2182 = vld [vmem:[%s246 + $0x6c] sm:$0xf]
      %v2183 = vld [vmem:[%s246 + $0x70] sm:$0xf]
      %v2184 = vld [vmem:[%s246 + $0x74] sm:$0xf]
      %v2185 = vld [vmem:[%s246 + $0x78] sm:$0xf]
      %v2186 = vld [vmem:[%s246 + $0x7c] sm:$0xf]
      %v2187 = vld [vmem:[%s246 + $0x80] sm:$0xf]
      %v2188 = vld [vmem:[%s246 + $0x84] sm:$0xf]
      %v2189 = vld [vmem:[%s246 + $0x88] sm:$0x1]
      %v2190 = vsel %vm1454, %v2157, 0
      %v2191 = vsel %vm1455, %v2158, 0
      %v2192 = vsel %vm1456, %v2159, 0
      %v2193 = vsel %vm1457, %v2160, 0
      %v2194 = vsel %vm1458, %v2161, 0
      %v2195 = vsel %vm1459, %v2162, 0
      %v2196 = vsel %vm1460, %v2163, 0
      %v2197 = vsel %vm1461, %v2164, 0
      %v2198 = vsel %vm1462, %v2165, 0
      %v2199 = vsel %vm1463, %v2166, 0
      %v2200 = vsel %vm1464, %v2167, 0
      %v2201 = vsel %vm1465, %v2168, 0
      %v2202 = vsel %vm1466, %v2169, 0
      %v2203 = vsel %vm1467, %v2170, 0
      %v2204 = vsel %vm1468, %v2171, 0
      %v2205 = vsel %vm1469, %v2172, 0
      %v2206 = vsel %vm1470, %v2173, 0
      %v2207 = vsel %vm1471, %v2174, 0
      %v2208 = vsel %vm1472, %v2175, 0
      %v2209 = vsel %vm1473, %v2176, 0
      %v2210 = vsel %vm1474, %v2177, 0
      %v2211 = vsel %vm1475, %v2178, 0
      %v2212 = vsel %vm1476, %v2179, 0
      %v2213 = vsel %vm1477, %v2180, 0
      %v2214 = vsel %vm1478, %v2181, 0
      %v2215 = vsel %vm1479, %v2182, 0
      %v2216 = vsel %vm1480, %v2183, 0
      %v2217 = vsel %vm1481, %v2184, 0
      %v2218 = vsel %vm1482, %v2185, 0
      %v2219 = vsel %vm1483, %v2186, 0
      %v2220 = vsel %vm1484, %v2187, 0
      %v2221 = vsel %vm1485, %v2188, 0
      %v2222 = vsel %vm1486, %v2189, 0
      %v2256 = vunpack.c.l.b16 %v2190
      %v2257 = vunpack.c.l.b16 %v2191
      %v2258 = vunpack.c.l.b16 %v2192
      %v2259 = vunpack.c.l.b16 %v2193
      %v2260 = vunpack.c.l.b16 %v2194
      %v2261 = vunpack.c.l.b16 %v2195
      %v2262 = vunpack.c.l.b16 %v2196
      %v2263 = vunpack.c.l.b16 %v2197
      %v2264 = vunpack.c.l.b16 %v2198
      %v2265 = vunpack.c.l.b16 %v2199
      %v2266 = vunpack.c.l.b16 %v2200
      %v2267 = vunpack.c.l.b16 %v2201
      %v2268 = vunpack.c.l.b16 %v2202
      %v2269 = vunpack.c.l.b16 %v2203
      %v2270 = vunpack.c.l.b16 %v2204
      %v2271 = vunpack.c.l.b16 %v2205
      %v2272 = vunpack.c.l.b16 %v2206
      %v2273 = vunpack.c.l.b16 %v2207
      %v2274 = vunpack.c.l.b16 %v2208
      %v2275 = vunpack.c.l.b16 %v2209
      %v2276 = vunpack.c.l.b16 %v2210
      %v2277 = vunpack.c.l.b16 %v2211
      %v2278 = vunpack.c.l.b16 %v2212
      %v2279 = vunpack.c.l.b16 %v2213
      %v2280 = vunpack.c.l.b16 %v2214
      %v2281 = vunpack.c.l.b16 %v2215
      %v2282 = vunpack.c.l.b16 %v2216
      %v2283 = vunpack.c.l.b16 %v2217
      %v2284 = vunpack.c.l.b16 %v2218
      %v2285 = vunpack.c.l.b16 %v2219
      %v2286 = vunpack.c.l.b16 %v2220
      %v2287 = vunpack.c.l.b16 %v2221
      %v2288 = vunpack.c.l.b16 %v2222
      %v2289 = vpack.c.b16 %v2257, %v2256
      %v2290 = vpack.c.b16 %v2259, %v2258
      %v2291 = vpack.c.b16 %v2261, %v2260
      %v2292 = vpack.c.b16 %v2263, %v2262
      %v2293 = vpack.c.b16 %v2265, %v2264
      %v2294 = vpack.c.b16 %v2267, %v2266
      %v2295 = vpack.c.b16 %v2269, %v2268
      %v2296 = vpack.c.b16 %v2271, %v2270
      %v2297 = vpack.c.b16 %v2273, %v2272
      %v2298 = vpack.c.b16 %v2275, %v2274
      %v2299 = vpack.c.b16 %v2277, %v2276
      %v2300 = vpack.c.b16 %v2279, %v2278
      %v2301 = vpack.c.b16 %v2281, %v2280
      %v2302 = vpack.c.b16 %v2283, %v2282
      %v2303 = vpack.c.b16 %v2285, %v2284
      %v2304 = vpack.c.b16 %v2287, %v2286
      %v2305 = vpack.c.b16 %v2288, %v2288
      %v2306 = vrot.slane %v2289, 1
      %v2307 = vrot.slane %v2290, 1
      %v2308 = vsel %vm1603, %v2306, %v2307
      %v2309 = vrot.slane %v2291, 1
      %v2310 = vsel %vm1603, %v2307, %v2309
      %v2311 = vrot.slane %v2292, 1
      %v2312 = vsel %vm1603, %v2309, %v2311
      %v2313 = vrot.slane %v2293, 1
      %v2314 = vsel %vm1603, %v2311, %v2313
      %v2315 = vrot.slane %v2294, 1
      %v2316 = vsel %vm1603, %v2313, %v2315
      %v2317 = vrot.slane %v2295, 1
      %v2318 = vsel %vm1603, %v2315, %v2317
      %v2319 = vrot.slane %v2296, 1
      %v2320 = vsel %vm1603, %v2317, %v2319
      %v2321 = vrot.slane %v2297, 1
      %v2322 = vsel %vm1603, %v2319, %v2321
      %v2323 = vrot.slane %v2298, 1
      %v2324 = vsel %vm1603, %v2321, %v2323
      %v2325 = vrot.slane %v2299, 1
      %v2326 = vsel %vm1603, %v2323, %v2325
      %v2327 = vrot.slane %v2300, 1
      %v2328 = vsel %vm1603, %v2325, %v2327
      %v2329 = vrot.slane %v2301, 1
      %v2330 = vsel %vm1603, %v2327, %v2329
      %v2331 = vrot.slane %v2302, 1
      %v2332 = vsel %vm1603, %v2329, %v2331
      %v2333 = vrot.slane %v2303, 1
      %v2334 = vsel %vm1603, %v2331, %v2333
      %v2335 = vrot.slane %v2304, 1
      %v2336 = vsel %vm1603, %v2333, %v2335
      %v2337 = vrot.slane %v2305, 1
      %v2338 = vsel %vm1603, %v2335, %v2337
      %2339 = vrot.lane.b32.xlu0 %v2308, 64
      %v2340 = vpop.permute.xlu0 %2339
      %2341 = vrot.lane.b32.xlu0 %v2310, 64
      %v2342 = vpop.permute.xlu0 %2341
      %2343 = vrot.lane.b32.xlu0 %v2312, 64
      %v2344 = vpop.permute.xlu0 %2343
      %2345 = vrot.lane.b32.xlu0 %v2314, 64
      %v2346 = vpop.permute.xlu0 %2345
      %2347 = vrot.lane.b32.xlu0 %v2316, 64
      %v2348 = vpop.permute.xlu0 %2347
      %2349 = vrot.lane.b32.xlu0 %v2318, 64
      %v2350 = vpop.permute.xlu0 %2349
      %2351 = vrot.lane.b32.xlu0 %v2320, 64
      %v2352 = vpop.permute.xlu0 %2351
      %2353 = vrot.lane.b32.xlu0 %v2322, 64
      %v2354 = vpop.permute.xlu0 %2353
      %2355 = vrot.lane.b32.xlu0 %v2324, 64
      %v2356 = vpop.permute.xlu0 %2355
      %2357 = vrot.lane.b32.xlu0 %v2326, 64
      %v2358 = vpop.permute.xlu0 %2357
      %2359 = vrot.lane.b32.xlu0 %v2328, 64
      %v2360 = vpop.permute.xlu0 %2359
      %2361 = vrot.lane.b32.xlu0 %v2330, 64
      %v2362 = vpop.permute.xlu0 %2361
      %2363 = vrot.lane.b32.xlu0 %v2332, 64
      %v2364 = vpop.permute.xlu0 %2363
      %2365 = vrot.lane.b32.xlu0 %v2334, 64
      %v2366 = vpop.permute.xlu0 %2365
      %2367 = vrot.lane.b32.xlu0 %v2336, 64
      %v2368 = vpop.permute.xlu0 %2367
      %2369 = vrot.lane.b32.xlu0 %v2338, 64
      %v2370 = vpop.permute.xlu0 %2369
      %2387 = vst.msk [vmem:[#allocation2 + $0x10] sm:$0xff] %vm1242, %v2340
      %2388 = vst.msk [vmem:[#allocation2 + $0x38] sm:$0xff] %vm1242, %v2342
      %2389 = vst.msk [vmem:[#allocation2 + $0x60] sm:$0xff] %vm1242, %v2344
      %2390 = vst.msk [vmem:[#allocation2 + $0x88] sm:$0xff] %vm1242, %v2346
      %2391 = vst.msk [vmem:[#allocation2 + $0xb0] sm:$0xff] %vm1242, %v2348
      %2392 = vst.msk [vmem:[#allocation2 + $0xd8] sm:$0xff] %vm1242, %v2350
      %2393 = vst.msk [vmem:[#allocation2 + $0x100] sm:$0xff] %vm1242, %v2352
      %2394 = vst.msk [vmem:[#allocation2 + $0x128] sm:$0xff] %vm1242, %v2354
      %2395 = vst.msk [vmem:[#allocation2 + $0x150] sm:$0xff] %vm1242, %v2356
      %2396 = vst.msk [vmem:[#allocation2 + $0x178] sm:$0xff] %vm1242, %v2358
      %2397 = vst.msk [vmem:[#allocation2 + $0x1a0] sm:$0xff] %vm1242, %v2360
      %2398 = vst.msk [vmem:[#allocation2 + $0x1c8] sm:$0xff] %vm1242, %v2362
      %2399 = vst.msk [vmem:[#allocation2 + $0x1f0] sm:$0xff] %vm1242, %v2364
      %2400 = vst.msk [vmem:[#allocation2 + $0x218] sm:$0xff] %vm1242, %v2366
      %2401 = vst.msk [vmem:[#allocation2 + $0x240] sm:$0xff] %vm1242, %v2368
      %2402 = vst.msk [vmem:[#allocation2 + $0x268] sm:$0xff] %vm1242, %v2370
      %v2403 = vld [vmem:[%s246 + $0x10] sm:$0xf]
      %v2404 = vld [vmem:[%s246 + $0x14] sm:$0xf]
      %v2405 = vld [vmem:[%s246 + $0x18] sm:$0xf]
      %v2406 = vld [vmem:[%s246 + $0x1c] sm:$0xf]
      %v2407 = vld [vmem:[%s246 + $0x20] sm:$0xf]
      %v2408 = vld [vmem:[%s246 + $0x24] sm:$0xf]
      %v2409 = vld [vmem:[%s246 + $0x28] sm:$0xf]
      %v2410 = vld [vmem:[%s246 + $0x2c] sm:$0xf]
      %v2411 = vld [vmem:[%s246 + $0x30] sm:$0xf]
      %v2412 = vld [vmem:[%s246 + $0x34] sm:$0xf]
      %v2413 = vld [vmem:[%s246 + $0x38] sm:$0xf]
      %v2414 = vld [vmem:[%s246 + $0x3c] sm:$0xf]
      %v2415 = vld [vmem:[%s246 + $0x40] sm:$0xf]
      %v2416 = vld [vmem:[%s246 + $0x44] sm:$0xf]
      %v2417 = vld [vmem:[%s246 + $0x48] sm:$0xf]
      %v2418 = vld [vmem:[%s246 + $0x4c] sm:$0xf]
      %v2419 = vld [vmem:[%s246 + $0x50] sm:$0xf]
      %v2420 = vld [vmem:[%s246 + $0x54] sm:$0xf]
      %v2421 = vld [vmem:[%s246 + $0x58] sm:$0xf]
      %v2422 = vld [vmem:[%s246 + $0x5c] sm:$0xf]
      %v2423 = vld [vmem:[%s246 + $0x60] sm:$0xf]
      %v2424 = vld [vmem:[%s246 + $0x64] sm:$0xf]
      %v2425 = vld [vmem:[%s246 + $0x68] sm:$0xf]
      %v2426 = vld [vmem:[%s246 + $0x6c] sm:$0xf]
      %v2427 = vld [vmem:[%s246 + $0x70] sm:$0xf]
      %v2428 = vld [vmem:[%s246 + $0x74] sm:$0xf]
      %v2429 = vld [vmem:[%s246 + $0x78] sm:$0xf]
      %v2430 = vld [vmem:[%s246 + $0x7c] sm:$0xf]
      %v2431 = vld [vmem:[%s246 + $0x80] sm:$0xf]
      %v2432 = vld [vmem:[%s246 + $0x84] sm:$0xf]
      %v2433 = vld [vmem:[%s246 + $0x88] sm:$0xf]
      %v2434 = vld [vmem:[%s246 + $0x8c] sm:$0xf]
      %v2435 = vsel %vm768, %v2403, 0
      %v2436 = vsel %vm769, %v2404, 0
      %v2437 = vsel %vm770, %v2405, 0
      %v2438 = vsel %vm771, %v2406, 0
      %v2439 = vsel %vm772, %v2407, 0
      %v2440 = vsel %vm773, %v2408, 0
      %v2441 = vsel %vm774, %v2409, 0
      %v2442 = vsel %vm775, %v2410, 0
      %v2443 = vsel %vm776, %v2411, 0
      %v2444 = vsel %vm777, %v2412, 0
      %v2445 = vsel %vm778, %v2413, 0
      %v2446 = vsel %vm779, %v2414, 0
      %v2447 = vsel %vm780, %v2415, 0
      %v2448 = vsel %vm781, %v2416, 0
      %v2449 = vsel %vm782, %v2417, 0
      %v2450 = vsel %vm783, %v2418, 0
      %v2451 = vsel %vm784, %v2419, 0
      %v2452 = vsel %vm785, %v2420, 0
      %v2453 = vsel %vm786, %v2421, 0
      %v2454 = vsel %vm787, %v2422, 0
      %v2455 = vsel %vm788, %v2423, 0
      %v2456 = vsel %vm789, %v2424, 0
      %v2457 = vsel %vm790, %v2425, 0
      %v2458 = vsel %vm791, %v2426, 0
      %v2459 = vsel %vm792, %v2427, 0
      %v2460 = vsel %vm793, %v2428, 0
      %v2461 = vsel %vm794, %v2429, 0
      %v2462 = vsel %vm795, %v2430, 0
      %v2463 = vsel %vm796, %v2431, 0
      %v2464 = vsel %vm797, %v2432, 0
      %v2465 = vsel %vm798, %v2433, 0
      %v2466 = vsel %vm799, %v2434, 0
      %v2499 = vunpack.c.l.b16 %v2435
      %v2500 = vunpack.c.l.b16 %v2436
      %v2501 = vunpack.c.l.b16 %v2437
      %v2502 = vunpack.c.l.b16 %v2438
      %v2503 = vunpack.c.l.b16 %v2439
      %v2504 = vunpack.c.l.b16 %v2440
      %v2505 = vunpack.c.l.b16 %v2441
      %v2506 = vunpack.c.l.b16 %v2442
      %v2507 = vunpack.c.l.b16 %v2443
      %v2508 = vunpack.c.l.b16 %v2444
      %v2509 = vunpack.c.l.b16 %v2445
      %v2510 = vunpack.c.l.b16 %v2446
      %v2511 = vunpack.c.l.b16 %v2447
      %v2512 = vunpack.c.l.b16 %v2448
      %v2513 = vunpack.c.l.b16 %v2449
      %v2514 = vunpack.c.l.b16 %v2450
      %v2515 = vunpack.c.l.b16 %v2451
      %v2516 = vunpack.c.l.b16 %v2452
      %v2517 = vunpack.c.l.b16 %v2453
      %v2518 = vunpack.c.l.b16 %v2454
      %v2519 = vunpack.c.l.b16 %v2455
      %v2520 = vunpack.c.l.b16 %v2456
      %v2521 = vunpack.c.l.b16 %v2457
      %v2522 = vunpack.c.l.b16 %v2458
      %v2523 = vunpack.c.l.b16 %v2459
      %v2524 = vunpack.c.l.b16 %v2460
      %v2525 = vunpack.c.l.b16 %v2461
      %v2526 = vunpack.c.l.b16 %v2462
      %v2527 = vunpack.c.l.b16 %v2463
      %v2528 = vunpack.c.l.b16 %v2464
      %v2529 = vunpack.c.l.b16 %v2465
      %v2530 = vunpack.c.l.b16 %v2466
      %v2531 = vpack.c.b16 %v2500, %v2499
      %v2532 = vpack.c.b16 %v2502, %v2501
      %v2533 = vpack.c.b16 %v2504, %v2503
      %v2534 = vpack.c.b16 %v2506, %v2505
      %v2535 = vpack.c.b16 %v2508, %v2507
      %v2536 = vpack.c.b16 %v2510, %v2509
      %v2537 = vpack.c.b16 %v2512, %v2511
      %v2538 = vpack.c.b16 %v2514, %v2513
      %v2539 = vpack.c.b16 %v2516, %v2515
      %v2540 = vpack.c.b16 %v2518, %v2517
      %v2541 = vpack.c.b16 %v2520, %v2519
      %v2542 = vpack.c.b16 %v2522, %v2521
      %v2543 = vpack.c.b16 %v2524, %v2523
      %v2544 = vpack.c.b16 %v2526, %v2525
      %v2545 = vpack.c.b16 %v2528, %v2527
      %v2546 = vpack.c.b16 %v2530, %v2529
      %2563 = vst.msk [vmem:[#allocation2 + $0x18] sm:$0xff] %vm928, %v2531
      %2564 = vst.msk [vmem:[#allocation2 + $0x40] sm:$0xff] %vm928, %v2532
      %2565 = vst.msk [vmem:[#allocation2 + $0x68] sm:$0xff] %vm928, %v2533
      %2566 = vst.msk [vmem:[#allocation2 + $0x90] sm:$0xff] %vm928, %v2534
      %2567 = vst.msk [vmem:[#allocation2 + $0xb8] sm:$0xff] %vm928, %v2535
      %2568 = vst.msk [vmem:[#allocation2 + $0xe0] sm:$0xff] %vm928, %v2536
      %2569 = vst.msk [vmem:[#allocation2 + $0x108] sm:$0xff] %vm928, %v2537
      %2570 = vst.msk [vmem:[#allocation2 + $0x130] sm:$0xff] %vm928, %v2538
      %2571 = vst.msk [vmem:[#allocation2 + $0x158] sm:$0xff] %vm928, %v2539
      %2572 = vst.msk [vmem:[#allocation2 + $0x180] sm:$0xff] %vm928, %v2540
      %2573 = vst.msk [vmem:[#allocation2 + $0x1a8] sm:$0xff] %vm928, %v2541
      %2574 = vst.msk [vmem:[#allocation2 + $0x1d0] sm:$0xff] %vm928, %v2542
      %2575 = vst.msk [vmem:[#allocation2 + $0x1f8] sm:$0xff] %vm928, %v2543
      %2576 = vst.msk [vmem:[#allocation2 + $0x220] sm:$0xff] %vm928, %v2544
      %2577 = vst.msk [vmem:[#allocation2 + $0x248] sm:$0xff] %vm928, %v2545
      %2578 = vst.msk [vmem:[#allocation2 + $0x270] sm:$0xff] %vm928, %v2546
      %v2579 = vld [vmem:[%s246 + $0x10] sm:$0xf]
      %v2580 = vld [vmem:[%s246 + $0x14] sm:$0xf]
      %v2581 = vld [vmem:[%s246 + $0x18] sm:$0xf]
      %v2582 = vld [vmem:[%s246 + $0x1c] sm:$0xf]
      %v2583 = vld [vmem:[%s246 + $0x20] sm:$0xf]
      %v2584 = vld [vmem:[%s246 + $0x24] sm:$0xf]
      %v2585 = vld [vmem:[%s246 + $0x28] sm:$0xf]
      %v2586 = vld [vmem:[%s246 + $0x2c] sm:$0xf]
      %v2587 = vld [vmem:[%s246 + $0x30] sm:$0xf]
      %v2588 = vld [vmem:[%s246 + $0x34] sm:$0xf]
      %v2589 = vld [vmem:[%s246 + $0x38] sm:$0xf]
      %v2590 = vld [vmem:[%s246 + $0x3c] sm:$0xf]
      %v2591 = vld [vmem:[%s246 + $0x40] sm:$0xf]
      %v2592 = vld [vmem:[%s246 + $0x44] sm:$0xf]
      %v2593 = vld [vmem:[%s246 + $0x48] sm:$0xf]
      %v2594 = vld [vmem:[%s246 + $0x4c] sm:$0xf]
      %v2595 = vld [vmem:[%s246 + $0x50] sm:$0xf]
      %v2596 = vld [vmem:[%s246 + $0x54] sm:$0xf]
      %v2597 = vld [vmem:[%s246 + $0x58] sm:$0xf]
      %v2598 = vld [vmem:[%s246 + $0x5c] sm:$0xf]
      %v2599 = vld [vmem:[%s246 + $0x60] sm:$0xf]
      %v2600 = vld [vmem:[%s246 + $0x64] sm:$0xf]
      %v2601 = vld [vmem:[%s246 + $0x68] sm:$0xf]
      %v2602 = vld [vmem:[%s246 + $0x6c] sm:$0xf]
      %v2603 = vld [vmem:[%s246 + $0x70] sm:$0xf]
      %v2604 = vld [vmem:[%s246 + $0x74] sm:$0xf]
      %v2605 = vld [vmem:[%s246 + $0x78] sm:$0xf]
      %v2606 = vld [vmem:[%s246 + $0x7c] sm:$0xf]
      %v2607 = vld [vmem:[%s246 + $0x80] sm:$0xf]
      %v2608 = vld [vmem:[%s246 + $0x84] sm:$0xf]
      %v2609 = vld [vmem:[%s246 + $0x88] sm:$0xf]
      %v2610 = vld [vmem:[%s246 + $0x8c] sm:$0xf]
      %v2611 = vld [vmem:[%s246 + $0x90] sm:$0x1]
      %v2645 = vunpack.c.l.b16 %v2579
      %v2646 = vunpack.c.l.b16 %v2580
      %v2647 = vunpack.c.l.b16 %v2581
      %v2648 = vunpack.c.l.b16 %v2582
      %v2649 = vunpack.c.l.b16 %v2583
      %v2650 = vunpack.c.l.b16 %v2584
      %v2651 = vunpack.c.l.b16 %v2585
      %v2652 = vunpack.c.l.b16 %v2586
      %v2653 = vunpack.c.l.b16 %v2587
      %v2654 = vunpack.c.l.b16 %v2588
      %v2655 = vunpack.c.l.b16 %v2589
      %v2656 = vunpack.c.l.b16 %v2590
      %v2657 = vunpack.c.l.b16 %v2591
      %v2658 = vunpack.c.l.b16 %v2592
      %v2659 = vunpack.c.l.b16 %v2593
      %v2660 = vunpack.c.l.b16 %v2594
      %v2661 = vunpack.c.l.b16 %v2595
      %v2662 = vunpack.c.l.b16 %v2596
      %v2663 = vunpack.c.l.b16 %v2597
      %v2664 = vunpack.c.l.b16 %v2598
      %v2665 = vunpack.c.l.b16 %v2599
      %v2666 = vunpack.c.l.b16 %v2600
      %v2667 = vunpack.c.l.b16 %v2601
      %v2668 = vunpack.c.l.b16 %v2602
      %v2669 = vunpack.c.l.b16 %v2603
      %v2670 = vunpack.c.l.b16 %v2604
      %v2671 = vunpack.c.l.b16 %v2605
      %v2672 = vunpack.c.l.b16 %v2606
      %v2673 = vunpack.c.l.b16 %v2607
      %v2674 = vunpack.c.l.b16 %v2608
      %v2675 = vunpack.c.l.b16 %v2609
      %v2676 = vunpack.c.l.b16 %v2610
      %v2677 = vunpack.c.l.b16 %v2611
      %v2678 = vpack.c.b16 %v2646, %v2645
      %v2679 = vpack.c.b16 %v2648, %v2647
      %v2680 = vpack.c.b16 %v2650, %v2649
      %v2681 = vpack.c.b16 %v2652, %v2651
      %v2682 = vpack.c.b16 %v2654, %v2653
      %v2683 = vpack.c.b16 %v2656, %v2655
      %v2684 = vpack.c.b16 %v2658, %v2657
      %v2685 = vpack.c.b16 %v2660, %v2659
      %v2686 = vpack.c.b16 %v2662, %v2661
      %v2687 = vpack.c.b16 %v2664, %v2663
      %v2688 = vpack.c.b16 %v2666, %v2665
      %v2689 = vpack.c.b16 %v2668, %v2667
      %v2690 = vpack.c.b16 %v2670, %v2669
      %v2691 = vpack.c.b16 %v2672, %v2671
      %v2692 = vpack.c.b16 %v2674, %v2673
      %v2693 = vpack.c.b16 %v2676, %v2675
      %v2694 = vpack.c.b16 %v2677, %v2677
      %v2696 = vshrl.u32 %v2678, 16
      %v2698 = vshll.u32 %v2678, 16
      %v2700 = vrot.slane %v2698, 1
      %v2701 = vor.u32 %v2696, %v2700
      %v2703 = vshll.u32 %v2679, 16
      %v2705 = vrot.slane %v2703, 1
      %v2706 = vsel %vm1061, %v2701, %v2705
      %v2707 = vshrl.u32 %v2679, 16
      %v2709 = vor.u32 %v2707, %v2705
      %v2711 = vshll.u32 %v2680, 16
      %v2713 = vrot.slane %v2711, 1
      %v2714 = vsel %vm1061, %v2709, %v2713
      %v2715 = vshrl.u32 %v2680, 16
      %v2717 = vor.u32 %v2715, %v2713
      %v2719 = vshll.u32 %v2681, 16
      %v2721 = vrot.slane %v2719, 1
      %v2722 = vsel %vm1061, %v2717, %v2721
      %v2723 = vshrl.u32 %v2681, 16
      %v2725 = vor.u32 %v2723, %v2721
      %v2727 = vshll.u32 %v2682, 16
      %v2729 = vrot.slane %v2727, 1
      %v2730 = vsel %vm1061, %v2725, %v2729
      %v2731 = vshrl.u32 %v2682, 16
      %v2733 = vor.u32 %v2731, %v2729
      %v2735 = vshll.u32 %v2683, 16
      %v2737 = vrot.slane %v2735, 1
      %v2738 = vsel %vm1061, %v2733, %v2737
      %v2739 = vshrl.u32 %v2683, 16
      %v2741 = vor.u32 %v2739, %v2737
      %v2743 = vshll.u32 %v2684, 16
      %v2745 = vrot.slane %v2743, 1
      %v2746 = vsel %vm1061, %v2741, %v2745
      %v2747 = vshrl.u32 %v2684, 16
      %v2749 = vor.u32 %v2747, %v2745
      %v2751 = vshll.u32 %v2685, 16
      %v2753 = vrot.slane %v2751, 1
      %v2754 = vsel %vm1061, %v2749, %v2753
      %v2755 = vshrl.u32 %v2685, 16
      %v2757 = vor.u32 %v2755, %v2753
      %v2759 = vshll.u32 %v2686, 16
      %v2761 = vrot.slane %v2759, 1
      %v2762 = vsel %vm1061, %v2757, %v2761
      %v2763 = vshrl.u32 %v2686, 16
      %v2765 = vor.u32 %v2763, %v2761
      %v2767 = vshll.u32 %v2687, 16
      %v2769 = vrot.slane %v2767, 1
      %v2770 = vsel %vm1061, %v2765, %v2769
      %v2771 = vshrl.u32 %v2687, 16
      %v2773 = vor.u32 %v2771, %v2769
      %v2775 = vshll.u32 %v2688, 16
      %v2777 = vrot.slane %v2775, 1
      %v2778 = vsel %vm1061, %v2773, %v2777
      %v2779 = vshrl.u32 %v2688, 16
      %v2781 = vor.u32 %v2779, %v2777
      %v2783 = vshll.u32 %v2689, 16
      %v2785 = vrot.slane %v2783, 1
      %v2786 = vsel %vm1061, %v2781, %v2785
      %v2787 = vshrl.u32 %v2689, 16
      %v2789 = vor.u32 %v2787, %v2785
      %v2791 = vshll.u32 %v2690, 16
      %v2793 = vrot.slane %v2791, 1
      %v2794 = vsel %vm1061, %v2789, %v2793
      %v2795 = vshrl.u32 %v2690, 16
      %v2797 = vor.u32 %v2795, %v2793
      %v2799 = vshll.u32 %v2691, 16
      %v2801 = vrot.slane %v2799, 1
      %v2802 = vsel %vm1061, %v2797, %v2801
      %v2803 = vshrl.u32 %v2691, 16
      %v2805 = vor.u32 %v2803, %v2801
      %v2807 = vshll.u32 %v2692, 16
      %v2809 = vrot.slane %v2807, 1
      %v2810 = vsel %vm1061, %v2805, %v2809
      %v2811 = vshrl.u32 %v2692, 16
      %v2813 = vor.u32 %v2811, %v2809
      %v2815 = vshll.u32 %v2693, 16
      %v2817 = vrot.slane %v2815, 1
      %v2818 = vsel %vm1061, %v2813, %v2817
      %v2819 = vshrl.u32 %v2693, 16
      %v2821 = vor.u32 %v2819, %v2817
      %v2823 = vshll.u32 %v2694, 16
      %v2825 = vrot.slane %v2823, 1
      %v2826 = vsel %vm1061, %v2821, %v2825
      %2827 = vrot.lane.b32.xlu0 %v2706, 64
      %v2828 = vpop.permute.xlu0 %2827
      %2829 = vrot.lane.b32.xlu0 %v2714, 64
      %v2830 = vpop.permute.xlu0 %2829
      %2831 = vrot.lane.b32.xlu0 %v2722, 64
      %v2832 = vpop.permute.xlu0 %2831
      %2833 = vrot.lane.b32.xlu0 %v2730, 64
      %v2834 = vpop.permute.xlu0 %2833
      %2835 = vrot.lane.b32.xlu0 %v2738, 64
      %v2836 = vpop.permute.xlu0 %2835
      %2837 = vrot.lane.b32.xlu0 %v2746, 64
      %v2838 = vpop.permute.xlu0 %2837
      %2839 = vrot.lane.b32.xlu0 %v2754, 64
      %v2840 = vpop.permute.xlu0 %2839
      %2841 = vrot.lane.b32.xlu0 %v2762, 64
      %v2842 = vpop.permute.xlu0 %2841
      %2843 = vrot.lane.b32.xlu0 %v2770, 64
      %v2844 = vpop.permute.xlu0 %2843
      %2845 = vrot.lane.b32.xlu0 %v2778, 64
      %v2846 = vpop.permute.xlu0 %2845
      %2847 = vrot.lane.b32.xlu0 %v2786, 64
      %v2848 = vpop.permute.xlu0 %2847
      %2849 = vrot.lane.b32.xlu0 %v2794, 64
      %v2850 = vpop.permute.xlu0 %2849
      %2851 = vrot.lane.b32.xlu0 %v2802, 64
      %v2852 = vpop.permute.xlu0 %2851
      %2853 = vrot.lane.b32.xlu0 %v2810, 64
      %v2854 = vpop.permute.xlu0 %2853
      %2855 = vrot.lane.b32.xlu0 %v2818, 64
      %v2856 = vpop.permute.xlu0 %2855
      %2857 = vrot.lane.b32.xlu0 %v2826, 64
      %v2858 = vpop.permute.xlu0 %2857
      %2875 = vst.msk [vmem:[#allocation2 + $0x18] sm:$0xff] %vm1242, %v2828
      %2876 = vst.msk [vmem:[#allocation2 + $0x40] sm:$0xff] %vm1242, %v2830
      %2877 = vst.msk [vmem:[#allocation2 + $0x68] sm:$0xff] %vm1242, %v2832
      %2878 = vst.msk [vmem:[#allocation2 + $0x90] sm:$0xff] %vm1242, %v2834
      %2879 = vst.msk [vmem:[#allocation2 + $0xb8] sm:$0xff] %vm1242, %v2836
      %2880 = vst.msk [vmem:[#allocation2 + $0xe0] sm:$0xff] %vm1242, %v2838
      %2881 = vst.msk [vmem:[#allocation2 + $0x108] sm:$0xff] %vm1242, %v2840
      %2882 = vst.msk [vmem:[#allocation2 + $0x130] sm:$0xff] %vm1242, %v2842
      %2883 = vst.msk [vmem:[#allocation2 + $0x158] sm:$0xff] %vm1242, %v2844
      %2884 = vst.msk [vmem:[#allocation2 + $0x180] sm:$0xff] %vm1242, %v2846
      %2885 = vst.msk [vmem:[#allocation2 + $0x1a8] sm:$0xff] %vm1242, %v2848
      %2886 = vst.msk [vmem:[#allocation2 + $0x1d0] sm:$0xff] %vm1242, %v2850
      %2887 = vst.msk [vmem:[#allocation2 + $0x1f8] sm:$0xff] %vm1242, %v2852
      %2888 = vst.msk [vmem:[#allocation2 + $0x220] sm:$0xff] %vm1242, %v2854
      %2889 = vst.msk [vmem:[#allocation2 + $0x248] sm:$0xff] %vm1242, %v2856
      %2890 = vst.msk [vmem:[#allocation2 + $0x270] sm:$0xff] %vm1242, %v2858
      %v2891 = vld [vmem:[%s246 + $0x10] sm:$0xe]
      %v2892 = vld [vmem:[%s246 + $0x14] sm:$0xf]
      %v2893 = vld [vmem:[%s246 + $0x18] sm:$0xf]
      %v2894 = vld [vmem:[%s246 + $0x1c] sm:$0xf]
      %v2895 = vld [vmem:[%s246 + $0x20] sm:$0xf]
      %v2896 = vld [vmem:[%s246 + $0x24] sm:$0xf]
      %v2897 = vld [vmem:[%s246 + $0x28] sm:$0xf]
      %v2898 = vld [vmem:[%s246 + $0x2c] sm:$0xf]
      %v2899 = vld [vmem:[%s246 + $0x30] sm:$0xf]
      %v2900 = vld [vmem:[%s246 + $0x34] sm:$0xf]
      %v2901 = vld [vmem:[%s246 + $0x38] sm:$0xf]
      %v2902 = vld [vmem:[%s246 + $0x3c] sm:$0xf]
      %v2903 = vld [vmem:[%s246 + $0x40] sm:$0xf]
      %v2904 = vld [vmem:[%s246 + $0x44] sm:$0xf]
      %v2905 = vld [vmem:[%s246 + $0x48] sm:$0xf]
      %v2906 = vld [vmem:[%s246 + $0x4c] sm:$0xf]
      %v2907 = vld [vmem:[%s246 + $0x50] sm:$0xf]
      %v2908 = vld [vmem:[%s246 + $0x54] sm:$0xf]
      %v2909 = vld [vmem:[%s246 + $0x58] sm:$0xf]
      %v2910 = vld [vmem:[%s246 + $0x5c] sm:$0xf]
      %v2911 = vld [vmem:[%s246 + $0x60] sm:$0xf]
      %v2912 = vld [vmem:[%s246 + $0x64] sm:$0xf]
      %v2913 = vld [vmem:[%s246 + $0x68] sm:$0xf]
      %v2914 = vld [vmem:[%s246 + $0x6c] sm:$0xf]
      %v2915 = vld [vmem:[%s246 + $0x70] sm:$0xf]
      %v2916 = vld [vmem:[%s246 + $0x74] sm:$0xf]
      %v2917 = vld [vmem:[%s246 + $0x78] sm:$0xf]
      %v2918 = vld [vmem:[%s246 + $0x7c] sm:$0xf]
      %v2919 = vld [vmem:[%s246 + $0x80] sm:$0xf]
      %v2920 = vld [vmem:[%s246 + $0x84] sm:$0xf]
      %v2921 = vld [vmem:[%s246 + $0x88] sm:$0xf]
      %v2922 = vld [vmem:[%s246 + $0x8c] sm:$0xf]
      %v2923 = vld [vmem:[%s246 + $0x90] sm:$0x1]
      %v2924 = vsel %vm1454, %v2891, 0
      %v2925 = vsel %vm1455, %v2892, 0
      %v2926 = vsel %vm1456, %v2893, 0
      %v2927 = vsel %vm1457, %v2894, 0
      %v2928 = vsel %vm1458, %v2895, 0
      %v2929 = vsel %vm1459, %v2896, 0
      %v2930 = vsel %vm1460, %v2897, 0
      %v2931 = vsel %vm1461, %v2898, 0
      %v2932 = vsel %vm1462, %v2899, 0
      %v2933 = vsel %vm1463, %v2900, 0
      %v2934 = vsel %vm1464, %v2901, 0
      %v2935 = vsel %vm1465, %v2902, 0
      %v2936 = vsel %vm1466, %v2903, 0
      %v2937 = vsel %vm1467, %v2904, 0
      %v2938 = vsel %vm1468, %v2905, 0
      %v2939 = vsel %vm1469, %v2906, 0
      %v2940 = vsel %vm1470, %v2907, 0
      %v2941 = vsel %vm1471, %v2908, 0
      %v2942 = vsel %vm1472, %v2909, 0
      %v2943 = vsel %vm1473, %v2910, 0
      %v2944 = vsel %vm1474, %v2911, 0
      %v2945 = vsel %vm1475, %v2912, 0
      %v2946 = vsel %vm1476, %v2913, 0
      %v2947 = vsel %vm1477, %v2914, 0
      %v2948 = vsel %vm1478, %v2915, 0
      %v2949 = vsel %vm1479, %v2916, 0
      %v2950 = vsel %vm1480, %v2917, 0
      %v2951 = vsel %vm1481, %v2918, 0
      %v2952 = vsel %vm1482, %v2919, 0
      %v2953 = vsel %vm1483, %v2920, 0
      %v2954 = vsel %vm1484, %v2921, 0
      %v2955 = vsel %vm1485, %v2922, 0
      %v2956 = vsel %vm1486, %v2923, 0
      %v2990 = vunpack.c.l.b16 %v2924
      %v2991 = vunpack.c.l.b16 %v2925
      %v2992 = vunpack.c.l.b16 %v2926
      %v2993 = vunpack.c.l.b16 %v2927
      %v2994 = vunpack.c.l.b16 %v2928
      %v2995 = vunpack.c.l.b16 %v2929
      %v2996 = vunpack.c.l.b16 %v2930
      %v2997 = vunpack.c.l.b16 %v2931
      %v2998 = vunpack.c.l.b16 %v2932
      %v2999 = vunpack.c.l.b16 %v2933
      %v3000 = vunpack.c.l.b16 %v2934
      %v3001 = vunpack.c.l.b16 %v2935
      %v3002 = vunpack.c.l.b16 %v2936
      %v3003 = vunpack.c.l.b16 %v2937
      %v3004 = vunpack.c.l.b16 %v2938
      %v3005 = vunpack.c.l.b16 %v2939
      %v3006 = vunpack.c.l.b16 %v2940
      %v3007 = vunpack.c.l.b16 %v2941
      %v3008 = vunpack.c.l.b16 %v2942
      %v3009 = vunpack.c.l.b16 %v2943
      %v3010 = vunpack.c.l.b16 %v2944
      %v3011 = vunpack.c.l.b16 %v2945
      %v3012 = vunpack.c.l.b16 %v2946
      %v3013 = vunpack.c.l.b16 %v2947
      %v3014 = vunpack.c.l.b16 %v2948
      %v3015 = vunpack.c.l.b16 %v2949
      %v3016 = vunpack.c.l.b16 %v2950
      %v3017 = vunpack.c.l.b16 %v2951
      %v3018 = vunpack.c.l.b16 %v2952
      %v3019 = vunpack.c.l.b16 %v2953
      %v3020 = vunpack.c.l.b16 %v2954
      %v3021 = vunpack.c.l.b16 %v2955
      %v3022 = vunpack.c.l.b16 %v2956
      %v3023 = vpack.c.b16 %v2991, %v2990
      %v3024 = vpack.c.b16 %v2993, %v2992
      %v3025 = vpack.c.b16 %v2995, %v2994
      %v3026 = vpack.c.b16 %v2997, %v2996
      %v3027 = vpack.c.b16 %v2999, %v2998
      %v3028 = vpack.c.b16 %v3001, %v3000
      %v3029 = vpack.c.b16 %v3003, %v3002
      %v3030 = vpack.c.b16 %v3005, %v3004
      %v3031 = vpack.c.b16 %v3007, %v3006
      %v3032 = vpack.c.b16 %v3009, %v3008
      %v3033 = vpack.c.b16 %v3011, %v3010
      %v3034 = vpack.c.b16 %v3013, %v3012
      %v3035 = vpack.c.b16 %v3015, %v3014
      %v3036 = vpack.c.b16 %v3017, %v3016
      %v3037 = vpack.c.b16 %v3019, %v3018
      %v3038 = vpack.c.b16 %v3021, %v3020
      %v3039 = vpack.c.b16 %v3022, %v3022
      %v3040 = vrot.slane %v3023, 1
      %v3041 = vrot.slane %v3024, 1
      %v3042 = vsel %vm1603, %v3040, %v3041
      %v3043 = vrot.slane %v3025, 1
      %v3044 = vsel %vm1603, %v3041, %v3043
      %v3045 = vrot.slane %v3026, 1
      %v3046 = vsel %vm1603, %v3043, %v3045
      %v3047 = vrot.slane %v3027, 1
      %v3048 = vsel %vm1603, %v3045, %v3047
      %v3049 = vrot.slane %v3028, 1
      %v3050 = vsel %vm1603, %v3047, %v3049
      %v3051 = vrot.slane %v3029, 1
      %v3052 = vsel %vm1603, %v3049, %v3051
      %v3053 = vrot.slane %v3030, 1
      %v3054 = vsel %vm1603, %v3051, %v3053
      %v3055 = vrot.slane %v3031, 1
      %v3056 = vsel %vm1603, %v3053, %v3055
      %v3057 = vrot.slane %v3032, 1
      %v3058 = vsel %vm1603, %v3055, %v3057
      %v3059 = vrot.slane %v3033, 1
      %v3060 = vsel %vm1603, %v3057, %v3059
      %v3061 = vrot.slane %v3034, 1
      %v3062 = vsel %vm1603, %v3059, %v3061
      %v3063 = vrot.slane %v3035, 1
      %v3064 = vsel %vm1603, %v3061, %v3063
      %v3065 = vrot.slane %v3036, 1
      %v3066 = vsel %vm1603, %v3063, %v3065
      %v3067 = vrot.slane %v3037, 1
      %v3068 = vsel %vm1603, %v3065, %v3067
      %v3069 = vrot.slane %v3038, 1
      %v3070 = vsel %vm1603, %v3067, %v3069
      %v3071 = vrot.slane %v3039, 1
      %v3072 = vsel %vm1603, %v3069, %v3071
      %3089 = vst.msk [vmem:[#allocation2 + $0x20] sm:$0xff] %vm928, %v3042
      %3090 = vst.msk [vmem:[#allocation2 + $0x48] sm:$0xff] %vm928, %v3044
      %3091 = vst.msk [vmem:[#allocation2 + $0x70] sm:$0xff] %vm928, %v3046
      %3092 = vst.msk [vmem:[#allocation2 + $0x98] sm:$0xff] %vm928, %v3048
      %3093 = vst.msk [vmem:[#allocation2 + $0xc0] sm:$0xff] %vm928, %v3050
      %3094 = vst.msk [vmem:[#allocation2 + $0xe8] sm:$0xff] %vm928, %v3052
      %3095 = vst.msk [vmem:[#allocation2 + $0x110] sm:$0xff] %vm928, %v3054
      %3096 = vst.msk [vmem:[#allocation2 + $0x138] sm:$0xff] %vm928, %v3056
      %3097 = vst.msk [vmem:[#allocation2 + $0x160] sm:$0xff] %vm928, %v3058
      %3098 = vst.msk [vmem:[#allocation2 + $0x188] sm:$0xff] %vm928, %v3060
      %3099 = vst.msk [vmem:[#allocation2 + $0x1b0] sm:$0xff] %vm928, %v3062
      %3100 = vst.msk [vmem:[#allocation2 + $0x1d8] sm:$0xff] %vm928, %v3064
      %3101 = vst.msk [vmem:[#allocation2 + $0x200] sm:$0xff] %vm928, %v3066
      %3102 = vst.msk [vmem:[#allocation2 + $0x228] sm:$0xff] %vm928, %v3068
      %3103 = vst.msk [vmem:[#allocation2 + $0x250] sm:$0xff] %vm928, %v3070
      %3104 = vst.msk [vmem:[#allocation2 + $0x278] sm:$0xff] %vm928, %v3072
      %v3105 = vld [vmem:[#allocation2] sm:$0xff]
      %v3106 = vld [vmem:[#allocation2 + $0x8] sm:$0xff]
      %v3107 = vld [vmem:[#allocation2 + $0x10] sm:$0xff]
      %v3108 = vld [vmem:[#allocation2 + $0x18] sm:$0xff]
      %v3109 = vld [vmem:[#allocation2 + $0x20] sm:$0xff]
      %v3110 = vld [vmem:[#allocation2 + $0x28] sm:$0xff]
      %v3111 = vld [vmem:[#allocation2 + $0x30] sm:$0xff]
      %v3112 = vld [vmem:[#allocation2 + $0x38] sm:$0xff]
      %v3113 = vld [vmem:[#allocation2 + $0x40] sm:$0xff]
      %v3114 = vld [vmem:[#allocation2 + $0x48] sm:$0xff]
      %v3115 = vld [vmem:[#allocation2 + $0x50] sm:$0xff]
      %v3116 = vld [vmem:[#allocation2 + $0x58] sm:$0xff]
      %v3117 = vld [vmem:[#allocation2 + $0x60] sm:$0xff]
      %v3118 = vld [vmem:[#allocation2 + $0x68] sm:$0xff]
      %v3119 = vld [vmem:[#allocation2 + $0x70] sm:$0xff]
      %v3120 = vld [vmem:[#allocation2 + $0x78] sm:$0xff]
      %v3121 = vld [vmem:[#allocation2 + $0x80] sm:$0xff]
      %v3122 = vld [vmem:[#allocation2 + $0x88] sm:$0xff]
      %v3123 = vld [vmem:[#allocation2 + $0x90] sm:$0xff]
      %v3124 = vld [vmem:[#allocation2 + $0x98] sm:$0xff]
      %v3125 = vld [vmem:[#allocation2 + $0xa0] sm:$0xff]
      %v3126 = vld [vmem:[#allocation2 + $0xa8] sm:$0xff]
      %v3127 = vld [vmem:[#allocation2 + $0xb0] sm:$0xff]
      %v3128 = vld [vmem:[#allocation2 + $0xb8] sm:$0xff]
      %v3129 = vld [vmem:[#allocation2 + $0xc0] sm:$0xff]
      %v3130 = vld [vmem:[#allocation2 + $0xc8] sm:$0xff]
      %v3131 = vld [vmem:[#allocation2 + $0xd0] sm:$0xff]
      %v3132 = vld [vmem:[#allocation2 + $0xd8] sm:$0xff]
      %v3133 = vld [vmem:[#allocation2 + $0xe0] sm:$0xff]
      %v3134 = vld [vmem:[#allocation2 + $0xe8] sm:$0xff]
      %v3135 = vld [vmem:[#allocation2 + $0xf0] sm:$0xff]
      %v3136 = vld [vmem:[#allocation2 + $0xf8] sm:$0xff]
      %v3137 = vld [vmem:[#allocation2 + $0x100] sm:$0xff]
      %v3138 = vld [vmem:[#allocation2 + $0x108] sm:$0xff]
      %v3139 = vld [vmem:[#allocation2 + $0x110] sm:$0xff]
      %v3140 = vld [vmem:[#allocation2 + $0x118] sm:$0xff]
      %v3141 = vld [vmem:[#allocation2 + $0x120] sm:$0xff]
      %v3142 = vld [vmem:[#allocation2 + $0x128] sm:$0xff]
      %v3143 = vld [vmem:[#allocation2 + $0x130] sm:$0xff]
      %v3144 = vld [vmem:[#allocation2 + $0x138] sm:$0xff]
      %v3145 = vld [vmem:[#allocation2 + $0x140] sm:$0xff]
      %v3146 = vld [vmem:[#allocation2 + $0x148] sm:$0xff]
      %v3147 = vld [vmem:[#allocation2 + $0x150] sm:$0xff]
      %v3148 = vld [vmem:[#allocation2 + $0x158] sm:$0xff]
      %v3149 = vld [vmem:[#allocation2 + $0x160] sm:$0xff]
      %v3150 = vld [vmem:[#allocation2 + $0x168] sm:$0xff]
      %v3151 = vld [vmem:[#allocation2 + $0x170] sm:$0xff]
      %v3152 = vld [vmem:[#allocation2 + $0x178] sm:$0xff]
      %v3153 = vld [vmem:[#allocation2 + $0x180] sm:$0xff]
      %v3154 = vld [vmem:[#allocation2 + $0x188] sm:$0xff]
      %v3155 = vld [vmem:[#allocation2 + $0x190] sm:$0xff]
      %v3156 = vld [vmem:[#allocation2 + $0x198] sm:$0xff]
      %v3157 = vld [vmem:[#allocation2 + $0x1a0] sm:$0xff]
      %v3158 = vld [vmem:[#allocation2 + $0x1a8] sm:$0xff]
      %v3159 = vld [vmem:[#allocation2 + $0x1b0] sm:$0xff]
      %v3160 = vld [vmem:[#allocation2 + $0x1b8] sm:$0xff]
      %v3161 = vld [vmem:[#allocation2 + $0x1c0] sm:$0xff]
      %v3162 = vld [vmem:[#allocation2 + $0x1c8] sm:$0xff]
      %v3163 = vld [vmem:[#allocation2 + $0x1d0] sm:$0xff]
      %v3164 = vld [vmem:[#allocation2 + $0x1d8] sm:$0xff]
      %v3165 = vld [vmem:[#allocation2 + $0x1e0] sm:$0xff]
      %v3166 = vld [vmem:[#allocation2 + $0x1e8] sm:$0xff]
      %v3167 = vld [vmem:[#allocation2 + $0x1f0] sm:$0xff]
      %v3168 = vld [vmem:[#allocation2 + $0x1f8] sm:$0xff]
      %v3169 = vld [vmem:[#allocation2 + $0x200] sm:$0xff]
      %v3170 = vld [vmem:[#allocation2 + $0x208] sm:$0xff]
      %v3171 = vld [vmem:[#allocation2 + $0x210] sm:$0xff]
      %v3172 = vld [vmem:[#allocation2 + $0x218] sm:$0xff]
      %v3173 = vld [vmem:[#allocation2 + $0x220] sm:$0xff]
      %v3174 = vld [vmem:[#allocation2 + $0x228] sm:$0xff]
      %v3175 = vld [vmem:[#allocation2 + $0x230] sm:$0xff]
      %v3176 = vld [vmem:[#allocation2 + $0x238] sm:$0xff]
      %v3177 = vld [vmem:[#allocation2 + $0x240] sm:$0xff]
      %v3178 = vld [vmem:[#allocation2 + $0x248] sm:$0xff]
      %v3179 = vld [vmem:[#allocation2 + $0x250] sm:$0xff]
      %v3180 = vld [vmem:[#allocation2 + $0x258] sm:$0xff]
      %v3181 = vld [vmem:[#allocation2 + $0x260] sm:$0xff]
      %v3182 = vld [vmem:[#allocation2 + $0x268] sm:$0xff]
      %v3183 = vld [vmem:[#allocation2 + $0x270] sm:$0xff]
      %v3184 = vld [vmem:[#allocation2 + $0x278] sm:$0xff]
      %v3185 = vld [vmem:[%s1] sm:$0xff]
      %v3186 = vld [vmem:[%s1 + $0x8] sm:$0xff]
      %v3187 = vld [vmem:[%s1 + $0x10] sm:$0xff]
      %v3188 = vld [vmem:[%s1 + $0x18] sm:$0xff]
      %v3189 = vld [vmem:[%s1 + $0x20] sm:$0xff]
      %v3190 = vld [vmem:[%s1 + $0x28] sm:$0xff]
      %v3191 = vld [vmem:[%s1 + $0x30] sm:$0xff]
      %v3192 = vld [vmem:[%s1 + $0x38] sm:$0xff]
      %v3193 = vld [vmem:[%s1 + $0x40] sm:$0xff]
      %v3194 = vld [vmem:[%s1 + $0x48] sm:$0xff]
      %v3195 = vld [vmem:[%s1 + $0x50] sm:$0xff]
      %v3196 = vld [vmem:[%s1 + $0x58] sm:$0xff]
      %v3197 = vld [vmem:[%s1 + $0x60] sm:$0xff]
      %v3198 = vld [vmem:[%s1 + $0x68] sm:$0xff]
      %v3199 = vld [vmem:[%s1 + $0x70] sm:$0xff]
      %v3200 = vld [vmem:[%s1 + $0x78] sm:$0xff]
      %v3201 = vld [vmem:[%s1 + $0x80] sm:$0xff]
      %v3202 = vld [vmem:[%s1 + $0x88] sm:$0xff]
      %v3203 = vld [vmem:[%s1 + $0x90] sm:$0xff]
      %v3204 = vld [vmem:[%s1 + $0x98] sm:$0xff]
      %v3205 = vld [vmem:[%s1 + $0xa0] sm:$0xff]
      %v3206 = vld [vmem:[%s1 + $0xa8] sm:$0xff]
      %v3207 = vld [vmem:[%s1 + $0xb0] sm:$0xff]
      %v3208 = vld [vmem:[%s1 + $0xb8] sm:$0xff]
      %v3209 = vld [vmem:[%s1 + $0xc0] sm:$0xff]
      %v3210 = vld [vmem:[%s1 + $0xc8] sm:$0xff]
      %v3211 = vld [vmem:[%s1 + $0xd0] sm:$0xff]
      %v3212 = vld [vmem:[%s1 + $0xd8] sm:$0xff]
      %v3213 = vld [vmem:[%s1 + $0xe0] sm:$0xff]
      %v3214 = vld [vmem:[%s1 + $0xe8] sm:$0xff]
      %v3215 = vld [vmem:[%s1 + $0xf0] sm:$0xff]
      %v3216 = vld [vmem:[%s1 + $0xf8] sm:$0xff]
      %v3217 = vld [vmem:[%s1 + $0x100] sm:$0xff]
      %v3218 = vld [vmem:[%s1 + $0x108] sm:$0xff]
      %v3219 = vld [vmem:[%s1 + $0x110] sm:$0xff]
      %v3220 = vld [vmem:[%s1 + $0x118] sm:$0xff]
      %v3221 = vld [vmem:[%s1 + $0x120] sm:$0xff]
      %v3222 = vld [vmem:[%s1 + $0x128] sm:$0xff]
      %v3223 = vld [vmem:[%s1 + $0x130] sm:$0xff]
      %v3224 = vld [vmem:[%s1 + $0x138] sm:$0xff]
      %v3225 = vld [vmem:[%s1 + $0x140] sm:$0xff]
      %v3226 = vld [vmem:[%s1 + $0x148] sm:$0xff]
      %v3227 = vld [vmem:[%s1 + $0x150] sm:$0xff]
      %v3228 = vld [vmem:[%s1 + $0x158] sm:$0xff]
      %v3229 = vld [vmem:[%s1 + $0x160] sm:$0xff]
      %v3230 = vld [vmem:[%s1 + $0x168] sm:$0xff]
      %v3231 = vld [vmem:[%s1 + $0x170] sm:$0xff]
      %v3232 = vld [vmem:[%s1 + $0x178] sm:$0xff]
      %v3233 = vld [vmem:[%s1 + $0x180] sm:$0xff]
      %v3234 = vld [vmem:[%s1 + $0x188] sm:$0xff]
      %v3235 = vld [vmem:[%s1 + $0x190] sm:$0xff]
      %v3236 = vld [vmem:[%s1 + $0x198] sm:$0xff]
      %v3237 = vld [vmem:[%s1 + $0x1a0] sm:$0xff]
      %v3238 = vld [vmem:[%s1 + $0x1a8] sm:$0xff]
      %v3239 = vld [vmem:[%s1 + $0x1b0] sm:$0xff]
      %v3240 = vld [vmem:[%s1 + $0x1b8] sm:$0xff]
      %v3241 = vld [vmem:[%s1 + $0x1c0] sm:$0xff]
      %v3242 = vld [vmem:[%s1 + $0x1c8] sm:$0xff]
      %v3243 = vld [vmem:[%s1 + $0x1d0] sm:$0xff]
      %v3244 = vld [vmem:[%s1 + $0x1d8] sm:$0xff]
      %v3245 = vld [vmem:[%s1 + $0x1e0] sm:$0xff]
      %v3246 = vld [vmem:[%s1 + $0x1e8] sm:$0xff]
      %v3247 = vld [vmem:[%s1 + $0x1f0] sm:$0xff]
      %v3248 = vld [vmem:[%s1 + $0x1f8] sm:$0xff]
      %v3249 = vld [vmem:[%s1 + $0x200] sm:$0xff]
      %v3250 = vld [vmem:[%s1 + $0x208] sm:$0xff]
      %v3251 = vld [vmem:[%s1 + $0x210] sm:$0xff]
      %v3252 = vld [vmem:[%s1 + $0x218] sm:$0xff]
      %v3253 = vld [vmem:[%s1 + $0x220] sm:$0xff]
      %v3254 = vld [vmem:[%s1 + $0x228] sm:$0xff]
      %v3255 = vld [vmem:[%s1 + $0x230] sm:$0xff]
      %v3256 = vld [vmem:[%s1 + $0x238] sm:$0xff]
      %v3329 = vunpack.c.l.b16 %v3185
      %v3330 = vunpack.c.h.b16 %v3185
      %v3331 = vunpack.c.l.b16 %v3186
      %v3332 = vunpack.c.h.b16 %v3186
      %v3333 = vunpack.c.l.b16 %v3187
      %v3334 = vunpack.c.h.b16 %v3187
      %v3335 = vunpack.c.l.b16 %v3188
      %v3336 = vunpack.c.h.b16 %v3188
      %v3337 = vunpack.c.l.b16 %v3189
      %v3338 = vunpack.c.h.b16 %v3189
      %v3339 = vunpack.c.l.b16 %v3190
      %v3340 = vunpack.c.h.b16 %v3190
      %v3341 = vunpack.c.l.b16 %v3191
      %v3342 = vunpack.c.h.b16 %v3191
      %v3343 = vunpack.c.l.b16 %v3192
      %v3344 = vunpack.c.h.b16 %v3192
      %v3345 = vunpack.c.l.b16 %v3193
      %v3346 = vunpack.c.h.b16 %v3193
      %v3347 = vunpack.c.l.b16 %v3194
      %v3348 = vunpack.c.h.b16 %v3194
      %v3349 = vunpack.c.l.b16 %v3195
      %v3350 = vunpack.c.h.b16 %v3195
      %v3351 = vunpack.c.l.b16 %v3196
      %v3352 = vunpack.c.h.b16 %v3196
      %v3353 = vunpack.c.l.b16 %v3197
      %v3354 = vunpack.c.h.b16 %v3197
      %v3355 = vunpack.c.l.b16 %v3198
      %v3356 = vunpack.c.h.b16 %v3198
      %v3357 = vunpack.c.l.b16 %v3199
      %v3358 = vunpack.c.h.b16 %v3199
      %v3359 = vunpack.c.l.b16 %v3200
      %v3360 = vunpack.c.h.b16 %v3200
      %v3361 = vunpack.c.l.b16 %v3201
      %v3362 = vunpack.c.h.b16 %v3201
      %v3363 = vunpack.c.l.b16 %v3202
      %v3364 = vunpack.c.h.b16 %v3202
      %v3365 = vunpack.c.l.b16 %v3203
      %v3366 = vunpack.c.h.b16 %v3203
      %v3367 = vunpack.c.l.b16 %v3204
      %v3368 = vunpack.c.h.b16 %v3204
      %v3369 = vunpack.c.l.b16 %v3205
      %v3370 = vunpack.c.h.b16 %v3205
      %v3371 = vunpack.c.l.b16 %v3206
      %v3372 = vunpack.c.h.b16 %v3206
      %v3373 = vunpack.c.l.b16 %v3207
      %v3374 = vunpack.c.h.b16 %v3207
      %v3375 = vunpack.c.l.b16 %v3208
      %v3376 = vunpack.c.h.b16 %v3208
      %v3377 = vunpack.c.l.b16 %v3209
      %v3378 = vunpack.c.h.b16 %v3209
      %v3379 = vunpack.c.l.b16 %v3210
      %v3380 = vunpack.c.h.b16 %v3210
      %v3381 = vunpack.c.l.b16 %v3211
      %v3382 = vunpack.c.h.b16 %v3211
      %v3383 = vunpack.c.l.b16 %v3212
      %v3384 = vunpack.c.h.b16 %v3212
      %v3385 = vunpack.c.l.b16 %v3213
      %v3386 = vunpack.c.h.b16 %v3213
      %v3387 = vunpack.c.l.b16 %v3214
      %v3388 = vunpack.c.h.b16 %v3214
      %v3389 = vunpack.c.l.b16 %v3215
      %v3390 = vunpack.c.h.b16 %v3215
      %v3391 = vunpack.c.l.b16 %v3216
      %v3392 = vunpack.c.h.b16 %v3216
      %v3393 = vunpack.c.l.b16 %v3217
      %v3394 = vunpack.c.h.b16 %v3217
      %v3395 = vunpack.c.l.b16 %v3218
      %v3396 = vunpack.c.h.b16 %v3218
      %v3397 = vunpack.c.l.b16 %v3219
      %v3398 = vunpack.c.h.b16 %v3219
      %v3399 = vunpack.c.l.b16 %v3220
      %v3400 = vunpack.c.h.b16 %v3220
      %v3401 = vunpack.c.l.b16 %v3221
      %v3402 = vunpack.c.h.b16 %v3221
      %v3403 = vunpack.c.l.b16 %v3222
      %v3404 = vunpack.c.h.b16 %v3222
      %v3405 = vunpack.c.l.b16 %v3223
      %v3406 = vunpack.c.h.b16 %v3223
      %v3407 = vunpack.c.l.b16 %v3224
      %v3408 = vunpack.c.h.b16 %v3224
      %v3409 = vunpack.c.l.b16 %v3225
      %v3410 = vunpack.c.h.b16 %v3225
      %v3411 = vunpack.c.l.b16 %v3226
      %v3412 = vunpack.c.h.b16 %v3226
      %v3413 = vunpack.c.l.b16 %v3227
      %v3414 = vunpack.c.h.b16 %v3227
      %v3415 = vunpack.c.l.b16 %v3228
      %v3416 = vunpack.c.h.b16 %v3228
      %v3417 = vunpack.c.l.b16 %v3229
      %v3418 = vunpack.c.h.b16 %v3229
      %v3419 = vunpack.c.l.b16 %v3230
      %v3420 = vunpack.c.h.b16 %v3230
      %v3421 = vunpack.c.l.b16 %v3231
      %v3422 = vunpack.c.h.b16 %v3231
      %v3423 = vunpack.c.l.b16 %v3232
      %v3424 = vunpack.c.h.b16 %v3232
      %v3425 = vunpack.c.l.b16 %v3233
      %v3426 = vunpack.c.h.b16 %v3233
      %v3427 = vunpack.c.l.b16 %v3234
      %v3428 = vunpack.c.h.b16 %v3234
      %v3429 = vunpack.c.l.b16 %v3235
      %v3430 = vunpack.c.h.b16 %v3235
      %v3431 = vunpack.c.l.b16 %v3236
      %v3432 = vunpack.c.h.b16 %v3236
      %v3433 = vunpack.c.l.b16 %v3237
      %v3434 = vunpack.c.h.b16 %v3237
      %v3435 = vunpack.c.l.b16 %v3238
      %v3436 = vunpack.c.h.b16 %v3238
      %v3437 = vunpack.c.l.b16 %v3239
      %v3438 = vunpack.c.h.b16 %v3239
      %v3439 = vunpack.c.l.b16 %v3240
      %v3440 = vunpack.c.h.b16 %v3240
      %v3441 = vunpack.c.l.b16 %v3241
      %v3442 = vunpack.c.h.b16 %v3241
      %v3443 = vunpack.c.l.b16 %v3242
      %v3444 = vunpack.c.h.b16 %v3242
      %v3445 = vunpack.c.l.b16 %v3243
      %v3446 = vunpack.c.h.b16 %v3243
      %v3447 = vunpack.c.l.b16 %v3244
      %v3448 = vunpack.c.h.b16 %v3244
      %v3449 = vunpack.c.l.b16 %v3245
      %v3450 = vunpack.c.h.b16 %v3245
      %v3451 = vunpack.c.l.b16 %v3246
      %v3452 = vunpack.c.h.b16 %v3246
      %v3453 = vunpack.c.l.b16 %v3247
      %v3454 = vunpack.c.h.b16 %v3247
      %v3455 = vunpack.c.l.b16 %v3248
      %v3456 = vunpack.c.h.b16 %v3248
      %v3457 = vunpack.c.l.b16 %v3249
      %v3458 = vunpack.c.h.b16 %v3249
      %v3459 = vunpack.c.l.b16 %v3250
      %v3460 = vunpack.c.h.b16 %v3250
      %v3461 = vunpack.c.l.b16 %v3251
      %v3462 = vunpack.c.h.b16 %v3251
      %v3463 = vunpack.c.l.b16 %v3252
      %v3464 = vunpack.c.h.b16 %v3252
      %v3465 = vunpack.c.l.b16 %v3253
      %v3466 = vunpack.c.h.b16 %v3253
      %v3467 = vunpack.c.l.b16 %v3254
      %v3468 = vunpack.c.h.b16 %v3254
      %v3469 = vunpack.c.l.b16 %v3255
      %v3470 = vunpack.c.h.b16 %v3255
      %v3471 = vunpack.c.l.b16 %v3256
      %v3472 = vunpack.c.h.b16 %v3256
      %v3473 = vpack.c.b16 %v3331, %v3329
      %v3474 = vpack.c.b16 %v3332, %v3330
      %v3475 = vpack.c.b16 %v3335, %v3333
      %v3476 = vpack.c.b16 %v3336, %v3334
      %v3477 = vpack.c.b16 %v3339, %v3337
      %v3478 = vpack.c.b16 %v3340, %v3338
      %v3479 = vpack.c.b16 %v3343, %v3341
      %v3480 = vpack.c.b16 %v3344, %v3342
      %v3481 = vpack.c.b16 %v3347, %v3345
      %v3482 = vpack.c.b16 %v3348, %v3346
      %v3483 = vpack.c.b16 %v3351, %v3349
      %v3484 = vpack.c.b16 %v3352, %v3350
      %v3485 = vpack.c.b16 %v3355, %v3353
      %v3486 = vpack.c.b16 %v3356, %v3354
      %v3487 = vpack.c.b16 %v3359, %v3357
      %v3488 = vpack.c.b16 %v3360, %v3358
      %v3489 = vpack.c.b16 %v3363, %v3361
      %v3490 = vpack.c.b16 %v3364, %v3362
      %v3491 = vpack.c.b16 %v3367, %v3365
      %v3492 = vpack.c.b16 %v3368, %v3366
      %v3493 = vpack.c.b16 %v3371, %v3369
      %v3494 = vpack.c.b16 %v3372, %v3370
      %v3495 = vpack.c.b16 %v3375, %v3373
      %v3496 = vpack.c.b16 %v3376, %v3374
      %v3497 = vpack.c.b16 %v3379, %v3377
      %v3498 = vpack.c.b16 %v3380, %v3378
      %v3499 = vpack.c.b16 %v3383, %v3381
      %v3500 = vpack.c.b16 %v3384, %v3382
      %v3501 = vpack.c.b16 %v3387, %v3385
      %v3502 = vpack.c.b16 %v3388, %v3386
      %v3503 = vpack.c.b16 %v3391, %v3389
      %v3504 = vpack.c.b16 %v3392, %v3390
      %v3505 = vpack.c.b16 %v3395, %v3393
      %v3506 = vpack.c.b16 %v3396, %v3394
      %v3507 = vpack.c.b16 %v3399, %v3397
      %v3508 = vpack.c.b16 %v3400, %v3398
      %v3509 = vpack.c.b16 %v3403, %v3401
      %v3510 = vpack.c.b16 %v3404, %v3402
      %v3511 = vpack.c.b16 %v3407, %v3405
      %v3512 = vpack.c.b16 %v3408, %v3406
      %v3513 = vpack.c.b16 %v3411, %v3409
      %v3514 = vpack.c.b16 %v3412, %v3410
      %v3515 = vpack.c.b16 %v3415, %v3413
      %v3516 = vpack.c.b16 %v3416, %v3414
      %v3517 = vpack.c.b16 %v3419, %v3417
      %v3518 = vpack.c.b16 %v3420, %v3418
      %v3519 = vpack.c.b16 %v3423, %v3421
      %v3520 = vpack.c.b16 %v3424, %v3422
      %v3521 = vpack.c.b16 %v3427, %v3425
      %v3522 = vpack.c.b16 %v3428, %v3426
      %v3523 = vpack.c.b16 %v3431, %v3429
      %v3524 = vpack.c.b16 %v3432, %v3430
      %v3525 = vpack.c.b16 %v3435, %v3433
      %v3526 = vpack.c.b16 %v3436, %v3434
      %v3527 = vpack.c.b16 %v3439, %v3437
      %v3528 = vpack.c.b16 %v3440, %v3438
      %v3529 = vpack.c.b16 %v3443, %v3441
      %v3530 = vpack.c.b16 %v3444, %v3442
      %v3531 = vpack.c.b16 %v3447, %v3445
      %v3532 = vpack.c.b16 %v3448, %v3446
      %v3533 = vpack.c.b16 %v3451, %v3449
      %v3534 = vpack.c.b16 %v3452, %v3450
      %v3535 = vpack.c.b16 %v3455, %v3453
      %v3536 = vpack.c.b16 %v3456, %v3454
      %v3537 = vpack.c.b16 %v3459, %v3457
      %v3538 = vpack.c.b16 %v3460, %v3458
      %v3539 = vpack.c.b16 %v3463, %v3461
      %v3540 = vpack.c.b16 %v3464, %v3462
      %v3541 = vpack.c.b16 %v3467, %v3465
      %v3542 = vpack.c.b16 %v3468, %v3466
      %v3543 = vpack.c.b16 %v3471, %v3469
      %v3544 = vpack.c.b16 %v3472, %v3470
      %v3618 = vsel %vm928, %v3109, 0
      %v3621 = vsel %vm928, %v3114, 0
      %v3624 = vsel %vm928, %v3119, 0
      %v3627 = vsel %vm928, %v3124, 0
      %v3630 = vsel %vm928, %v3129, 0
      %v3633 = vsel %vm928, %v3134, 0
      %v3636 = vsel %vm928, %v3139, 0
      %v3639 = vsel %vm928, %v3144, 0
      %v3642 = vsel %vm928, %v3149, 0
      %v3645 = vsel %vm928, %v3154, 0
      %v3648 = vsel %vm928, %v3159, 0
      %v3651 = vsel %vm928, %v3164, 0
      %v3654 = vsel %vm928, %v3169, 0
      %v3657 = vsel %vm928, %v3174, 0
      %v3660 = vsel %vm928, %v3179, 0
      %v3663 = vsel %vm928, %v3184, 0
      %3665 = vmatprep.subr.bf16.mxu0 %v3474
      %3666 = vmatpush1.bf16.msra.mxu0 %v3473
      %3667 = vmatprep.subr.bf16.mxu0 %v3476
      %3668 = vmatpush1.bf16.msra.mxu0 %v3475
      %3669 = vmatprep.subr.bf16.mxu0 %v3478
      %3670 = vmatpush1.bf16.msra.mxu0 %v3477
      %3671 = vmatprep.subr.bf16.mxu0 %v3480
      %3672 = vmatpush1.bf16.msra.mxu0 %v3479
      %3673 = vmatprep.subr.bf16.mxu0 %v3482
      %3674 = vmatpush1.bf16.msra.mxu0 %v3481
      %3675 = vmatprep.subr.bf16.mxu0 %v3484
      %3676 = vmatpush1.bf16.msra.mxu0 %v3483
      %3677 = vmatprep.subr.bf16.mxu0 %v3486
      %3678 = vmatpush1.bf16.msra.mxu0 %v3485
      %3679 = vmatprep.subr.bf16.mxu0 %v3488
      %3680 = vmatpush1.bf16.msra.mxu0 %v3487
      %3681 = vmatprep.subr.bf16.mxu0 %v3490
      %3682 = vmatpush1.bf16.msra.mxu0 %v3489
      %3683 = vmatprep.subr.bf16.mxu0 %v3492
      %3684 = vmatpush1.bf16.msra.mxu0 %v3491
      %3685 = vmatprep.subr.bf16.mxu0 %v3494
      %3686 = vmatpush1.bf16.msra.mxu0 %v3493
      %3687 = vmatprep.subr.bf16.mxu0 %v3496
      %3688 = vmatpush1.bf16.msra.mxu0 %v3495
      %3689 = vmatprep.subr.bf16.mxu0 %v3498
      %3690 = vmatpush1.bf16.msra.mxu0 %v3497
      %3691 = vmatprep.subr.bf16.mxu0 %v3500
      %3692 = vmatpush1.bf16.msra.mxu0 %v3499
      %3693 = vmatprep.subr.bf16.mxu0 %v3502
      %3694 = vmatpush1.bf16.msra.mxu0 %v3501
      %3695 = vmatprep.subr.bf16.mxu0 %v3504
      %3696 = vmatpush1.bf16.msra.mxu0 %v3503
      %3697 = vmatprep.mubr.bf16.mxu0 %v3106
      %3698 = vmatmul.mubr.bf16.gmra.mrb[0].mxu0 %v3105
      %v3699 = vpop.f32.mrb[0].mxu0
      %v3700 = vadd.f32 0.0, %v3699
      %v3701 = vpop.f32.mrb[0].mxu0
      %v3702 = vadd.f32 0.0, %v3701
      %v3703 = vpop.f32.mrb[0].mxu0
      %v3704 = vadd.f32 0.0, %v3703
      %v3705 = vpop.f32.mrb[0].mxu0
      %v3706 = vadd.f32 0.0, %v3705
      %3707 = vmatprep.mubr.bf16.mxu0 %v3111
      %3708 = vmatmul.mubr.bf16.gmra.mrb[0].mxu0 %v3110
      %v3709 = vpop.f32.mrb[0].mxu0
      %v3710 = vadd.f32 0.0, %v3709
      %v3711 = vpop.f32.mrb[0].mxu0
      %v3712 = vadd.f32 0.0, %v3711
      %v3713 = vpop.f32.mrb[0].mxu0
      %v3714 = vadd.f32 0.0, %v3713
      %v3715 = vpop.f32.mrb[0].mxu0
      %v3716 = vadd.f32 0.0, %v3715
      %3717 = vmatprep.mubr.bf16.mxu0 %v3116
      %3718 = vmatmul.mubr.bf16.gmra.mrb[0].mxu0 %v3115
      %v3719 = vpop.f32.mrb[0].mxu0
      %v3720 = vadd.f32 0.0, %v3719
      %v3721 = vpop.f32.mrb[0].mxu0
      %v3722 = vadd.f32 0.0, %v3721
      %v3723 = vpop.f32.mrb[0].mxu0
      %v3724 = vadd.f32 0.0, %v3723
      %v3725 = vpop.f32.mrb[0].mxu0
      %v3726 = vadd.f32 0.0, %v3725
      %3727 = vmatprep.mubr.bf16.mxu0 %v3121
      %3728 = vmatmul.mubr.bf16.gmra.mrb[0].mxu0 %v3120
      %v3729 = vpop.f32.mrb[0].mxu0
      %v3730 = vadd.f32 0.0, %v3729
      %v3731 = vpop.f32.mrb[0].mxu0
      %v3732 = vadd.f32 0.0, %v3731
      %v3733 = vpop.f32.mrb[0].mxu0
      %v3734 = vadd.f32 0.0, %v3733
      %v3735 = vpop.f32.mrb[0].mxu0
      %v3736 = vadd.f32 0.0, %v3735
      %3737 = vmatprep.mubr.bf16.mxu0 %v3126
      %3738 = vmatmul.mubr.bf16.gmra.mrb[0].mxu0 %v3125
      %v3739 = vpop.f32.mrb[0].mxu0
      %v3740 = vadd.f32 0.0, %v3739
      %v3741 = vpop.f32.mrb[0].mxu0
      %v3742 = vadd.f32 0.0, %v3741
      %v3743 = vpop.f32.mrb[0].mxu0
      %v3744 = vadd.f32 0.0, %v3743
      %v3745 = vpop.f32.mrb[0].mxu0
      %v3746 = vadd.f32 0.0, %v3745
      %3747 = vmatprep.mubr.bf16.mxu0 %v3131
      %3748 = vmatmul.mubr.bf16.gmra.mrb[0].mxu0 %v3130
      %v3749 = vpop.f32.mrb[0].mxu0
      %v3750 = vadd.f32 0.0, %v3749
      %v3751 = vpop.f32.mrb[0].mxu0
      %v3752 = vadd.f32 0.0, %v3751
      %v3753 = vpop.f32.mrb[0].mxu0
      %v3754 = vadd.f32 0.0, %v3753
      %v3755 = vpop.f32.mrb[0].mxu0
      %v3756 = vadd.f32 0.0, %v3755
      %3757 = vmatprep.mubr.bf16.mxu0 %v3136
      %3758 = vmatmul.mubr.bf16.gmra.mrb[0].mxu0 %v3135
      %v3759 = vpop.f32.mrb[0].mxu0
      %v3760 = vadd.f32 0.0, %v3759
      %v3761 = vpop.f32.mrb[0].mxu0
      %v3762 = vadd.f32 0.0, %v3761
      %v3763 = vpop.f32.mrb[0].mxu0
      %v3764 = vadd.f32 0.0, %v3763
      %v3765 = vpop.f32.mrb[0].mxu0
      %v3766 = vadd.f32 0.0, %v3765
      %3767 = vmatprep.mubr.bf16.mxu0 %v3141
      %3768 = vmatmul.mubr.bf16.gmra.mrb[0].mxu0 %v3140
      %v3769 = vpop.f32.mrb[0].mxu0
      %v3770 = vadd.f32 0.0, %v3769
      %v3771 = vpop.f32.mrb[0].mxu0
      %v3772 = vadd.f32 0.0, %v3771
      %v3773 = vpop.f32.mrb[0].mxu0
      %v3774 = vadd.f32 0.0, %v3773
      %v3775 = vpop.f32.mrb[0].mxu0
      %v3776 = vadd.f32 0.0, %v3775
      %3777 = vmatprep.mubr.bf16.mxu0 %v3146
      %3778 = vmatmul.mubr.bf16.gmra.mrb[0].mxu0 %v3145
      %v3779 = vpop.f32.mrb[0].mxu0
      %v3780 = vadd.f32 0.0, %v3779
      %v3781 = vpop.f32.mrb[0].mxu0
      %v3782 = vadd.f32 0.0, %v3781
      %v3783 = vpop.f32.mrb[0].mxu0
      %v3784 = vadd.f32 0.0, %v3783
      %v3785 = vpop.f32.mrb[0].mxu0
      %v3786 = vadd.f32 0.0, %v3785
      %3787 = vmatprep.mubr.bf16.mxu0 %v3151
      %3788 = vmatmul.mubr.bf16.gmra.mrb[0].mxu0 %v3150
      %v3789 = vpop.f32.mrb[0].mxu0
      %v3790 = vadd.f32 0.0, %v3789
      %v3791 = vpop.f32.mrb[0].mxu0
      %v3792 = vadd.f32 0.0, %v3791
      %v3793 = vpop.f32.mrb[0].mxu0
      %v3794 = vadd.f32 0.0, %v3793
      %v3795 = vpop.f32.mrb[0].mxu0
      %v3796 = vadd.f32 0.0, %v3795
      %3797 = vmatprep.mubr.bf16.mxu0 %v3156
      %3798 = vmatmul.mubr.bf16.gmra.mrb[0].mxu0 %v3155
      %v3799 = vpop.f32.mrb[0].mxu0
      %v3800 = vadd.f32 0.0, %v3799
      %v3801 = vpop.f32.mrb[0].mxu0
      %v3802 = vadd.f32 0.0, %v3801
      %v3803 = vpop.f32.mrb[0].mxu0
      %v3804 = vadd.f32 0.0, %v3803
      %v3805 = vpop.f32.mrb[0].mxu0
      %v3806 = vadd.f32 0.0, %v3805
      %3807 = vmatprep.mubr.bf16.mxu0 %v3161
      %3808 = vmatmul.mubr.bf16.gmra.mrb[0].mxu0 %v3160
      %v3809 = vpop.f32.mrb[0].mxu0
      %v3810 = vadd.f32 0.0, %v3809
      %v3811 = vpop.f32.mrb[0].mxu0
      %v3812 = vadd.f32 0.0, %v3811
      %v3813 = vpop.f32.mrb[0].mxu0
      %v3814 = vadd.f32 0.0, %v3813
      %v3815 = vpop.f32.mrb[0].mxu0
      %v3816 = vadd.f32 0.0, %v3815
      %3817 = vmatprep.mubr.bf16.mxu0 %v3166
      %3818 = vmatmul.mubr.bf16.gmra.mrb[0].mxu0 %v3165
      %v3819 = vpop.f32.mrb[0].mxu0
      %v3820 = vadd.f32 0.0, %v3819
      %v3821 = vpop.f32.mrb[0].mxu0
      %v3822 = vadd.f32 0.0, %v3821
      %v3823 = vpop.f32.mrb[0].mxu0
      %v3824 = vadd.f32 0.0, %v3823
      %v3825 = vpop.f32.mrb[0].mxu0
      %v3826 = vadd.f32 0.0, %v3825
      %3827 = vmatprep.mubr.bf16.mxu0 %v3171
      %3828 = vmatmul.mubr.bf16.gmra.mrb[0].mxu0 %v3170
      %v3829 = vpop.f32.mrb[0].mxu0
      %v3830 = vadd.f32 0.0, %v3829
      %v3831 = vpop.f32.mrb[0].mxu0
      %v3832 = vadd.f32 0.0, %v3831
      %v3833 = vpop.f32.mrb[0].mxu0
      %v3834 = vadd.f32 0.0, %v3833
      %v3835 = vpop.f32.mrb[0].mxu0
      %v3836 = vadd.f32 0.0, %v3835
      %3837 = vmatprep.mubr.bf16.mxu0 %v3176
      %3838 = vmatmul.mubr.bf16.gmra.mrb[0].mxu0 %v3175
      %v3839 = vpop.f32.mrb[0].mxu0
      %v3840 = vadd.f32 0.0, %v3839
      %v3841 = vpop.f32.mrb[0].mxu0
      %v3842 = vadd.f32 0.0, %v3841
      %v3843 = vpop.f32.mrb[0].mxu0
      %v3844 = vadd.f32 0.0, %v3843
      %v3845 = vpop.f32.mrb[0].mxu0
      %v3846 = vadd.f32 0.0, %v3845
      %3847 = vmatprep.mubr.bf16.mxu0 %v3181
      %3848 = vmatmul.mubr.bf16.gmra.mrb[0].mxu0 %v3180
      %v3849 = vpop.f32.mrb[0].mxu0
      %v3850 = vadd.f32 0.0, %v3849
      %v3851 = vpop.f32.mrb[0].mxu0
      %v3852 = vadd.f32 0.0, %v3851
      %v3853 = vpop.f32.mrb[0].mxu0
      %v3854 = vadd.f32 0.0, %v3853
      %v3855 = vpop.f32.mrb[0].mxu0
      %v3856 = vadd.f32 0.0, %v3855
      %3857 = vdwg.mxu0
      %3858 = vmatprep.subr.bf16.mxu0 %v3506
      %3859 = vmatpush1.bf16.msra.mxu0 %v3505
      %3860 = vmatprep.subr.bf16.mxu0 %v3508
      %3861 = vmatpush1.bf16.msra.mxu0 %v3507
      %3862 = vmatprep.subr.bf16.mxu0 %v3510
      %3863 = vmatpush1.bf16.msra.mxu0 %v3509
      %3864 = vmatprep.subr.bf16.mxu0 %v3512
      %3865 = vmatpush1.bf16.msra.mxu0 %v3511
      %3866 = vmatprep.subr.bf16.mxu0 %v3514
      %3867 = vmatpush1.bf16.msra.mxu0 %v3513
      %3868 = vmatprep.subr.bf16.mxu0 %v3516
      %3869 = vmatpush1.bf16.msra.mxu0 %v3515
      %3870 = vmatprep.subr.bf16.mxu0 %v3518
      %3871 = vmatpush1.bf16.msra.mxu0 %v3517
      %3872 = vmatprep.subr.bf16.mxu0 %v3520
      %3873 = vmatpush1.bf16.msra.mxu0 %v3519
      %3874 = vmatprep.subr.bf16.mxu0 %v3522
      %3875 = vmatpush1.bf16.msra.mxu0 %v3521
      %3876 = vmatprep.subr.bf16.mxu0 %v3524
      %3877 = vmatpush1.bf16.msra.mxu0 %v3523
      %3878 = vmatprep.subr.bf16.mxu0 %v3526
      %3879 = vmatpush1.bf16.msra.mxu0 %v3525
      %3880 = vmatprep.subr.bf16.mxu0 %v3528
      %3881 = vmatpush1.bf16.msra.mxu0 %v3527
      %3882 = vmatprep.subr.bf16.mxu0 %v3530
      %3883 = vmatpush1.bf16.msra.mxu0 %v3529
      %3884 = vmatprep.subr.bf16.mxu0 %v3532
      %3885 = vmatpush1.bf16.msra.mxu0 %v3531
      %3886 = vmatprep.subr.bf16.mxu0 %v3534
      %3887 = vmatpush1.bf16.msra.mxu0 %v3533
      %3888 = vmatprep.subr.bf16.mxu0 %v3536
      %3889 = vmatpush1.bf16.msra.mxu0 %v3535
      %3890 = vmatprep.mubr.bf16.mxu0 %v3108
      %3891 = vmatmul.mubr.bf16.gmra.mrb[0].mxu0 %v3107
      %v3892 = vpop.f32.mrb[0].mxu0
      %v3893 = vadd.f32 %v3700, %v3892
      %v3894 = vpop.f32.mrb[0].mxu0
      %v3895 = vadd.f32 %v3702, %v3894
      %v3896 = vpop.f32.mrb[0].mxu0
      %v3897 = vadd.f32 %v3704, %v3896
      %v3898 = vpop.f32.mrb[0].mxu0
      %v3899 = vadd.f32 %v3706, %v3898
      %3900 = vmatprep.mubr.bf16.mxu0 %v3113
      %3901 = vmatmul.mubr.bf16.gmra.mrb[0].mxu0 %v3112
      %v3902 = vpop.f32.mrb[0].mxu0
      %v3903 = vadd.f32 %v3710, %v3902
      %v3904 = vpop.f32.mrb[0].mxu0
      %v3905 = vadd.f32 %v3712, %v3904
      %v3906 = vpop.f32.mrb[0].mxu0
      %v3907 = vadd.f32 %v3714, %v3906
      %v3908 = vpop.f32.mrb[0].mxu0
      %v3909 = vadd.f32 %v3716, %v3908
      %3910 = vmatprep.mubr.bf16.mxu0 %v3118
      %3911 = vmatmul.mubr.bf16.gmra.mrb[0].mxu0 %v3117
      %v3912 = vpop.f32.mrb[0].mxu0
      %v3913 = vadd.f32 %v3720, %v3912
      %v3914 = vpop.f32.mrb[0].mxu0
      %v3915 = vadd.f32 %v3722, %v3914
      %v3916 = vpop.f32.mrb[0].mxu0
      %v3917 = vadd.f32 %v3724, %v3916
      %v3918 = vpop.f32.mrb[0].mxu0
      %v3919 = vadd.f32 %v3726, %v3918
      %3920 = vmatprep.mubr.bf16.mxu0 %v3123
      %3921 = vmatmul.mubr.bf16.gmra.mrb[0].mxu0 %v3122
      %v3922 = vpop.f32.mrb[0].mxu0
      %v3923 = vadd.f32 %v3730, %v3922
      %v3924 = vpop.f32.mrb[0].mxu0
      %v3925 = vadd.f32 %v3732, %v3924
      %v3926 = vpop.f32.mrb[0].mxu0
      %v3927 = vadd.f32 %v3734, %v3926
      %v3928 = vpop.f32.mrb[0].mxu0
      %v3929 = vadd.f32 %v3736, %v3928
      %3930 = vmatprep.mubr.bf16.mxu0 %v3128
      %3931 = vmatmul.mubr.bf16.gmra.mrb[0].mxu0 %v3127
      %v3932 = vpop.f32.mrb[0].mxu0
      %v3933 = vadd.f32 %v3740, %v3932
      %v3934 = vpop.f32.mrb[0].mxu0
      %v3935 = vadd.f32 %v3742, %v3934
      %v3936 = vpop.f32.mrb[0].mxu0
      %v3937 = vadd.f32 %v3744, %v3936
      %v3938 = vpop.f32.mrb[0].mxu0
      %v3939 = vadd.f32 %v3746, %v3938
      %3940 = vmatprep.mubr.bf16.mxu0 %v3133
      %3941 = vmatmul.mubr.bf16.gmra.mrb[0].mxu0 %v3132
      %v3942 = vpop.f32.mrb[0].mxu0
      %v3943 = vadd.f32 %v3750, %v3942
      %v3944 = vpop.f32.mrb[0].mxu0
      %v3945 = vadd.f32 %v3752, %v3944
      %v3946 = vpop.f32.mrb[0].mxu0
      %v3947 = vadd.f32 %v3754, %v3946
      %v3948 = vpop.f32.mrb[0].mxu0
      %v3949 = vadd.f32 %v3756, %v3948
      %3950 = vmatprep.mubr.bf16.mxu0 %v3138
      %3951 = vmatmul.mubr.bf16.gmra.mrb[0].mxu0 %v3137
      %v3952 = vpop.f32.mrb[0].mxu0
      %v3953 = vadd.f32 %v3760, %v3952
      %v3954 = vpop.f32.mrb[0].mxu0
      %v3955 = vadd.f32 %v3762, %v3954
      %v3956 = vpop.f32.mrb[0].mxu0
      %v3957 = vadd.f32 %v3764, %v3956
      %v3958 = vpop.f32.mrb[0].mxu0
      %v3959 = vadd.f32 %v3766, %v3958
      %3960 = vmatprep.mubr.bf16.mxu0 %v3143
      %3961 = vmatmul.mubr.bf16.gmra.mrb[0].mxu0 %v3142
      %v3962 = vpop.f32.mrb[0].mxu0
      %v3963 = vadd.f32 %v3770, %v3962
      %v3964 = vpop.f32.mrb[0].mxu0
      %v3965 = vadd.f32 %v3772, %v3964
      %v3966 = vpop.f32.mrb[0].mxu0
      %v3967 = vadd.f32 %v3774, %v3966
      %v3968 = vpop.f32.mrb[0].mxu0
      %v3969 = vadd.f32 %v3776, %v3968
      %3970 = vmatprep.mubr.bf16.mxu0 %v3148
      %3971 = vmatmul.mubr.bf16.gmra.mrb[0].mxu0 %v3147
      %v3972 = vpop.f32.mrb[0].mxu0
      %v3973 = vadd.f32 %v3780, %v3972
      %v3974 = vpop.f32.mrb[0].mxu0
      %v3975 = vadd.f32 %v3782, %v3974
      %v3976 = vpop.f32.mrb[0].mxu0
      %v3977 = vadd.f32 %v3784, %v3976
      %v3978 = vpop.f32.mrb[0].mxu0
      %v3979 = vadd.f32 %v3786, %v3978
      %3980 = vmatprep.mubr.bf16.mxu0 %v3153
      %3981 = vmatmul.mubr.bf16.gmra.mrb[0].mxu0 %v3152
      %v3982 = vpop.f32.mrb[0].mxu0
      %v3983 = vadd.f32 %v3790, %v3982
      %v3984 = vpop.f32.mrb[0].mxu0
      %v3985 = vadd.f32 %v3792, %v3984
      %v3986 = vpop.f32.mrb[0].mxu0
      %v3987 = vadd.f32 %v3794, %v3986
      %v3988 = vpop.f32.mrb[0].mxu0
      %v3989 = vadd.f32 %v3796, %v3988
      %3990 = vmatprep.mubr.bf16.mxu0 %v3158
      %3991 = vmatmul.mubr.bf16.gmra.mrb[0].mxu0 %v3157
      %v3992 = vpop.f32.mrb[0].mxu0
      %v3993 = vadd.f32 %v3800, %v3992
      %v3994 = vpop.f32.mrb[0].mxu0
      %v3995 = vadd.f32 %v3802, %v3994
      %v3996 = vpop.f32.mrb[0].mxu0
      %v3997 = vadd.f32 %v3804, %v3996
      %v3998 = vpop.f32.mrb[0].mxu0
      %v3999 = vadd.f32 %v3806, %v3998
      %4000 = vmatprep.mubr.bf16.mxu0 %v3163
      %4001 = vmatmul.mubr.bf16.gmra.mrb[0].mxu0 %v3162
      %v4002 = vpop.f32.mrb[0].mxu0
      %v4003 = vadd.f32 %v3810, %v4002
      %v4004 = vpop.f32.mrb[0].mxu0
      %v4005 = vadd.f32 %v3812, %v4004
      %v4006 = vpop.f32.mrb[0].mxu0
      %v4007 = vadd.f32 %v3814, %v4006
      %v4008 = vpop.f32.mrb[0].mxu0
      %v4009 = vadd.f32 %v3816, %v4008
      %4010 = vmatprep.mubr.bf16.mxu0 %v3168
      %4011 = vmatmul.mubr.bf16.gmra.mrb[0].mxu0 %v3167
      %v4012 = vpop.f32.mrb[0].mxu0
      %v4013 = vadd.f32 %v3820, %v4012
      %v4014 = vpop.f32.mrb[0].mxu0
      %v4015 = vadd.f32 %v3822, %v4014
      %v4016 = vpop.f32.mrb[0].mxu0
      %v4017 = vadd.f32 %v3824, %v4016
      %v4018 = vpop.f32.mrb[0].mxu0
      %v4019 = vadd.f32 %v3826, %v4018
      %4020 = vmatprep.mubr.bf16.mxu0 %v3173
      %4021 = vmatmul.mubr.bf16.gmra.mrb[0].mxu0 %v3172
      %v4022 = vpop.f32.mrb[0].mxu0
      %v4023 = vadd.f32 %v3830, %v4022
      %v4024 = vpop.f32.mrb[0].mxu0
      %v4025 = vadd.f32 %v3832, %v4024
      %v4026 = vpop.f32.mrb[0].mxu0
      %v4027 = vadd.f32 %v3834, %v4026
      %v4028 = vpop.f32.mrb[0].mxu0
      %v4029 = vadd.f32 %v3836, %v4028
      %4030 = vmatprep.mubr.bf16.mxu0 %v3178
      %4031 = vmatmul.mubr.bf16.gmra.mrb[0].mxu0 %v3177
      %v4032 = vpop.f32.mrb[0].mxu0
      %v4033 = vadd.f32 %v3840, %v4032
      %v4034 = vpop.f32.mrb[0].mxu0
      %v4035 = vadd.f32 %v3842, %v4034
      %v4036 = vpop.f32.mrb[0].mxu0
      %v4037 = vadd.f32 %v3844, %v4036
      %v4038 = vpop.f32.mrb[0].mxu0
      %v4039 = vadd.f32 %v3846, %v4038
      %4040 = vmatprep.mubr.bf16.mxu0 %v3183
      %4041 = vmatmul.mubr.bf16.gmra.mrb[0].mxu0 %v3182
      %v4042 = vpop.f32.mrb[0].mxu0
      %v4043 = vadd.f32 %v3850, %v4042
      %v4044 = vpop.f32.mrb[0].mxu0
      %v4045 = vadd.f32 %v3852, %v4044
      %v4046 = vpop.f32.mrb[0].mxu0
      %v4047 = vadd.f32 %v3854, %v4046
      %v4048 = vpop.f32.mrb[0].mxu0
      %v4049 = vadd.f32 %v3856, %v4048
      %4050 = vdwg.mxu0
      %4051 = vmatprep.subr.bf16.mxu0 %v3538
      %4052 = vmatpush1.bf16.msra.mxu0 %v3537
      %4053 = vmatprep.subr.bf16.mxu0 %v3540
      %4054 = vmatpush1.bf16.msra.mxu0 %v3539
      %4055 = vmatprep.subr.bf16.mxu0 %v3542
      %4056 = vmatpush1.bf16.msra.mxu0 %v3541
      %4057 = vmatprep.subr.bf16.mxu0 %v3544
      %4058 = vmatpush1.bf16.msra.mxu0 %v3543
      %4059 = vmatprep.subr.bf16.mxu0 0
      %4060 = vmatpush1.bf16.msra.mxu0 0
      %4061 = vmatprep.subr.bf16.mxu0 0
      %4062 = vmatpush1.bf16.msra.mxu0 0
      %4063 = vmatprep.subr.bf16.mxu0 0
      %4064 = vmatpush1.bf16.msra.mxu0 0
      %4065 = vmatprep.subr.bf16.mxu0 0
      %4066 = vmatpush1.bf16.msra.mxu0 0
      %4067 = vmatprep.subr.bf16.mxu0 0
      %4068 = vmatpush1.bf16.msra.mxu0 0
      %4069 = vmatprep.subr.bf16.mxu0 0
      %4070 = vmatpush1.bf16.msra.mxu0 0
      %4071 = vmatprep.subr.bf16.mxu0 0
      %4072 = vmatpush1.bf16.msra.mxu0 0
      %4073 = vmatprep.subr.bf16.mxu0 0
      %4074 = vmatpush1.bf16.msra.mxu0 0
      %4075 = vmatprep.subr.bf16.mxu0 0
      %4076 = vmatpush1.bf16.msra.mxu0 0
      %4077 = vmatprep.subr.bf16.mxu0 0
      %4078 = vmatpush1.bf16.msra.mxu0 0
      %4079 = vmatprep.subr.bf16.mxu0 0
      %4080 = vmatpush1.bf16.msra.mxu0 0
      %4081 = vmatprep.subr.bf16.mxu0 0
      %4082 = vmatpush1.bf16.msra.mxu0 0
      %4083 = vmatprep.mubr.bf16.mxu0 0
      %4084 = vmatmul.mubr.bf16.gmra.mrb[0].mxu0 %v3618
      %v4085 = vpop.f32.mrb[0].mxu0
      %v4086 = vadd.f32 %v3893, %v4085
      %v4087 = vpop.f32.mrb[0].mxu0
      %v4088 = vadd.f32 %v3895, %v4087
      %v4089 = vpop.f32.mrb[0].mxu0
      %v4090 = vadd.f32 %v3897, %v4089
      %v4091 = vpop.f32.mrb[0].mxu0
      %v4092 = vadd.f32 %v3899, %v4091
      %4093 = vmatprep.mubr.bf16.mxu0 0
      %4094 = vmatmul.mubr.bf16.gmra.mrb[0].mxu0 %v3621
      %v4095 = vpop.f32.mrb[0].mxu0
      %v4096 = vadd.f32 %v3903, %v4095
      %v4097 = vpop.f32.mrb[0].mxu0
      %v4098 = vadd.f32 %v3905, %v4097
      %v4099 = vpop.f32.mrb[0].mxu0
      %v4100 = vadd.f32 %v3907, %v4099
      %v4101 = vpop.f32.mrb[0].mxu0
      %v4102 = vadd.f32 %v3909, %v4101
      %4103 = vmatprep.mubr.bf16.mxu0 0
      %4104 = vmatmul.mubr.bf16.gmra.mrb[0].mxu0 %v3624
      %v4105 = vpop.f32.mrb[0].mxu0
      %v4106 = vadd.f32 %v3913, %v4105
      %v4107 = vpop.f32.mrb[0].mxu0
      %v4108 = vadd.f32 %v3915, %v4107
      %v4109 = vpop.f32.mrb[0].mxu0
      %v4110 = vadd.f32 %v3917, %v4109
      %v4111 = vpop.f32.mrb[0].mxu0
      %v4112 = vadd.f32 %v3919, %v4111
      %4113 = vmatprep.mubr.bf16.mxu0 0
      %4114 = vmatmul.mubr.bf16.gmra.mrb[0].mxu0 %v3627
      %v4115 = vpop.f32.mrb[0].mxu0
      %v4116 = vadd.f32 %v3923, %v4115
      %v4117 = vpop.f32.mrb[0].mxu0
      %v4118 = vadd.f32 %v3925, %v4117
      %v4119 = vpop.f32.mrb[0].mxu0
      %v4120 = vadd.f32 %v3927, %v4119
      %v4121 = vpop.f32.mrb[0].mxu0
      %v4122 = vadd.f32 %v3929, %v4121
      %4123 = vmatprep.mubr.bf16.mxu0 0
      %4124 = vmatmul.mubr.bf16.gmra.mrb[0].mxu0 %v3630
      %v4125 = vpop.f32.mrb[0].mxu0
      %v4126 = vadd.f32 %v3933, %v4125
      %v4127 = vpop.f32.mrb[0].mxu0
      %v4128 = vadd.f32 %v3935, %v4127
      %v4129 = vpop.f32.mrb[0].mxu0
      %v4130 = vadd.f32 %v3937, %v4129
      %v4131 = vpop.f32.mrb[0].mxu0
      %v4132 = vadd.f32 %v3939, %v4131
      %4133 = vmatprep.mubr.bf16.mxu0 0
      %4134 = vmatmul.mubr.bf16.gmra.mrb[0].mxu0 %v3633
      %v4135 = vpop.f32.mrb[0].mxu0
      %v4136 = vadd.f32 %v3943, %v4135
      %v4137 = vpop.f32.mrb[0].mxu0
      %v4138 = vadd.f32 %v3945, %v4137
      %v4139 = vpop.f32.mrb[0].mxu0
      %v4140 = vadd.f32 %v3947, %v4139
      %v4141 = vpop.f32.mrb[0].mxu0
      %v4142 = vadd.f32 %v3949, %v4141
      %4143 = vmatprep.mubr.bf16.mxu0 0
      %4144 = vmatmul.mubr.bf16.gmra.mrb[0].mxu0 %v3636
      %v4145 = vpop.f32.mrb[0].mxu0
      %v4146 = vadd.f32 %v3953, %v4145
      %v4147 = vpop.f32.mrb[0].mxu0
      %v4148 = vadd.f32 %v3955, %v4147
      %v4149 = vpop.f32.mrb[0].mxu0
      %v4150 = vadd.f32 %v3957, %v4149
      %v4151 = vpop.f32.mrb[0].mxu0
      %v4152 = vadd.f32 %v3959, %v4151
      %4153 = vmatprep.mubr.bf16.mxu0 0
      %4154 = vmatmul.mubr.bf16.gmra.mrb[0].mxu0 %v3639
      %v4155 = vpop.f32.mrb[0].mxu0
      %v4156 = vadd.f32 %v3963, %v4155
      %v4157 = vpop.f32.mrb[0].mxu0
      %v4158 = vadd.f32 %v3965, %v4157
      %v4159 = vpop.f32.mrb[0].mxu0
      %v4160 = vadd.f32 %v3967, %v4159
      %v4161 = vpop.f32.mrb[0].mxu0
      %v4162 = vadd.f32 %v3969, %v4161
      %4163 = vmatprep.mubr.bf16.mxu0 0
      %4164 = vmatmul.mubr.bf16.gmra.mrb[0].mxu0 %v3642
      %v4165 = vpop.f32.mrb[0].mxu0
      %v4166 = vadd.f32 %v3973, %v4165
      %v4167 = vpop.f32.mrb[0].mxu0
      %v4168 = vadd.f32 %v3975, %v4167
      %v4169 = vpop.f32.mrb[0].mxu0
      %v4170 = vadd.f32 %v3977, %v4169
      %v4171 = vpop.f32.mrb[0].mxu0
      %v4172 = vadd.f32 %v3979, %v4171
      %4173 = vmatprep.mubr.bf16.mxu0 0
      %4174 = vmatmul.mubr.bf16.gmra.mrb[0].mxu0 %v3645
      %v4175 = vpop.f32.mrb[0].mxu0
      %v4176 = vadd.f32 %v3983, %v4175
      %v4177 = vpop.f32.mrb[0].mxu0
      %v4178 = vadd.f32 %v3985, %v4177
      %v4179 = vpop.f32.mrb[0].mxu0
      %v4180 = vadd.f32 %v3987, %v4179
      %v4181 = vpop.f32.mrb[0].mxu0
      %v4182 = vadd.f32 %v3989, %v4181
      %4183 = vmatprep.mubr.bf16.mxu0 0
      %4184 = vmatmul.mubr.bf16.gmra.mrb[0].mxu0 %v3648
      %v4185 = vpop.f32.mrb[0].mxu0
      %v4186 = vadd.f32 %v3993, %v4185
      %v4187 = vpop.f32.mrb[0].mxu0
      %v4188 = vadd.f32 %v3995, %v4187
      %v4189 = vpop.f32.mrb[0].mxu0
      %v4190 = vadd.f32 %v3997, %v4189
      %v4191 = vpop.f32.mrb[0].mxu0
      %v4192 = vadd.f32 %v3999, %v4191
      %4193 = vmatprep.mubr.bf16.mxu0 0
      %4194 = vmatmul.mubr.bf16.gmra.mrb[0].mxu0 %v3651
      %v4195 = vpop.f32.mrb[0].mxu0
      %v4196 = vadd.f32 %v4003, %v4195
      %v4197 = vpop.f32.mrb[0].mxu0
      %v4198 = vadd.f32 %v4005, %v4197
      %v4199 = vpop.f32.mrb[0].mxu0
      %v4200 = vadd.f32 %v4007, %v4199
      %v4201 = vpop.f32.mrb[0].mxu0
      %v4202 = vadd.f32 %v4009, %v4201
      %4203 = vmatprep.mubr.bf16.mxu0 0
      %4204 = vmatmul.mubr.bf16.gmra.mrb[0].mxu0 %v3654
      %v4205 = vpop.f32.mrb[0].mxu0
      %v4206 = vadd.f32 %v4013, %v4205
      %v4207 = vpop.f32.mrb[0].mxu0
      %v4208 = vadd.f32 %v4015, %v4207
      %v4209 = vpop.f32.mrb[0].mxu0
      %v4210 = vadd.f32 %v4017, %v4209
      %v4211 = vpop.f32.mrb[0].mxu0
      %v4212 = vadd.f32 %v4019, %v4211
      %4213 = vmatprep.mubr.bf16.mxu0 0
      %4214 = vmatmul.mubr.bf16.gmra.mrb[0].mxu0 %v3657
      %v4215 = vpop.f32.mrb[0].mxu0
      %v4216 = vadd.f32 %v4023, %v4215
      %v4217 = vpop.f32.mrb[0].mxu0
      %v4218 = vadd.f32 %v4025, %v4217
      %v4219 = vpop.f32.mrb[0].mxu0
      %v4220 = vadd.f32 %v4027, %v4219
      %v4221 = vpop.f32.mrb[0].mxu0
      %v4222 = vadd.f32 %v4029, %v4221
      %4223 = vmatprep.mubr.bf16.mxu0 0
      %4224 = vmatmul.mubr.bf16.gmra.mrb[0].mxu0 %v3660
      %v4225 = vpop.f32.mrb[0].mxu0
      %v4226 = vadd.f32 %v4033, %v4225
      %v4227 = vpop.f32.mrb[0].mxu0
      %v4228 = vadd.f32 %v4035, %v4227
      %v4229 = vpop.f32.mrb[0].mxu0
      %v4230 = vadd.f32 %v4037, %v4229
      %v4231 = vpop.f32.mrb[0].mxu0
      %v4232 = vadd.f32 %v4039, %v4231
      %4233 = vmatprep.mubr.bf16.mxu0 0
      %4234 = vmatmul.mubr.bf16.gmra.mrb[0].mxu0 %v3663
      %v4235 = vpop.f32.mrb[0].mxu0
      %v4236 = vadd.f32 %v4043, %v4235
      %v4237 = vpop.f32.mrb[0].mxu0
      %v4238 = vadd.f32 %v4045, %v4237
      %v4239 = vpop.f32.mrb[0].mxu0
      %v4240 = vadd.f32 %v4047, %v4239
      %v4241 = vpop.f32.mrb[0].mxu0
      %v4242 = vadd.f32 %v4049, %v4241
      %4243 = vdwg.mxu0
      %v4244 = vld [vmem:[%s4] ss:$2 sm:$0x3]
      %v4246 = vlaneseq
      %v4247 = vshrl.u32 %v4246, 7
      %v4248 = vsub.s32 0, %v4247
      %v4249 = vrot.slane %v4244, %v4248
      %v4250 = vlaneseq
      %v4251 = vshrl.u32 %v4250, 7
      %v4252 = vsub.s32 1, %v4251
      %v4253 = vrot.slane %v4244, %v4252
      %v4256 = vmul.f32 %v4086, %v4249
      %v4257 = vmul.f32 %v4088, %v4253
      %v4258 = vmul.f32 %v4090, %v4249
      %v4259 = vmul.f32 %v4092, %v4253
      %v4260 = vmul.f32 %v4096, %v4249
      %v4261 = vmul.f32 %v4098, %v4253
      %v4262 = vmul.f32 %v4100, %v4249
      %v4263 = vmul.f32 %v4102, %v4253
      %v4264 = vmul.f32 %v4106, %v4249
      %v4265 = vmul.f32 %v4108, %v4253
      %v4266 = vmul.f32 %v4110, %v4249
      %v4267 = vmul.f32 %v4112, %v4253
      %v4268 = vmul.f32 %v4116, %v4249
      %v4269 = vmul.f32 %v4118, %v4253
      %v4270 = vmul.f32 %v4120, %v4249
      %v4271 = vmul.f32 %v4122, %v4253
      %v4272 = vmul.f32 %v4126, %v4249
      %v4273 = vmul.f32 %v4128, %v4253
      %v4274 = vmul.f32 %v4130, %v4249
      %v4275 = vmul.f32 %v4132, %v4253
      %v4276 = vmul.f32 %v4136, %v4249
      %v4277 = vmul.f32 %v4138, %v4253
      %v4278 = vmul.f32 %v4140, %v4249
      %v4279 = vmul.f32 %v4142, %v4253
      %v4280 = vmul.f32 %v4146, %v4249
      %v4281 = vmul.f32 %v4148, %v4253
      %v4282 = vmul.f32 %v4150, %v4249
      %v4283 = vmul.f32 %v4152, %v4253
      %v4284 = vmul.f32 %v4156, %v4249
      %v4285 = vmul.f32 %v4158, %v4253
      %v4286 = vmul.f32 %v4160, %v4249
      %v4287 = vmul.f32 %v4162, %v4253
      %v4288 = vmul.f32 %v4166, %v4249
      %v4289 = vmul.f32 %v4168, %v4253
      %v4290 = vmul.f32 %v4170, %v4249
      %v4291 = vmul.f32 %v4172, %v4253
      %v4292 = vmul.f32 %v4176, %v4249
      %v4293 = vmul.f32 %v4178, %v4253
      %v4294 = vmul.f32 %v4180, %v4249
      %v4295 = vmul.f32 %v4182, %v4253
      %v4296 = vmul.f32 %v4186, %v4249
      %v4297 = vmul.f32 %v4188, %v4253
      %v4298 = vmul.f32 %v4190, %v4249
      %v4299 = vmul.f32 %v4192, %v4253
      %v4300 = vmul.f32 %v4196, %v4249
      %v4301 = vmul.f32 %v4198, %v4253
      %v4302 = vmul.f32 %v4200, %v4249
      %v4303 = vmul.f32 %v4202, %v4253
      %v4304 = vmul.f32 %v4206, %v4249
      %v4305 = vmul.f32 %v4208, %v4253
      %v4306 = vmul.f32 %v4210, %v4249
      %v4307 = vmul.f32 %v4212, %v4253
      %v4308 = vmul.f32 %v4216, %v4249
      %v4309 = vmul.f32 %v4218, %v4253
      %v4310 = vmul.f32 %v4220, %v4249
      %v4311 = vmul.f32 %v4222, %v4253
      %v4312 = vmul.f32 %v4226, %v4249
      %v4313 = vmul.f32 %v4228, %v4253
      %v4314 = vmul.f32 %v4230, %v4249
      %v4315 = vmul.f32 %v4232, %v4253
      %v4316 = vmul.f32 %v4236, %v4249
      %v4317 = vmul.f32 %v4238, %v4253
      %v4318 = vmul.f32 %v4240, %v4249
      %v4319 = vmul.f32 %v4242, %v4253
      %s4320 = scalar_lea.vmem %s4, 1
      %v4321 = vld [vmem:[%s4320] ss:$2 sm:$0x3]
      %v4323 = vlaneseq
      %v4324 = vshrl.u32 %v4323, 7
      %v4325 = vsub.s32 0, %v4324
      %v4326 = vrot.slane %v4321, %v4325
      %v4327 = vlaneseq
      %v4328 = vshrl.u32 %v4327, 7
      %v4329 = vsub.s32 1, %v4328
      %v4330 = vrot.slane %v4321, %v4329
      %v4333 = vadd.f32 %v4256, %v4326
      %v4334 = vadd.f32 %v4257, %v4330
      %v4335 = vadd.f32 %v4258, %v4326
      %v4336 = vadd.f32 %v4259, %v4330
      %v4337 = vadd.f32 %v4260, %v4326
      %v4338 = vadd.f32 %v4261, %v4330
      %v4339 = vadd.f32 %v4262, %v4326
      %v4340 = vadd.f32 %v4263, %v4330
      %v4341 = vadd.f32 %v4264, %v4326
      %v4342 = vadd.f32 %v4265, %v4330
      %v4343 = vadd.f32 %v4266, %v4326
      %v4344 = vadd.f32 %v4267, %v4330
      %v4345 = vadd.f32 %v4268, %v4326
      %v4346 = vadd.f32 %v4269, %v4330
      %v4347 = vadd.f32 %v4270, %v4326
      %v4348 = vadd.f32 %v4271, %v4330
      %v4349 = vadd.f32 %v4272, %v4326
      %v4350 = vadd.f32 %v4273, %v4330
      %v4351 = vadd.f32 %v4274, %v4326
      %v4352 = vadd.f32 %v4275, %v4330
      %v4353 = vadd.f32 %v4276, %v4326
      %v4354 = vadd.f32 %v4277, %v4330
      %v4355 = vadd.f32 %v4278, %v4326
      %v4356 = vadd.f32 %v4279, %v4330
      %v4357 = vadd.f32 %v4280, %v4326
      %v4358 = vadd.f32 %v4281, %v4330
      %v4359 = vadd.f32 %v4282, %v4326
      %v4360 = vadd.f32 %v4283, %v4330
      %v4361 = vadd.f32 %v4284, %v4326
      %v4362 = vadd.f32 %v4285, %v4330
      %v4363 = vadd.f32 %v4286, %v4326
      %v4364 = vadd.f32 %v4287, %v4330
      %v4365 = vadd.f32 %v4288, %v4326
      %v4366 = vadd.f32 %v4289, %v4330
      %v4367 = vadd.f32 %v4290, %v4326
      %v4368 = vadd.f32 %v4291, %v4330
      %v4369 = vadd.f32 %v4292, %v4326
      %v4370 = vadd.f32 %v4293, %v4330
      %v4371 = vadd.f32 %v4294, %v4326
      %v4372 = vadd.f32 %v4295, %v4330
      %v4373 = vadd.f32 %v4296, %v4326
      %v4374 = vadd.f32 %v4297, %v4330
      %v4375 = vadd.f32 %v4298, %v4326
      %v4376 = vadd.f32 %v4299, %v4330
      %v4377 = vadd.f32 %v4300, %v4326
      %v4378 = vadd.f32 %v4301, %v4330
      %v4379 = vadd.f32 %v4302, %v4326
      %v4380 = vadd.f32 %v4303, %v4330
      %v4381 = vadd.f32 %v4304, %v4326
      %v4382 = vadd.f32 %v4305, %v4330
      %v4383 = vadd.f32 %v4306, %v4326
      %v4384 = vadd.f32 %v4307, %v4330
      %v4385 = vadd.f32 %v4308, %v4326
      %v4386 = vadd.f32 %v4309, %v4330
      %v4387 = vadd.f32 %v4310, %v4326
      %v4388 = vadd.f32 %v4311, %v4330
      %v4389 = vadd.f32 %v4312, %v4326
      %v4390 = vadd.f32 %v4313, %v4330
      %v4391 = vadd.f32 %v4314, %v4326
      %v4392 = vadd.f32 %v4315, %v4330
      %v4393 = vadd.f32 %v4316, %v4326
      %v4394 = vadd.f32 %v4317, %v4330
      %v4395 = vadd.f32 %v4318, %v4326
      %v4396 = vadd.f32 %v4319, %v4330
      %v4397 = vmax.f32 %v4333, 0.0
      %v4398 = vmax.f32 %v4334, 0.0
      %v4399 = vmax.f32 %v4335, 0.0
      %v4400 = vmax.f32 %v4336, 0.0
      %v4401 = vmax.f32 %v4337, 0.0
      %v4402 = vmax.f32 %v4338, 0.0
      %v4403 = vmax.f32 %v4339, 0.0
      %v4404 = vmax.f32 %v4340, 0.0
      %v4405 = vmax.f32 %v4341, 0.0
      %v4406 = vmax.f32 %v4342, 0.0
      %v4407 = vmax.f32 %v4343, 0.0
      %v4408 = vmax.f32 %v4344, 0.0
      %v4409 = vmax.f32 %v4345, 0.0
      %v4410 = vmax.f32 %v4346, 0.0
      %v4411 = vmax.f32 %v4347, 0.0
      %v4412 = vmax.f32 %v4348, 0.0
      %v4413 = vmax.f32 %v4349, 0.0
      %v4414 = vmax.f32 %v4350, 0.0
      %v4415 = vmax.f32 %v4351, 0.0
      %v4416 = vmax.f32 %v4352, 0.0
      %v4417 = vmax.f32 %v4353, 0.0
      %v4418 = vmax.f32 %v4354, 0.0
      %v4419 = vmax.f32 %v4355, 0.0
      %v4420 = vmax.f32 %v4356, 0.0
      %v4421 = vmax.f32 %v4357, 0.0
      %v4422 = vmax.f32 %v4358, 0.0
      %v4423 = vmax.f32 %v4359, 0.0
      %v4424 = vmax.f32 %v4360, 0.0
      %v4425 = vmax.f32 %v4361, 0.0
      %v4426 = vmax.f32 %v4362, 0.0
      %v4427 = vmax.f32 %v4363, 0.0
      %v4428 = vmax.f32 %v4364, 0.0
      %v4429 = vmax.f32 %v4365, 0.0
      %v4430 = vmax.f32 %v4366, 0.0
      %v4431 = vmax.f32 %v4367, 0.0
      %v4432 = vmax.f32 %v4368, 0.0
      %v4433 = vmax.f32 %v4369, 0.0
      %v4434 = vmax.f32 %v4370, 0.0
      %v4435 = vmax.f32 %v4371, 0.0
      %v4436 = vmax.f32 %v4372, 0.0
      %v4437 = vmax.f32 %v4373, 0.0
      %v4438 = vmax.f32 %v4374, 0.0
      %v4439 = vmax.f32 %v4375, 0.0
      %v4440 = vmax.f32 %v4376, 0.0
      %v4441 = vmax.f32 %v4377, 0.0
      %v4442 = vmax.f32 %v4378, 0.0
      %v4443 = vmax.f32 %v4379, 0.0
      %v4444 = vmax.f32 %v4380, 0.0
      %v4445 = vmax.f32 %v4381, 0.0
      %v4446 = vmax.f32 %v4382, 0.0
      %v4447 = vmax.f32 %v4383, 0.0
      %v4448 = vmax.f32 %v4384, 0.0
      %v4449 = vmax.f32 %v4385, 0.0
      %v4450 = vmax.f32 %v4386, 0.0
      %v4451 = vmax.f32 %v4387, 0.0
      %v4452 = vmax.f32 %v4388, 0.0
      %v4453 = vmax.f32 %v4389, 0.0
      %v4454 = vmax.f32 %v4390, 0.0
      %v4455 = vmax.f32 %v4391, 0.0
      %v4456 = vmax.f32 %v4392, 0.0
      %v4457 = vmax.f32 %v4393, 0.0
      %v4458 = vmax.f32 %v4394, 0.0
      %v4459 = vmax.f32 %v4395, 0.0
      %v4460 = vmax.f32 %v4396, 0.0
      %v4461 = vpack.c.bf16 %v4399, %v4397
      %v4462 = vpack.c.bf16 %v4400, %v4398
      %v4463 = vpack.c.bf16 %v4403, %v4401
      %v4464 = vpack.c.bf16 %v4404, %v4402
      %v4465 = vpack.c.bf16 %v4407, %v4405
      %v4466 = vpack.c.bf16 %v4408, %v4406
      %v4467 = vpack.c.bf16 %v4411, %v4409
      %v4468 = vpack.c.bf16 %v4412, %v4410
      %v4469 = vpack.c.bf16 %v4415, %v4413
      %v4470 = vpack.c.bf16 %v4416, %v4414
      %v4471 = vpack.c.bf16 %v4419, %v4417
      %v4472 = vpack.c.bf16 %v4420, %v4418
      %v4473 = vpack.c.bf16 %v4423, %v4421
      %v4474 = vpack.c.bf16 %v4424, %v4422
      %v4475 = vpack.c.bf16 %v4427, %v4425
      %v4476 = vpack.c.bf16 %v4428, %v4426
      %v4477 = vpack.c.bf16 %v4431, %v4429
      %v4478 = vpack.c.bf16 %v4432, %v4430
      %v4479 = vpack.c.bf16 %v4435, %v4433
      %v4480 = vpack.c.bf16 %v4436, %v4434
      %v4481 = vpack.c.bf16 %v4439, %v4437
      %v4482 = vpack.c.bf16 %v4440, %v4438
      %v4483 = vpack.c.bf16 %v4443, %v4441
      %v4484 = vpack.c.bf16 %v4444, %v4442
      %v4485 = vpack.c.bf16 %v4447, %v4445
      %v4486 = vpack.c.bf16 %v4448, %v4446
      %v4487 = vpack.c.bf16 %v4451, %v4449
      %v4488 = vpack.c.bf16 %v4452, %v4450
      %v4489 = vpack.c.bf16 %v4455, %v4453
      %v4490 = vpack.c.bf16 %v4456, %v4454
      %v4491 = vpack.c.bf16 %v4459, %v4457
      %v4492 = vpack.c.bf16 %v4460, %v4458
      %v4493 = vld [vmem:[%s2] sm:$0xf]
      %v4494 = vld [vmem:[%s2 + $0x4] sm:$0xf]
      %v4495 = vld [vmem:[%s2 + $0x8] sm:$0xf]
      %v4496 = vld [vmem:[%s2 + $0xc] sm:$0xf]
      %v4497 = vld [vmem:[%s2 + $0x10] sm:$0xf]
      %v4498 = vld [vmem:[%s2 + $0x14] sm:$0xf]
      %v4499 = vld [vmem:[%s2 + $0x18] sm:$0xf]
      %v4500 = vld [vmem:[%s2 + $0x1c] sm:$0xf]
      %v4501 = vld [vmem:[%s2 + $0x20] sm:$0xf]
      %v4502 = vld [vmem:[%s2 + $0x24] sm:$0xf]
      %v4503 = vld [vmem:[%s2 + $0x28] sm:$0xf]
      %v4504 = vld [vmem:[%s2 + $0x2c] sm:$0xf]
      %v4505 = vld [vmem:[%s2 + $0x30] sm:$0xf]
      %v4506 = vld [vmem:[%s2 + $0x34] sm:$0xf]
      %v4507 = vld [vmem:[%s2 + $0x38] sm:$0xf]
      %v4508 = vld [vmem:[%s2 + $0x3c] sm:$0xf]
      %v4509 = vld [vmem:[%s2 + $0x40] sm:$0xf]
      %v4510 = vld [vmem:[%s2 + $0x44] sm:$0xf]
      %v4511 = vld [vmem:[%s2 + $0x48] sm:$0xf]
      %v4512 = vld [vmem:[%s2 + $0x4c] sm:$0xf]
      %v4513 = vld [vmem:[%s2 + $0x50] sm:$0xf]
      %v4514 = vld [vmem:[%s2 + $0x54] sm:$0xf]
      %v4515 = vld [vmem:[%s2 + $0x58] sm:$0xf]
      %v4516 = vld [vmem:[%s2 + $0x5c] sm:$0xf]
      %v4517 = vld [vmem:[%s2 + $0x60] sm:$0xf]
      %v4518 = vld [vmem:[%s2 + $0x64] sm:$0xf]
      %v4519 = vld [vmem:[%s2 + $0x68] sm:$0xf]
      %v4520 = vld [vmem:[%s2 + $0x6c] sm:$0xf]
      %v4521 = vld [vmem:[%s2 + $0x70] sm:$0xf]
      %v4522 = vld [vmem:[%s2 + $0x74] sm:$0xf]
      %v4523 = vld [vmem:[%s2 + $0x78] sm:$0xf]
      %v4524 = vld [vmem:[%s2 + $0x7c] sm:$0xf]
      %v4525 = vld [vmem:[%s5] sm:$0x1]
      %v4526 = vlaneseq
      %v4527 = vshrl.u32 %v4526, 7
      %v4528 = vsub.s32 0, %v4527
      %v4529 = vrot.slane %v4525, %v4528
      %v4562 = vunpack.c.l.b16 %v4493
      %v4563 = vunpack.c.l.b16 %v4494
      %v4564 = vunpack.c.l.b16 %v4495
      %v4565 = vunpack.c.l.b16 %v4496
      %v4566 = vunpack.c.l.b16 %v4497
      %v4567 = vunpack.c.l.b16 %v4498
      %v4568 = vunpack.c.l.b16 %v4499
      %v4569 = vunpack.c.l.b16 %v4500
      %v4570 = vunpack.c.l.b16 %v4501
      %v4571 = vunpack.c.l.b16 %v4502
      %v4572 = vunpack.c.l.b16 %v4503
      %v4573 = vunpack.c.l.b16 %v4504
      %v4574 = vunpack.c.l.b16 %v4505
      %v4575 = vunpack.c.l.b16 %v4506
      %v4576 = vunpack.c.l.b16 %v4507
      %v4577 = vunpack.c.l.b16 %v4508
      %v4578 = vunpack.c.l.b16 %v4509
      %v4579 = vunpack.c.l.b16 %v4510
      %v4580 = vunpack.c.l.b16 %v4511
      %v4581 = vunpack.c.l.b16 %v4512
      %v4582 = vunpack.c.l.b16 %v4513
      %v4583 = vunpack.c.l.b16 %v4514
      %v4584 = vunpack.c.l.b16 %v4515
      %v4585 = vunpack.c.l.b16 %v4516
      %v4586 = vunpack.c.l.b16 %v4517
      %v4587 = vunpack.c.l.b16 %v4518
      %v4588 = vunpack.c.l.b16 %v4519
      %v4589 = vunpack.c.l.b16 %v4520
      %v4590 = vunpack.c.l.b16 %v4521
      %v4591 = vunpack.c.l.b16 %v4522
      %v4592 = vunpack.c.l.b16 %v4523
      %v4593 = vunpack.c.l.b16 %v4524
      %v4594 = vpack.c.b16 %v4563, %v4562
      %v4595 = vpack.c.b16 %v4565, %v4564
      %v4596 = vpack.c.b16 %v4567, %v4566
      %v4597 = vpack.c.b16 %v4569, %v4568
      %v4598 = vpack.c.b16 %v4571, %v4570
      %v4599 = vpack.c.b16 %v4573, %v4572
      %v4600 = vpack.c.b16 %v4575, %v4574
      %v4601 = vpack.c.b16 %v4577, %v4576
      %v4602 = vpack.c.b16 %v4579, %v4578
      %v4603 = vpack.c.b16 %v4581, %v4580
      %v4604 = vpack.c.b16 %v4583, %v4582
      %v4605 = vpack.c.b16 %v4585, %v4584
      %v4606 = vpack.c.b16 %v4587, %v4586
      %v4607 = vpack.c.b16 %v4589, %v4588
      %v4608 = vpack.c.b16 %v4591, %v4590
      %v4609 = vpack.c.b16 %v4593, %v4592
      %4626 = vmatprep.subr.bf16.mxu0 0
      %4627 = vmatpush1.bf16.msra.mxu0 %v4594
      %4628 = vmatprep.subr.bf16.mxu0 0
      %4629 = vmatpush1.bf16.msra.mxu0 %v4595
      %4630 = vmatprep.subr.bf16.mxu0 0
      %4631 = vmatpush1.bf16.msra.mxu0 %v4596
      %4632 = vmatprep.subr.bf16.mxu0 0
      %4633 = vmatpush1.bf16.msra.mxu0 %v4597
      %4634 = vmatprep.subr.bf16.mxu0 0
      %4635 = vmatpush1.bf16.msra.mxu0 %v4598
      %4636 = vmatprep.subr.bf16.mxu0 0
      %4637 = vmatpush1.bf16.msra.mxu0 %v4599
      %4638 = vmatprep.subr.bf16.mxu0 0
      %4639 = vmatpush1.bf16.msra.mxu0 %v4600
      %4640 = vmatprep.subr.bf16.mxu0 0
      %4641 = vmatpush1.bf16.msra.mxu0 %v4601
      %4642 = vmatprep.subr.bf16.mxu0 0
      %4643 = vmatpush1.bf16.msra.mxu0 %v4602
      %4644 = vmatprep.subr.bf16.mxu0 0
      %4645 = vmatpush1.bf16.msra.mxu0 %v4603
      %4646 = vmatprep.subr.bf16.mxu0 0
      %4647 = vmatpush1.bf16.msra.mxu0 %v4604
      %4648 = vmatprep.subr.bf16.mxu0 0
      %4649 = vmatpush1.bf16.msra.mxu0 %v4605
      %4650 = vmatprep.subr.bf16.mxu0 0
      %4651 = vmatpush1.bf16.msra.mxu0 %v4606
      %4652 = vmatprep.subr.bf16.mxu0 0
      %4653 = vmatpush1.bf16.msra.mxu0 %v4607
      %4654 = vmatprep.subr.bf16.mxu0 0
      %4655 = vmatpush1.bf16.msra.mxu0 %v4608
      %4656 = vmatprep.subr.bf16.mxu0 0
      %4657 = vmatpush1.bf16.msra.mxu0 %v4609
      %4658 = vmatprep.mubr.bf16.mxu0 %v4462
      %4659 = vmatmul.mubr.bf16.gmra.mrb[0].mxu0 %v4461
      %v4660 = vpop.f32.mrb[0].mxu0
      %v4661 = vadd.f32 %v4529, %v4660
      %v4662 = vpop.f32.mrb[0].mxu0
      %v4663 = vpop.f32.mrb[0].mxu0
      %v4664 = vadd.f32 %v4529, %v4663
      %v4665 = vpop.f32.mrb[0].mxu0
      %4666 = vmatprep.mubr.bf16.mxu0 %v4464
      %4667 = vmatmul.mubr.bf16.gmra.mrb[0].mxu0 %v4463
      %v4668 = vpop.f32.mrb[0].mxu0
      %v4669 = vadd.f32 %v4529, %v4668
      %v4670 = vpop.f32.mrb[0].mxu0
      %v4671 = vpop.f32.mrb[0].mxu0
      %v4672 = vadd.f32 %v4529, %v4671
      %v4673 = vpop.f32.mrb[0].mxu0
      %4674 = vmatprep.mubr.bf16.mxu0 %v4466
      %4675 = vmatmul.mubr.bf16.gmra.mrb[0].mxu0 %v4465
      %v4676 = vpop.f32.mrb[0].mxu0
      %v4677 = vadd.f32 %v4529, %v4676
      %v4678 = vpop.f32.mrb[0].mxu0
      %v4679 = vpop.f32.mrb[0].mxu0
      %v4680 = vadd.f32 %v4529, %v4679
      %v4681 = vpop.f32.mrb[0].mxu0
      %4682 = vmatprep.mubr.bf16.mxu0 %v4468
      %4683 = vmatmul.mubr.bf16.gmra.mrb[0].mxu0 %v4467
      %v4684 = vpop.f32.mrb[0].mxu0
      %v4685 = vadd.f32 %v4529, %v4684
      %v4686 = vpop.f32.mrb[0].mxu0
      %v4687 = vpop.f32.mrb[0].mxu0
      %v4688 = vadd.f32 %v4529, %v4687
      %v4689 = vpop.f32.mrb[0].mxu0
      %4690 = vmatprep.mubr.bf16.mxu0 %v4470
      %4691 = vmatmul.mubr.bf16.gmra.mrb[0].mxu0 %v4469
      %v4692 = vpop.f32.mrb[0].mxu0
      %v4693 = vadd.f32 %v4529, %v4692
      %v4694 = vpop.f32.mrb[0].mxu0
      %v4695 = vpop.f32.mrb[0].mxu0
      %v4696 = vadd.f32 %v4529, %v4695
      %v4697 = vpop.f32.mrb[0].mxu0
      %4698 = vmatprep.mubr.bf16.mxu0 %v4472
      %4699 = vmatmul.mubr.bf16.gmra.mrb[0].mxu0 %v4471
      %v4700 = vpop.f32.mrb[0].mxu0
      %v4701 = vadd.f32 %v4529, %v4700
      %v4702 = vpop.f32.mrb[0].mxu0
      %v4703 = vpop.f32.mrb[0].mxu0
      %v4704 = vadd.f32 %v4529, %v4703
      %v4705 = vpop.f32.mrb[0].mxu0
      %4706 = vmatprep.mubr.bf16.mxu0 %v4474
      %4707 = vmatmul.mubr.bf16.gmra.mrb[0].mxu0 %v4473
      %v4708 = vpop.f32.mrb[0].mxu0
      %v4709 = vadd.f32 %v4529, %v4708
      %v4710 = vpop.f32.mrb[0].mxu0
      %v4711 = vpop.f32.mrb[0].mxu0
      %v4712 = vadd.f32 %v4529, %v4711
      %v4713 = vpop.f32.mrb[0].mxu0
      %4714 = vmatprep.mubr.bf16.mxu0 %v4476
      %4715 = vmatmul.mubr.bf16.gmra.mrb[0].mxu0 %v4475
      %v4716 = vpop.f32.mrb[0].mxu0
      %v4717 = vadd.f32 %v4529, %v4716
      %v4718 = vpop.f32.mrb[0].mxu0
      %v4719 = vpop.f32.mrb[0].mxu0
      %v4720 = vadd.f32 %v4529, %v4719
      %v4721 = vpop.f32.mrb[0].mxu0
      %4722 = vmatprep.mubr.bf16.mxu0 %v4478
      %4723 = vmatmul.mubr.bf16.gmra.mrb[0].mxu0 %v4477
      %v4724 = vpop.f32.mrb[0].mxu0
      %v4725 = vadd.f32 %v4529, %v4724
      %v4726 = vpop.f32.mrb[0].mxu0
      %v4727 = vpop.f32.mrb[0].mxu0
      %v4728 = vadd.f32 %v4529, %v4727
      %v4729 = vpop.f32.mrb[0].mxu0
      %4730 = vmatprep.mubr.bf16.mxu0 %v4480
      %4731 = vmatmul.mubr.bf16.gmra.mrb[0].mxu0 %v4479
      %v4732 = vpop.f32.mrb[0].mxu0
      %v4733 = vadd.f32 %v4529, %v4732
      %v4734 = vpop.f32.mrb[0].mxu0
      %v4735 = vpop.f32.mrb[0].mxu0
      %v4736 = vadd.f32 %v4529, %v4735
      %v4737 = vpop.f32.mrb[0].mxu0
      %4738 = vmatprep.mubr.bf16.mxu0 %v4482
      %4739 = vmatmul.mubr.bf16.gmra.mrb[0].mxu0 %v4481
      %v4740 = vpop.f32.mrb[0].mxu0
      %v4741 = vadd.f32 %v4529, %v4740
      %v4742 = vpop.f32.mrb[0].mxu0
      %v4743 = vpop.f32.mrb[0].mxu0
      %v4744 = vadd.f32 %v4529, %v4743
      %v4745 = vpop.f32.mrb[0].mxu0
      %4746 = vmatprep.mubr.bf16.mxu0 %v4484
      %4747 = vmatmul.mubr.bf16.gmra.mrb[0].mxu0 %v4483
      %v4748 = vpop.f32.mrb[0].mxu0
      %v4749 = vadd.f32 %v4529, %v4748
      %v4750 = vpop.f32.mrb[0].mxu0
      %v4751 = vpop.f32.mrb[0].mxu0
      %v4752 = vadd.f32 %v4529, %v4751
      %v4753 = vpop.f32.mrb[0].mxu0
      %4754 = vmatprep.mubr.bf16.mxu0 %v4486
      %4755 = vmatmul.mubr.bf16.gmra.mrb[0].mxu0 %v4485
      %v4756 = vpop.f32.mrb[0].mxu0
      %v4757 = vadd.f32 %v4529, %v4756
      %v4758 = vpop.f32.mrb[0].mxu0
      %v4759 = vpop.f32.mrb[0].mxu0
      %v4760 = vadd.f32 %v4529, %v4759
      %v4761 = vpop.f32.mrb[0].mxu0
      %4762 = vmatprep.mubr.bf16.mxu0 %v4488
      %4763 = vmatmul.mubr.bf16.gmra.mrb[0].mxu0 %v4487
      %v4764 = vpop.f32.mrb[0].mxu0
      %v4765 = vadd.f32 %v4529, %v4764
      %v4766 = vpop.f32.mrb[0].mxu0
      %v4767 = vpop.f32.mrb[0].mxu0
      %v4768 = vadd.f32 %v4529, %v4767
      %v4769 = vpop.f32.mrb[0].mxu0
      %4770 = vmatprep.mubr.bf16.mxu0 %v4490
      %4771 = vmatmul.mubr.bf16.gmra.mrb[0].mxu0 %v4489
      %v4772 = vpop.f32.mrb[0].mxu0
      %v4773 = vadd.f32 %v4529, %v4772
      %v4774 = vpop.f32.mrb[0].mxu0
      %v4775 = vpop.f32.mrb[0].mxu0
      %v4776 = vadd.f32 %v4529, %v4775
      %v4777 = vpop.f32.mrb[0].mxu0
      %4778 = vmatprep.mubr.bf16.mxu0 %v4492
      %4779 = vmatmul.mubr.bf16.gmra.mrb[0].mxu0 %v4491
      %v4780 = vpop.f32.mrb[0].mxu0
      %v4781 = vadd.f32 %v4529, %v4780
      %v4782 = vpop.f32.mrb[0].mxu0
      %v4783 = vpop.f32.mrb[0].mxu0
      %v4784 = vadd.f32 %v4529, %v4783
      %v4785 = vpop.f32.mrb[0].mxu0
      %4786 = vdwg.mxu0
      %v4787 = vpack.c.bf16 %v4664, %v4661
      %v4788 = vpack.c.bf16 %v4672, %v4669
      %v4789 = vpack.c.bf16 %v4680, %v4677
      %v4790 = vpack.c.bf16 %v4688, %v4685
      %v4791 = vpack.c.bf16 %v4696, %v4693
      %v4792 = vpack.c.bf16 %v4704, %v4701
      %v4793 = vpack.c.bf16 %v4712, %v4709
      %v4794 = vpack.c.bf16 %v4720, %v4717
      %v4795 = vpack.c.bf16 %v4728, %v4725
      %v4796 = vpack.c.bf16 %v4736, %v4733
      %v4797 = vpack.c.bf16 %v4744, %v4741
      %v4798 = vpack.c.bf16 %v4752, %v4749
      %v4799 = vpack.c.bf16 %v4760, %v4757
      %v4800 = vpack.c.bf16 %v4768, %v4765
      %v4801 = vpack.c.bf16 %v4776, %v4773
      %v4802 = vpack.c.bf16 %v4784, %v4781
      %4819 = vrot.lane.b32.xlu0 %v4787, 96
      %v4820 = vpop.permute.xlu0 %4819
      %4821 = vrot.lane.b32.xlu0 %v4788, 96
      %v4822 = vpop.permute.xlu0 %4821
      %4823 = vrot.lane.b32.xlu0 %v4789, 96
      %v4824 = vpop.permute.xlu0 %4823
      %4825 = vrot.lane.b32.xlu0 %v4790, 96
      %v4826 = vpop.permute.xlu0 %4825
      %4827 = vrot.lane.b32.xlu0 %v4791, 96
      %v4828 = vpop.permute.xlu0 %4827
      %4829 = vrot.lane.b32.xlu0 %v4792, 96
      %v4830 = vpop.permute.xlu0 %4829
      %4831 = vrot.lane.b32.xlu0 %v4793, 96
      %v4832 = vpop.permute.xlu0 %4831
      %4833 = vrot.lane.b32.xlu0 %v4794, 96
      %v4834 = vpop.permute.xlu0 %4833
      %4835 = vrot.lane.b32.xlu0 %v4795, 96
      %v4836 = vpop.permute.xlu0 %4835
      %4837 = vrot.lane.b32.xlu0 %v4796, 96
      %v4838 = vpop.permute.xlu0 %4837
      %4839 = vrot.lane.b32.xlu0 %v4797, 96
      %v4840 = vpop.permute.xlu0 %4839
      %4841 = vrot.lane.b32.xlu0 %v4798, 96
      %v4842 = vpop.permute.xlu0 %4841
      %4843 = vrot.lane.b32.xlu0 %v4799, 96
      %v4844 = vpop.permute.xlu0 %4843
      %4845 = vrot.lane.b32.xlu0 %v4800, 96
      %v4846 = vpop.permute.xlu0 %4845
      %4847 = vrot.lane.b32.xlu0 %v4801, 96
      %v4848 = vpop.permute.xlu0 %4847
      %4849 = vrot.lane.b32.xlu0 %v4802, 96
      %v4850 = vpop.permute.xlu0 %4849
      %vm4851 = vcmask 261120
      %v4853 = vsel %vm4851, %v4787, 0
      %v4856 = vsel %vm4851, %v4788, 0
      %v4859 = vsel %vm4851, %v4789, 0
      %v4862 = vsel %vm4851, %v4790, 0
      %v4865 = vsel %vm4851, %v4791, 0
      %v4868 = vsel %vm4851, %v4792, 0
      %v4871 = vsel %vm4851, %v4793, 0
      %v4874 = vsel %vm4851, %v4794, 0
      %v4877 = vsel %vm4851, %v4795, 0
      %v4880 = vsel %vm4851, %v4796, 0
      %v4883 = vsel %vm4851, %v4797, 0
      %v4886 = vsel %vm4851, %v4798, 0
      %v4889 = vsel %vm4851, %v4799, 0
      %v4892 = vsel %vm4851, %v4800, 0
      %v4895 = vsel %vm4851, %v4801, 0
      %v4898 = vsel %vm4851, %v4802, 0
      %v4901 = vsel %vm4851, %v4820, 0
      %v4904 = vsel %vm4851, %v4822, 0
      %v4907 = vsel %vm4851, %v4824, 0
      %v4910 = vsel %vm4851, %v4826, 0
      %v4913 = vsel %vm4851, %v4828, 0
      %v4916 = vsel %vm4851, %v4830, 0
      %v4919 = vsel %vm4851, %v4832, 0
      %v4922 = vsel %vm4851, %v4834, 0
      %v4925 = vsel %vm4851, %v4836, 0
      %v4928 = vsel %vm4851, %v4838, 0
      %v4931 = vsel %vm4851, %v4840, 0
      %v4934 = vsel %vm4851, %v4842, 0
      %v4937 = vsel %vm4851, %v4844, 0
      %v4940 = vsel %vm4851, %v4846, 0
      %v4943 = vsel %vm4851, %v4848, 0
      %v4946 = vsel %vm4851, %v4850, 0
      %4948 = vmatprep.subr.bf16.mxu0 0
      %4949 = vmatpush1.bf16.xpose.msra.mxu0 %v4901
      %4950 = vmatprep.subr.bf16.mxu0 0
      %4951 = vmatpush1.bf16.xpose.msra.mxu0 %v4904
      %4952 = vmatprep.subr.bf16.mxu0 0
      %4953 = vmatpush1.bf16.xpose.msra.mxu0 %v4907
      %4954 = vmatprep.subr.bf16.mxu0 0
      %4955 = vmatpush1.bf16.xpose.msra.mxu0 %v4910
      %4956 = vmatprep.subr.bf16.mxu0 0
      %4957 = vmatpush1.bf16.xpose.msra.mxu0 %v4913
      %4958 = vmatprep.subr.bf16.mxu0 0
      %4959 = vmatpush1.bf16.xpose.msra.mxu0 %v4916
      %4960 = vmatprep.subr.bf16.mxu0 0
      %4961 = vmatpush1.bf16.xpose.msra.mxu0 %v4919
      %4962 = vmatprep.subr.bf16.mxu0 0
      %4963 = vmatpush1.bf16.xpose.msra.mxu0 %v4922
      %4964 = vmatprep.subr.bf16.mxu0 0
      %4965 = vmatpush1.bf16.xpose.msra.mxu0 %v4925
      %4966 = vmatprep.subr.bf16.mxu0 0
      %4967 = vmatpush1.bf16.xpose.msra.mxu0 %v4928
      %4968 = vmatprep.subr.bf16.mxu0 0
      %4969 = vmatpush1.bf16.xpose.msra.mxu0 %v4931
      %4970 = vmatprep.subr.bf16.mxu0 0
      %4971 = vmatpush1.bf16.xpose.msra.mxu0 %v4934
      %4972 = vmatprep.subr.bf16.mxu0 0
      %4973 = vmatpush1.bf16.xpose.msra.mxu0 %v4937
      %4974 = vmatprep.subr.bf16.mxu0 0
      %4975 = vmatpush1.bf16.xpose.msra.mxu0 %v4940
      %4976 = vmatprep.subr.bf16.mxu0 0
      %4977 = vmatpush1.bf16.xpose.msra.mxu0 %v4943
      %4978 = vmatprep.subr.bf16.mxu0 0
      %4979 = vmatpush1.bf16.xpose.msra.mxu0 %v4946
      %4980 = vmatprep.mubr.bf16.mxu0 0
      %4981 = vmatmul.mubr.bf16.gmra.mrb[0].mxu0 %v4853
      %v4982 = vpop.f32.mrb[0].mxu0
      %v4983 = vadd.f32 0.0, %v4982
      %v4984 = vpop.f32.mrb[0].mxu0
      %v4985 = vadd.f32 0.0, %v4984
      %v4986 = vpop.f32.mrb[0].mxu0
      %v4987 = vadd.f32 0.0, %v4986
      %v4988 = vpop.f32.mrb[0].mxu0
      %v4989 = vadd.f32 0.0, %v4988
      %4990 = vmatprep.mubr.bf16.mxu0 0
      %4991 = vmatmul.mubr.bf16.gmra.mrb[0].mxu0 %v4856
      %v4992 = vpop.f32.mrb[0].mxu0
      %v4993 = vadd.f32 0.0, %v4992
      %v4994 = vpop.f32.mrb[0].mxu0
      %v4995 = vadd.f32 0.0, %v4994
      %v4996 = vpop.f32.mrb[0].mxu0
      %v4997 = vadd.f32 0.0, %v4996
      %v4998 = vpop.f32.mrb[0].mxu0
      %v4999 = vadd.f32 0.0, %v4998
      %5000 = vmatprep.mubr.bf16.mxu0 0
      %5001 = vmatmul.mubr.bf16.gmra.mrb[0].mxu0 %v4859
      %v5002 = vpop.f32.mrb[0].mxu0
      %v5003 = vadd.f32 0.0, %v5002
      %v5004 = vpop.f32.mrb[0].mxu0
      %v5005 = vadd.f32 0.0, %v5004
      %v5006 = vpop.f32.mrb[0].mxu0
      %v5007 = vadd.f32 0.0, %v5006
      %v5008 = vpop.f32.mrb[0].mxu0
      %v5009 = vadd.f32 0.0, %v5008
      %5010 = vmatprep.mubr.bf16.mxu0 0
      %5011 = vmatmul.mubr.bf16.gmra.mrb[0].mxu0 %v4862
      %v5012 = vpop.f32.mrb[0].mxu0
      %v5013 = vadd.f32 0.0, %v5012
      %v5014 = vpop.f32.mrb[0].mxu0
      %v5015 = vadd.f32 0.0, %v5014
      %v5016 = vpop.f32.mrb[0].mxu0
      %v5017 = vadd.f32 0.0, %v5016
      %v5018 = vpop.f32.mrb[0].mxu0
      %v5019 = vadd.f32 0.0, %v5018
      %5020 = vmatprep.mubr.bf16.mxu0 0
      %5021 = vmatmul.mubr.bf16.gmra.mrb[0].mxu0 %v4865
      %v5022 = vpop.f32.mrb[0].mxu0
      %v5023 = vadd.f32 0.0, %v5022
      %v5024 = vpop.f32.mrb[0].mxu0
      %v5025 = vadd.f32 0.0, %v5024
      %v5026 = vpop.f32.mrb[0].mxu0
      %v5027 = vadd.f32 0.0, %v5026
      %v5028 = vpop.f32.mrb[0].mxu0
      %v5029 = vadd.f32 0.0, %v5028
      %5030 = vmatprep.mubr.bf16.mxu0 0
      %5031 = vmatmul.mubr.bf16.gmra.mrb[0].mxu0 %v4868
      %v5032 = vpop.f32.mrb[0].mxu0
      %v5033 = vadd.f32 0.0, %v5032
      %v5034 = vpop.f32.mrb[0].mxu0
      %v5035 = vadd.f32 0.0, %v5034
      %v5036 = vpop.f32.mrb[0].mxu0
      %v5037 = vadd.f32 0.0, %v5036
      %v5038 = vpop.f32.mrb[0].mxu0
      %v5039 = vadd.f32 0.0, %v5038
      %5040 = vmatprep.mubr.bf16.mxu0 0
      %5041 = vmatmul.mubr.bf16.gmra.mrb[0].mxu0 %v4871
      %v5042 = vpop.f32.mrb[0].mxu0
      %v5043 = vadd.f32 0.0, %v5042
      %v5044 = vpop.f32.mrb[0].mxu0
      %v5045 = vadd.f32 0.0, %v5044
      %v5046 = vpop.f32.mrb[0].mxu0
      %v5047 = vadd.f32 0.0, %v5046
      %v5048 = vpop.f32.mrb[0].mxu0
      %v5049 = vadd.f32 0.0, %v5048
      %5050 = vmatprep.mubr.bf16.mxu0 0
      %5051 = vmatmul.mubr.bf16.gmra.mrb[0].mxu0 %v4874
      %v5052 = vpop.f32.mrb[0].mxu0
      %v5053 = vadd.f32 0.0, %v5052
      %v5054 = vpop.f32.mrb[0].mxu0
      %v5055 = vadd.f32 0.0, %v5054
      %v5056 = vpop.f32.mrb[0].mxu0
      %v5057 = vadd.f32 0.0, %v5056
      %v5058 = vpop.f32.mrb[0].mxu0
      %v5059 = vadd.f32 0.0, %v5058
      %5060 = vmatprep.mubr.bf16.mxu0 0
      %5061 = vmatmul.mubr.bf16.gmra.mrb[0].mxu0 %v4877
      %v5062 = vpop.f32.mrb[0].mxu0
      %v5063 = vadd.f32 0.0, %v5062
      %v5064 = vpop.f32.mrb[0].mxu0
      %v5065 = vadd.f32 0.0, %v5064
      %v5066 = vpop.f32.mrb[0].mxu0
      %v5067 = vadd.f32 0.0, %v5066
      %v5068 = vpop.f32.mrb[0].mxu0
      %v5069 = vadd.f32 0.0, %v5068
      %5070 = vmatprep.mubr.bf16.mxu0 0
      %5071 = vmatmul.mubr.bf16.gmra.mrb[0].mxu0 %v4880
      %v5072 = vpop.f32.mrb[0].mxu0
      %v5073 = vadd.f32 0.0, %v5072
      %v5074 = vpop.f32.mrb[0].mxu0
      %v5075 = vadd.f32 0.0, %v5074
      %v5076 = vpop.f32.mrb[0].mxu0
      %v5077 = vadd.f32 0.0, %v5076
      %v5078 = vpop.f32.mrb[0].mxu0
      %v5079 = vadd.f32 0.0, %v5078
      %5080 = vmatprep.mubr.bf16.mxu0 0
      %5081 = vmatmul.mubr.bf16.gmra.mrb[0].mxu0 %v4883
      %v5082 = vpop.f32.mrb[0].mxu0
      %v5083 = vadd.f32 0.0, %v5082
      %v5084 = vpop.f32.mrb[0].mxu0
      %v5085 = vadd.f32 0.0, %v5084
      %v5086 = vpop.f32.mrb[0].mxu0
      %v5087 = vadd.f32 0.0, %v5086
      %v5088 = vpop.f32.mrb[0].mxu0
      %v5089 = vadd.f32 0.0, %v5088
      %5090 = vmatprep.mubr.bf16.mxu0 0
      %5091 = vmatmul.mubr.bf16.gmra.mrb[0].mxu0 %v4886
      %v5092 = vpop.f32.mrb[0].mxu0
      %v5093 = vadd.f32 0.0, %v5092
      %v5094 = vpop.f32.mrb[0].mxu0
      %v5095 = vadd.f32 0.0, %v5094
      %v5096 = vpop.f32.mrb[0].mxu0
      %v5097 = vadd.f32 0.0, %v5096
      %v5098 = vpop.f32.mrb[0].mxu0
      %v5099 = vadd.f32 0.0, %v5098
      %5100 = vmatprep.mubr.bf16.mxu0 0
      %5101 = vmatmul.mubr.bf16.gmra.mrb[0].mxu0 %v4889
      %v5102 = vpop.f32.mrb[0].mxu0
      %v5103 = vadd.f32 0.0, %v5102
      %v5104 = vpop.f32.mrb[0].mxu0
      %v5105 = vadd.f32 0.0, %v5104
      %v5106 = vpop.f32.mrb[0].mxu0
      %v5107 = vadd.f32 0.0, %v5106
      %v5108 = vpop.f32.mrb[0].mxu0
      %v5109 = vadd.f32 0.0, %v5108
      %5110 = vmatprep.mubr.bf16.mxu0 0
      %5111 = vmatmul.mubr.bf16.gmra.mrb[0].mxu0 %v4892
      %v5112 = vpop.f32.mrb[0].mxu0
      %v5113 = vadd.f32 0.0, %v5112
      %v5114 = vpop.f32.mrb[0].mxu0
      %v5115 = vadd.f32 0.0, %v5114
      %v5116 = vpop.f32.mrb[0].mxu0
      %v5117 = vadd.f32 0.0, %v5116
      %v5118 = vpop.f32.mrb[0].mxu0
      %v5119 = vadd.f32 0.0, %v5118
      %5120 = vmatprep.mubr.bf16.mxu0 0
      %5121 = vmatmul.mubr.bf16.gmra.mrb[0].mxu0 %v4895
      %v5122 = vpop.f32.mrb[0].mxu0
      %v5123 = vadd.f32 0.0, %v5122
      %v5124 = vpop.f32.mrb[0].mxu0
      %v5125 = vadd.f32 0.0, %v5124
      %v5126 = vpop.f32.mrb[0].mxu0
      %v5127 = vadd.f32 0.0, %v5126
      %v5128 = vpop.f32.mrb[0].mxu0
      %v5129 = vadd.f32 0.0, %v5128
      %5130 = vmatprep.mubr.bf16.mxu0 0
      %5131 = vmatmul.mubr.bf16.gmra.mrb[0].mxu0 %v4898
      %v5132 = vpop.f32.mrb[0].mxu0
      %v5133 = vadd.f32 0.0, %v5132
      %v5134 = vpop.f32.mrb[0].mxu0
      %v5135 = vadd.f32 0.0, %v5134
      %v5136 = vpop.f32.mrb[0].mxu0
      %v5137 = vadd.f32 0.0, %v5136
      %v5138 = vpop.f32.mrb[0].mxu0
      %v5139 = vadd.f32 0.0, %v5138
      %5140 = vdwg.mxu0
      %v5141 = vmax.f32 %v4983, %v4985
      %5142 = vmax.xlane.f32.xlu0 %v5141
      %v5143 = vpop.xlane.xlu0 %5142
      %v5144 = vmax.f32 %v4987, %v4989
      %5145 = vmax.xlane.f32.xlu0 %v5144
      %v5146 = vpop.xlane.xlu0 %5145
      %v5147 = vmax.f32 %v4993, %v4995
      %5148 = vmax.xlane.f32.xlu0 %v5147
      %v5149 = vpop.xlane.xlu0 %5148
      %v5150 = vmax.f32 %v4997, %v4999
      %5151 = vmax.xlane.f32.xlu0 %v5150
      %v5152 = vpop.xlane.xlu0 %5151
      %v5153 = vmax.f32 %v5003, %v5005
      %5154 = vmax.xlane.f32.xlu0 %v5153
      %v5155 = vpop.xlane.xlu0 %5154
      %v5156 = vmax.f32 %v5007, %v5009
      %5157 = vmax.xlane.f32.xlu0 %v5156
      %v5158 = vpop.xlane.xlu0 %5157
      %v5159 = vmax.f32 %v5013, %v5015
      %5160 = vmax.xlane.f32.xlu0 %v5159
      %v5161 = vpop.xlane.xlu0 %5160
      %v5162 = vmax.f32 %v5017, %v5019
      %5163 = vmax.xlane.f32.xlu0 %v5162
      %v5164 = vpop.xlane.xlu0 %5163
      %v5165 = vmax.f32 %v5023, %v5025
      %5166 = vmax.xlane.f32.xlu0 %v5165
      %v5167 = vpop.xlane.xlu0 %5166
      %v5168 = vmax.f32 %v5027, %v5029
      %5169 = vmax.xlane.f32.xlu0 %v5168
      %v5170 = vpop.xlane.xlu0 %5169
      %v5171 = vmax.f32 %v5033, %v5035
      %5172 = vmax.xlane.f32.xlu0 %v5171
      %v5173 = vpop.xlane.xlu0 %5172
      %v5174 = vmax.f32 %v5037, %v5039
      %5175 = vmax.xlane.f32.xlu0 %v5174
      %v5176 = vpop.xlane.xlu0 %5175
      %v5177 = vmax.f32 %v5043, %v5045
      %5178 = vmax.xlane.f32.xlu0 %v5177
      %v5179 = vpop.xlane.xlu0 %5178
      %v5180 = vmax.f32 %v5047, %v5049
      %5181 = vmax.xlane.f32.xlu0 %v5180
      %v5182 = vpop.xlane.xlu0 %5181
      %v5183 = vmax.f32 %v5053, %v5055
      %5184 = vmax.xlane.f32.xlu0 %v5183
      %v5185 = vpop.xlane.xlu0 %5184
      %v5186 = vmax.f32 %v5057, %v5059
      %5187 = vmax.xlane.f32.xlu0 %v5186
      %v5188 = vpop.xlane.xlu0 %5187
      %v5189 = vmax.f32 %v5063, %v5065
      %5190 = vmax.xlane.f32.xlu0 %v5189
      %v5191 = vpop.xlane.xlu0 %5190
      %v5192 = vmax.f32 %v5067, %v5069
      %5193 = vmax.xlane.f32.xlu0 %v5192
      %v5194 = vpop.xlane.xlu0 %5193
      %v5195 = vmax.f32 %v5073, %v5075
      %5196 = vmax.xlane.f32.xlu0 %v5195
      %v5197 = vpop.xlane.xlu0 %5196
      %v5198 = vmax.f32 %v5077, %v5079
      %5199 = vmax.xlane.f32.xlu0 %v5198
      %v5200 = vpop.xlane.xlu0 %5199
      %v5201 = vmax.f32 %v5083, %v5085
      %5202 = vmax.xlane.f32.xlu0 %v5201
      %v5203 = vpop.xlane.xlu0 %5202
      %v5204 = vmax.f32 %v5087, %v5089
      %5205 = vmax.xlane.f32.xlu0 %v5204
      %v5206 = vpop.xlane.xlu0 %5205
      %v5207 = vmax.f32 %v5093, %v5095
      %5208 = vmax.xlane.f32.xlu0 %v5207
      %v5209 = vpop.xlane.xlu0 %5208
      %v5210 = vmax.f32 %v5097, %v5099
      %5211 = vmax.xlane.f32.xlu0 %v5210
      %v5212 = vpop.xlane.xlu0 %5211
      %v5213 = vmax.f32 %v5103, %v5105
      %5214 = vmax.xlane.f32.xlu0 %v5213
      %v5215 = vpop.xlane.xlu0 %5214
      %v5216 = vmax.f32 %v5107, %v5109
      %5217 = vmax.xlane.f32.xlu0 %v5216
      %v5218 = vpop.xlane.xlu0 %5217
      %v5219 = vmax.f32 %v5113, %v5115
      %5220 = vmax.xlane.f32.xlu0 %v5219
      %v5221 = vpop.xlane.xlu0 %5220
      %v5222 = vmax.f32 %v5117, %v5119
      %5223 = vmax.xlane.f32.xlu0 %v5222
      %v5224 = vpop.xlane.xlu0 %5223
      %v5225 = vmax.f32 %v5123, %v5125
      %5226 = vmax.xlane.f32.xlu0 %v5225
      %v5227 = vpop.xlane.xlu0 %5226
      %v5228 = vmax.f32 %v5127, %v5129
      %5229 = vmax.xlane.f32.xlu0 %v5228
      %v5230 = vpop.xlane.xlu0 %5229
      %v5231 = vmax.f32 %v5133, %v5135
      %5232 = vmax.xlane.f32.xlu0 %v5231
      %v5233 = vpop.xlane.xlu0 %5232
      %v5234 = vmax.f32 %v5137, %v5139
      %5235 = vmax.xlane.f32.xlu0 %v5234
      %v5236 = vpop.xlane.xlu0 %5235
      %v5237 = vsub.f32 %v4983, %v5143
      %v5238 = vsub.f32 %v4985, %v5143
      %v5239 = vsub.f32 %v4987, %v5146
      %v5240 = vsub.f32 %v4989, %v5146
      %v5241 = vsub.f32 %v4993, %v5149
      %v5242 = vsub.f32 %v4995, %v5149
      %v5243 = vsub.f32 %v4997, %v5152
      %v5244 = vsub.f32 %v4999, %v5152
      %v5245 = vsub.f32 %v5003, %v5155
      %v5246 = vsub.f32 %v5005, %v5155
      %v5247 = vsub.f32 %v5007, %v5158
      %v5248 = vsub.f32 %v5009, %v5158
      %v5249 = vsub.f32 %v5013, %v5161
      %v5250 = vsub.f32 %v5015, %v5161
      %v5251 = vsub.f32 %v5017, %v5164
      %v5252 = vsub.f32 %v5019, %v5164
      %v5253 = vsub.f32 %v5023, %v5167
      %v5254 = vsub.f32 %v5025, %v5167
      %v5255 = vsub.f32 %v5027, %v5170
      %v5256 = vsub.f32 %v5029, %v5170
      %v5257 = vsub.f32 %v5033, %v5173
      %v5258 = vsub.f32 %v5035, %v5173
      %v5259 = vsub.f32 %v5037, %v5176
      %v5260 = vsub.f32 %v5039, %v5176
      %v5261 = vsub.f32 %v5043, %v5179
      %v5262 = vsub.f32 %v5045, %v5179
      %v5263 = vsub.f32 %v5047, %v5182
      %v5264 = vsub.f32 %v5049, %v5182
      %v5265 = vsub.f32 %v5053, %v5185
      %v5266 = vsub.f32 %v5055, %v5185
      %v5267 = vsub.f32 %v5057, %v5188
      %v5268 = vsub.f32 %v5059, %v5188
      %v5269 = vsub.f32 %v5063, %v5191
      %v5270 = vsub.f32 %v5065, %v5191
      %v5271 = vsub.f32 %v5067, %v5194
      %v5272 = vsub.f32 %v5069, %v5194
      %v5273 = vsub.f32 %v5073, %v5197
      %v5274 = vsub.f32 %v5075, %v5197
      %v5275 = vsub.f32 %v5077, %v5200
      %v5276 = vsub.f32 %v5079, %v5200
      %v5277 = vsub.f32 %v5083, %v5203
      %v5278 = vsub.f32 %v5085, %v5203
      %v5279 = vsub.f32 %v5087, %v5206
      %v5280 = vsub.f32 %v5089, %v5206
      %v5281 = vsub.f32 %v5093, %v5209
      %v5282 = vsub.f32 %v5095, %v5209
      %v5283 = vsub.f32 %v5097, %v5212
      %v5284 = vsub.f32 %v5099, %v5212
      %v5285 = vsub.f32 %v5103, %v5215
      %v5286 = vsub.f32 %v5105, %v5215
      %v5287 = vsub.f32 %v5107, %v5218
      %v5288 = vsub.f32 %v5109, %v5218
      %v5289 = vsub.f32 %v5113, %v5221
      %v5290 = vsub.f32 %v5115, %v5221
      %v5291 = vsub.f32 %v5117, %v5224
      %v5292 = vsub.f32 %v5119, %v5224
      %v5293 = vsub.f32 %v5123, %v5227
      %v5294 = vsub.f32 %v5125, %v5227
      %v5295 = vsub.f32 %v5127, %v5230
      %v5296 = vsub.f32 %v5129, %v5230
      %v5297 = vsub.f32 %v5133, %v5233
      %v5298 = vsub.f32 %v5135, %v5233
      %v5299 = vsub.f32 %v5137, %v5236
      %v5300 = vsub.f32 %v5139, %v5236
      %v5301 = vmul.f32 %v5237, 1.442695
      %v5302 = vpow.pop %v5301
      %v5303 = vmul.f32 %v5238, 1.442695
      %v5304 = vpow.pop %v5303
      %v5305 = vmul.f32 %v5239, 1.442695
      %v5306 = vpow.pop %v5305
      %v5307 = vmul.f32 %v5240, 1.442695
      %v5308 = vpow.pop %v5307
      %v5309 = vmul.f32 %v5241, 1.442695
      %v5310 = vpow.pop %v5309
      %v5311 = vmul.f32 %v5242, 1.442695
      %v5312 = vpow.pop %v5311
      %v5313 = vmul.f32 %v5243, 1.442695
      %v5314 = vpow.pop %v5313
      %v5315 = vmul.f32 %v5244, 1.442695
      %v5316 = vpow.pop %v5315
      %v5317 = vmul.f32 %v5245, 1.442695
      %v5318 = vpow.pop %v5317
      %v5319 = vmul.f32 %v5246, 1.442695
      %v5320 = vpow.pop %v5319
      %v5321 = vmul.f32 %v5247, 1.442695
      %v5322 = vpow.pop %v5321
      %v5323 = vmul.f32 %v5248, 1.442695
      %v5324 = vpow.pop %v5323
      %v5325 = vmul.f32 %v5249, 1.442695
      %v5326 = vpow.pop %v5325
      %v5327 = vmul.f32 %v5250, 1.442695
      %v5328 = vpow.pop %v5327
      %v5329 = vmul.f32 %v5251, 1.442695
      %v5330 = vpow.pop %v5329
      %v5331 = vmul.f32 %v5252, 1.442695
      %v5332 = vpow.pop %v5331
      %v5333 = vmul.f32 %v5253, 1.442695
      %v5334 = vpow.pop %v5333
      %v5335 = vmul.f32 %v5254, 1.442695
      %v5336 = vpow.pop %v5335
      %v5337 = vmul.f32 %v5255, 1.442695
      %v5338 = vpow.pop %v5337
      %v5339 = vmul.f32 %v5256, 1.442695
      %v5340 = vpow.pop %v5339
      %v5341 = vmul.f32 %v5257, 1.442695
      %v5342 = vpow.pop %v5341
      %v5343 = vmul.f32 %v5258, 1.442695
      %v5344 = vpow.pop %v5343
      %v5345 = vmul.f32 %v5259, 1.442695
      %v5346 = vpow.pop %v5345
      %v5347 = vmul.f32 %v5260, 1.442695
      %v5348 = vpow.pop %v5347
      %v5349 = vmul.f32 %v5261, 1.442695
      %v5350 = vpow.pop %v5349
      %v5351 = vmul.f32 %v5262, 1.442695
      %v5352 = vpow.pop %v5351
      %v5353 = vmul.f32 %v5263, 1.442695
      %v5354 = vpow.pop %v5353
      %v5355 = vmul.f32 %v5264, 1.442695
      %v5356 = vpow.pop %v5355
      %v5357 = vmul.f32 %v5265, 1.442695
      %v5358 = vpow.pop %v5357
      %v5359 = vmul.f32 %v5266, 1.442695
      %v5360 = vpow.pop %v5359
      %v5361 = vmul.f32 %v5267, 1.442695
      %v5362 = vpow.pop %v5361
      %v5363 = vmul.f32 %v5268, 1.442695
      %v5364 = vpow.pop %v5363
      %v5365 = vmul.f32 %v5269, 1.442695
      %v5366 = vpow.pop %v5365
      %v5367 = vmul.f32 %v5270, 1.442695
      %v5368 = vpow.pop %v5367
      %v5369 = vmul.f32 %v5271, 1.442695
      %v5370 = vpow.pop %v5369
      %v5371 = vmul.f32 %v5272, 1.442695
      %v5372 = vpow.pop %v5371
      %v5373 = vmul.f32 %v5273, 1.442695
      %v5374 = vpow.pop %v5373
      %v5375 = vmul.f32 %v5274, 1.442695
      %v5376 = vpow.pop %v5375
      %v5377 = vmul.f32 %v5275, 1.442695
      %v5378 = vpow.pop %v5377
      %v5379 = vmul.f32 %v5276, 1.442695
      %v5380 = vpow.pop %v5379
      %v5381 = vmul.f32 %v5277, 1.442695
      %v5382 = vpow.pop %v5381
      %v5383 = vmul.f32 %v5278, 1.442695
      %v5384 = vpow.pop %v5383
      %v5385 = vmul.f32 %v5279, 1.442695
      %v5386 = vpow.pop %v5385
      %v5387 = vmul.f32 %v5280, 1.442695
      %v5388 = vpow.pop %v5387
      %v5389 = vmul.f32 %v5281, 1.442695
      %v5390 = vpow.pop %v5389
      %v5391 = vmul.f32 %v5282, 1.442695
      %v5392 = vpow.pop %v5391
      %v5393 = vmul.f32 %v5283, 1.442695
      %v5394 = vpow.pop %v5393
      %v5395 = vmul.f32 %v5284, 1.442695
      %v5396 = vpow.pop %v5395
      %v5397 = vmul.f32 %v5285, 1.442695
      %v5398 = vpow.pop %v5397
      %v5399 = vmul.f32 %v5286, 1.442695
      %v5400 = vpow.pop %v5399
      %v5401 = vmul.f32 %v5287, 1.442695
      %v5402 = vpow.pop %v5401
      %v5403 = vmul.f32 %v5288, 1.442695
      %v5404 = vpow.pop %v5403
      %v5405 = vmul.f32 %v5289, 1.442695
      %v5406 = vpow.pop %v5405
      %v5407 = vmul.f32 %v5290, 1.442695
      %v5408 = vpow.pop %v5407
      %v5409 = vmul.f32 %v5291, 1.442695
      %v5410 = vpow.pop %v5409
      %v5411 = vmul.f32 %v5292, 1.442695
      %v5412 = vpow.pop %v5411
      %v5413 = vmul.f32 %v5293, 1.442695
      %v5414 = vpow.pop %v5413
      %v5415 = vmul.f32 %v5294, 1.442695
      %v5416 = vpow.pop %v5415
      %v5417 = vmul.f32 %v5295, 1.442695
      %v5418 = vpow.pop %v5417
      %v5419 = vmul.f32 %v5296, 1.442695
      %v5420 = vpow.pop %v5419
      %v5421 = vmul.f32 %v5297, 1.442695
      %v5422 = vpow.pop %v5421
      %v5423 = vmul.f32 %v5298, 1.442695
      %v5424 = vpow.pop %v5423
      %v5425 = vmul.f32 %v5299, 1.442695
      %v5426 = vpow.pop %v5425
      %v5427 = vmul.f32 %v5300, 1.442695
      %v5428 = vpow.pop %v5427
      %v5429 = vadd.f32 %v5302, %v5304
      %5430 = vadd.xlane.f32.xlu0 %v5429
      %v5431 = vpop.xlane.xlu0 %5430
      %v5432 = vadd.f32 %v5306, %v5308
      %5433 = vadd.xlane.f32.xlu0 %v5432
      %v5434 = vpop.xlane.xlu0 %5433
      %v5435 = vadd.f32 %v5310, %v5312
      %5436 = vadd.xlane.f32.xlu0 %v5435
      %v5437 = vpop.xlane.xlu0 %5436
      %v5438 = vadd.f32 %v5314, %v5316
      %5439 = vadd.xlane.f32.xlu0 %v5438
      %v5440 = vpop.xlane.xlu0 %5439
      %v5441 = vadd.f32 %v5318, %v5320
      %5442 = vadd.xlane.f32.xlu0 %v5441
      %v5443 = vpop.xlane.xlu0 %5442
      %v5444 = vadd.f32 %v5322, %v5324
      %5445 = vadd.xlane.f32.xlu0 %v5444
      %v5446 = vpop.xlane.xlu0 %5445
      %v5447 = vadd.f32 %v5326, %v5328
      %5448 = vadd.xlane.f32.xlu0 %v5447
      %v5449 = vpop.xlane.xlu0 %5448
      %v5450 = vadd.f32 %v5330, %v5332
      %5451 = vadd.xlane.f32.xlu0 %v5450
      %v5452 = vpop.xlane.xlu0 %5451
      %v5453 = vadd.f32 %v5334, %v5336
      %5454 = vadd.xlane.f32.xlu0 %v5453
      %v5455 = vpop.xlane.xlu0 %5454
      %v5456 = vadd.f32 %v5338, %v5340
      %5457 = vadd.xlane.f32.xlu0 %v5456
      %v5458 = vpop.xlane.xlu0 %5457
      %v5459 = vadd.f32 %v5342, %v5344
      %5460 = vadd.xlane.f32.xlu0 %v5459
      %v5461 = vpop.xlane.xlu0 %5460
      %v5462 = vadd.f32 %v5346, %v5348
      %5463 = vadd.xlane.f32.xlu0 %v5462
      %v5464 = vpop.xlane.xlu0 %5463
      %v5465 = vadd.f32 %v5350, %v5352
      %5466 = vadd.xlane.f32.xlu0 %v5465
      %v5467 = vpop.xlane.xlu0 %5466
      %v5468 = vadd.f32 %v5354, %v5356
      %5469 = vadd.xlane.f32.xlu0 %v5468
      %v5470 = vpop.xlane.xlu0 %5469
      %v5471 = vadd.f32 %v5358, %v5360
      %5472 = vadd.xlane.f32.xlu0 %v5471
      %v5473 = vpop.xlane.xlu0 %5472
      %v5474 = vadd.f32 %v5362, %v5364
      %5475 = vadd.xlane.f32.xlu0 %v5474
      %v5476 = vpop.xlane.xlu0 %5475
      %v5477 = vadd.f32 %v5366, %v5368
      %5478 = vadd.xlane.f32.xlu0 %v5477
      %v5479 = vpop.xlane.xlu0 %5478
      %v5480 = vadd.f32 %v5370, %v5372
      %5481 = vadd.xlane.f32.xlu0 %v5480
      %v5482 = vpop.xlane.xlu0 %5481
      %v5483 = vadd.f32 %v5374, %v5376
      %5484 = vadd.xlane.f32.xlu0 %v5483
      %v5485 = vpop.xlane.xlu0 %5484
      %v5486 = vadd.f32 %v5378, %v5380
      %5487 = vadd.xlane.f32.xlu0 %v5486
      %v5488 = vpop.xlane.xlu0 %5487
      %v5489 = vadd.f32 %v5382, %v5384
      %5490 = vadd.xlane.f32.xlu0 %v5489
      %v5491 = vpop.xlane.xlu0 %5490
      %v5492 = vadd.f32 %v5386, %v5388
      %5493 = vadd.xlane.f32.xlu0 %v5492
      %v5494 = vpop.xlane.xlu0 %5493
      %v5495 = vadd.f32 %v5390, %v5392
      %5496 = vadd.xlane.f32.xlu0 %v5495
      %v5497 = vpop.xlane.xlu0 %5496
      %v5498 = vadd.f32 %v5394, %v5396
      %5499 = vadd.xlane.f32.xlu0 %v5498
      %v5500 = vpop.xlane.xlu0 %5499
      %v5501 = vadd.f32 %v5398, %v5400
      %5502 = vadd.xlane.f32.xlu0 %v5501
      %v5503 = vpop.xlane.xlu0 %5502
      %v5504 = vadd.f32 %v5402, %v5404
      %5505 = vadd.xlane.f32.xlu0 %v5504
      %v5506 = vpop.xlane.xlu0 %5505
      %v5507 = vadd.f32 %v5406, %v5408
      %5508 = vadd.xlane.f32.xlu0 %v5507
      %v5509 = vpop.xlane.xlu0 %5508
      %v5510 = vadd.f32 %v5410, %v5412
      %5511 = vadd.xlane.f32.xlu0 %v5510
      %v5512 = vpop.xlane.xlu0 %5511
      %v5513 = vadd.f32 %v5414, %v5416
      %5514 = vadd.xlane.f32.xlu0 %v5513
      %v5515 = vpop.xlane.xlu0 %5514
      %v5516 = vadd.f32 %v5418, %v5420
      %5517 = vadd.xlane.f32.xlu0 %v5516
      %v5518 = vpop.xlane.xlu0 %5517
      %v5519 = vadd.f32 %v5422, %v5424
      %5520 = vadd.xlane.f32.xlu0 %v5519
      %v5521 = vpop.xlane.xlu0 %5520
      %v5522 = vadd.f32 %v5426, %v5428
      %5523 = vadd.xlane.f32.xlu0 %v5522
      %v5524 = vpop.xlane.xlu0 %5523
      %v5525 = vrcp.pop %v5431
      %v5526 = vmul.f32 1.0, %v5525
      %v5527 = vrcp.pop %v5434
      %v5528 = vmul.f32 1.0, %v5527
      %v5529 = vrcp.pop %v5437
      %v5530 = vmul.f32 1.0, %v5529
      %v5531 = vrcp.pop %v5440
      %v5532 = vmul.f32 1.0, %v5531
      %v5533 = vrcp.pop %v5443
      %v5534 = vmul.f32 1.0, %v5533
      %v5535 = vrcp.pop %v5446
      %v5536 = vmul.f32 1.0, %v5535
      %v5537 = vrcp.pop %v5449
      %v5538 = vmul.f32 1.0, %v5537
      %v5539 = vrcp.pop %v5452
      %v5540 = vmul.f32 1.0, %v5539
      %v5541 = vrcp.pop %v5455
      %v5542 = vmul.f32 1.0, %v5541
      %v5543 = vrcp.pop %v5458
      %v5544 = vmul.f32 1.0, %v5543
      %v5545 = vrcp.pop %v5461
      %v5546 = vmul.f32 1.0, %v5545
      %v5547 = vrcp.pop %v5464
      %v5548 = vmul.f32 1.0, %v5547
      %v5549 = vrcp.pop %v5467
      %v5550 = vmul.f32 1.0, %v5549
      %v5551 = vrcp.pop %v5470
      %v5552 = vmul.f32 1.0, %v5551
      %v5553 = vrcp.pop %v5473
      %v5554 = vmul.f32 1.0, %v5553
      %v5555 = vrcp.pop %v5476
      %v5556 = vmul.f32 1.0, %v5555
      %v5557 = vrcp.pop %v5479
      %v5558 = vmul.f32 1.0, %v5557
      %v5559 = vrcp.pop %v5482
      %v5560 = vmul.f32 1.0, %v5559
      %v5561 = vrcp.pop %v5485
      %v5562 = vmul.f32 1.0, %v5561
      %v5563 = vrcp.pop %v5488
      %v5564 = vmul.f32 1.0, %v5563
      %v5565 = vrcp.pop %v5491
      %v5566 = vmul.f32 1.0, %v5565
      %v5567 = vrcp.pop %v5494
      %v5568 = vmul.f32 1.0, %v5567
      %v5569 = vrcp.pop %v5497
      %v5570 = vmul.f32 1.0, %v5569
      %v5571 = vrcp.pop %v5500
      %v5572 = vmul.f32 1.0, %v5571
      %v5573 = vrcp.pop %v5503
      %v5574 = vmul.f32 1.0, %v5573
      %v5575 = vrcp.pop %v5506
      %v5576 = vmul.f32 1.0, %v5575
      %v5577 = vrcp.pop %v5509
      %v5578 = vmul.f32 1.0, %v5577
      %v5579 = vrcp.pop %v5512
      %v5580 = vmul.f32 1.0, %v5579
      %v5581 = vrcp.pop %v5515
      %v5582 = vmul.f32 1.0, %v5581
      %v5583 = vrcp.pop %v5518
      %v5584 = vmul.f32 1.0, %v5583
      %v5585 = vrcp.pop %v5521
      %v5586 = vmul.f32 1.0, %v5585
      %v5587 = vrcp.pop %v5524
      %v5588 = vmul.f32 1.0, %v5587
      %v5589 = vpack.c.bf16 %v5306, %v5302
      %v5590 = vpack.c.bf16 %v5308, %v5304
      %v5591 = vpack.c.bf16 %v5314, %v5310
      %v5592 = vpack.c.bf16 %v5316, %v5312
      %v5593 = vpack.c.bf16 %v5322, %v5318
      %v5594 = vpack.c.bf16 %v5324, %v5320
      %v5595 = vpack.c.bf16 %v5330, %v5326
      %v5596 = vpack.c.bf16 %v5332, %v5328
      %v5597 = vpack.c.bf16 %v5338, %v5334
      %v5598 = vpack.c.bf16 %v5340, %v5336
      %v5599 = vpack.c.bf16 %v5346, %v5342
      %v5600 = vpack.c.bf16 %v5348, %v5344
      %v5601 = vpack.c.bf16 %v5354, %v5350
      %v5602 = vpack.c.bf16 %v5356, %v5352
      %v5603 = vpack.c.bf16 %v5362, %v5358
      %v5604 = vpack.c.bf16 %v5364, %v5360
      %v5605 = vpack.c.bf16 %v5370, %v5366
      %v5606 = vpack.c.bf16 %v5372, %v5368
      %v5607 = vpack.c.bf16 %v5378, %v5374
      %v5608 = vpack.c.bf16 %v5380, %v5376
      %v5609 = vpack.c.bf16 %v5386, %v5382
      %v5610 = vpack.c.bf16 %v5388, %v5384
      %v5611 = vpack.c.bf16 %v5394, %v5390
      %v5612 = vpack.c.bf16 %v5396, %v5392
      %v5613 = vpack.c.bf16 %v5402, %v5398
      %v5614 = vpack.c.bf16 %v5404, %v5400
      %v5615 = vpack.c.bf16 %v5410, %v5406
      %v5616 = vpack.c.bf16 %v5412, %v5408
      %v5617 = vpack.c.bf16 %v5418, %v5414
      %v5618 = vpack.c.bf16 %v5420, %v5416
      %v5619 = vpack.c.bf16 %v5426, %v5422
      %v5620 = vpack.c.bf16 %v5428, %v5424
      %5621 = vrot.lane.b32.xlu0 %v4787, 32
      %v5622 = vpop.permute.xlu0 %5621
      %5623 = vrot.lane.b32.xlu0 %v4788, 32
      %v5624 = vpop.permute.xlu0 %5623
      %5625 = vrot.lane.b32.xlu0 %v4789, 32
      %v5626 = vpop.permute.xlu0 %5625
      %5627 = vrot.lane.b32.xlu0 %v4790, 32
      %v5628 = vpop.permute.xlu0 %5627
      %5629 = vrot.lane.b32.xlu0 %v4791, 32
      %v5630 = vpop.permute.xlu0 %5629
      %5631 = vrot.lane.b32.xlu0 %v4792, 32
      %v5632 = vpop.permute.xlu0 %5631
      %5633 = vrot.lane.b32.xlu0 %v4793, 32
      %v5634 = vpop.permute.xlu0 %5633
      %5635 = vrot.lane.b32.xlu0 %v4794, 32
      %v5636 = vpop.permute.xlu0 %5635
      %5637 = vrot.lane.b32.xlu0 %v4795, 32
      %v5638 = vpop.permute.xlu0 %5637
      %5639 = vrot.lane.b32.xlu0 %v4796, 32
      %v5640 = vpop.permute.xlu0 %5639
      %5641 = vrot.lane.b32.xlu0 %v4797, 32
      %v5642 = vpop.permute.xlu0 %5641
      %5643 = vrot.lane.b32.xlu0 %v4798, 32
      %v5644 = vpop.permute.xlu0 %5643
      %5645 = vrot.lane.b32.xlu0 %v4799, 32
      %v5646 = vpop.permute.xlu0 %5645
      %5647 = vrot.lane.b32.xlu0 %v4800, 32
      %v5648 = vpop.permute.xlu0 %5647
      %5649 = vrot.lane.b32.xlu0 %v4801, 32
      %v5650 = vpop.permute.xlu0 %5649
      %5651 = vrot.lane.b32.xlu0 %v4802, 32
      %v5652 = vpop.permute.xlu0 %5651
      %5669 = vmatprep.subr.bf16.mxu0 0
      %5670 = vmatpush1.bf16.msra.mxu0 %v5622
      %5671 = vmatprep.subr.bf16.mxu0 0
      %5672 = vmatpush1.bf16.msra.mxu0 %v5624
      %5673 = vmatprep.subr.bf16.mxu0 0
      %5674 = vmatpush1.bf16.msra.mxu0 %v5626
      %5675 = vmatprep.subr.bf16.mxu0 0
      %5676 = vmatpush1.bf16.msra.mxu0 %v5628
      %5677 = vmatprep.subr.bf16.mxu0 0
      %5678 = vmatpush1.bf16.msra.mxu0 %v5630
      %5679 = vmatprep.subr.bf16.mxu0 0
      %5680 = vmatpush1.bf16.msra.mxu0 %v5632
      %5681 = vmatprep.subr.bf16.mxu0 0
      %5682 = vmatpush1.bf16.msra.mxu0 %v5634
      %5683 = vmatprep.subr.bf16.mxu0 0
      %5684 = vmatpush1.bf16.msra.mxu0 %v5636
      %5685 = vmatprep.subr.bf16.mxu0 0
      %5686 = vmatpush1.bf16.msra.mxu0 %v5638
      %5687 = vmatprep.subr.bf16.mxu0 0
      %5688 = vmatpush1.bf16.msra.mxu0 %v5640
      %5689 = vmatprep.subr.bf16.mxu0 0
      %5690 = vmatpush1.bf16.msra.mxu0 %v5642
      %5691 = vmatprep.subr.bf16.mxu0 0
      %5692 = vmatpush1.bf16.msra.mxu0 %v5644
      %5693 = vmatprep.subr.bf16.mxu0 0
      %5694 = vmatpush1.bf16.msra.mxu0 %v5646
      %5695 = vmatprep.subr.bf16.mxu0 0
      %5696 = vmatpush1.bf16.msra.mxu0 %v5648
      %5697 = vmatprep.subr.bf16.mxu0 0
      %5698 = vmatpush1.bf16.msra.mxu0 %v5650
      %5699 = vmatprep.subr.bf16.mxu0 0
      %5700 = vmatpush1.bf16.msra.mxu0 %v5652
      %5701 = vmatprep.mubr.bf16.mxu0 %v5590
      %5702 = vmatmul.mubr.bf16.gmra.mrb[0].mxu0 %v5589
      %v5703 = vpop.f32.mrb[0].mxu0
      %v5704 = vadd.f32 0.0, %v5703
      %v5705 = vpop.f32.mrb[0].mxu0
      %v5706 = vpop.f32.mrb[0].mxu0
      %v5707 = vadd.f32 0.0, %v5706
      %v5708 = vpop.f32.mrb[0].mxu0
      %5709 = vmatprep.mubr.bf16.mxu0 %v5592
      %5710 = vmatmul.mubr.bf16.gmra.mrb[0].mxu0 %v5591
      %v5711 = vpop.f32.mrb[0].mxu0
      %v5712 = vadd.f32 0.0, %v5711
      %v5713 = vpop.f32.mrb[0].mxu0
      %v5714 = vpop.f32.mrb[0].mxu0
      %v5715 = vadd.f32 0.0, %v5714
      %v5716 = vpop.f32.mrb[0].mxu0
      %5717 = vmatprep.mubr.bf16.mxu0 %v5594
      %5718 = vmatmul.mubr.bf16.gmra.mrb[0].mxu0 %v5593
      %v5719 = vpop.f32.mrb[0].mxu0
      %v5720 = vadd.f32 0.0, %v5719
      %v5721 = vpop.f32.mrb[0].mxu0
      %v5722 = vpop.f32.mrb[0].mxu0
      %v5723 = vadd.f32 0.0, %v5722
      %v5724 = vpop.f32.mrb[0].mxu0
      %5725 = vmatprep.mubr.bf16.mxu0 %v5596
      %5726 = vmatmul.mubr.bf16.gmra.mrb[0].mxu0 %v5595
      %v5727 = vpop.f32.mrb[0].mxu0
      %v5728 = vadd.f32 0.0, %v5727
      %v5729 = vpop.f32.mrb[0].mxu0
      %v5730 = vpop.f32.mrb[0].mxu0
      %v5731 = vadd.f32 0.0, %v5730
      %v5732 = vpop.f32.mrb[0].mxu0
      %5733 = vmatprep.mubr.bf16.mxu0 %v5598
      %5734 = vmatmul.mubr.bf16.gmra.mrb[0].mxu0 %v5597
      %v5735 = vpop.f32.mrb[0].mxu0
      %v5736 = vadd.f32 0.0, %v5735
      %v5737 = vpop.f32.mrb[0].mxu0
      %v5738 = vpop.f32.mrb[0].mxu0
      %v5739 = vadd.f32 0.0, %v5738
      %v5740 = vpop.f32.mrb[0].mxu0
      %5741 = vmatprep.mubr.bf16.mxu0 %v5600
      %5742 = vmatmul.mubr.bf16.gmra.mrb[0].mxu0 %v5599
      %v5743 = vpop.f32.mrb[0].mxu0
      %v5744 = vadd.f32 0.0, %v5743
      %v5745 = vpop.f32.mrb[0].mxu0
      %v5746 = vpop.f32.mrb[0].mxu0
      %v5747 = vadd.f32 0.0, %v5746
      %v5748 = vpop.f32.mrb[0].mxu0
      %5749 = vmatprep.mubr.bf16.mxu0 %v5602
      %5750 = vmatmul.mubr.bf16.gmra.mrb[0].mxu0 %v5601
      %v5751 = vpop.f32.mrb[0].mxu0
      %v5752 = vadd.f32 0.0, %v5751
      %v5753 = vpop.f32.mrb[0].mxu0
      %v5754 = vpop.f32.mrb[0].mxu0
      %v5755 = vadd.f32 0.0, %v5754
      %v5756 = vpop.f32.mrb[0].mxu0
      %5757 = vmatprep.mubr.bf16.mxu0 %v5604
      %5758 = vmatmul.mubr.bf16.gmra.mrb[0].mxu0 %v5603
      %v5759 = vpop.f32.mrb[0].mxu0
      %v5760 = vadd.f32 0.0, %v5759
      %v5761 = vpop.f32.mrb[0].mxu0
      %v5762 = vpop.f32.mrb[0].mxu0
      %v5763 = vadd.f32 0.0, %v5762
      %v5764 = vpop.f32.mrb[0].mxu0
      %5765 = vmatprep.mubr.bf16.mxu0 %v5606
      %5766 = vmatmul.mubr.bf16.gmra.mrb[0].mxu0 %v5605
      %v5767 = vpop.f32.mrb[0].mxu0
      %v5768 = vadd.f32 0.0, %v5767
      %v5769 = vpop.f32.mrb[0].mxu0
      %v5770 = vpop.f32.mrb[0].mxu0
      %v5771 = vadd.f32 0.0, %v5770
      %v5772 = vpop.f32.mrb[0].mxu0
      %5773 = vmatprep.mubr.bf16.mxu0 %v5608
      %5774 = vmatmul.mubr.bf16.gmra.mrb[0].mxu0 %v5607
      %v5775 = vpop.f32.mrb[0].mxu0
      %v5776 = vadd.f32 0.0, %v5775
      %v5777 = vpop.f32.mrb[0].mxu0
      %v5778 = vpop.f32.mrb[0].mxu0
      %v5779 = vadd.f32 0.0, %v5778
      %v5780 = vpop.f32.mrb[0].mxu0
      %5781 = vmatprep.mubr.bf16.mxu0 %v5610
      %5782 = vmatmul.mubr.bf16.gmra.mrb[0].mxu0 %v5609
      %v5783 = vpop.f32.mrb[0].mxu0
      %v5784 = vadd.f32 0.0, %v5783
      %v5785 = vpop.f32.mrb[0].mxu0
      %v5786 = vpop.f32.mrb[0].mxu0
      %v5787 = vadd.f32 0.0, %v5786
      %v5788 = vpop.f32.mrb[0].mxu0
      %5789 = vmatprep.mubr.bf16.mxu0 %v5612
      %5790 = vmatmul.mubr.bf16.gmra.mrb[0].mxu0 %v5611
      %v5791 = vpop.f32.mrb[0].mxu0
      %v5792 = vadd.f32 0.0, %v5791
      %v5793 = vpop.f32.mrb[0].mxu0
      %v5794 = vpop.f32.mrb[0].mxu0
      %v5795 = vadd.f32 0.0, %v5794
      %v5796 = vpop.f32.mrb[0].mxu0
      %5797 = vmatprep.mubr.bf16.mxu0 %v5614
      %5798 = vmatmul.mubr.bf16.gmra.mrb[0].mxu0 %v5613
      %v5799 = vpop.f32.mrb[0].mxu0
      %v5800 = vadd.f32 0.0, %v5799
      %v5801 = vpop.f32.mrb[0].mxu0
      %v5802 = vpop.f32.mrb[0].mxu0
      %v5803 = vadd.f32 0.0, %v5802
      %v5804 = vpop.f32.mrb[0].mxu0
      %5805 = vmatprep.mubr.bf16.mxu0 %v5616
      %5806 = vmatmul.mubr.bf16.gmra.mrb[0].mxu0 %v5615
      %v5807 = vpop.f32.mrb[0].mxu0
      %v5808 = vadd.f32 0.0, %v5807
      %v5809 = vpop.f32.mrb[0].mxu0
      %v5810 = vpop.f32.mrb[0].mxu0
      %v5811 = vadd.f32 0.0, %v5810
      %v5812 = vpop.f32.mrb[0].mxu0
      %5813 = vmatprep.mubr.bf16.mxu0 %v5618
      %5814 = vmatmul.mubr.bf16.gmra.mrb[0].mxu0 %v5617
      %v5815 = vpop.f32.mrb[0].mxu0
      %v5816 = vadd.f32 0.0, %v5815
      %v5817 = vpop.f32.mrb[0].mxu0
      %v5818 = vpop.f32.mrb[0].mxu0
      %v5819 = vadd.f32 0.0, %v5818
      %v5820 = vpop.f32.mrb[0].mxu0
      %5821 = vmatprep.mubr.bf16.mxu0 %v5620
      %5822 = vmatmul.mubr.bf16.gmra.mrb[0].mxu0 %v5619
      %v5823 = vpop.f32.mrb[0].mxu0
      %v5824 = vadd.f32 0.0, %v5823
      %v5825 = vpop.f32.mrb[0].mxu0
      %v5826 = vpop.f32.mrb[0].mxu0
      %v5827 = vadd.f32 0.0, %v5826
      %v5828 = vpop.f32.mrb[0].mxu0
      %5829 = vdwg.mxu0
      %v5830 = vmul.f32 %v5704, %v5526
      %v5831 = vmul.f32 %v5707, %v5528
      %v5832 = vmul.f32 %v5712, %v5530
      %v5833 = vmul.f32 %v5715, %v5532
      %v5834 = vmul.f32 %v5720, %v5534
      %v5835 = vmul.f32 %v5723, %v5536
      %v5836 = vmul.f32 %v5728, %v5538
      %v5837 = vmul.f32 %v5731, %v5540
      %v5838 = vmul.f32 %v5736, %v5542
      %v5839 = vmul.f32 %v5739, %v5544
      %v5840 = vmul.f32 %v5744, %v5546
      %v5841 = vmul.f32 %v5747, %v5548
      %v5842 = vmul.f32 %v5752, %v5550
      %v5843 = vmul.f32 %v5755, %v5552
      %v5844 = vmul.f32 %v5760, %v5554
      %v5845 = vmul.f32 %v5763, %v5556
      %v5846 = vmul.f32 %v5768, %v5558
      %v5847 = vmul.f32 %v5771, %v5560
      %v5848 = vmul.f32 %v5776, %v5562
      %v5849 = vmul.f32 %v5779, %v5564
      %v5850 = vmul.f32 %v5784, %v5566
      %v5851 = vmul.f32 %v5787, %v5568
      %v5852 = vmul.f32 %v5792, %v5570
      %v5853 = vmul.f32 %v5795, %v5572
      %v5854 = vmul.f32 %v5800, %v5574
      %v5855 = vmul.f32 %v5803, %v5576
      %v5856 = vmul.f32 %v5808, %v5578
      %v5857 = vmul.f32 %v5811, %v5580
      %v5858 = vmul.f32 %v5816, %v5582
      %v5859 = vmul.f32 %v5819, %v5584
      %v5860 = vmul.f32 %v5824, %v5586
      %v5861 = vmul.f32 %v5827, %v5588
      %v5862 = vadd.f32 %v5830, %v4661
      %v5863 = vadd.f32 %v5831, %v4664
      %v5864 = vadd.f32 %v5832, %v4669
      %v5865 = vadd.f32 %v5833, %v4672
      %v5866 = vadd.f32 %v5834, %v4677
      %v5867 = vadd.f32 %v5835, %v4680
      %v5868 = vadd.f32 %v5836, %v4685
      %v5869 = vadd.f32 %v5837, %v4688
      %v5870 = vadd.f32 %v5838, %v4693
      %v5871 = vadd.f32 %v5839, %v4696
      %v5872 = vadd.f32 %v5840, %v4701
      %v5873 = vadd.f32 %v5841, %v4704
      %v5874 = vadd.f32 %v5842, %v4709
      %v5875 = vadd.f32 %v5843, %v4712
      %v5876 = vadd.f32 %v5844, %v4717
      %v5877 = vadd.f32 %v5845, %v4720
      %v5878 = vadd.f32 %v5846, %v4725
      %v5879 = vadd.f32 %v5847, %v4728
      %v5880 = vadd.f32 %v5848, %v4733
      %v5881 = vadd.f32 %v5849, %v4736
      %v5882 = vadd.f32 %v5850, %v4741
      %v5883 = vadd.f32 %v5851, %v4744
      %v5884 = vadd.f32 %v5852, %v4749
      %v5885 = vadd.f32 %v5853, %v4752
      %v5886 = vadd.f32 %v5854, %v4757
      %v5887 = vadd.f32 %v5855, %v4760
      %v5888 = vadd.f32 %v5856, %v4765
      %v5889 = vadd.f32 %v5857, %v4768
      %v5890 = vadd.f32 %v5858, %v4773
      %v5891 = vadd.f32 %v5859, %v4776
      %v5892 = vadd.f32 %v5860, %v4781
      %v5893 = vadd.f32 %v5861, %v4784
      %5894 = vxpose.xlu0.b32.start [1/16] %v5302, 128
      %5895 = vxpose.xlu0.b32.cont [2/16] %v5306, 128
      %5896 = vxpose.xlu0.b32.cont [3/16] %v5310, 128
      %5897 = vxpose.xlu0.b32.cont [4/16] %v5314, 128
      %5898 = vxpose.xlu0.b32.cont [5/16] %v5318, 128
      %5899 = vxpose.xlu0.b32.cont [6/16] %v5322, 128
      %5900 = vxpose.xlu0.b32.cont [7/16] %v5326, 128
      %5901 = vxpose.xlu0.b32.cont [8/16] %v5330, 128
      %5902 = vxpose.xlu0.b32.cont [9/16] %v5334, 128
      %5903 = vxpose.xlu0.b32.cont [10/16] %v5338, 128
      %5904 = vxpose.xlu0.b32.cont [11/16] %v5342, 128
      %5905 = vxpose.xlu0.b32.cont [12/16] %v5346, 128
      %5906 = vxpose.xlu0.b32.cont [13/16] %v5350, 128
      %5907 = vxpose.xlu0.b32.cont [14/16] %v5354, 128
      %5908 = vxpose.xlu0.b32.cont [15/16] %v5358, 128
      %5909 = vxpose.xlu0.b32.end [16/16] %v5362, 128
      %v5910 = vpop.trf.xlu0
      %v5911 = vpop.trf.xlu0
      %v5912 = vpop.trf.xlu0
      %v5913 = vpop.trf.xlu0
      %v5914 = vpop.trf.xlu0
      %v5915 = vpop.trf.xlu0
      %v5916 = vpop.trf.xlu0
      %v5917 = vpop.trf.xlu0
      %v5918 = vpop.trf.xlu0
      %v5919 = vpop.trf.xlu0
      %v5920 = vpop.trf.xlu0
      %v5921 = vpop.trf.xlu0
      %v5922 = vpop.trf.xlu0
      %v5923 = vpop.trf.xlu0
      %v5924 = vpop.trf.xlu0
      %v5925 = vpop.trf.xlu0
      %5926 = vxpose.xlu0.b32.start [1/16] %v5304, 128
      %5927 = vxpose.xlu0.b32.cont [2/16] %v5308, 128
      %5928 = vxpose.xlu0.b32.cont [3/16] %v5312, 128
      %5929 = vxpose.xlu0.b32.cont [4/16] %v5316, 128
      %5930 = vxpose.xlu0.b32.cont [5/16] %v5320, 128
      %5931 = vxpose.xlu0.b32.cont [6/16] %v5324, 128
      %5932 = vxpose.xlu0.b32.cont [7/16] %v5328, 128
      %5933 = vxpose.xlu0.b32.cont [8/16] %v5332, 128
      %5934 = vxpose.xlu0.b32.cont [9/16] %v5336, 128
      %5935 = vxpose.xlu0.b32.cont [10/16] %v5340, 128
      %5936 = vxpose.xlu0.b32.cont [11/16] %v5344, 128
      %5937 = vxpose.xlu0.b32.cont [12/16] %v5348, 128
      %5938 = vxpose.xlu0.b32.cont [13/16] %v5352, 128
      %5939 = vxpose.xlu0.b32.cont [14/16] %v5356, 128
      %5940 = vxpose.xlu0.b32.cont [15/16] %v5360, 128
      %5941 = vxpose.xlu0.b32.end [16/16] %v5364, 128
      %v5942 = vpop.trf.xlu0
      %v5943 = vpop.trf.xlu0
      %v5944 = vpop.trf.xlu0
      %v5945 = vpop.trf.xlu0
      %v5946 = vpop.trf.xlu0
      %v5947 = vpop.trf.xlu0
      %v5948 = vpop.trf.xlu0
      %v5949 = vpop.trf.xlu0
      %v5950 = vpop.trf.xlu0
      %v5951 = vpop.trf.xlu0
      %v5952 = vpop.trf.xlu0
      %v5953 = vpop.trf.xlu0
      %v5954 = vpop.trf.xlu0
      %v5955 = vpop.trf.xlu0
      %v5956 = vpop.trf.xlu0
      %v5957 = vpop.trf.xlu0
      %5958 = vxpose.xlu0.b32.start [1/16] %v5366, 128
      %5959 = vxpose.xlu0.b32.cont [2/16] %v5370, 128
      %5960 = vxpose.xlu0.b32.cont [3/16] %v5374, 128
      %5961 = vxpose.xlu0.b32.cont [4/16] %v5378, 128
      %5962 = vxpose.xlu0.b32.cont [5/16] %v5382, 128
      %5963 = vxpose.xlu0.b32.cont [6/16] %v5386, 128
      %5964 = vxpose.xlu0.b32.cont [7/16] %v5390, 128
      %5965 = vxpose.xlu0.b32.cont [8/16] %v5394, 128
      %5966 = vxpose.xlu0.b32.cont [9/16] %v5398, 128
      %5967 = vxpose.xlu0.b32.cont [10/16] %v5402, 128
      %5968 = vxpose.xlu0.b32.cont [11/16] %v5406, 128
      %5969 = vxpose.xlu0.b32.cont [12/16] %v5410, 128
      %5970 = vxpose.xlu0.b32.cont [13/16] %v5414, 128
      %5971 = vxpose.xlu0.b32.cont [14/16] %v5418, 128
      %5972 = vxpose.xlu0.b32.cont [15/16] %v5422, 128
      %5973 = vxpose.xlu0.b32.end [16/16] %v5426, 128
      %v5974 = vpop.trf.xlu0
      %v5975 = vpop.trf.xlu0
      %v5976 = vpop.trf.xlu0
      %v5977 = vpop.trf.xlu0
      %v5978 = vpop.trf.xlu0
      %v5979 = vpop.trf.xlu0
      %v5980 = vpop.trf.xlu0
      %v5981 = vpop.trf.xlu0
      %v5982 = vpop.trf.xlu0
      %v5983 = vpop.trf.xlu0
      %v5984 = vpop.trf.xlu0
      %v5985 = vpop.trf.xlu0
      %v5986 = vpop.trf.xlu0
      %v5987 = vpop.trf.xlu0
      %v5988 = vpop.trf.xlu0
      %v5989 = vpop.trf.xlu0
      %5990 = vxpose.xlu0.b32.start [1/16] %v5368, 128
      %5991 = vxpose.xlu0.b32.cont [2/16] %v5372, 128
      %5992 = vxpose.xlu0.b32.cont [3/16] %v5376, 128
      %5993 = vxpose.xlu0.b32.cont [4/16] %v5380, 128
      %5994 = vxpose.xlu0.b32.cont [5/16] %v5384, 128
      %5995 = vxpose.xlu0.b32.cont [6/16] %v5388, 128
      %5996 = vxpose.xlu0.b32.cont [7/16] %v5392, 128
      %5997 = vxpose.xlu0.b32.cont [8/16] %v5396, 128
      %5998 = vxpose.xlu0.b32.cont [9/16] %v5400, 128
      %5999 = vxpose.xlu0.b32.cont [10/16] %v5404, 128
      %6000 = vxpose.xlu0.b32.cont [11/16] %v5408, 128
      %6001 = vxpose.xlu0.b32.cont [12/16] %v5412, 128
      %6002 = vxpose.xlu0.b32.cont [13/16] %v5416, 128
      %6003 = vxpose.xlu0.b32.cont [14/16] %v5420, 128
      %6004 = vxpose.xlu0.b32.cont [15/16] %v5424, 128
      %6005 = vxpose.xlu0.b32.end [16/16] %v5428, 128
      %v6006 = vpop.trf.xlu0
      %v6007 = vpop.trf.xlu0
      %v6008 = vpop.trf.xlu0
      %v6009 = vpop.trf.xlu0
      %v6010 = vpop.trf.xlu0
      %v6011 = vpop.trf.xlu0
      %v6012 = vpop.trf.xlu0
      %v6013 = vpop.trf.xlu0
      %v6014 = vpop.trf.xlu0
      %v6015 = vpop.trf.xlu0
      %v6016 = vpop.trf.xlu0
      %v6017 = vpop.trf.xlu0
      %v6018 = vpop.trf.xlu0
      %v6019 = vpop.trf.xlu0
      %v6020 = vpop.trf.xlu0
      %v6021 = vpop.trf.xlu0
      %v6022 = vpack.c.bf16 %v5911, %v5910
      %v6023 = vpack.c.bf16 %v5975, %v5974
      %v6024 = vpack.c.bf16 %v5913, %v5912
      %v6025 = vpack.c.bf16 %v5977, %v5976
      %v6026 = vpack.c.bf16 %v5915, %v5914
      %v6027 = vpack.c.bf16 %v5979, %v5978
      %v6028 = vpack.c.bf16 %v5917, %v5916
      %v6029 = vpack.c.bf16 %v5981, %v5980
      %v6030 = vpack.c.bf16 %v5919, %v5918
      %v6031 = vpack.c.bf16 %v5983, %v5982
      %v6032 = vpack.c.bf16 %v5921, %v5920
      %v6033 = vpack.c.bf16 %v5985, %v5984
      %v6034 = vpack.c.bf16 %v5923, %v5922
      %v6035 = vpack.c.bf16 %v5987, %v5986
      %v6036 = vpack.c.bf16 %v5925, %v5924
      %v6037 = vpack.c.bf16 %v5989, %v5988
      %v6038 = vpack.c.bf16 %v5943, %v5942
      %v6039 = vpack.c.bf16 %v6007, %v6006
      %v6040 = vpack.c.bf16 %v5945, %v5944
      %v6041 = vpack.c.bf16 %v6009, %v6008
      %v6042 = vpack.c.bf16 %v5947, %v5946
      %v6043 = vpack.c.bf16 %v6011, %v6010
      %v6044 = vpack.c.bf16 %v5949, %v5948
      %v6045 = vpack.c.bf16 %v6013, %v6012
      %v6046 = vpack.c.bf16 %v5951, %v5950
      %v6047 = vpack.c.bf16 %v6015, %v6014
      %v6048 = vpack.c.bf16 %v5953, %v5952
      %v6049 = vpack.c.bf16 %v6017, %v6016
      %v6050 = vpack.c.bf16 %v5955, %v5954
      %v6051 = vpack.c.bf16 %v6019, %v6018
      %v6052 = vpack.c.bf16 %v5957, %v5956
      %v6053 = vpack.c.bf16 %v6021, %v6020
      %v6054 = vmul.f32 %v4661, %v5526
      %v6055 = vmul.f32 %v4664, %v5528
      %v6056 = vmul.f32 %v4669, %v5530
      %v6057 = vmul.f32 %v4672, %v5532
      %v6058 = vmul.f32 %v4677, %v5534
      %v6059 = vmul.f32 %v4680, %v5536
      %v6060 = vmul.f32 %v4685, %v5538
      %v6061 = vmul.f32 %v4688, %v5540
      %v6062 = vmul.f32 %v4693, %v5542
      %v6063 = vmul.f32 %v4696, %v5544
      %v6064 = vmul.f32 %v4701, %v5546
      %v6065 = vmul.f32 %v4704, %v5548
      %v6066 = vmul.f32 %v4709, %v5550
      %v6067 = vmul.f32 %v4712, %v5552
      %v6068 = vmul.f32 %v4717, %v5554
      %v6069 = vmul.f32 %v4720, %v5556
      %v6070 = vmul.f32 %v4725, %v5558
      %v6071 = vmul.f32 %v4728, %v5560
      %v6072 = vmul.f32 %v4733, %v5562
      %v6073 = vmul.f32 %v4736, %v5564
      %v6074 = vmul.f32 %v4741, %v5566
      %v6075 = vmul.f32 %v4744, %v5568
      %v6076 = vmul.f32 %v4749, %v5570
      %v6077 = vmul.f32 %v4752, %v5572
      %v6078 = vmul.f32 %v4757, %v5574
      %v6079 = vmul.f32 %v4760, %v5576
      %v6080 = vmul.f32 %v4765, %v5578
      %v6081 = vmul.f32 %v4768, %v5580
      %v6082 = vmul.f32 %v4773, %v5582
      %v6083 = vmul.f32 %v4776, %v5584
      %v6084 = vmul.f32 %v4781, %v5586
      %v6085 = vmul.f32 %v4784, %v5588
      %v6086 = vpack.c.bf16 %v6055, %v6054
      %v6087 = vpack.c.bf16 %v6057, %v6056
      %v6088 = vpack.c.bf16 %v6059, %v6058
      %v6089 = vpack.c.bf16 %v6061, %v6060
      %v6090 = vpack.c.bf16 %v6063, %v6062
      %v6091 = vpack.c.bf16 %v6065, %v6064
      %v6092 = vpack.c.bf16 %v6067, %v6066
      %v6093 = vpack.c.bf16 %v6069, %v6068
      %v6094 = vpack.c.bf16 %v6071, %v6070
      %v6095 = vpack.c.bf16 %v6073, %v6072
      %v6096 = vpack.c.bf16 %v6075, %v6074
      %v6097 = vpack.c.bf16 %v6077, %v6076
      %v6098 = vpack.c.bf16 %v6079, %v6078
      %v6099 = vpack.c.bf16 %v6081, %v6080
      %v6100 = vpack.c.bf16 %v6083, %v6082
      %v6101 = vpack.c.bf16 %v6085, %v6084
      %6118 = vrot.lane.b32.xlu0 %v6086, 64
      %v6119 = vpop.permute.xlu0 %6118
      %6120 = vrot.lane.b32.xlu0 %v6087, 64
      %v6121 = vpop.permute.xlu0 %6120
      %6122 = vrot.lane.b32.xlu0 %v6088, 64
      %v6123 = vpop.permute.xlu0 %6122
      %6124 = vrot.lane.b32.xlu0 %v6089, 64
      %v6125 = vpop.permute.xlu0 %6124
      %6126 = vrot.lane.b32.xlu0 %v6090, 64
      %v6127 = vpop.permute.xlu0 %6126
      %6128 = vrot.lane.b32.xlu0 %v6091, 64
      %v6129 = vpop.permute.xlu0 %6128
      %6130 = vrot.lane.b32.xlu0 %v6092, 64
      %v6131 = vpop.permute.xlu0 %6130
      %6132 = vrot.lane.b32.xlu0 %v6093, 64
      %v6133 = vpop.permute.xlu0 %6132
      %6134 = vrot.lane.b32.xlu0 %v6094, 64
      %v6135 = vpop.permute.xlu0 %6134
      %6136 = vrot.lane.b32.xlu0 %v6095, 64
      %v6137 = vpop.permute.xlu0 %6136
      %6138 = vrot.lane.b32.xlu0 %v6096, 64
      %v6139 = vpop.permute.xlu0 %6138
      %6140 = vrot.lane.b32.xlu0 %v6097, 64
      %v6141 = vpop.permute.xlu0 %6140
      %6142 = vrot.lane.b32.xlu0 %v6098, 64
      %v6143 = vpop.permute.xlu0 %6142
      %6144 = vrot.lane.b32.xlu0 %v6099, 64
      %v6145 = vpop.permute.xlu0 %6144
      %6146 = vrot.lane.b32.xlu0 %v6100, 64
      %v6147 = vpop.permute.xlu0 %6146
      %6148 = vrot.lane.b32.xlu0 %v6101, 64
      %v6149 = vpop.permute.xlu0 %6148
      %6198 = vrot.lane.b32.xlu0 %v4661, 96
      %v6199 = vpop.permute.xlu0 %6198
      %6200 = vrot.lane.b32.xlu0 %v4664, 96
      %v6201 = vpop.permute.xlu0 %6200
      %6202 = vrot.lane.b32.xlu0 %v4669, 96
      %v6203 = vpop.permute.xlu0 %6202
      %6204 = vrot.lane.b32.xlu0 %v4672, 96
      %v6205 = vpop.permute.xlu0 %6204
      %6206 = vrot.lane.b32.xlu0 %v4677, 96
      %v6207 = vpop.permute.xlu0 %6206
      %6208 = vrot.lane.b32.xlu0 %v4680, 96
      %v6209 = vpop.permute.xlu0 %6208
      %6210 = vrot.lane.b32.xlu0 %v4685, 96
      %v6211 = vpop.permute.xlu0 %6210
      %6212 = vrot.lane.b32.xlu0 %v4688, 96
      %v6213 = vpop.permute.xlu0 %6212
      %6214 = vrot.lane.b32.xlu0 %v4693, 96
      %v6215 = vpop.permute.xlu0 %6214
      %6216 = vrot.lane.b32.xlu0 %v4696, 96
      %v6217 = vpop.permute.xlu0 %6216
      %6218 = vrot.lane.b32.xlu0 %v4701, 96
      %v6219 = vpop.permute.xlu0 %6218
      %6220 = vrot.lane.b32.xlu0 %v4704, 96
      %v6221 = vpop.permute.xlu0 %6220
      %6222 = vrot.lane.b32.xlu0 %v4709, 96
      %v6223 = vpop.permute.xlu0 %6222
      %6224 = vrot.lane.b32.xlu0 %v4712, 96
      %v6225 = vpop.permute.xlu0 %6224
      %6226 = vrot.lane.b32.xlu0 %v4717, 96
      %v6227 = vpop.permute.xlu0 %6226
      %6228 = vrot.lane.b32.xlu0 %v4720, 96
      %v6229 = vpop.permute.xlu0 %6228
      %6230 = vrot.lane.b32.xlu0 %v4725, 96
      %v6231 = vpop.permute.xlu0 %6230
      %6232 = vrot.lane.b32.xlu0 %v4728, 96
      %v6233 = vpop.permute.xlu0 %6232
      %6234 = vrot.lane.b32.xlu0 %v4733, 96
      %v6235 = vpop.permute.xlu0 %6234
      %6236 = vrot.lane.b32.xlu0 %v4736, 96
      %v6237 = vpop.permute.xlu0 %6236
      %6238 = vrot.lane.b32.xlu0 %v4741, 96
      %v6239 = vpop.permute.xlu0 %6238
      %6240 = vrot.lane.b32.xlu0 %v4744, 96
      %v6241 = vpop.permute.xlu0 %6240
      %6242 = vrot.lane.b32.xlu0 %v4749, 96
      %v6243 = vpop.permute.xlu0 %6242
      %6244 = vrot.lane.b32.xlu0 %v4752, 96
      %v6245 = vpop.permute.xlu0 %6244
      %6246 = vrot.lane.b32.xlu0 %v4757, 96
      %v6247 = vpop.permute.xlu0 %6246
      %6248 = vrot.lane.b32.xlu0 %v4760, 96
      %v6249 = vpop.permute.xlu0 %6248
      %6250 = vrot.lane.b32.xlu0 %v4765, 96
      %v6251 = vpop.permute.xlu0 %6250
      %6252 = vrot.lane.b32.xlu0 %v4768, 96
      %v6253 = vpop.permute.xlu0 %6252
      %6254 = vrot.lane.b32.xlu0 %v4773, 96
      %v6255 = vpop.permute.xlu0 %6254
      %6256 = vrot.lane.b32.xlu0 %v4776, 96
      %v6257 = vpop.permute.xlu0 %6256
      %6258 = vrot.lane.b32.xlu0 %v4781, 96
      %v6259 = vpop.permute.xlu0 %6258
      %6260 = vrot.lane.b32.xlu0 %v4784, 96
      %v6261 = vpop.permute.xlu0 %6260
      %6294 = vmatprep.subr.bf16.mxu0 0
      %6295 = vmatpush1.bf16.msra.mxu0 %v6119
      %6296 = vmatprep.subr.bf16.mxu0 0
      %6297 = vmatpush1.bf16.msra.mxu0 %v6121
      %6298 = vmatprep.subr.bf16.mxu0 0
      %6299 = vmatpush1.bf16.msra.mxu0 %v6123
      %6300 = vmatprep.subr.bf16.mxu0 0
      %6301 = vmatpush1.bf16.msra.mxu0 %v6125
      %6302 = vmatprep.subr.bf16.mxu0 0
      %6303 = vmatpush1.bf16.msra.mxu0 %v6127
      %6304 = vmatprep.subr.bf16.mxu0 0
      %6305 = vmatpush1.bf16.msra.mxu0 %v6129
      %6306 = vmatprep.subr.bf16.mxu0 0
      %6307 = vmatpush1.bf16.msra.mxu0 %v6131
      %6308 = vmatprep.subr.bf16.mxu0 0
      %6309 = vmatpush1.bf16.msra.mxu0 %v6133
      %6310 = vmatprep.subr.bf16.mxu0 0
      %6311 = vmatpush1.bf16.msra.mxu0 %v6135
      %6312 = vmatprep.subr.bf16.mxu0 0
      %6313 = vmatpush1.bf16.msra.mxu0 %v6137
      %6314 = vmatprep.subr.bf16.mxu0 0
      %6315 = vmatpush1.bf16.msra.mxu0 %v6139
      %6316 = vmatprep.subr.bf16.mxu0 0
      %6317 = vmatpush1.bf16.msra.mxu0 %v6141
      %6318 = vmatprep.subr.bf16.mxu0 0
      %6319 = vmatpush1.bf16.msra.mxu0 %v6143
      %6320 = vmatprep.subr.bf16.mxu0 0
      %6321 = vmatpush1.bf16.msra.mxu0 %v6145
      %6322 = vmatprep.subr.bf16.mxu0 0
      %6323 = vmatpush1.bf16.msra.mxu0 %v6147
      %6324 = vmatprep.subr.bf16.mxu0 0
      %6325 = vmatpush1.bf16.msra.mxu0 %v6149
      %6326 = vmatprep.mubr.bf16.mxu0 %v6023
      %6327 = vmatmul.mubr.bf16.gmra.mrb[0].mxu0 %v6022
      %v6328 = vpop.f32.mrb[0].mxu0
      %v6329 = vadd.f32 %v6199, %v6328
      %v6330 = vpop.f32.mrb[0].mxu0
      %v6331 = vpop.f32.mrb[0].mxu0
      %v6332 = vadd.f32 %v6201, %v6331
      %v6333 = vpop.f32.mrb[0].mxu0
      %6334 = vmatprep.mubr.bf16.mxu0 %v6025
      %6335 = vmatmul.mubr.bf16.gmra.mrb[0].mxu0 %v6024
      %v6336 = vpop.f32.mrb[0].mxu0
      %v6337 = vadd.f32 %v6203, %v6336
      %v6338 = vpop.f32.mrb[0].mxu0
      %v6339 = vpop.f32.mrb[0].mxu0
      %v6340 = vadd.f32 %v6205, %v6339
      %v6341 = vpop.f32.mrb[0].mxu0
      %6342 = vmatprep.mubr.bf16.mxu0 %v6027
      %6343 = vmatmul.mubr.bf16.gmra.mrb[0].mxu0 %v6026
      %v6344 = vpop.f32.mrb[0].mxu0
      %v6345 = vadd.f32 %v6207, %v6344
      %v6346 = vpop.f32.mrb[0].mxu0
      %v6347 = vpop.f32.mrb[0].mxu0
      %v6348 = vadd.f32 %v6209, %v6347
      %v6349 = vpop.f32.mrb[0].mxu0
      %6350 = vmatprep.mubr.bf16.mxu0 %v6029
      %6351 = vmatmul.mubr.bf16.gmra.mrb[0].mxu0 %v6028
      %v6352 = vpop.f32.mrb[0].mxu0
      %v6353 = vadd.f32 %v6211, %v6352
      %v6354 = vpop.f32.mrb[0].mxu0
      %v6355 = vpop.f32.mrb[0].mxu0
      %v6356 = vadd.f32 %v6213, %v6355
      %v6357 = vpop.f32.mrb[0].mxu0
      %6358 = vmatprep.mubr.bf16.mxu0 %v6031
      %6359 = vmatmul.mubr.bf16.gmra.mrb[0].mxu0 %v6030
      %v6360 = vpop.f32.mrb[0].mxu0
      %v6361 = vadd.f32 %v6215, %v6360
      %v6362 = vpop.f32.mrb[0].mxu0
      %v6363 = vpop.f32.mrb[0].mxu0
      %v6364 = vadd.f32 %v6217, %v6363
      %v6365 = vpop.f32.mrb[0].mxu0
      %6366 = vmatprep.mubr.bf16.mxu0 %v6033
      %6367 = vmatmul.mubr.bf16.gmra.mrb[0].mxu0 %v6032
      %v6368 = vpop.f32.mrb[0].mxu0
      %v6369 = vadd.f32 %v6219, %v6368
      %v6370 = vpop.f32.mrb[0].mxu0
      %v6371 = vpop.f32.mrb[0].mxu0
      %v6372 = vadd.f32 %v6221, %v6371
      %v6373 = vpop.f32.mrb[0].mxu0
      %6374 = vmatprep.mubr.bf16.mxu0 %v6035
      %6375 = vmatmul.mubr.bf16.gmra.mrb[0].mxu0 %v6034
      %v6376 = vpop.f32.mrb[0].mxu0
      %v6377 = vadd.f32 %v6223, %v6376
      %v6378 = vpop.f32.mrb[0].mxu0
      %v6379 = vpop.f32.mrb[0].mxu0
      %v6380 = vadd.f32 %v6225, %v6379
      %v6381 = vpop.f32.mrb[0].mxu0
      %6382 = vmatprep.mubr.bf16.mxu0 %v6037
      %6383 = vmatmul.mubr.bf16.gmra.mrb[0].mxu0 %v6036
      %v6384 = vpop.f32.mrb[0].mxu0
      %v6385 = vadd.f32 %v6227, %v6384
      %v6386 = vpop.f32.mrb[0].mxu0
      %v6387 = vpop.f32.mrb[0].mxu0
      %v6388 = vadd.f32 %v6229, %v6387
      %v6389 = vpop.f32.mrb[0].mxu0
      %6390 = vmatprep.mubr.bf16.mxu0 %v6039
      %6391 = vmatmul.mubr.bf16.gmra.mrb[0].mxu0 %v6038
      %v6392 = vpop.f32.mrb[0].mxu0
      %v6393 = vadd.f32 %v6231, %v6392
      %v6394 = vpop.f32.mrb[0].mxu0
      %v6395 = vpop.f32.mrb[0].mxu0
      %v6396 = vadd.f32 %v6233, %v6395
      %v6397 = vpop.f32.mrb[0].mxu0
      %6398 = vmatprep.mubr.bf16.mxu0 %v6041
      %6399 = vmatmul.mubr.bf16.gmra.mrb[0].mxu0 %v6040
      %v6400 = vpop.f32.mrb[0].mxu0
      %v6401 = vadd.f32 %v6235, %v6400
      %v6402 = vpop.f32.mrb[0].mxu0
      %v6403 = vpop.f32.mrb[0].mxu0
      %v6404 = vadd.f32 %v6237, %v6403
      %v6405 = vpop.f32.mrb[0].mxu0
      %6406 = vmatprep.mubr.bf16.mxu0 %v6043
      %6407 = vmatmul.mubr.bf16.gmra.mrb[0].mxu0 %v6042
      %v6408 = vpop.f32.mrb[0].mxu0
      %v6409 = vadd.f32 %v6239, %v6408
      %v6410 = vpop.f32.mrb[0].mxu0
      %v6411 = vpop.f32.mrb[0].mxu0
      %v6412 = vadd.f32 %v6241, %v6411
      %v6413 = vpop.f32.mrb[0].mxu0
      %6414 = vmatprep.mubr.bf16.mxu0 %v6045
      %6415 = vmatmul.mubr.bf16.gmra.mrb[0].mxu0 %v6044
      %v6416 = vpop.f32.mrb[0].mxu0
      %v6417 = vadd.f32 %v6243, %v6416
      %v6418 = vpop.f32.mrb[0].mxu0
      %v6419 = vpop.f32.mrb[0].mxu0
      %v6420 = vadd.f32 %v6245, %v6419
      %v6421 = vpop.f32.mrb[0].mxu0
      %6422 = vmatprep.mubr.bf16.mxu0 %v6047
      %6423 = vmatmul.mubr.bf16.gmra.mrb[0].mxu0 %v6046
      %v6424 = vpop.f32.mrb[0].mxu0
      %v6425 = vadd.f32 %v6247, %v6424
      %v6426 = vpop.f32.mrb[0].mxu0
      %v6427 = vpop.f32.mrb[0].mxu0
      %v6428 = vadd.f32 %v6249, %v6427
      %v6429 = vpop.f32.mrb[0].mxu0
      %6430 = vmatprep.mubr.bf16.mxu0 %v6049
      %6431 = vmatmul.mubr.bf16.gmra.mrb[0].mxu0 %v6048
      %v6432 = vpop.f32.mrb[0].mxu0
      %v6433 = vadd.f32 %v6251, %v6432
      %v6434 = vpop.f32.mrb[0].mxu0
      %v6435 = vpop.f32.mrb[0].mxu0
      %v6436 = vadd.f32 %v6253, %v6435
      %v6437 = vpop.f32.mrb[0].mxu0
      %6438 = vmatprep.mubr.bf16.mxu0 %v6051
      %6439 = vmatmul.mubr.bf16.gmra.mrb[0].mxu0 %v6050
      %v6440 = vpop.f32.mrb[0].mxu0
      %v6441 = vadd.f32 %v6255, %v6440
      %v6442 = vpop.f32.mrb[0].mxu0
      %v6443 = vpop.f32.mrb[0].mxu0
      %v6444 = vadd.f32 %v6257, %v6443
      %v6445 = vpop.f32.mrb[0].mxu0
      %6446 = vmatprep.mubr.bf16.mxu0 %v6053
      %6447 = vmatmul.mubr.bf16.gmra.mrb[0].mxu0 %v6052
      %v6448 = vpop.f32.mrb[0].mxu0
      %v6449 = vadd.f32 %v6259, %v6448
      %v6450 = vpop.f32.mrb[0].mxu0
      %v6451 = vpop.f32.mrb[0].mxu0
      %v6452 = vadd.f32 %v6261, %v6451
      %v6453 = vpop.f32.mrb[0].mxu0
      %6454 = vdwg.mxu0
      %6455 = vst.msk [vmem:[#allocation3] sm:$0xff] %vm928, 0
      %6456 = vst.msk [vmem:[#allocation3 + $0x8] sm:$0xff] %vm928, 0
      %6457 = vst.msk [vmem:[#allocation3 + $0x90] sm:$0xff] %vm928, 0
      %6458 = vst.msk [vmem:[#allocation3 + $0x98] sm:$0xff] %vm928, 0
      %v6459 = vpack.c.bf16 %v5863, %v5862
      %v6460 = vpack.c.bf16 %v5865, %v5864
      %v6461 = vpack.c.bf16 %v5867, %v5866
      %v6462 = vpack.c.bf16 %v5869, %v5868
      %v6463 = vpack.c.bf16 %v5871, %v5870
      %v6464 = vpack.c.bf16 %v5873, %v5872
      %v6465 = vpack.c.bf16 %v5875, %v5874
      %v6466 = vpack.c.bf16 %v5877, %v5876
      %v6467 = vpack.c.bf16 %v5879, %v5878
      %v6468 = vpack.c.bf16 %v5881, %v5880
      %v6469 = vpack.c.bf16 %v5883, %v5882
      %v6470 = vpack.c.bf16 %v5885, %v5884
      %v6471 = vpack.c.bf16 %v5887, %v5886
      %v6472 = vpack.c.bf16 %v5889, %v5888
      %v6473 = vpack.c.bf16 %v5891, %v5890
      %v6474 = vpack.c.bf16 %v5893, %v5892
      %6475 = vst.msk [vmem:[#allocation3 + $0x10] sm:$0xff] %vm4851, %v6459
      %6476 = vst.msk [vmem:[#allocation3 + $0x18] sm:$0xff] %vm4851, %v6460
      %6477 = vst.msk [vmem:[#allocation3 + $0x20] sm:$0xff] %vm4851, %v6461
      %6478 = vst.msk [vmem:[#allocation3 + $0x28] sm:$0xff] %vm4851, %v6462
      %6479 = vst.msk [vmem:[#allocation3 + $0x30] sm:$0xff] %vm4851, %v6463
      %6480 = vst.msk [vmem:[#allocation3 + $0x38] sm:$0xff] %vm4851, %v6464
      %6481 = vst.msk [vmem:[#allocation3 + $0x40] sm:$0xff] %vm4851, %v6465
      %6482 = vst.msk [vmem:[#allocation3 + $0x48] sm:$0xff] %vm4851, %v6466
      %6483 = vst.msk [vmem:[#allocation3 + $0x50] sm:$0xff] %vm4851, %v6467
      %6484 = vst.msk [vmem:[#allocation3 + $0x58] sm:$0xff] %vm4851, %v6468
      %6485 = vst.msk [vmem:[#allocation3 + $0x60] sm:$0xff] %vm4851, %v6469
      %6486 = vst.msk [vmem:[#allocation3 + $0x68] sm:$0xff] %vm4851, %v6470
      %6487 = vst.msk [vmem:[#allocation3 + $0x70] sm:$0xff] %vm4851, %v6471
      %6488 = vst.msk [vmem:[#allocation3 + $0x78] sm:$0xff] %vm4851, %v6472
      %6489 = vst.msk [vmem:[#allocation3 + $0x80] sm:$0xff] %vm4851, %v6473
      %6490 = vst.msk [vmem:[#allocation3 + $0x88] sm:$0xff] %vm4851, %v6474
      %v6491 = vpack.c.bf16 %v6332, %v6329
      %v6492 = vpack.c.bf16 %v6340, %v6337
      %v6493 = vpack.c.bf16 %v6348, %v6345
      %v6494 = vpack.c.bf16 %v6356, %v6353
      %v6495 = vpack.c.bf16 %v6364, %v6361
      %v6496 = vpack.c.bf16 %v6372, %v6369
      %v6497 = vpack.c.bf16 %v6380, %v6377
      %v6498 = vpack.c.bf16 %v6388, %v6385
      %v6499 = vpack.c.bf16 %v6396, %v6393
      %v6500 = vpack.c.bf16 %v6404, %v6401
      %v6501 = vpack.c.bf16 %v6412, %v6409
      %v6502 = vpack.c.bf16 %v6420, %v6417
      %v6503 = vpack.c.bf16 %v6428, %v6425
      %v6504 = vpack.c.bf16 %v6436, %v6433
      %v6505 = vpack.c.bf16 %v6444, %v6441
      %v6506 = vpack.c.bf16 %v6452, %v6449
      %6523 = vrot.lane.b32.xlu0 %v6491, 32
      %v6524 = vpop.permute.xlu0 %6523
      %6525 = vrot.lane.b32.xlu0 %v6492, 32
      %v6526 = vpop.permute.xlu0 %6525
      %6527 = vrot.lane.b32.xlu0 %v6493, 32
      %v6528 = vpop.permute.xlu0 %6527
      %6529 = vrot.lane.b32.xlu0 %v6494, 32
      %v6530 = vpop.permute.xlu0 %6529
      %6531 = vrot.lane.b32.xlu0 %v6495, 32
      %v6532 = vpop.permute.xlu0 %6531
      %6533 = vrot.lane.b32.xlu0 %v6496, 32
      %v6534 = vpop.permute.xlu0 %6533
      %6535 = vrot.lane.b32.xlu0 %v6497, 32
      %v6536 = vpop.permute.xlu0 %6535
      %6537 = vrot.lane.b32.xlu0 %v6498, 32
      %v6538 = vpop.permute.xlu0 %6537
      %6539 = vrot.lane.b32.xlu0 %v6499, 32
      %v6540 = vpop.permute.xlu0 %6539
      %6541 = vrot.lane.b32.xlu0 %v6500, 32
      %v6542 = vpop.permute.xlu0 %6541
      %6543 = vrot.lane.b32.xlu0 %v6501, 32
      %v6544 = vpop.permute.xlu0 %6543
      %6545 = vrot.lane.b32.xlu0 %v6502, 32
      %v6546 = vpop.permute.xlu0 %6545
      %6547 = vrot.lane.b32.xlu0 %v6503, 32
      %v6548 = vpop.permute.xlu0 %6547
      %6549 = vrot.lane.b32.xlu0 %v6504, 32
      %v6550 = vpop.permute.xlu0 %6549
      %6551 = vrot.lane.b32.xlu0 %v6505, 32
      %v6552 = vpop.permute.xlu0 %6551
      %6553 = vrot.lane.b32.xlu0 %v6506, 32
      %v6554 = vpop.permute.xlu0 %6553
      %vm6571 = vcmask 523520
      %6572 = vst.msk [vmem:[#allocation3 + $0x10] sm:$0xff] %vm6571, %v6524
      %6573 = vst.msk [vmem:[#allocation3 + $0x18] sm:$0xff] %vm6571, %v6526
      %6574 = vst.msk [vmem:[#allocation3 + $0x20] sm:$0xff] %vm6571, %v6528
      %6575 = vst.msk [vmem:[#allocation3 + $0x28] sm:$0xff] %vm6571, %v6530
      %6576 = vst.msk [vmem:[#allocation3 + $0x30] sm:$0xff] %vm6571, %v6532
      %6577 = vst.msk [vmem:[#allocation3 + $0x38] sm:$0xff] %vm6571, %v6534
      %6578 = vst.msk [vmem:[#allocation3 + $0x40] sm:$0xff] %vm6571, %v6536
      %6579 = vst.msk [vmem:[#allocation3 + $0x48] sm:$0xff] %vm6571, %v6538
      %6580 = vst.msk [vmem:[#allocation3 + $0x50] sm:$0xff] %vm6571, %v6540
      %6581 = vst.msk [vmem:[#allocation3 + $0x58] sm:$0xff] %vm6571, %v6542
      %6582 = vst.msk [vmem:[#allocation3 + $0x60] sm:$0xff] %vm6571, %v6544
      %6583 = vst.msk [vmem:[#allocation3 + $0x68] sm:$0xff] %vm6571, %v6546
      %6584 = vst.msk [vmem:[#allocation3 + $0x70] sm:$0xff] %vm6571, %v6548
      %6585 = vst.msk [vmem:[#allocation3 + $0x78] sm:$0xff] %vm6571, %v6550
      %6586 = vst.msk [vmem:[#allocation3 + $0x80] sm:$0xff] %vm6571, %v6552
      %6587 = vst.msk [vmem:[#allocation3 + $0x88] sm:$0xff] %vm6571, %v6554
      %v6588 = vld [vmem:[#allocation3] sm:$0x80]
      %v6589 = vld [vmem:[#allocation3 + $0x8] sm:$0xff]
      %v6590 = vld [vmem:[#allocation3 + $0x10] sm:$0xff]
      %v6591 = vld [vmem:[#allocation3 + $0x18] sm:$0xff]
      %v6592 = vld [vmem:[#allocation3 + $0x20] sm:$0xff]
      %v6593 = vld [vmem:[#allocation3 + $0x28] sm:$0xff]
      %v6594 = vld [vmem:[#allocation3 + $0x30] sm:$0xff]
      %v6595 = vld [vmem:[#allocation3 + $0x38] sm:$0xff]
      %v6596 = vld [vmem:[#allocation3 + $0x40] sm:$0xff]
      %v6597 = vld [vmem:[#allocation3 + $0x48] sm:$0xff]
      %v6598 = vld [vmem:[#allocation3 + $0x50] sm:$0xff]
      %v6599 = vld [vmem:[#allocation3 + $0x58] sm:$0xff]
      %v6600 = vld [vmem:[#allocation3 + $0x60] sm:$0xff]
      %v6601 = vld [vmem:[#allocation3 + $0x68] sm:$0xff]
      %v6602 = vld [vmem:[#allocation3 + $0x70] sm:$0xff]
      %v6603 = vld [vmem:[#allocation3 + $0x78] sm:$0xff]
      %v6604 = vld [vmem:[#allocation3 + $0x80] sm:$0xff]
      %v6605 = vsel %vm768, 65537, 0
      %v6606 = vsel %vm769, 65537, 0
      %v6607 = vsel %vm770, 65537, 0
      %v6608 = vsel %vm771, 65537, 0
      %v6609 = vsel %vm772, 65537, 0
      %v6610 = vsel %vm773, 65537, 0
      %v6611 = vsel %vm774, 65537, 0
      %v6612 = vsel %vm775, 65537, 0
      %v6613 = vsel %vm776, 65537, 0
      %v6614 = vsel %vm777, 65537, 0
      %v6615 = vsel %vm778, 65537, 0
      %v6616 = vsel %vm779, 65537, 0
      %v6617 = vsel %vm780, 65537, 0
      %v6618 = vsel %vm781, 65537, 0
      %v6619 = vsel %vm782, 65537, 0
      %v6620 = vsel %vm783, 65537, 0
      %v6621 = vsel %vm784, 65537, 0
      %v6622 = vsel %vm785, 65537, 0
      %v6623 = vsel %vm786, 65537, 0
      %v6624 = vsel %vm787, 65537, 0
      %v6625 = vsel %vm788, 65537, 0
      %v6626 = vsel %vm789, 65537, 0
      %v6627 = vsel %vm790, 65537, 0
      %v6628 = vsel %vm791, 65537, 0
      %v6629 = vsel %vm792, 65537, 0
      %v6630 = vsel %vm793, 65537, 0
      %v6631 = vsel %vm794, 65537, 0
      %v6632 = vsel %vm795, 65537, 0
      %v6633 = vsel %vm796, 65537, 0
      %v6634 = vsel %vm797, 65537, 0
      %v6635 = vsel %vm798, 65537, 0
      %v6636 = vsel %vm799, 65537, 0
      %v6637 = vunpack.c.l.b16 %v6605
      %v6638 = vunpack.c.l.b16 %v6606
      %v6639 = vunpack.c.l.b16 %v6607
      %v6640 = vunpack.c.l.b16 %v6608
      %v6641 = vunpack.c.l.b16 %v6609
      %v6642 = vunpack.c.l.b16 %v6610
      %v6643 = vunpack.c.l.b16 %v6611
      %v6644 = vunpack.c.l.b16 %v6612
      %v6645 = vunpack.c.l.b16 %v6613
      %v6646 = vunpack.c.l.b16 %v6614
      %v6647 = vunpack.c.l.b16 %v6615
      %v6648 = vunpack.c.l.b16 %v6616
      %v6649 = vunpack.c.l.b16 %v6617
      %v6650 = vunpack.c.l.b16 %v6618
      %v6651 = vunpack.c.l.b16 %v6619
      %v6652 = vunpack.c.l.b16 %v6620
      %v6653 = vunpack.c.l.b16 %v6621
      %v6654 = vunpack.c.l.b16 %v6622
      %v6655 = vunpack.c.l.b16 %v6623
      %v6656 = vunpack.c.l.b16 %v6624
      %v6657 = vunpack.c.l.b16 %v6625
      %v6658 = vunpack.c.l.b16 %v6626
      %v6659 = vunpack.c.l.b16 %v6627
      %v6660 = vunpack.c.l.b16 %v6628
      %v6661 = vunpack.c.l.b16 %v6629
      %v6662 = vunpack.c.l.b16 %v6630
      %v6663 = vunpack.c.l.b16 %v6631
      %v6664 = vunpack.c.l.b16 %v6632
      %v6665 = vunpack.c.l.b16 %v6633
      %v6666 = vunpack.c.l.b16 %v6634
      %v6667 = vunpack.c.l.b16 %v6635
      %v6668 = vunpack.c.l.b16 %v6636
      %v6669 = vpack.c.b16 %v6638, %v6637
      %v6670 = vpack.c.b16 %v6640, %v6639
      %v6671 = vpack.c.b16 %v6642, %v6641
      %v6672 = vpack.c.b16 %v6644, %v6643
      %v6673 = vpack.c.b16 %v6646, %v6645
      %v6674 = vpack.c.b16 %v6648, %v6647
      %v6675 = vpack.c.b16 %v6650, %v6649
      %v6676 = vpack.c.b16 %v6652, %v6651
      %v6677 = vpack.c.b16 %v6654, %v6653
      %v6678 = vpack.c.b16 %v6656, %v6655
      %v6679 = vpack.c.b16 %v6658, %v6657
      %v6680 = vpack.c.b16 %v6660, %v6659
      %v6681 = vpack.c.b16 %v6662, %v6661
      %v6682 = vpack.c.b16 %v6664, %v6663
      %v6683 = vpack.c.b16 %v6666, %v6665
      %v6684 = vpack.c.b16 %v6668, %v6667
      %v6686 = vshll.u32 %v6669, 16
      %v6688 = vrot.slane %v6686, 1
      %v6689 = vshrl.u32 %v6669, 16
      %v6691 = vor.u32 %v6689, %v6688
      %v6693 = vshll.u32 %v6670, 16
      %v6695 = vrot.slane %v6693, 1
      %v6696 = vsel %vm1061, %v6691, %v6695
      %v6697 = vshrl.u32 %v6670, 16
      %v6699 = vor.u32 %v6697, %v6695
      %v6701 = vshll.u32 %v6671, 16
      %v6703 = vrot.slane %v6701, 1
      %v6704 = vsel %vm1061, %v6699, %v6703
      %v6705 = vshrl.u32 %v6671, 16
      %v6707 = vor.u32 %v6705, %v6703
      %v6709 = vshll.u32 %v6672, 16
      %v6711 = vrot.slane %v6709, 1
      %v6712 = vsel %vm1061, %v6707, %v6711
      %v6713 = vshrl.u32 %v6672, 16
      %v6715 = vor.u32 %v6713, %v6711
      %v6717 = vshll.u32 %v6673, 16
      %v6719 = vrot.slane %v6717, 1
      %v6720 = vsel %vm1061, %v6715, %v6719
      %v6721 = vshrl.u32 %v6673, 16
      %v6723 = vor.u32 %v6721, %v6719
      %v6725 = vshll.u32 %v6674, 16
      %v6727 = vrot.slane %v6725, 1
      %v6728 = vsel %vm1061, %v6723, %v6727
      %v6729 = vshrl.u32 %v6674, 16
      %v6731 = vor.u32 %v6729, %v6727
      %v6733 = vshll.u32 %v6675, 16
      %v6735 = vrot.slane %v6733, 1
      %v6736 = vsel %vm1061, %v6731, %v6735
      %v6737 = vshrl.u32 %v6675, 16
      %v6739 = vor.u32 %v6737, %v6735
      %v6741 = vshll.u32 %v6676, 16
      %v6743 = vrot.slane %v6741, 1
      %v6744 = vsel %vm1061, %v6739, %v6743
      %v6745 = vshrl.u32 %v6676, 16
      %v6747 = vor.u32 %v6745, %v6743
      %v6749 = vshll.u32 %v6677, 16
      %v6751 = vrot.slane %v6749, 1
      %v6752 = vsel %vm1061, %v6747, %v6751
      %v6753 = vshrl.u32 %v6677, 16
      %v6755 = vor.u32 %v6753, %v6751
      %v6757 = vshll.u32 %v6678, 16
      %v6759 = vrot.slane %v6757, 1
      %v6760 = vsel %vm1061, %v6755, %v6759
      %v6761 = vshrl.u32 %v6678, 16
      %v6763 = vor.u32 %v6761, %v6759
      %v6765 = vshll.u32 %v6679, 16
      %v6767 = vrot.slane %v6765, 1
      %v6768 = vsel %vm1061, %v6763, %v6767
      %v6769 = vshrl.u32 %v6679, 16
      %v6771 = vor.u32 %v6769, %v6767
      %v6773 = vshll.u32 %v6680, 16
      %v6775 = vrot.slane %v6773, 1
      %v6776 = vsel %vm1061, %v6771, %v6775
      %v6777 = vshrl.u32 %v6680, 16
      %v6779 = vor.u32 %v6777, %v6775
      %v6781 = vshll.u32 %v6681, 16
      %v6783 = vrot.slane %v6781, 1
      %v6784 = vsel %vm1061, %v6779, %v6783
      %v6785 = vshrl.u32 %v6681, 16
      %v6787 = vor.u32 %v6785, %v6783
      %v6789 = vshll.u32 %v6682, 16
      %v6791 = vrot.slane %v6789, 1
      %v6792 = vsel %vm1061, %v6787, %v6791
      %v6793 = vshrl.u32 %v6682, 16
      %v6795 = vor.u32 %v6793, %v6791
      %v6797 = vshll.u32 %v6683, 16
      %v6799 = vrot.slane %v6797, 1
      %v6800 = vsel %vm1061, %v6795, %v6799
      %v6801 = vshrl.u32 %v6683, 16
      %v6803 = vor.u32 %v6801, %v6799
      %v6805 = vshll.u32 %v6684, 16
      %v6807 = vrot.slane %v6805, 1
      %v6808 = vsel %vm1061, %v6803, %v6807
      %v6809 = vshrl.u32 %v6684, 16
      %v6811 = vor.u32 %v6809, %v6807
      %vm6812 = vcmp.ne.s16.totalorder %v6688, 0
      %vm6813 = vcmp.ne.s16.totalorder %v6696, 0
      %vm6814 = vcmp.ne.s16.totalorder %v6704, 0
      %vm6815 = vcmp.ne.s16.totalorder %v6712, 0
      %vm6816 = vcmp.ne.s16.totalorder %v6720, 0
      %vm6817 = vcmp.ne.s16.totalorder %v6728, 0
      %vm6818 = vcmp.ne.s16.totalorder %v6736, 0
      %vm6819 = vcmp.ne.s16.totalorder %v6744, 0
      %vm6820 = vcmp.ne.s16.totalorder %v6752, 0
      %vm6821 = vcmp.ne.s16.totalorder %v6760, 0
      %vm6822 = vcmp.ne.s16.totalorder %v6768, 0
      %vm6823 = vcmp.ne.s16.totalorder %v6776, 0
      %vm6824 = vcmp.ne.s16.totalorder %v6784, 0
      %vm6825 = vcmp.ne.s16.totalorder %v6792, 0
      %vm6826 = vcmp.ne.s16.totalorder %v6800, 0
      %vm6827 = vcmp.ne.s16.totalorder %v6808, 0
      %vm6828 = vcmp.ne.s16.totalorder %v6811, 0
      %v6829 = vsel %vm6812, %v6588, 0
      %v6830 = vsel %vm6813, %v6589, 0
      %v6831 = vsel %vm6814, %v6590, 0
      %v6832 = vsel %vm6815, %v6591, 0
      %v6833 = vsel %vm6816, %v6592, 0
      %v6834 = vsel %vm6817, %v6593, 0
      %v6835 = vsel %vm6818, %v6594, 0
      %v6836 = vsel %vm6819, %v6595, 0
      %v6837 = vsel %vm6820, %v6596, 0
      %v6838 = vsel %vm6821, %v6597, 0
      %v6839 = vsel %vm6822, %v6598, 0
      %v6840 = vsel %vm6823, %v6599, 0
      %v6841 = vsel %vm6824, %v6600, 0
      %v6842 = vsel %vm6825, %v6601, 0
      %v6843 = vsel %vm6826, %v6602, 0
      %v6844 = vsel %vm6827, %v6603, 0
      %v6845 = vsel %vm6828, %v6604, 0
      %vm6846 = vsmask.f32 256
      %v6848 = vshrl.u32 %v6829, 16
      %v6850 = vrot.slane %v6848, 7
      %v6852 = vshrl.u32 %v6830, 16
      %v6854 = vrot.slane %v6852, 7
      %v6855 = vshll.u32 %v6830, 16
      %v6857 = vor.u32 %v6854, %v6855
      %v6858 = vsel %vm6846, %v6850, %v6857
      %v6860 = vshrl.u32 %v6831, 16
      %v6862 = vrot.slane %v6860, 7
      %v6863 = vshll.u32 %v6831, 16
      %v6865 = vor.u32 %v6862, %v6863
      %v6866 = vsel %vm6846, %v6854, %v6865
      %v6868 = vshrl.u32 %v6832, 16
      %v6870 = vrot.slane %v6868, 7
      %v6871 = vshll.u32 %v6832, 16
      %v6873 = vor.u32 %v6870, %v6871
      %v6874 = vsel %vm6846, %v6862, %v6873
      %v6876 = vshrl.u32 %v6833, 16
      %v6878 = vrot.slane %v6876, 7
      %v6879 = vshll.u32 %v6833, 16
      %v6881 = vor.u32 %v6878, %v6879
      %v6882 = vsel %vm6846, %v6870, %v6881
      %v6884 = vshrl.u32 %v6834, 16
      %v6886 = vrot.slane %v6884, 7
      %v6887 = vshll.u32 %v6834, 16
      %v6889 = vor.u32 %v6886, %v6887
      %v6890 = vsel %vm6846, %v6878, %v6889
      %v6892 = vshrl.u32 %v6835, 16
      %v6894 = vrot.slane %v6892, 7
      %v6895 = vshll.u32 %v6835, 16
      %v6897 = vor.u32 %v6894, %v6895
      %v6898 = vsel %vm6846, %v6886, %v6897
      %v6900 = vshrl.u32 %v6836, 16
      %v6902 = vrot.slane %v6900, 7
      %v6903 = vshll.u32 %v6836, 16
      %v6905 = vor.u32 %v6902, %v6903
      %v6906 = vsel %vm6846, %v6894, %v6905
      %v6908 = vshrl.u32 %v6837, 16
      %v6910 = vrot.slane %v6908, 7
      %v6911 = vshll.u32 %v6837, 16
      %v6913 = vor.u32 %v6910, %v6911
      %v6914 = vsel %vm6846, %v6902, %v6913
      %v6916 = vshrl.u32 %v6838, 16
      %v6918 = vrot.slane %v6916, 7
      %v6919 = vshll.u32 %v6838, 16
      %v6921 = vor.u32 %v6918, %v6919
      %v6922 = vsel %vm6846, %v6910, %v6921
      %v6924 = vshrl.u32 %v6839, 16
      %v6926 = vrot.slane %v6924, 7
      %v6927 = vshll.u32 %v6839, 16
      %v6929 = vor.u32 %v6926, %v6927
      %v6930 = vsel %vm6846, %v6918, %v6929
      %v6932 = vshrl.u32 %v6840, 16
      %v6934 = vrot.slane %v6932, 7
      %v6935 = vshll.u32 %v6840, 16
      %v6937 = vor.u32 %v6934, %v6935
      %v6938 = vsel %vm6846, %v6926, %v6937
      %v6940 = vshrl.u32 %v6841, 16
      %v6942 = vrot.slane %v6940, 7
      %v6943 = vshll.u32 %v6841, 16
      %v6945 = vor.u32 %v6942, %v6943
      %v6946 = vsel %vm6846, %v6934, %v6945
      %v6948 = vshrl.u32 %v6842, 16
      %v6950 = vrot.slane %v6948, 7
      %v6951 = vshll.u32 %v6842, 16
      %v6953 = vor.u32 %v6950, %v6951
      %v6954 = vsel %vm6846, %v6942, %v6953
      %v6956 = vshrl.u32 %v6843, 16
      %v6958 = vrot.slane %v6956, 7
      %v6959 = vshll.u32 %v6843, 16
      %v6961 = vor.u32 %v6958, %v6959
      %v6962 = vsel %vm6846, %v6950, %v6961
      %v6964 = vshrl.u32 %v6844, 16
      %v6966 = vrot.slane %v6964, 7
      %v6967 = vshll.u32 %v6844, 16
      %v6969 = vor.u32 %v6966, %v6967
      %v6970 = vsel %vm6846, %v6958, %v6969
      %v6972 = vshrl.u32 %v6845, 16
      %v6974 = vrot.slane %v6972, 7
      %v6975 = vshll.u32 %v6845, 16
      %v6977 = vor.u32 %v6974, %v6975
      %v6978 = vsel %vm6846, %v6966, %v6977
      %6995 = vst.msk [vmem:[#allocation2] sm:$0xff] %vm928, %v6858
      %6996 = vst.msk [vmem:[#allocation2 + $0x28] sm:$0xff] %vm928, %v6866
      %6997 = vst.msk [vmem:[#allocation2 + $0x50] sm:$0xff] %vm928, %v6874
      %6998 = vst.msk [vmem:[#allocation2 + $0x78] sm:$0xff] %vm928, %v6882
      %6999 = vst.msk [vmem:[#allocation2 + $0xa0] sm:$0xff] %vm928, %v6890
      %7000 = vst.msk [vmem:[#allocation2 + $0xc8] sm:$0xff] %vm928, %v6898
      %7001 = vst.msk [vmem:[#allocation2 + $0xf0] sm:$0xff] %vm928, %v6906
      %7002 = vst.msk [vmem:[#allocation2 + $0x118] sm:$0xff] %vm928, %v6914
      %7003 = vst.msk [vmem:[#allocation2 + $0x140] sm:$0xff] %vm928, %v6922
      %7004 = vst.msk [vmem:[#allocation2 + $0x168] sm:$0xff] %vm928, %v6930
      %7005 = vst.msk [vmem:[#allocation2 + $0x190] sm:$0xff] %vm928, %v6938
      %7006 = vst.msk [vmem:[#allocation2 + $0x1b8] sm:$0xff] %vm928, %v6946
      %7007 = vst.msk [vmem:[#allocation2 + $0x1e0] sm:$0xff] %vm928, %v6954
      %7008 = vst.msk [vmem:[#allocation2 + $0x208] sm:$0xff] %vm928, %v6962
      %7009 = vst.msk [vmem:[#allocation2 + $0x230] sm:$0xff] %vm928, %v6970
      %7010 = vst.msk [vmem:[#allocation2 + $0x258] sm:$0xff] %vm928, %v6978
      %v7011 = vld [vmem:[#allocation3 + $0x8] sm:$0xff]
      %v7012 = vld [vmem:[#allocation3 + $0x10] sm:$0xff]
      %v7013 = vld [vmem:[#allocation3 + $0x18] sm:$0xff]
      %v7014 = vld [vmem:[#allocation3 + $0x20] sm:$0xff]
      %v7015 = vld [vmem:[#allocation3 + $0x28] sm:$0xff]
      %v7016 = vld [vmem:[#allocation3 + $0x30] sm:$0xff]
      %v7017 = vld [vmem:[#allocation3 + $0x38] sm:$0xff]
      %v7018 = vld [vmem:[#allocation3 + $0x40] sm:$0xff]
      %v7019 = vld [vmem:[#allocation3 + $0x48] sm:$0xff]
      %v7020 = vld [vmem:[#allocation3 + $0x50] sm:$0xff]
      %v7021 = vld [vmem:[#allocation3 + $0x58] sm:$0xff]
      %v7022 = vld [vmem:[#allocation3 + $0x60] sm:$0xff]
      %v7023 = vld [vmem:[#allocation3 + $0x68] sm:$0xff]
      %v7024 = vld [vmem:[#allocation3 + $0x70] sm:$0xff]
      %v7025 = vld [vmem:[#allocation3 + $0x78] sm:$0xff]
      %v7026 = vld [vmem:[#allocation3 + $0x80] sm:$0xff]
      %7043 = vrot.lane.b32.xlu0 %v7011, 64
      %v7044 = vpop.permute.xlu0 %7043
      %7045 = vrot.lane.b32.xlu0 %v7012, 64
      %v7046 = vpop.permute.xlu0 %7045
      %7047 = vrot.lane.b32.xlu0 %v7013, 64
      %v7048 = vpop.permute.xlu0 %7047
      %7049 = vrot.lane.b32.xlu0 %v7014, 64
      %v7050 = vpop.permute.xlu0 %7049
      %7051 = vrot.lane.b32.xlu0 %v7015, 64
      %v7052 = vpop.permute.xlu0 %7051
      %7053 = vrot.lane.b32.xlu0 %v7016, 64
      %v7054 = vpop.permute.xlu0 %7053
      %7055 = vrot.lane.b32.xlu0 %v7017, 64
      %v7056 = vpop.permute.xlu0 %7055
      %7057 = vrot.lane.b32.xlu0 %v7018, 64
      %v7058 = vpop.permute.xlu0 %7057
      %7059 = vrot.lane.b32.xlu0 %v7019, 64
      %v7060 = vpop.permute.xlu0 %7059
      %7061 = vrot.lane.b32.xlu0 %v7020, 64
      %v7062 = vpop.permute.xlu0 %7061
      %7063 = vrot.lane.b32.xlu0 %v7021, 64
      %v7064 = vpop.permute.xlu0 %7063
      %7065 = vrot.lane.b32.xlu0 %v7022, 64
      %v7066 = vpop.permute.xlu0 %7065
      %7067 = vrot.lane.b32.xlu0 %v7023, 64
      %v7068 = vpop.permute.xlu0 %7067
      %7069 = vrot.lane.b32.xlu0 %v7024, 64
      %v7070 = vpop.permute.xlu0 %7069
      %7071 = vrot.lane.b32.xlu0 %v7025, 64
      %v7072 = vpop.permute.xlu0 %7071
      %7073 = vrot.lane.b32.xlu0 %v7026, 64
      %v7074 = vpop.permute.xlu0 %7073
      %7091 = vst.msk [vmem:[#allocation2] sm:$0xff] %vm1242, %v7044
      %7092 = vst.msk [vmem:[#allocation2 + $0x28] sm:$0xff] %vm1242, %v7046
      %7093 = vst.msk [vmem:[#allocation2 + $0x50] sm:$0xff] %vm1242, %v7048
      %7094 = vst.msk [vmem:[#allocation2 + $0x78] sm:$0xff] %vm1242, %v7050
      %7095 = vst.msk [vmem:[#allocation2 + $0xa0] sm:$0xff] %vm1242, %v7052
      %7096 = vst.msk [vmem:[#allocation2 + $0xc8] sm:$0xff] %vm1242, %v7054
      %7097 = vst.msk [vmem:[#allocation2 + $0xf0] sm:$0xff] %vm1242, %v7056
      %7098 = vst.msk [vmem:[#allocation2 + $0x118] sm:$0xff] %vm1242, %v7058
      %7099 = vst.msk [vmem:[#allocation2 + $0x140] sm:$0xff] %vm1242, %v7060
      %7100 = vst.msk [vmem:[#allocation2 + $0x168] sm:$0xff] %vm1242, %v7062
      %7101 = vst.msk [vmem:[#allocation2 + $0x190] sm:$0xff] %vm1242, %v7064
      %7102 = vst.msk [vmem:[#allocation2 + $0x1b8] sm:$0xff] %vm1242, %v7066
      %7103 = vst.msk [vmem:[#allocation2 + $0x1e0] sm:$0xff] %vm1242, %v7068
      %7104 = vst.msk [vmem:[#allocation2 + $0x208] sm:$0xff] %vm1242, %v7070
      %7105 = vst.msk [vmem:[#allocation2 + $0x230] sm:$0xff] %vm1242, %v7072
      %7106 = vst.msk [vmem:[#allocation2 + $0x258] sm:$0xff] %vm1242, %v7074
      %v7107 = vld [vmem:[#allocation3 + $0x8] sm:$0xff]
      %v7108 = vld [vmem:[#allocation3 + $0x10] sm:$0xff]
      %v7109 = vld [vmem:[#allocation3 + $0x18] sm:$0xff]
      %v7110 = vld [vmem:[#allocation3 + $0x20] sm:$0xff]
      %v7111 = vld [vmem:[#allocation3 + $0x28] sm:$0xff]
      %v7112 = vld [vmem:[#allocation3 + $0x30] sm:$0xff]
      %v7113 = vld [vmem:[#allocation3 + $0x38] sm:$0xff]
      %v7114 = vld [vmem:[#allocation3 + $0x40] sm:$0xff]
      %v7115 = vld [vmem:[#allocation3 + $0x48] sm:$0xff]
      %v7116 = vld [vmem:[#allocation3 + $0x50] sm:$0xff]
      %v7117 = vld [vmem:[#allocation3 + $0x58] sm:$0xff]
      %v7118 = vld [vmem:[#allocation3 + $0x60] sm:$0xff]
      %v7119 = vld [vmem:[#allocation3 + $0x68] sm:$0xff]
      %v7120 = vld [vmem:[#allocation3 + $0x70] sm:$0xff]
      %v7121 = vld [vmem:[#allocation3 + $0x78] sm:$0xff]
      %v7122 = vld [vmem:[#allocation3 + $0x80] sm:$0xff]
      %v7123 = vld [vmem:[#allocation3 + $0x88] sm:$0x1]
      %v7124 = vunpack.c.l.b16 %v1324
      %v7125 = vunpack.c.l.b16 %v1325
      %v7126 = vunpack.c.l.b16 %v1326
      %v7127 = vunpack.c.l.b16 %v1327
      %v7128 = vunpack.c.l.b16 %v1328
      %v7129 = vunpack.c.l.b16 %v1329
      %v7130 = vunpack.c.l.b16 %v1330
      %v7131 = vunpack.c.l.b16 %v1331
      %v7132 = vunpack.c.l.b16 %v1332
      %v7133 = vunpack.c.l.b16 %v1333
      %v7134 = vunpack.c.l.b16 %v1334
      %v7135 = vunpack.c.l.b16 %v1335
      %v7136 = vunpack.c.l.b16 %v1336
      %v7137 = vunpack.c.l.b16 %v1337
      %v7138 = vunpack.c.l.b16 %v1338
      %v7139 = vunpack.c.l.b16 %v1339
      %v7140 = vunpack.c.l.b16 %v1340
      %v7141 = vunpack.c.l.b16 %v1341
      %v7142 = vunpack.c.l.b16 %v1342
      %v7143 = vunpack.c.l.b16 %v1343
      %v7144 = vunpack.c.l.b16 %v1344
      %v7145 = vunpack.c.l.b16 %v1345
      %v7146 = vunpack.c.l.b16 %v1346
      %v7147 = vunpack.c.l.b16 %v1347
      %v7148 = vunpack.c.l.b16 %v1348
      %v7149 = vunpack.c.l.b16 %v1349
      %v7150 = vunpack.c.l.b16 %v1350
      %v7151 = vunpack.c.l.b16 %v1351
      %v7152 = vunpack.c.l.b16 %v1352
      %v7153 = vunpack.c.l.b16 %v1353
      %v7154 = vunpack.c.l.b16 %v1354
      %v7155 = vunpack.c.l.b16 %v1355
      %v7156 = vpack.c.b16 %v7125, %v7124
      %v7157 = vpack.c.b16 %v7127, %v7126
      %v7158 = vpack.c.b16 %v7129, %v7128
      %v7159 = vpack.c.b16 %v7131, %v7130
      %v7160 = vpack.c.b16 %v7133, %v7132
      %v7161 = vpack.c.b16 %v7135, %v7134
      %v7162 = vpack.c.b16 %v7137, %v7136
      %v7163 = vpack.c.b16 %v7139, %v7138
      %v7164 = vpack.c.b16 %v7141, %v7140
      %v7165 = vpack.c.b16 %v7143, %v7142
      %v7166 = vpack.c.b16 %v7145, %v7144
      %v7167 = vpack.c.b16 %v7147, %v7146
      %v7168 = vpack.c.b16 %v7149, %v7148
      %v7169 = vpack.c.b16 %v7151, %v7150
      %v7170 = vpack.c.b16 %v7153, %v7152
      %v7171 = vpack.c.b16 %v7155, %v7154
      %v7173 = vshrl.u32 %v7156, 16
      %v7175 = vrot.slane %v7173, 7
      %v7176 = vshll.u32 %v7156, 16
      %v7178 = vor.u32 %v7175, %v7176
      %v7180 = vshrl.u32 %v7157, 16
      %v7182 = vrot.slane %v7180, 7
      %v7183 = vshll.u32 %v7157, 16
      %v7185 = vor.u32 %v7182, %v7183
      %v7186 = vsel %vm6846, %v7175, %v7185
      %v7188 = vshrl.u32 %v7158, 16
      %v7190 = vrot.slane %v7188, 7
      %v7191 = vshll.u32 %v7158, 16
      %v7193 = vor.u32 %v7190, %v7191
      %v7194 = vsel %vm6846, %v7182, %v7193
      %v7196 = vshrl.u32 %v7159, 16
      %v7198 = vrot.slane %v7196, 7
      %v7199 = vshll.u32 %v7159, 16
      %v7201 = vor.u32 %v7198, %v7199
      %v7202 = vsel %vm6846, %v7190, %v7201
      %v7204 = vshrl.u32 %v7160, 16
      %v7206 = vrot.slane %v7204, 7
      %v7207 = vshll.u32 %v7160, 16
      %v7209 = vor.u32 %v7206, %v7207
      %v7210 = vsel %vm6846, %v7198, %v7209
      %v7212 = vshrl.u32 %v7161, 16
      %v7214 = vrot.slane %v7212, 7
      %v7215 = vshll.u32 %v7161, 16
      %v7217 = vor.u32 %v7214, %v7215
      %v7218 = vsel %vm6846, %v7206, %v7217
      %v7220 = vshrl.u32 %v7162, 16
      %v7222 = vrot.slane %v7220, 7
      %v7223 = vshll.u32 %v7162, 16
      %v7225 = vor.u32 %v7222, %v7223
      %v7226 = vsel %vm6846, %v7214, %v7225
      %v7228 = vshrl.u32 %v7163, 16
      %v7230 = vrot.slane %v7228, 7
      %v7231 = vshll.u32 %v7163, 16
      %v7233 = vor.u32 %v7230, %v7231
      %v7234 = vsel %vm6846, %v7222, %v7233
      %v7236 = vshrl.u32 %v7164, 16
      %v7238 = vrot.slane %v7236, 7
      %v7239 = vshll.u32 %v7164, 16
      %v7241 = vor.u32 %v7238, %v7239
      %v7242 = vsel %vm6846, %v7230, %v7241
      %v7244 = vshrl.u32 %v7165, 16
      %v7246 = vrot.slane %v7244, 7
      %v7247 = vshll.u32 %v7165, 16
      %v7249 = vor.u32 %v7246, %v7247
      %v7250 = vsel %vm6846, %v7238, %v7249
      %v7252 = vshrl.u32 %v7166, 16
      %v7254 = vrot.slane %v7252, 7
      %v7255 = vshll.u32 %v7166, 16
      %v7257 = vor.u32 %v7254, %v7255
      %v7258 = vsel %vm6846, %v7246, %v7257
      %v7260 = vshrl.u32 %v7167, 16
      %v7262 = vrot.slane %v7260, 7
      %v7263 = vshll.u32 %v7167, 16
      %v7265 = vor.u32 %v7262, %v7263
      %v7266 = vsel %vm6846, %v7254, %v7265
      %v7268 = vshrl.u32 %v7168, 16
      %v7270 = vrot.slane %v7268, 7
      %v7271 = vshll.u32 %v7168, 16
      %v7273 = vor.u32 %v7270, %v7271
      %v7274 = vsel %vm6846, %v7262, %v7273
      %v7276 = vshrl.u32 %v7169, 16
      %v7278 = vrot.slane %v7276, 7
      %v7279 = vshll.u32 %v7169, 16
      %v7281 = vor.u32 %v7278, %v7279
      %v7282 = vsel %vm6846, %v7270, %v7281
      %v7284 = vshrl.u32 %v7170, 16
      %v7286 = vrot.slane %v7284, 7
      %v7287 = vshll.u32 %v7170, 16
      %v7289 = vor.u32 %v7286, %v7287
      %v7290 = vsel %vm6846, %v7278, %v7289
      %v7292 = vshrl.u32 %v7171, 16
      %v7294 = vrot.slane %v7292, 7
      %v7295 = vshll.u32 %v7171, 16
      %v7297 = vor.u32 %v7294, %v7295
      %v7298 = vsel %vm6846, %v7286, %v7297
      %vm7299 = vcmp.ne.s16.totalorder %v7178, 0
      %vm7300 = vcmp.ne.s16.totalorder %v7186, 0
      %vm7301 = vcmp.ne.s16.totalorder %v7194, 0
      %vm7302 = vcmp.ne.s16.totalorder %v7202, 0
      %vm7303 = vcmp.ne.s16.totalorder %v7210, 0
      %vm7304 = vcmp.ne.s16.totalorder %v7218, 0
      %vm7305 = vcmp.ne.s16.totalorder %v7226, 0
      %vm7306 = vcmp.ne.s16.totalorder %v7234, 0
      %vm7307 = vcmp.ne.s16.totalorder %v7242, 0
      %vm7308 = vcmp.ne.s16.totalorder %v7250, 0
      %vm7309 = vcmp.ne.s16.totalorder %v7258, 0
      %vm7310 = vcmp.ne.s16.totalorder %v7266, 0
      %vm7311 = vcmp.ne.s16.totalorder %v7274, 0
      %vm7312 = vcmp.ne.s16.totalorder %v7282, 0
      %vm7313 = vcmp.ne.s16.totalorder %v7290, 0
      %vm7314 = vcmp.ne.s16.totalorder %v7298, 0
      %vm7315 = vcmp.ne.s16.totalorder %v7294, 0
      %v7316 = vsel %vm7299, %v7107, 0
      %v7317 = vsel %vm7300, %v7108, 0
      %v7318 = vsel %vm7301, %v7109, 0
      %v7319 = vsel %vm7302, %v7110, 0
      %v7320 = vsel %vm7303, %v7111, 0
      %v7321 = vsel %vm7304, %v7112, 0
      %v7322 = vsel %vm7305, %v7113, 0
      %v7323 = vsel %vm7306, %v7114, 0
      %v7324 = vsel %vm7307, %v7115, 0
      %v7325 = vsel %vm7308, %v7116, 0
      %v7326 = vsel %vm7309, %v7117, 0
      %v7327 = vsel %vm7310, %v7118, 0
      %v7328 = vsel %vm7311, %v7119, 0
      %v7329 = vsel %vm7312, %v7120, 0
      %v7330 = vsel %vm7313, %v7121, 0
      %v7331 = vsel %vm7314, %v7122, 0
      %v7332 = vsel %vm7315, %v7123, 0
      %v7334 = vshrl.u32 %v7316, 16
      %v7336 = vshll.u32 %v7316, 16
      %v7338 = vrot.slane %v7336, 1
      %v7339 = vor.u32 %v7334, %v7338
      %v7341 = vshll.u32 %v7317, 16
      %v7343 = vrot.slane %v7341, 1
      %v7344 = vsel %vm1061, %v7339, %v7343
      %v7345 = vshrl.u32 %v7317, 16
      %v7347 = vor.u32 %v7345, %v7343
      %v7349 = vshll.u32 %v7318, 16
      %v7351 = vrot.slane %v7349, 1
      %v7352 = vsel %vm1061, %v7347, %v7351
      %v7353 = vshrl.u32 %v7318, 16
      %v7355 = vor.u32 %v7353, %v7351
      %v7357 = vshll.u32 %v7319, 16
      %v7359 = vrot.slane %v7357, 1
      %v7360 = vsel %vm1061, %v7355, %v7359
      %v7361 = vshrl.u32 %v7319, 16
      %v7363 = vor.u32 %v7361, %v7359
      %v7365 = vshll.u32 %v7320, 16
      %v7367 = vrot.slane %v7365, 1
      %v7368 = vsel %vm1061, %v7363, %v7367
      %v7369 = vshrl.u32 %v7320, 16
      %v7371 = vor.u32 %v7369, %v7367
      %v7373 = vshll.u32 %v7321, 16
      %v7375 = vrot.slane %v7373, 1
      %v7376 = vsel %vm1061, %v7371, %v7375
      %v7377 = vshrl.u32 %v7321, 16
      %v7379 = vor.u32 %v7377, %v7375
      %v7381 = vshll.u32 %v7322, 16
      %v7383 = vrot.slane %v7381, 1
      %v7384 = vsel %vm1061, %v7379, %v7383
      %v7385 = vshrl.u32 %v7322, 16
      %v7387 = vor.u32 %v7385, %v7383
      %v7389 = vshll.u32 %v7323, 16
      %v7391 = vrot.slane %v7389, 1
      %v7392 = vsel %vm1061, %v7387, %v7391
      %v7393 = vshrl.u32 %v7323, 16
      %v7395 = vor.u32 %v7393, %v7391
      %v7397 = vshll.u32 %v7324, 16
      %v7399 = vrot.slane %v7397, 1
      %v7400 = vsel %vm1061, %v7395, %v7399
      %v7401 = vshrl.u32 %v7324, 16
      %v7403 = vor.u32 %v7401, %v7399
      %v7405 = vshll.u32 %v7325, 16
      %v7407 = vrot.slane %v7405, 1
      %v7408 = vsel %vm1061, %v7403, %v7407
      %v7409 = vshrl.u32 %v7325, 16
      %v7411 = vor.u32 %v7409, %v7407
      %v7413 = vshll.u32 %v7326, 16
      %v7415 = vrot.slane %v7413, 1
      %v7416 = vsel %vm1061, %v7411, %v7415
      %v7417 = vshrl.u32 %v7326, 16
      %v7419 = vor.u32 %v7417, %v7415
      %v7421 = vshll.u32 %v7327, 16
      %v7423 = vrot.slane %v7421, 1
      %v7424 = vsel %vm1061, %v7419, %v7423
      %v7425 = vshrl.u32 %v7327, 16
      %v7427 = vor.u32 %v7425, %v7423
      %v7429 = vshll.u32 %v7328, 16
      %v7431 = vrot.slane %v7429, 1
      %v7432 = vsel %vm1061, %v7427, %v7431
      %v7433 = vshrl.u32 %v7328, 16
      %v7435 = vor.u32 %v7433, %v7431
      %v7437 = vshll.u32 %v7329, 16
      %v7439 = vrot.slane %v7437, 1
      %v7440 = vsel %vm1061, %v7435, %v7439
      %v7441 = vshrl.u32 %v7329, 16
      %v7443 = vor.u32 %v7441, %v7439
      %v7445 = vshll.u32 %v7330, 16
      %v7447 = vrot.slane %v7445, 1
      %v7448 = vsel %vm1061, %v7443, %v7447
      %v7449 = vshrl.u32 %v7330, 16
      %v7451 = vor.u32 %v7449, %v7447
      %v7453 = vshll.u32 %v7331, 16
      %v7455 = vrot.slane %v7453, 1
      %v7456 = vsel %vm1061, %v7451, %v7455
      %v7457 = vshrl.u32 %v7331, 16
      %v7459 = vor.u32 %v7457, %v7455
      %v7461 = vshll.u32 %v7332, 16
      %v7463 = vrot.slane %v7461, 1
      %v7464 = vsel %vm1061, %v7459, %v7463
      %7481 = vst.msk [vmem:[#allocation2 + $0x8] sm:$0xff] %vm928, %v7344
      %7482 = vst.msk [vmem:[#allocation2 + $0x30] sm:$0xff] %vm928, %v7352
      %7483 = vst.msk [vmem:[#allocation2 + $0x58] sm:$0xff] %vm928, %v7360
      %7484 = vst.msk [vmem:[#allocation2 + $0x80] sm:$0xff] %vm928, %v7368
      %7485 = vst.msk [vmem:[#allocation2 + $0xa8] sm:$0xff] %vm928, %v7376
      %7486 = vst.msk [vmem:[#allocation2 + $0xd0] sm:$0xff] %vm928, %v7384
      %7487 = vst.msk [vmem:[#allocation2 + $0xf8] sm:$0xff] %vm928, %v7392
      %7488 = vst.msk [vmem:[#allocation2 + $0x120] sm:$0xff] %vm928, %v7400
      %7489 = vst.msk [vmem:[#allocation2 + $0x148] sm:$0xff] %vm928, %v7408
      %7490 = vst.msk [vmem:[#allocation2 + $0x170] sm:$0xff] %vm928, %v7416
      %7491 = vst.msk [vmem:[#allocation2 + $0x198] sm:$0xff] %vm928, %v7424
      %7492 = vst.msk [vmem:[#allocation2 + $0x1c0] sm:$0xff] %vm928, %v7432
      %7493 = vst.msk [vmem:[#allocation2 + $0x1e8] sm:$0xff] %vm928, %v7440
      %7494 = vst.msk [vmem:[#allocation2 + $0x210] sm:$0xff] %vm928, %v7448
      %7495 = vst.msk [vmem:[#allocation2 + $0x238] sm:$0xff] %vm928, %v7456
      %7496 = vst.msk [vmem:[#allocation2 + $0x260] sm:$0xff] %vm928, %v7464
      %v7497 = vld [vmem:[#allocation3 + $0x8] sm:$0x80]
      %v7498 = vld [vmem:[#allocation3 + $0x10] sm:$0xff]
      %v7499 = vld [vmem:[#allocation3 + $0x18] sm:$0xff]
      %v7500 = vld [vmem:[#allocation3 + $0x20] sm:$0xff]
      %v7501 = vld [vmem:[#allocation3 + $0x28] sm:$0xff]
      %v7502 = vld [vmem:[#allocation3 + $0x30] sm:$0xff]
      %v7503 = vld [vmem:[#allocation3 + $0x38] sm:$0xff]
      %v7504 = vld [vmem:[#allocation3 + $0x40] sm:$0xff]
      %v7505 = vld [vmem:[#allocation3 + $0x48] sm:$0xff]
      %v7506 = vld [vmem:[#allocation3 + $0x50] sm:$0xff]
      %v7507 = vld [vmem:[#allocation3 + $0x58] sm:$0xff]
      %v7508 = vld [vmem:[#allocation3 + $0x60] sm:$0xff]
      %v7509 = vld [vmem:[#allocation3 + $0x68] sm:$0xff]
      %v7510 = vld [vmem:[#allocation3 + $0x70] sm:$0xff]
      %v7511 = vld [vmem:[#allocation3 + $0x78] sm:$0xff]
      %v7512 = vld [vmem:[#allocation3 + $0x80] sm:$0xff]
      %v7513 = vld [vmem:[#allocation3 + $0x88] sm:$0xff]
      %v7514 = vsel %vm6812, %v7497, 0
      %v7515 = vsel %vm6813, %v7498, 0
      %v7516 = vsel %vm6814, %v7499, 0
      %v7517 = vsel %vm6815, %v7500, 0
      %v7518 = vsel %vm6816, %v7501, 0
      %v7519 = vsel %vm6817, %v7502, 0
      %v7520 = vsel %vm6818, %v7503, 0
      %v7521 = vsel %vm6819, %v7504, 0
      %v7522 = vsel %vm6820, %v7505, 0
      %v7523 = vsel %vm6821, %v7506, 0
      %v7524 = vsel %vm6822, %v7507, 0
      %v7525 = vsel %vm6823, %v7508, 0
      %v7526 = vsel %vm6824, %v7509, 0
      %v7527 = vsel %vm6825, %v7510, 0
      %v7528 = vsel %vm6826, %v7511, 0
      %v7529 = vsel %vm6827, %v7512, 0
      %v7530 = vsel %vm6828, %v7513, 0
      %v7532 = vshrl.u32 %v7514, 16
      %v7534 = vrot.slane %v7532, 7
      %v7536 = vshrl.u32 %v7515, 16
      %v7538 = vrot.slane %v7536, 7
      %v7539 = vshll.u32 %v7515, 16
      %v7541 = vor.u32 %v7538, %v7539
      %v7542 = vsel %vm6846, %v7534, %v7541
      %v7544 = vshrl.u32 %v7516, 16
      %v7546 = vrot.slane %v7544, 7
      %v7547 = vshll.u32 %v7516, 16
      %v7549 = vor.u32 %v7546, %v7547
      %v7550 = vsel %vm6846, %v7538, %v7549
      %v7552 = vshrl.u32 %v7517, 16
      %v7554 = vrot.slane %v7552, 7
      %v7555 = vshll.u32 %v7517, 16
      %v7557 = vor.u32 %v7554, %v7555
      %v7558 = vsel %vm6846, %v7546, %v7557
      %v7560 = vshrl.u32 %v7518, 16
      %v7562 = vrot.slane %v7560, 7
      %v7563 = vshll.u32 %v7518, 16
      %v7565 = vor.u32 %v7562, %v7563
      %v7566 = vsel %vm6846, %v7554, %v7565
      %v7568 = vshrl.u32 %v7519, 16
      %v7570 = vrot.slane %v7568, 7
      %v7571 = vshll.u32 %v7519, 16
      %v7573 = vor.u32 %v7570, %v7571
      %v7574 = vsel %vm6846, %v7562, %v7573
      %v7576 = vshrl.u32 %v7520, 16
      %v7578 = vrot.slane %v7576, 7
      %v7579 = vshll.u32 %v7520, 16
      %v7581 = vor.u32 %v7578, %v7579
      %v7582 = vsel %vm6846, %v7570, %v7581
      %v7584 = vshrl.u32 %v7521, 16
      %v7586 = vrot.slane %v7584, 7
      %v7587 = vshll.u32 %v7521, 16
      %v7589 = vor.u32 %v7586, %v7587
      %v7590 = vsel %vm6846, %v7578, %v7589
      %v7592 = vshrl.u32 %v7522, 16
      %v7594 = vrot.slane %v7592, 7
      %v7595 = vshll.u32 %v7522, 16
      %v7597 = vor.u32 %v7594, %v7595
      %v7598 = vsel %vm6846, %v7586, %v7597
      %v7600 = vshrl.u32 %v7523, 16
      %v7602 = vrot.slane %v7600, 7
      %v7603 = vshll.u32 %v7523, 16
      %v7605 = vor.u32 %v7602, %v7603
      %v7606 = vsel %vm6846, %v7594, %v7605
      %v7608 = vshrl.u32 %v7524, 16
      %v7610 = vrot.slane %v7608, 7
      %v7611 = vshll.u32 %v7524, 16
      %v7613 = vor.u32 %v7610, %v7611
      %v7614 = vsel %vm6846, %v7602, %v7613
      %v7616 = vshrl.u32 %v7525, 16
      %v7618 = vrot.slane %v7616, 7
      %v7619 = vshll.u32 %v7525, 16
      %v7621 = vor.u32 %v7618, %v7619
      %v7622 = vsel %vm6846, %v7610, %v7621
      %v7624 = vshrl.u32 %v7526, 16
      %v7626 = vrot.slane %v7624, 7
      %v7627 = vshll.u32 %v7526, 16
      %v7629 = vor.u32 %v7626, %v7627
      %v7630 = vsel %vm6846, %v7618, %v7629
      %v7632 = vshrl.u32 %v7527, 16
      %v7634 = vrot.slane %v7632, 7
      %v7635 = vshll.u32 %v7527, 16
      %v7637 = vor.u32 %v7634, %v7635
      %v7638 = vsel %vm6846, %v7626, %v7637
      %v7640 = vshrl.u32 %v7528, 16
      %v7642 = vrot.slane %v7640, 7
      %v7643 = vshll.u32 %v7528, 16
      %v7645 = vor.u32 %v7642, %v7643
      %v7646 = vsel %vm6846, %v7634, %v7645
      %v7648 = vshrl.u32 %v7529, 16
      %v7650 = vrot.slane %v7648, 7
      %v7651 = vshll.u32 %v7529, 16
      %v7653 = vor.u32 %v7650, %v7651
      %v7654 = vsel %vm6846, %v7642, %v7653
      %v7656 = vshrl.u32 %v7530, 16
      %v7658 = vrot.slane %v7656, 7
      %v7659 = vshll.u32 %v7530, 16
      %v7661 = vor.u32 %v7658, %v7659
      %v7662 = vsel %vm6846, %v7650, %v7661
      %7663 = vrot.lane.b32.xlu0 %v7542, 64
      %v7664 = vpop.permute.xlu0 %7663
      %7665 = vrot.lane.b32.xlu0 %v7550, 64
      %v7666 = vpop.permute.xlu0 %7665
      %7667 = vrot.lane.b32.xlu0 %v7558, 64
      %v7668 = vpop.permute.xlu0 %7667
      %7669 = vrot.lane.b32.xlu0 %v7566, 64
      %v7670 = vpop.permute.xlu0 %7669
      %7671 = vrot.lane.b32.xlu0 %v7574, 64
      %v7672 = vpop.permute.xlu0 %7671
      %7673 = vrot.lane.b32.xlu0 %v7582, 64
      %v7674 = vpop.permute.xlu0 %7673
      %7675 = vrot.lane.b32.xlu0 %v7590, 64
      %v7676 = vpop.permute.xlu0 %7675
      %7677 = vrot.lane.b32.xlu0 %v7598, 64
      %v7678 = vpop.permute.xlu0 %7677
      %7679 = vrot.lane.b32.xlu0 %v7606, 64
      %v7680 = vpop.permute.xlu0 %7679
      %7681 = vrot.lane.b32.xlu0 %v7614, 64
      %v7682 = vpop.permute.xlu0 %7681
      %7683 = vrot.lane.b32.xlu0 %v7622, 64
      %v7684 = vpop.permute.xlu0 %7683
      %7685 = vrot.lane.b32.xlu0 %v7630, 64
      %v7686 = vpop.permute.xlu0 %7685
      %7687 = vrot.lane.b32.xlu0 %v7638, 64
      %v7688 = vpop.permute.xlu0 %7687
      %7689 = vrot.lane.b32.xlu0 %v7646, 64
      %v7690 = vpop.permute.xlu0 %7689
      %7691 = vrot.lane.b32.xlu0 %v7654, 64
      %v7692 = vpop.permute.xlu0 %7691
      %7693 = vrot.lane.b32.xlu0 %v7662, 64
      %v7694 = vpop.permute.xlu0 %7693
      %7711 = vst.msk [vmem:[#allocation2 + $0x8] sm:$0xff] %vm1242, %v7664
      %7712 = vst.msk [vmem:[#allocation2 + $0x30] sm:$0xff] %vm1242, %v7666
      %7713 = vst.msk [vmem:[#allocation2 + $0x58] sm:$0xff] %vm1242, %v7668
      %7714 = vst.msk [vmem:[#allocation2 + $0x80] sm:$0xff] %vm1242, %v7670
      %7715 = vst.msk [vmem:[#allocation2 + $0xa8] sm:$0xff] %vm1242, %v7672
      %7716 = vst.msk [vmem:[#allocation2 + $0xd0] sm:$0xff] %vm1242, %v7674
      %7717 = vst.msk [vmem:[#allocation2 + $0xf8] sm:$0xff] %vm1242, %v7676
      %7718 = vst.msk [vmem:[#allocation2 + $0x120] sm:$0xff] %vm1242, %v7678
      %7719 = vst.msk [vmem:[#allocation2 + $0x148] sm:$0xff] %vm1242, %v7680
      %7720 = vst.msk [vmem:[#allocation2 + $0x170] sm:$0xff] %vm1242, %v7682
      %7721 = vst.msk [vmem:[#allocation2 + $0x198] sm:$0xff] %vm1242, %v7684
      %7722 = vst.msk [vmem:[#allocation2 + $0x1c0] sm:$0xff] %vm1242, %v7686
      %7723 = vst.msk [vmem:[#allocation2 + $0x1e8] sm:$0xff] %vm1242, %v7688
      %7724 = vst.msk [vmem:[#allocation2 + $0x210] sm:$0xff] %vm1242, %v7690
      %7725 = vst.msk [vmem:[#allocation2 + $0x238] sm:$0xff] %vm1242, %v7692
      %7726 = vst.msk [vmem:[#allocation2 + $0x260] sm:$0xff] %vm1242, %v7694
      %v7727 = vld [vmem:[#allocation3 + $0x10] sm:$0xff]
      %v7728 = vld [vmem:[#allocation3 + $0x18] sm:$0xff]
      %v7729 = vld [vmem:[#allocation3 + $0x20] sm:$0xff]
      %v7730 = vld [vmem:[#allocation3 + $0x28] sm:$0xff]
      %v7731 = vld [vmem:[#allocation3 + $0x30] sm:$0xff]
      %v7732 = vld [vmem:[#allocation3 + $0x38] sm:$0xff]
      %v7733 = vld [vmem:[#allocation3 + $0x40] sm:$0xff]
      %v7734 = vld [vmem:[#allocation3 + $0x48] sm:$0xff]
      %v7735 = vld [vmem:[#allocation3 + $0x50] sm:$0xff]
      %v7736 = vld [vmem:[#allocation3 + $0x58] sm:$0xff]
      %v7737 = vld [vmem:[#allocation3 + $0x60] sm:$0xff]
      %v7738 = vld [vmem:[#allocation3 + $0x68] sm:$0xff]
      %v7739 = vld [vmem:[#allocation3 + $0x70] sm:$0xff]
      %v7740 = vld [vmem:[#allocation3 + $0x78] sm:$0xff]
      %v7741 = vld [vmem:[#allocation3 + $0x80] sm:$0xff]
      %v7742 = vld [vmem:[#allocation3 + $0x88] sm:$0xff]
      %7743 = vst.msk [vmem:[#allocation2 + $0x10] sm:$0xff] %vm928, %v7727
      %7744 = vst.msk [vmem:[#allocation2 + $0x38] sm:$0xff] %vm928, %v7728
      %7745 = vst.msk [vmem:[#allocation2 + $0x60] sm:$0xff] %vm928, %v7729
      %7746 = vst.msk [vmem:[#allocation2 + $0x88] sm:$0xff] %vm928, %v7730
      %7747 = vst.msk [vmem:[#allocation2 + $0xb0] sm:$0xff] %vm928, %v7731
      %7748 = vst.msk [vmem:[#allocation2 + $0xd8] sm:$0xff] %vm928, %v7732
      %7749 = vst.msk [vmem:[#allocation2 + $0x100] sm:$0xff] %vm928, %v7733
      %7750 = vst.msk [vmem:[#allocation2 + $0x128] sm:$0xff] %vm928, %v7734
      %7751 = vst.msk [vmem:[#allocation2 + $0x150] sm:$0xff] %vm928, %v7735
      %7752 = vst.msk [vmem:[#allocation2 + $0x178] sm:$0xff] %vm928, %v7736
      %7753 = vst.msk [vmem:[#allocation2 + $0x1a0] sm:$0xff] %vm928, %v7737
      %7754 = vst.msk [vmem:[#allocation2 + $0x1c8] sm:$0xff] %vm928, %v7738
      %7755 = vst.msk [vmem:[#allocation2 + $0x1f0] sm:$0xff] %vm928, %v7739
      %7756 = vst.msk [vmem:[#allocation2 + $0x218] sm:$0xff] %vm928, %v7740
      %7757 = vst.msk [vmem:[#allocation2 + $0x240] sm:$0xff] %vm928, %v7741
      %7758 = vst.msk [vmem:[#allocation2 + $0x268] sm:$0xff] %vm928, %v7742
      %v7759 = vld [vmem:[#allocation3 + $0x10] sm:$0xff]
      %v7760 = vld [vmem:[#allocation3 + $0x18] sm:$0xff]
      %v7761 = vld [vmem:[#allocation3 + $0x20] sm:$0xff]
      %v7762 = vld [vmem:[#allocation3 + $0x28] sm:$0xff]
      %v7763 = vld [vmem:[#allocation3 + $0x30] sm:$0xff]
      %v7764 = vld [vmem:[#allocation3 + $0x38] sm:$0xff]
      %v7765 = vld [vmem:[#allocation3 + $0x40] sm:$0xff]
      %v7766 = vld [vmem:[#allocation3 + $0x48] sm:$0xff]
      %v7767 = vld [vmem:[#allocation3 + $0x50] sm:$0xff]
      %v7768 = vld [vmem:[#allocation3 + $0x58] sm:$0xff]
      %v7769 = vld [vmem:[#allocation3 + $0x60] sm:$0xff]
      %v7770 = vld [vmem:[#allocation3 + $0x68] sm:$0xff]
      %v7771 = vld [vmem:[#allocation3 + $0x70] sm:$0xff]
      %v7772 = vld [vmem:[#allocation3 + $0x78] sm:$0xff]
      %v7773 = vld [vmem:[#allocation3 + $0x80] sm:$0xff]
      %v7774 = vld [vmem:[#allocation3 + $0x88] sm:$0xff]
      %v7775 = vld [vmem:[#allocation3 + $0x90] sm:$0x1]
      %v7776 = vsel %vm7299, %v7759, 0
      %v7777 = vsel %vm7300, %v7760, 0
      %v7778 = vsel %vm7301, %v7761, 0
      %v7779 = vsel %vm7302, %v7762, 0
      %v7780 = vsel %vm7303, %v7763, 0
      %v7781 = vsel %vm7304, %v7764, 0
      %v7782 = vsel %vm7305, %v7765, 0
      %v7783 = vsel %vm7306, %v7766, 0
      %v7784 = vsel %vm7307, %v7767, 0
      %v7785 = vsel %vm7308, %v7768, 0
      %v7786 = vsel %vm7309, %v7769, 0
      %v7787 = vsel %vm7310, %v7770, 0
      %v7788 = vsel %vm7311, %v7771, 0
      %v7789 = vsel %vm7312, %v7772, 0
      %v7790 = vsel %vm7313, %v7773, 0
      %v7791 = vsel %vm7314, %v7774, 0
      %v7792 = vsel %vm7315, %v7775, 0
      %v7794 = vshrl.u32 %v7776, 16
      %v7796 = vshll.u32 %v7776, 16
      %v7798 = vrot.slane %v7796, 1
      %v7799 = vor.u32 %v7794, %v7798
      %v7801 = vshll.u32 %v7777, 16
      %v7803 = vrot.slane %v7801, 1
      %v7804 = vsel %vm1061, %v7799, %v7803
      %v7805 = vshrl.u32 %v7777, 16
      %v7807 = vor.u32 %v7805, %v7803
      %v7809 = vshll.u32 %v7778, 16
      %v7811 = vrot.slane %v7809, 1
      %v7812 = vsel %vm1061, %v7807, %v7811
      %v7813 = vshrl.u32 %v7778, 16
      %v7815 = vor.u32 %v7813, %v7811
      %v7817 = vshll.u32 %v7779, 16
      %v7819 = vrot.slane %v7817, 1
      %v7820 = vsel %vm1061, %v7815, %v7819
      %v7821 = vshrl.u32 %v7779, 16
      %v7823 = vor.u32 %v7821, %v7819
      %v7825 = vshll.u32 %v7780, 16
      %v7827 = vrot.slane %v7825, 1
      %v7828 = vsel %vm1061, %v7823, %v7827
      %v7829 = vshrl.u32 %v7780, 16
      %v7831 = vor.u32 %v7829, %v7827
      %v7833 = vshll.u32 %v7781, 16
      %v7835 = vrot.slane %v7833, 1
      %v7836 = vsel %vm1061, %v7831, %v7835
      %v7837 = vshrl.u32 %v7781, 16
      %v7839 = vor.u32 %v7837, %v7835
      %v7841 = vshll.u32 %v7782, 16
      %v7843 = vrot.slane %v7841, 1
      %v7844 = vsel %vm1061, %v7839, %v7843
      %v7845 = vshrl.u32 %v7782, 16
      %v7847 = vor.u32 %v7845, %v7843
      %v7849 = vshll.u32 %v7783, 16
      %v7851 = vrot.slane %v7849, 1
      %v7852 = vsel %vm1061, %v7847, %v7851
      %v7853 = vshrl.u32 %v7783, 16
      %v7855 = vor.u32 %v7853, %v7851
      %v7857 = vshll.u32 %v7784, 16
      %v7859 = vrot.slane %v7857, 1
      %v7860 = vsel %vm1061, %v7855, %v7859
      %v7861 = vshrl.u32 %v7784, 16
      %v7863 = vor.u32 %v7861, %v7859
      %v7865 = vshll.u32 %v7785, 16
      %v7867 = vrot.slane %v7865, 1
      %v7868 = vsel %vm1061, %v7863, %v7867
      %v7869 = vshrl.u32 %v7785, 16
      %v7871 = vor.u32 %v7869, %v7867
      %v7873 = vshll.u32 %v7786, 16
      %v7875 = vrot.slane %v7873, 1
      %v7876 = vsel %vm1061, %v7871, %v7875
      %v7877 = vshrl.u32 %v7786, 16
      %v7879 = vor.u32 %v7877, %v7875
      %v7881 = vshll.u32 %v7787, 16
      %v7883 = vrot.slane %v7881, 1
      %v7884 = vsel %vm1061, %v7879, %v7883
      %v7885 = vshrl.u32 %v7787, 16
      %v7887 = vor.u32 %v7885, %v7883
      %v7889 = vshll.u32 %v7788, 16
      %v7891 = vrot.slane %v7889, 1
      %v7892 = vsel %vm1061, %v7887, %v7891
      %v7893 = vshrl.u32 %v7788, 16
      %v7895 = vor.u32 %v7893, %v7891
      %v7897 = vshll.u32 %v7789, 16
      %v7899 = vrot.slane %v7897, 1
      %v7900 = vsel %vm1061, %v7895, %v7899
      %v7901 = vshrl.u32 %v7789, 16
      %v7903 = vor.u32 %v7901, %v7899
      %v7905 = vshll.u32 %v7790, 16
      %v7907 = vrot.slane %v7905, 1
      %v7908 = vsel %vm1061, %v7903, %v7907
      %v7909 = vshrl.u32 %v7790, 16
      %v7911 = vor.u32 %v7909, %v7907
      %v7913 = vshll.u32 %v7791, 16
      %v7915 = vrot.slane %v7913, 1
      %v7916 = vsel %vm1061, %v7911, %v7915
      %v7917 = vshrl.u32 %v7791, 16
      %v7919 = vor.u32 %v7917, %v7915
      %v7921 = vshll.u32 %v7792, 16
      %v7923 = vrot.slane %v7921, 1
      %v7924 = vsel %vm1061, %v7919, %v7923
      %7925 = vrot.lane.b32.xlu0 %v7804, 64
      %v7926 = vpop.permute.xlu0 %7925
      %7927 = vrot.lane.b32.xlu0 %v7812, 64
      %v7928 = vpop.permute.xlu0 %7927
      %7929 = vrot.lane.b32.xlu0 %v7820, 64
      %v7930 = vpop.permute.xlu0 %7929
      %7931 = vrot.lane.b32.xlu0 %v7828, 64
      %v7932 = vpop.permute.xlu0 %7931
      %7933 = vrot.lane.b32.xlu0 %v7836, 64
      %v7934 = vpop.permute.xlu0 %7933
      %7935 = vrot.lane.b32.xlu0 %v7844, 64
      %v7936 = vpop.permute.xlu0 %7935
      %7937 = vrot.lane.b32.xlu0 %v7852, 64
      %v7938 = vpop.permute.xlu0 %7937
      %7939 = vrot.lane.b32.xlu0 %v7860, 64
      %v7940 = vpop.permute.xlu0 %7939
      %7941 = vrot.lane.b32.xlu0 %v7868, 64
      %v7942 = vpop.permute.xlu0 %7941
      %7943 = vrot.lane.b32.xlu0 %v7876, 64
      %v7944 = vpop.permute.xlu0 %7943
      %7945 = vrot.lane.b32.xlu0 %v7884, 64
      %v7946 = vpop.permute.xlu0 %7945
      %7947 = vrot.lane.b32.xlu0 %v7892, 64
      %v7948 = vpop.permute.xlu0 %7947
      %7949 = vrot.lane.b32.xlu0 %v7900, 64
      %v7950 = vpop.permute.xlu0 %7949
      %7951 = vrot.lane.b32.xlu0 %v7908, 64
      %v7952 = vpop.permute.xlu0 %7951
      %7953 = vrot.lane.b32.xlu0 %v7916, 64
      %v7954 = vpop.permute.xlu0 %7953
      %7955 = vrot.lane.b32.xlu0 %v7924, 64
      %v7956 = vpop.permute.xlu0 %7955
      %7973 = vst.msk [vmem:[#allocation2 + $0x10] sm:$0xff] %vm1242, %v7926
      %7974 = vst.msk [vmem:[#allocation2 + $0x38] sm:$0xff] %vm1242, %v7928
      %7975 = vst.msk [vmem:[#allocation2 + $0x60] sm:$0xff] %vm1242, %v7930
      %7976 = vst.msk [vmem:[#allocation2 + $0x88] sm:$0xff] %vm1242, %v7932
      %7977 = vst.msk [vmem:[#allocation2 + $0xb0] sm:$0xff] %vm1242, %v7934
      %7978 = vst.msk [vmem:[#allocation2 + $0xd8] sm:$0xff] %vm1242, %v7936
      %7979 = vst.msk [vmem:[#allocation2 + $0x100] sm:$0xff] %vm1242, %v7938
      %7980 = vst.msk [vmem:[#allocation2 + $0x128] sm:$0xff] %vm1242, %v7940
      %7981 = vst.msk [vmem:[#allocation2 + $0x150] sm:$0xff] %vm1242, %v7942
      %7982 = vst.msk [vmem:[#allocation2 + $0x178] sm:$0xff] %vm1242, %v7944
      %7983 = vst.msk [vmem:[#allocation2 + $0x1a0] sm:$0xff] %vm1242, %v7946
      %7984 = vst.msk [vmem:[#allocation2 + $0x1c8] sm:$0xff] %vm1242, %v7948
      %7985 = vst.msk [vmem:[#allocation2 + $0x1f0] sm:$0xff] %vm1242, %v7950
      %7986 = vst.msk [vmem:[#allocation2 + $0x218] sm:$0xff] %vm1242, %v7952
      %7987 = vst.msk [vmem:[#allocation2 + $0x240] sm:$0xff] %vm1242, %v7954
      %7988 = vst.msk [vmem:[#allocation2 + $0x268] sm:$0xff] %vm1242, %v7956
      %v7989 = vld [vmem:[#allocation3 + $0x10] sm:$0x80]
      %v7990 = vld [vmem:[#allocation3 + $0x18] sm:$0xff]
      %v7991 = vld [vmem:[#allocation3 + $0x20] sm:$0xff]
      %v7992 = vld [vmem:[#allocation3 + $0x28] sm:$0xff]
      %v7993 = vld [vmem:[#allocation3 + $0x30] sm:$0xff]
      %v7994 = vld [vmem:[#allocation3 + $0x38] sm:$0xff]
      %v7995 = vld [vmem:[#allocation3 + $0x40] sm:$0xff]
      %v7996 = vld [vmem:[#allocation3 + $0x48] sm:$0xff]
      %v7997 = vld [vmem:[#allocation3 + $0x50] sm:$0xff]
      %v7998 = vld [vmem:[#allocation3 + $0x58] sm:$0xff]
      %v7999 = vld [vmem:[#allocation3 + $0x60] sm:$0xff]
      %v8000 = vld [vmem:[#allocation3 + $0x68] sm:$0xff]
      %v8001 = vld [vmem:[#allocation3 + $0x70] sm:$0xff]
      %v8002 = vld [vmem:[#allocation3 + $0x78] sm:$0xff]
      %v8003 = vld [vmem:[#allocation3 + $0x80] sm:$0xff]
      %v8004 = vld [vmem:[#allocation3 + $0x88] sm:$0xff]
      %v8005 = vld [vmem:[#allocation3 + $0x90] sm:$0xff]
      %v8006 = vsel %vm6812, %v7989, 0
      %v8007 = vsel %vm6813, %v7990, 0
      %v8008 = vsel %vm6814, %v7991, 0
      %v8009 = vsel %vm6815, %v7992, 0
      %v8010 = vsel %vm6816, %v7993, 0
      %v8011 = vsel %vm6817, %v7994, 0
      %v8012 = vsel %vm6818, %v7995, 0
      %v8013 = vsel %vm6819, %v7996, 0
      %v8014 = vsel %vm6820, %v7997, 0
      %v8015 = vsel %vm6821, %v7998, 0
      %v8016 = vsel %vm6822, %v7999, 0
      %v8017 = vsel %vm6823, %v8000, 0
      %v8018 = vsel %vm6824, %v8001, 0
      %v8019 = vsel %vm6825, %v8002, 0
      %v8020 = vsel %vm6826, %v8003, 0
      %v8021 = vsel %vm6827, %v8004, 0
      %v8022 = vsel %vm6828, %v8005, 0
      %v8024 = vshrl.u32 %v8006, 16
      %v8026 = vrot.slane %v8024, 7
      %v8028 = vshrl.u32 %v8007, 16
      %v8030 = vrot.slane %v8028, 7
      %v8031 = vshll.u32 %v8007, 16
      %v8033 = vor.u32 %v8030, %v8031
      %v8034 = vsel %vm6846, %v8026, %v8033
      %v8036 = vshrl.u32 %v8008, 16
      %v8038 = vrot.slane %v8036, 7
      %v8039 = vshll.u32 %v8008, 16
      %v8041 = vor.u32 %v8038, %v8039
      %v8042 = vsel %vm6846, %v8030, %v8041
      %v8044 = vshrl.u32 %v8009, 16
      %v8046 = vrot.slane %v8044, 7
      %v8047 = vshll.u32 %v8009, 16
      %v8049 = vor.u32 %v8046, %v8047
      %v8050 = vsel %vm6846, %v8038, %v8049
      %v8052 = vshrl.u32 %v8010, 16
      %v8054 = vrot.slane %v8052, 7
      %v8055 = vshll.u32 %v8010, 16
      %v8057 = vor.u32 %v8054, %v8055
      %v8058 = vsel %vm6846, %v8046, %v8057
      %v8060 = vshrl.u32 %v8011, 16
      %v8062 = vrot.slane %v8060, 7
      %v8063 = vshll.u32 %v8011, 16
      %v8065 = vor.u32 %v8062, %v8063
      %v8066 = vsel %vm6846, %v8054, %v8065
      %v8068 = vshrl.u32 %v8012, 16
      %v8070 = vrot.slane %v8068, 7
      %v8071 = vshll.u32 %v8012, 16
      %v8073 = vor.u32 %v8070, %v8071
      %v8074 = vsel %vm6846, %v8062, %v8073
      %v8076 = vshrl.u32 %v8013, 16
      %v8078 = vrot.slane %v8076, 7
      %v8079 = vshll.u32 %v8013, 16
      %v8081 = vor.u32 %v8078, %v8079
      %v8082 = vsel %vm6846, %v8070, %v8081
      %v8084 = vshrl.u32 %v8014, 16
      %v8086 = vrot.slane %v8084, 7
      %v8087 = vshll.u32 %v8014, 16
      %v8089 = vor.u32 %v8086, %v8087
      %v8090 = vsel %vm6846, %v8078, %v8089
      %v8092 = vshrl.u32 %v8015, 16
      %v8094 = vrot.slane %v8092, 7
      %v8095 = vshll.u32 %v8015, 16
      %v8097 = vor.u32 %v8094, %v8095
      %v8098 = vsel %vm6846, %v8086, %v8097
      %v8100 = vshrl.u32 %v8016, 16
      %v8102 = vrot.slane %v8100, 7
      %v8103 = vshll.u32 %v8016, 16
      %v8105 = vor.u32 %v8102, %v8103
      %v8106 = vsel %vm6846, %v8094, %v8105
      %v8108 = vshrl.u32 %v8017, 16
      %v8110 = vrot.slane %v8108, 7
      %v8111 = vshll.u32 %v8017, 16
      %v8113 = vor.u32 %v8110, %v8111
      %v8114 = vsel %vm6846, %v8102, %v8113
      %v8116 = vshrl.u32 %v8018, 16
      %v8118 = vrot.slane %v8116, 7
      %v8119 = vshll.u32 %v8018, 16
      %v8121 = vor.u32 %v8118, %v8119
      %v8122 = vsel %vm6846, %v8110, %v8121
      %v8124 = vshrl.u32 %v8019, 16
      %v8126 = vrot.slane %v8124, 7
      %v8127 = vshll.u32 %v8019, 16
      %v8129 = vor.u32 %v8126, %v8127
      %v8130 = vsel %vm6846, %v8118, %v8129
      %v8132 = vshrl.u32 %v8020, 16
      %v8134 = vrot.slane %v8132, 7
      %v8135 = vshll.u32 %v8020, 16
      %v8137 = vor.u32 %v8134, %v8135
      %v8138 = vsel %vm6846, %v8126, %v8137
      %v8140 = vshrl.u32 %v8021, 16
      %v8142 = vrot.slane %v8140, 7
      %v8143 = vshll.u32 %v8021, 16
      %v8145 = vor.u32 %v8142, %v8143
      %v8146 = vsel %vm6846, %v8134, %v8145
      %v8148 = vshrl.u32 %v8022, 16
      %v8150 = vrot.slane %v8148, 7
      %v8151 = vshll.u32 %v8022, 16
      %v8153 = vor.u32 %v8150, %v8151
      %v8154 = vsel %vm6846, %v8142, %v8153
      %8171 = vst.msk [vmem:[#allocation2 + $0x18] sm:$0xff] %vm928, %v8034
      %8172 = vst.msk [vmem:[#allocation2 + $0x40] sm:$0xff] %vm928, %v8042
      %8173 = vst.msk [vmem:[#allocation2 + $0x68] sm:$0xff] %vm928, %v8050
      %8174 = vst.msk [vmem:[#allocation2 + $0x90] sm:$0xff] %vm928, %v8058
      %8175 = vst.msk [vmem:[#allocation2 + $0xb8] sm:$0xff] %vm928, %v8066
      %8176 = vst.msk [vmem:[#allocation2 + $0xe0] sm:$0xff] %vm928, %v8074
      %8177 = vst.msk [vmem:[#allocation2 + $0x108] sm:$0xff] %vm928, %v8082
      %8178 = vst.msk [vmem:[#allocation2 + $0x130] sm:$0xff] %vm928, %v8090
      %8179 = vst.msk [vmem:[#allocation2 + $0x158] sm:$0xff] %vm928, %v8098
      %8180 = vst.msk [vmem:[#allocation2 + $0x180] sm:$0xff] %vm928, %v8106
      %8181 = vst.msk [vmem:[#allocation2 + $0x1a8] sm:$0xff] %vm928, %v8114
      %8182 = vst.msk [vmem:[#allocation2 + $0x1d0] sm:$0xff] %vm928, %v8122
      %8183 = vst.msk [vmem:[#allocation2 + $0x1f8] sm:$0xff] %vm928, %v8130
      %8184 = vst.msk [vmem:[#allocation2 + $0x220] sm:$0xff] %vm928, %v8138
      %8185 = vst.msk [vmem:[#allocation2 + $0x248] sm:$0xff] %vm928, %v8146
      %8186 = vst.msk [vmem:[#allocation2 + $0x270] sm:$0xff] %vm928, %v8154
      %v8187 = vld [vmem:[#allocation3 + $0x18] sm:$0xff]
      %v8188 = vld [vmem:[#allocation3 + $0x20] sm:$0xff]
      %v8189 = vld [vmem:[#allocation3 + $0x28] sm:$0xff]
      %v8190 = vld [vmem:[#allocation3 + $0x30] sm:$0xff]
      %v8191 = vld [vmem:[#allocation3 + $0x38] sm:$0xff]
      %v8192 = vld [vmem:[#allocation3 + $0x40] sm:$0xff]
      %v8193 = vld [vmem:[#allocation3 + $0x48] sm:$0xff]
      %v8194 = vld [vmem:[#allocation3 + $0x50] sm:$0xff]
      %v8195 = vld [vmem:[#allocation3 + $0x58] sm:$0xff]
      %v8196 = vld [vmem:[#allocation3 + $0x60] sm:$0xff]
      %v8197 = vld [vmem:[#allocation3 + $0x68] sm:$0xff]
      %v8198 = vld [vmem:[#allocation3 + $0x70] sm:$0xff]
      %v8199 = vld [vmem:[#allocation3 + $0x78] sm:$0xff]
      %v8200 = vld [vmem:[#allocation3 + $0x80] sm:$0xff]
      %v8201 = vld [vmem:[#allocation3 + $0x88] sm:$0xff]
      %v8202 = vld [vmem:[#allocation3 + $0x90] sm:$0xff]
      %8219 = vrot.lane.b32.xlu0 %v8187, 64
      %v8220 = vpop.permute.xlu0 %8219
      %8221 = vrot.lane.b32.xlu0 %v8188, 64
      %v8222 = vpop.permute.xlu0 %8221
      %8223 = vrot.lane.b32.xlu0 %v8189, 64
      %v8224 = vpop.permute.xlu0 %8223
      %8225 = vrot.lane.b32.xlu0 %v8190, 64
      %v8226 = vpop.permute.xlu0 %8225
      %8227 = vrot.lane.b32.xlu0 %v8191, 64
      %v8228 = vpop.permute.xlu0 %8227
      %8229 = vrot.lane.b32.xlu0 %v8192, 64
      %v8230 = vpop.permute.xlu0 %8229
      %8231 = vrot.lane.b32.xlu0 %v8193, 64
      %v8232 = vpop.permute.xlu0 %8231
      %8233 = vrot.lane.b32.xlu0 %v8194, 64
      %v8234 = vpop.permute.xlu0 %8233
      %8235 = vrot.lane.b32.xlu0 %v8195, 64
      %v8236 = vpop.permute.xlu0 %8235
      %8237 = vrot.lane.b32.xlu0 %v8196, 64
      %v8238 = vpop.permute.xlu0 %8237
      %8239 = vrot.lane.b32.xlu0 %v8197, 64
      %v8240 = vpop.permute.xlu0 %8239
      %8241 = vrot.lane.b32.xlu0 %v8198, 64
      %v8242 = vpop.permute.xlu0 %8241
      %8243 = vrot.lane.b32.xlu0 %v8199, 64
      %v8244 = vpop.permute.xlu0 %8243
      %8245 = vrot.lane.b32.xlu0 %v8200, 64
      %v8246 = vpop.permute.xlu0 %8245
      %8247 = vrot.lane.b32.xlu0 %v8201, 64
      %v8248 = vpop.permute.xlu0 %8247
      %8249 = vrot.lane.b32.xlu0 %v8202, 64
      %v8250 = vpop.permute.xlu0 %8249
      %8267 = vst.msk [vmem:[#allocation2 + $0x18] sm:$0xff] %vm1242, %v8220
      %8268 = vst.msk [vmem:[#allocation2 + $0x40] sm:$0xff] %vm1242, %v8222
      %8269 = vst.msk [vmem:[#allocation2 + $0x68] sm:$0xff] %vm1242, %v8224
      %8270 = vst.msk [vmem:[#allocation2 + $0x90] sm:$0xff] %vm1242, %v8226
      %8271 = vst.msk [vmem:[#allocation2 + $0xb8] sm:$0xff] %vm1242, %v8228
      %8272 = vst.msk [vmem:[#allocation2 + $0xe0] sm:$0xff] %vm1242, %v8230
      %8273 = vst.msk [vmem:[#allocation2 + $0x108] sm:$0xff] %vm1242, %v8232
      %8274 = vst.msk [vmem:[#allocation2 + $0x130] sm:$0xff] %vm1242, %v8234
      %8275 = vst.msk [vmem:[#allocation2 + $0x158] sm:$0xff] %vm1242, %v8236
      %8276 = vst.msk [vmem:[#allocation2 + $0x180] sm:$0xff] %vm1242, %v8238
      %8277 = vst.msk [vmem:[#allocation2 + $0x1a8] sm:$0xff] %vm1242, %v8240
      %8278 = vst.msk [vmem:[#allocation2 + $0x1d0] sm:$0xff] %vm1242, %v8242
      %8279 = vst.msk [vmem:[#allocation2 + $0x1f8] sm:$0xff] %vm1242, %v8244
      %8280 = vst.msk [vmem:[#allocation2 + $0x220] sm:$0xff] %vm1242, %v8246
      %8281 = vst.msk [vmem:[#allocation2 + $0x248] sm:$0xff] %vm1242, %v8248
      %8282 = vst.msk [vmem:[#allocation2 + $0x270] sm:$0xff] %vm1242, %v8250
      %v8283 = vld [vmem:[#allocation3 + $0x18] sm:$0xff]
      %v8284 = vld [vmem:[#allocation3 + $0x20] sm:$0xff]
      %v8285 = vld [vmem:[#allocation3 + $0x28] sm:$0xff]
      %v8286 = vld [vmem:[#allocation3 + $0x30] sm:$0xff]
      %v8287 = vld [vmem:[#allocation3 + $0x38] sm:$0xff]
      %v8288 = vld [vmem:[#allocation3 + $0x40] sm:$0xff]
      %v8289 = vld [vmem:[#allocation3 + $0x48] sm:$0xff]
      %v8290 = vld [vmem:[#allocation3 + $0x50] sm:$0xff]
      %v8291 = vld [vmem:[#allocation3 + $0x58] sm:$0xff]
      %v8292 = vld [vmem:[#allocation3 + $0x60] sm:$0xff]
      %v8293 = vld [vmem:[#allocation3 + $0x68] sm:$0xff]
      %v8294 = vld [vmem:[#allocation3 + $0x70] sm:$0xff]
      %v8295 = vld [vmem:[#allocation3 + $0x78] sm:$0xff]
      %v8296 = vld [vmem:[#allocation3 + $0x80] sm:$0xff]
      %v8297 = vld [vmem:[#allocation3 + $0x88] sm:$0xff]
      %v8298 = vld [vmem:[#allocation3 + $0x90] sm:$0xff]
      %v8299 = vld [vmem:[#allocation3 + $0x98] sm:$0x1]
      %v8300 = vsel %vm7299, %v8283, 0
      %v8301 = vsel %vm7300, %v8284, 0
      %v8302 = vsel %vm7301, %v8285, 0
      %v8303 = vsel %vm7302, %v8286, 0
      %v8304 = vsel %vm7303, %v8287, 0
      %v8305 = vsel %vm7304, %v8288, 0
      %v8306 = vsel %vm7305, %v8289, 0
      %v8307 = vsel %vm7306, %v8290, 0
      %v8308 = vsel %vm7307, %v8291, 0
      %v8309 = vsel %vm7308, %v8292, 0
      %v8310 = vsel %vm7309, %v8293, 0
      %v8311 = vsel %vm7310, %v8294, 0
      %v8312 = vsel %vm7311, %v8295, 0
      %v8313 = vsel %vm7312, %v8296, 0
      %v8314 = vsel %vm7313, %v8297, 0
      %v8315 = vsel %vm7314, %v8298, 0
      %v8316 = vsel %vm7315, %v8299, 0
      %v8318 = vshrl.u32 %v8300, 16
      %v8320 = vshll.u32 %v8300, 16
      %v8322 = vrot.slane %v8320, 1
      %v8323 = vor.u32 %v8318, %v8322
      %v8325 = vshll.u32 %v8301, 16
      %v8327 = vrot.slane %v8325, 1
      %v8328 = vsel %vm1061, %v8323, %v8327
      %v8329 = vshrl.u32 %v8301, 16
      %v8331 = vor.u32 %v8329, %v8327
      %v8333 = vshll.u32 %v8302, 16
      %v8335 = vrot.slane %v8333, 1
      %v8336 = vsel %vm1061, %v8331, %v8335
      %v8337 = vshrl.u32 %v8302, 16
      %v8339 = vor.u32 %v8337, %v8335
      %v8341 = vshll.u32 %v8303, 16
      %v8343 = vrot.slane %v8341, 1
      %v8344 = vsel %vm1061, %v8339, %v8343
      %v8345 = vshrl.u32 %v8303, 16
      %v8347 = vor.u32 %v8345, %v8343
      %v8349 = vshll.u32 %v8304, 16
      %v8351 = vrot.slane %v8349, 1
      %v8352 = vsel %vm1061, %v8347, %v8351
      %v8353 = vshrl.u32 %v8304, 16
      %v8355 = vor.u32 %v8353, %v8351
      %v8357 = vshll.u32 %v8305, 16
      %v8359 = vrot.slane %v8357, 1
      %v8360 = vsel %vm1061, %v8355, %v8359
      %v8361 = vshrl.u32 %v8305, 16
      %v8363 = vor.u32 %v8361, %v8359
      %v8365 = vshll.u32 %v8306, 16
      %v8367 = vrot.slane %v8365, 1
      %v8368 = vsel %vm1061, %v8363, %v8367
      %v8369 = vshrl.u32 %v8306, 16
      %v8371 = vor.u32 %v8369, %v8367
      %v8373 = vshll.u32 %v8307, 16
      %v8375 = vrot.slane %v8373, 1
      %v8376 = vsel %vm1061, %v8371, %v8375
      %v8377 = vshrl.u32 %v8307, 16
      %v8379 = vor.u32 %v8377, %v8375
      %v8381 = vshll.u32 %v8308, 16
      %v8383 = vrot.slane %v8381, 1
      %v8384 = vsel %vm1061, %v8379, %v8383
      %v8385 = vshrl.u32 %v8308, 16
      %v8387 = vor.u32 %v8385, %v8383
      %v8389 = vshll.u32 %v8309, 16
      %v8391 = vrot.slane %v8389, 1
      %v8392 = vsel %vm1061, %v8387, %v8391
      %v8393 = vshrl.u32 %v8309, 16
      %v8395 = vor.u32 %v8393, %v8391
      %v8397 = vshll.u32 %v8310, 16
      %v8399 = vrot.slane %v8397, 1
      %v8400 = vsel %vm1061, %v8395, %v8399
      %v8401 = vshrl.u32 %v8310, 16
      %v8403 = vor.u32 %v8401, %v8399
      %v8405 = vshll.u32 %v8311, 16
      %v8407 = vrot.slane %v8405, 1
      %v8408 = vsel %vm1061, %v8403, %v8407
      %v8409 = vshrl.u32 %v8311, 16
      %v8411 = vor.u32 %v8409, %v8407
      %v8413 = vshll.u32 %v8312, 16
      %v8415 = vrot.slane %v8413, 1
      %v8416 = vsel %vm1061, %v8411, %v8415
      %v8417 = vshrl.u32 %v8312, 16
      %v8419 = vor.u32 %v8417, %v8415
      %v8421 = vshll.u32 %v8313, 16
      %v8423 = vrot.slane %v8421, 1
      %v8424 = vsel %vm1061, %v8419, %v8423
      %v8425 = vshrl.u32 %v8313, 16
      %v8427 = vor.u32 %v8425, %v8423
      %v8429 = vshll.u32 %v8314, 16
      %v8431 = vrot.slane %v8429, 1
      %v8432 = vsel %vm1061, %v8427, %v8431
      %v8433 = vshrl.u32 %v8314, 16
      %v8435 = vor.u32 %v8433, %v8431
      %v8437 = vshll.u32 %v8315, 16
      %v8439 = vrot.slane %v8437, 1
      %v8440 = vsel %vm1061, %v8435, %v8439
      %v8441 = vshrl.u32 %v8315, 16
      %v8443 = vor.u32 %v8441, %v8439
      %v8445 = vshll.u32 %v8316, 16
      %v8447 = vrot.slane %v8445, 1
      %v8448 = vsel %vm1061, %v8443, %v8447
      %8465 = vst.msk [vmem:[#allocation2 + $0x20] sm:$0xff] %vm928, %v8328
      %8466 = vst.msk [vmem:[#allocation2 + $0x48] sm:$0xff] %vm928, %v8336
      %8467 = vst.msk [vmem:[#allocation2 + $0x70] sm:$0xff] %vm928, %v8344
      %8468 = vst.msk [vmem:[#allocation2 + $0x98] sm:$0xff] %vm928, %v8352
      %8469 = vst.msk [vmem:[#allocation2 + $0xc0] sm:$0xff] %vm928, %v8360
      %8470 = vst.msk [vmem:[#allocation2 + $0xe8] sm:$0xff] %vm928, %v8368
      %8471 = vst.msk [vmem:[#allocation2 + $0x110] sm:$0xff] %vm928, %v8376
      %8472 = vst.msk [vmem:[#allocation2 + $0x138] sm:$0xff] %vm928, %v8384
      %8473 = vst.msk [vmem:[#allocation2 + $0x160] sm:$0xff] %vm928, %v8392
      %8474 = vst.msk [vmem:[#allocation2 + $0x188] sm:$0xff] %vm928, %v8400
      %8475 = vst.msk [vmem:[#allocation2 + $0x1b0] sm:$0xff] %vm928, %v8408
      %8476 = vst.msk [vmem:[#allocation2 + $0x1d8] sm:$0xff] %vm928, %v8416
      %8477 = vst.msk [vmem:[#allocation2 + $0x200] sm:$0xff] %vm928, %v8424
      %8478 = vst.msk [vmem:[#allocation2 + $0x228] sm:$0xff] %vm928, %v8432
      %8479 = vst.msk [vmem:[#allocation2 + $0x250] sm:$0xff] %vm928, %v8440
      %8480 = vst.msk [vmem:[#allocation2 + $0x278] sm:$0xff] %vm928, %v8448
      %v8481 = vld [vmem:[#allocation2] sm:$0xff]
      %v8482 = vld [vmem:[#allocation2 + $0x8] sm:$0xff]
      %v8483 = vld [vmem:[#allocation2 + $0x10] sm:$0xff]
      %v8484 = vld [vmem:[#allocation2 + $0x18] sm:$0xff]
      %v8485 = vld [vmem:[#allocation2 + $0x20] sm:$0xff]
      %v8486 = vld [vmem:[#allocation2 + $0x28] sm:$0xff]
      %v8487 = vld [vmem:[#allocation2 + $0x30] sm:$0xff]
      %v8488 = vld [vmem:[#allocation2 + $0x38] sm:$0xff]
      %v8489 = vld [vmem:[#allocation2 + $0x40] sm:$0xff]
      %v8490 = vld [vmem:[#allocation2 + $0x48] sm:$0xff]
      %v8491 = vld [vmem:[#allocation2 + $0x50] sm:$0xff]
      %v8492 = vld [vmem:[#allocation2 + $0x58] sm:$0xff]
      %v8493 = vld [vmem:[#allocation2 + $0x60] sm:$0xff]
      %v8494 = vld [vmem:[#allocation2 + $0x68] sm:$0xff]
      %v8495 = vld [vmem:[#allocation2 + $0x70] sm:$0xff]
      %v8496 = vld [vmem:[#allocation2 + $0x78] sm:$0xff]
      %v8497 = vld [vmem:[#allocation2 + $0x80] sm:$0xff]
      %v8498 = vld [vmem:[#allocation2 + $0x88] sm:$0xff]
      %v8499 = vld [vmem:[#allocation2 + $0x90] sm:$0xff]
      %v8500 = vld [vmem:[#allocation2 + $0x98] sm:$0xff]
      %v8501 = vld [vmem:[#allocation2 + $0xa0] sm:$0xff]
      %v8502 = vld [vmem:[#allocation2 + $0xa8] sm:$0xff]
      %v8503 = vld [vmem:[#allocation2 + $0xb0] sm:$0xff]
      %v8504 = vld [vmem:[#allocation2 + $0xb8] sm:$0xff]
      %v8505 = vld [vmem:[#allocation2 + $0xc0] sm:$0xff]
      %v8506 = vld [vmem:[#allocation2 + $0xc8] sm:$0xff]
      %v8507 = vld [vmem:[#allocation2 + $0xd0] sm:$0xff]
      %v8508 = vld [vmem:[#allocation2 + $0xd8] sm:$0xff]
      %v8509 = vld [vmem:[#allocation2 + $0xe0] sm:$0xff]
      %v8510 = vld [vmem:[#allocation2 + $0xe8] sm:$0xff]
      %v8511 = vld [vmem:[#allocation2 + $0xf0] sm:$0xff]
      %v8512 = vld [vmem:[#allocation2 + $0xf8] sm:$0xff]
      %v8513 = vld [vmem:[#allocation2 + $0x100] sm:$0xff]
      %v8514 = vld [vmem:[#allocation2 + $0x108] sm:$0xff]
      %v8515 = vld [vmem:[#allocation2 + $0x110] sm:$0xff]
      %v8516 = vld [vmem:[#allocation2 + $0x118] sm:$0xff]
      %v8517 = vld [vmem:[#allocation2 + $0x120] sm:$0xff]
      %v8518 = vld [vmem:[#allocation2 + $0x128] sm:$0xff]
      %v8519 = vld [vmem:[#allocation2 + $0x130] sm:$0xff]
      %v8520 = vld [vmem:[#allocation2 + $0x138] sm:$0xff]
      %v8521 = vld [vmem:[#allocation2 + $0x140] sm:$0xff]
      %v8522 = vld [vmem:[#allocation2 + $0x148] sm:$0xff]
      %v8523 = vld [vmem:[#allocation2 + $0x150] sm:$0xff]
      %v8524 = vld [vmem:[#allocation2 + $0x158] sm:$0xff]
      %v8525 = vld [vmem:[#allocation2 + $0x160] sm:$0xff]
      %v8526 = vld [vmem:[#allocation2 + $0x168] sm:$0xff]
      %v8527 = vld [vmem:[#allocation2 + $0x170] sm:$0xff]
      %v8528 = vld [vmem:[#allocation2 + $0x178] sm:$0xff]
      %v8529 = vld [vmem:[#allocation2 + $0x180] sm:$0xff]
      %v8530 = vld [vmem:[#allocation2 + $0x188] sm:$0xff]
      %v8531 = vld [vmem:[#allocation2 + $0x190] sm:$0xff]
      %v8532 = vld [vmem:[#allocation2 + $0x198] sm:$0xff]
      %v8533 = vld [vmem:[#allocation2 + $0x1a0] sm:$0xff]
      %v8534 = vld [vmem:[#allocation2 + $0x1a8] sm:$0xff]
      %v8535 = vld [vmem:[#allocation2 + $0x1b0] sm:$0xff]
      %v8536 = vld [vmem:[#allocation2 + $0x1b8] sm:$0xff]
      %v8537 = vld [vmem:[#allocation2 + $0x1c0] sm:$0xff]
      %v8538 = vld [vmem:[#allocation2 + $0x1c8] sm:$0xff]
      %v8539 = vld [vmem:[#allocation2 + $0x1d0] sm:$0xff]
      %v8540 = vld [vmem:[#allocation2 + $0x1d8] sm:$0xff]
      %v8541 = vld [vmem:[#allocation2 + $0x1e0] sm:$0xff]
      %v8542 = vld [vmem:[#allocation2 + $0x1e8] sm:$0xff]
      %v8543 = vld [vmem:[#allocation2 + $0x1f0] sm:$0xff]
      %v8544 = vld [vmem:[#allocation2 + $0x1f8] sm:$0xff]
      %v8545 = vld [vmem:[#allocation2 + $0x200] sm:$0xff]
      %v8546 = vld [vmem:[#allocation2 + $0x208] sm:$0xff]
      %v8547 = vld [vmem:[#allocation2 + $0x210] sm:$0xff]
      %v8548 = vld [vmem:[#allocation2 + $0x218] sm:$0xff]
      %v8549 = vld [vmem:[#allocation2 + $0x220] sm:$0xff]
      %v8550 = vld [vmem:[#allocation2 + $0x228] sm:$0xff]
      %v8551 = vld [vmem:[#allocation2 + $0x230] sm:$0xff]
      %v8552 = vld [vmem:[#allocation2 + $0x238] sm:$0xff]
      %v8553 = vld [vmem:[#allocation2 + $0x240] sm:$0xff]
      %v8554 = vld [vmem:[#allocation2 + $0x248] sm:$0xff]
      %v8555 = vld [vmem:[#allocation2 + $0x250] sm:$0xff]
      %v8556 = vld [vmem:[#allocation2 + $0x258] sm:$0xff]
      %v8557 = vld [vmem:[#allocation2 + $0x260] sm:$0xff]
      %v8558 = vld [vmem:[#allocation2 + $0x268] sm:$0xff]
      %v8559 = vld [vmem:[#allocation2 + $0x270] sm:$0xff]
      %v8560 = vld [vmem:[#allocation2 + $0x278] sm:$0xff]
      %v8561 = vld [vmem:[%s3] sm:$0xf]
      %v8562 = vld [vmem:[%s3 + $0x4] sm:$0xf]
      %v8563 = vld [vmem:[%s3 + $0x8] sm:$0xf]
      %v8564 = vld [vmem:[%s3 + $0xc] sm:$0xf]
      %v8565 = vld [vmem:[%s3 + $0x10] sm:$0xf]
      %v8566 = vld [vmem:[%s3 + $0x14] sm:$0xf]
      %v8567 = vld [vmem:[%s3 + $0x18] sm:$0xf]
      %v8568 = vld [vmem:[%s3 + $0x1c] sm:$0xf]
      %v8569 = vld [vmem:[%s3 + $0x20] sm:$0xf]
      %v8570 = vld [vmem:[%s3 + $0x24] sm:$0xf]
      %v8571 = vld [vmem:[%s3 + $0x28] sm:$0xf]
      %v8572 = vld [vmem:[%s3 + $0x2c] sm:$0xf]
      %v8573 = vld [vmem:[%s3 + $0x30] sm:$0xf]
      %v8574 = vld [vmem:[%s3 + $0x34] sm:$0xf]
      %v8575 = vld [vmem:[%s3 + $0x38] sm:$0xf]
      %v8576 = vld [vmem:[%s3 + $0x3c] sm:$0xf]
      %v8577 = vld [vmem:[%s3 + $0x40] sm:$0xf]
      %v8578 = vld [vmem:[%s3 + $0x44] sm:$0xf]
      %v8579 = vld [vmem:[%s3 + $0x48] sm:$0xf]
      %v8580 = vld [vmem:[%s3 + $0x4c] sm:$0xf]
      %v8581 = vld [vmem:[%s3 + $0x50] sm:$0xf]
      %v8582 = vld [vmem:[%s3 + $0x54] sm:$0xf]
      %v8583 = vld [vmem:[%s3 + $0x58] sm:$0xf]
      %v8584 = vld [vmem:[%s3 + $0x5c] sm:$0xf]
      %v8585 = vld [vmem:[%s3 + $0x60] sm:$0xf]
      %v8586 = vld [vmem:[%s3 + $0x64] sm:$0xf]
      %v8587 = vld [vmem:[%s3 + $0x68] sm:$0xf]
      %v8588 = vld [vmem:[%s3 + $0x6c] sm:$0xf]
      %v8589 = vld [vmem:[%s3 + $0x70] sm:$0xf]
      %v8590 = vld [vmem:[%s3 + $0x74] sm:$0xf]
      %v8591 = vld [vmem:[%s3 + $0x78] sm:$0xf]
      %v8592 = vld [vmem:[%s3 + $0x7c] sm:$0xf]
      %v8593 = vld [vmem:[%s3 + $0x80] sm:$0xf]
      %v8594 = vld [vmem:[%s3 + $0x84] sm:$0xf]
      %v8595 = vld [vmem:[%s3 + $0x88] sm:$0xf]
      %v8596 = vld [vmem:[%s3 + $0x8c] sm:$0xf]
      %v8597 = vld [vmem:[%s3 + $0x90] sm:$0xf]
      %v8598 = vld [vmem:[%s3 + $0x94] sm:$0xf]
      %v8599 = vld [vmem:[%s3 + $0x98] sm:$0xf]
      %v8600 = vld [vmem:[%s3 + $0x9c] sm:$0xf]
      %v8601 = vld [vmem:[%s3 + $0xa0] sm:$0xf]
      %v8602 = vld [vmem:[%s3 + $0xa4] sm:$0xf]
      %v8603 = vld [vmem:[%s3 + $0xa8] sm:$0xf]
      %v8604 = vld [vmem:[%s3 + $0xac] sm:$0xf]
      %v8605 = vld [vmem:[%s3 + $0xb0] sm:$0xf]
      %v8606 = vld [vmem:[%s3 + $0xb4] sm:$0xf]
      %v8607 = vld [vmem:[%s3 + $0xb8] sm:$0xf]
      %v8608 = vld [vmem:[%s3 + $0xbc] sm:$0xf]
      %v8609 = vld [vmem:[%s3 + $0xc0] sm:$0xf]
      %v8610 = vld [vmem:[%s3 + $0xc4] sm:$0xf]
      %v8611 = vld [vmem:[%s3 + $0xc8] sm:$0xf]
      %v8612 = vld [vmem:[%s3 + $0xcc] sm:$0xf]
      %v8613 = vld [vmem:[%s3 + $0xd0] sm:$0xf]
      %v8614 = vld [vmem:[%s3 + $0xd4] sm:$0xf]
      %v8615 = vld [vmem:[%s3 + $0xd8] sm:$0xf]
      %v8616 = vld [vmem:[%s3 + $0xdc] sm:$0xf]
      %v8617 = vld [vmem:[%s3 + $0xe0] sm:$0xf]
      %v8618 = vld [vmem:[%s3 + $0xe4] sm:$0xf]
      %v8619 = vld [vmem:[%s3 + $0xe8] sm:$0xf]
      %v8620 = vld [vmem:[%s3 + $0xec] sm:$0xf]
      %v8621 = vld [vmem:[%s3 + $0xf0] sm:$0xf]
      %v8622 = vld [vmem:[%s3 + $0xf4] sm:$0xf]
      %v8623 = vld [vmem:[%s3 + $0xf8] sm:$0xf]
      %v8624 = vld [vmem:[%s3 + $0xfc] sm:$0xf]
      %v8625 = vld [vmem:[%s3 + $0x100] sm:$0xf]
      %v8626 = vld [vmem:[%s3 + $0x104] sm:$0xf]
      %v8627 = vld [vmem:[%s3 + $0x108] sm:$0xf]
      %v8628 = vld [vmem:[%s3 + $0x10c] sm:$0xf]
      %v8629 = vld [vmem:[%s3 + $0x110] sm:$0xf]
      %v8630 = vld [vmem:[%s3 + $0x114] sm:$0xf]
      %v8631 = vld [vmem:[%s3 + $0x118] sm:$0xf]
      %v8632 = vld [vmem:[%s3 + $0x11c] sm:$0xf]
      %v8633 = vld [vmem:[%s5 + $0x1] sm:$0x1]
      %v8634 = vlaneseq
      %v8635 = vshrl.u32 %v8634, 7
      %v8636 = vsub.s32 0, %v8635
      %v8637 = vrot.slane %v8633, %v8636
      %v8710 = vunpack.c.l.b16 %v8561
      %v8711 = vunpack.c.l.b16 %v8562
      %v8712 = vunpack.c.l.b16 %v8563
      %v8713 = vunpack.c.l.b16 %v8564
      %v8714 = vunpack.c.l.b16 %v8565
      %v8715 = vunpack.c.l.b16 %v8566
      %v8716 = vunpack.c.l.b16 %v8567
      %v8717 = vunpack.c.l.b16 %v8568
      %v8718 = vunpack.c.l.b16 %v8569
      %v8719 = vunpack.c.l.b16 %v8570
      %v8720 = vunpack.c.l.b16 %v8571
      %v8721 = vunpack.c.l.b16 %v8572
      %v8722 = vunpack.c.l.b16 %v8573
      %v8723 = vunpack.c.l.b16 %v8574
      %v8724 = vunpack.c.l.b16 %v8575
      %v8725 = vunpack.c.l.b16 %v8576
      %v8726 = vunpack.c.l.b16 %v8577
      %v8727 = vunpack.c.l.b16 %v8578
      %v8728 = vunpack.c.l.b16 %v8579
      %v8729 = vunpack.c.l.b16 %v8580
      %v8730 = vunpack.c.l.b16 %v8581
      %v8731 = vunpack.c.l.b16 %v8582
      %v8732 = vunpack.c.l.b16 %v8583
      %v8733 = vunpack.c.l.b16 %v8584
      %v8734 = vunpack.c.l.b16 %v8585
      %v8735 = vunpack.c.l.b16 %v8586
      %v8736 = vunpack.c.l.b16 %v8587
      %v8737 = vunpack.c.l.b16 %v8588
      %v8738 = vunpack.c.l.b16 %v8589
      %v8739 = vunpack.c.l.b16 %v8590
      %v8740 = vunpack.c.l.b16 %v8591
      %v8741 = vunpack.c.l.b16 %v8592
      %v8742 = vunpack.c.l.b16 %v8593
      %v8743 = vunpack.c.l.b16 %v8594
      %v8744 = vunpack.c.l.b16 %v8595
      %v8745 = vunpack.c.l.b16 %v8596
      %v8746 = vunpack.c.l.b16 %v8597
      %v8747 = vunpack.c.l.b16 %v8598
      %v8748 = vunpack.c.l.b16 %v8599
      %v8749 = vunpack.c.l.b16 %v8600
      %v8750 = vunpack.c.l.b16 %v8601
      %v8751 = vunpack.c.l.b16 %v8602
      %v8752 = vunpack.c.l.b16 %v8603
      %v8753 = vunpack.c.l.b16 %v8604
      %v8754 = vunpack.c.l.b16 %v8605
      %v8755 = vunpack.c.l.b16 %v8606
      %v8756 = vunpack.c.l.b16 %v8607
      %v8757 = vunpack.c.l.b16 %v8608
      %v8758 = vunpack.c.l.b16 %v8609
      %v8759 = vunpack.c.l.b16 %v8610
      %v8760 = vunpack.c.l.b16 %v8611
      %v8761 = vunpack.c.l.b16 %v8612
      %v8762 = vunpack.c.l.b16 %v8613
      %v8763 = vunpack.c.l.b16 %v8614
      %v8764 = vunpack.c.l.b16 %v8615
      %v8765 = vunpack.c.l.b16 %v8616
      %v8766 = vunpack.c.l.b16 %v8617
      %v8767 = vunpack.c.l.b16 %v8618
      %v8768 = vunpack.c.l.b16 %v8619
      %v8769 = vunpack.c.l.b16 %v8620
      %v8770 = vunpack.c.l.b16 %v8621
      %v8771 = vunpack.c.l.b16 %v8622
      %v8772 = vunpack.c.l.b16 %v8623
      %v8773 = vunpack.c.l.b16 %v8624
      %v8774 = vunpack.c.l.b16 %v8625
      %v8775 = vunpack.c.l.b16 %v8626
      %v8776 = vunpack.c.l.b16 %v8627
      %v8777 = vunpack.c.l.b16 %v8628
      %v8778 = vunpack.c.l.b16 %v8629
      %v8779 = vunpack.c.l.b16 %v8630
      %v8780 = vunpack.c.l.b16 %v8631
      %v8781 = vunpack.c.l.b16 %v8632
      %v8782 = vpack.c.b16 %v8711, %v8710
      %v8783 = vpack.c.b16 %v8713, %v8712
      %v8784 = vpack.c.b16 %v8715, %v8714
      %v8785 = vpack.c.b16 %v8717, %v8716
      %v8786 = vpack.c.b16 %v8719, %v8718
      %v8787 = vpack.c.b16 %v8721, %v8720
      %v8788 = vpack.c.b16 %v8723, %v8722
      %v8789 = vpack.c.b16 %v8725, %v8724
      %v8790 = vpack.c.b16 %v8727, %v8726
      %v8791 = vpack.c.b16 %v8729, %v8728
      %v8792 = vpack.c.b16 %v8731, %v8730
      %v8793 = vpack.c.b16 %v8733, %v8732
      %v8794 = vpack.c.b16 %v8735, %v8734
      %v8795 = vpack.c.b16 %v8737, %v8736
      %v8796 = vpack.c.b16 %v8739, %v8738
      %v8797 = vpack.c.b16 %v8741, %v8740
      %v8798 = vpack.c.b16 %v8743, %v8742
      %v8799 = vpack.c.b16 %v8745, %v8744
      %v8800 = vpack.c.b16 %v8747, %v8746
      %v8801 = vpack.c.b16 %v8749, %v8748
      %v8802 = vpack.c.b16 %v8751, %v8750
      %v8803 = vpack.c.b16 %v8753, %v8752
      %v8804 = vpack.c.b16 %v8755, %v8754
      %v8805 = vpack.c.b16 %v8757, %v8756
      %v8806 = vpack.c.b16 %v8759, %v8758
      %v8807 = vpack.c.b16 %v8761, %v8760
      %v8808 = vpack.c.b16 %v8763, %v8762
      %v8809 = vpack.c.b16 %v8765, %v8764
      %v8810 = vpack.c.b16 %v8767, %v8766
      %v8811 = vpack.c.b16 %v8769, %v8768
      %v8812 = vpack.c.b16 %v8771, %v8770
      %v8813 = vpack.c.b16 %v8773, %v8772
      %v8814 = vpack.c.b16 %v8775, %v8774
      %v8815 = vpack.c.b16 %v8777, %v8776
      %v8816 = vpack.c.b16 %v8779, %v8778
      %v8817 = vpack.c.b16 %v8781, %v8780
      %v8855 = vsel %vm928, %v8485, 0
      %v8858 = vsel %vm928, %v8490, 0
      %v8861 = vsel %vm928, %v8495, 0
      %v8864 = vsel %vm928, %v8500, 0
      %v8867 = vsel %vm928, %v8505, 0
      %v8870 = vsel %vm928, %v8510, 0
      %v8873 = vsel %vm928, %v8515, 0
      %v8876 = vsel %vm928, %v8520, 0
      %v8879 = vsel %vm928, %v8525, 0
      %v8882 = vsel %vm928, %v8530, 0
      %v8885 = vsel %vm928, %v8535, 0
      %v8888 = vsel %vm928, %v8540, 0
      %v8891 = vsel %vm928, %v8545, 0
      %v8894 = vsel %vm928, %v8550, 0
      %v8897 = vsel %vm928, %v8555, 0
      %v8900 = vsel %vm928, %v8560, 0
      %8902 = vmatprep.subr.bf16.mxu0 0
      %8903 = vmatpush1.bf16.msra.mxu0 %v8782
      %8904 = vmatprep.subr.bf16.mxu0 0
      %8905 = vmatpush1.bf16.msra.mxu0 %v8783
      %8906 = vmatprep.subr.bf16.mxu0 0
      %8907 = vmatpush1.bf16.msra.mxu0 %v8784
      %8908 = vmatprep.subr.bf16.mxu0 0
      %8909 = vmatpush1.bf16.msra.mxu0 %v8785
      %8910 = vmatprep.subr.bf16.mxu0 0
      %8911 = vmatpush1.bf16.msra.mxu0 %v8786
      %8912 = vmatprep.subr.bf16.mxu0 0
      %8913 = vmatpush1.bf16.msra.mxu0 %v8787
      %8914 = vmatprep.subr.bf16.mxu0 0
      %8915 = vmatpush1.bf16.msra.mxu0 %v8788
      %8916 = vmatprep.subr.bf16.mxu0 0
      %8917 = vmatpush1.bf16.msra.mxu0 %v8789
      %8918 = vmatprep.subr.bf16.mxu0 0
      %8919 = vmatpush1.bf16.msra.mxu0 %v8790
      %8920 = vmatprep.subr.bf16.mxu0 0
      %8921 = vmatpush1.bf16.msra.mxu0 %v8791
      %8922 = vmatprep.subr.bf16.mxu0 0
      %8923 = vmatpush1.bf16.msra.mxu0 %v8792
      %8924 = vmatprep.subr.bf16.mxu0 0
      %8925 = vmatpush1.bf16.msra.mxu0 %v8793
      %8926 = vmatprep.subr.bf16.mxu0 0
      %8927 = vmatpush1.bf16.msra.mxu0 %v8794
      %8928 = vmatprep.subr.bf16.mxu0 0
      %8929 = vmatpush1.bf16.msra.mxu0 %v8795
      %8930 = vmatprep.subr.bf16.mxu0 0
      %8931 = vmatpush1.bf16.msra.mxu0 %v8796
      %8932 = vmatprep.subr.bf16.mxu0 0
      %8933 = vmatpush1.bf16.msra.mxu0 %v8797
      %8934 = vmatprep.mubr.bf16.mxu0 %v8482
      %8935 = vmatmul.mubr.bf16.gmra.mrb[0].mxu0 %v8481
      %v8936 = vpop.f32.mrb[0].mxu0
      %v8937 = vadd.f32 %v8637, %v8936
      %v8938 = vpop.f32.mrb[0].mxu0
      %v8939 = vpop.f32.mrb[0].mxu0
      %v8940 = vadd.f32 %v8637, %v8939
      %v8941 = vpop.f32.mrb[0].mxu0
      %8942 = vmatprep.mubr.bf16.mxu0 %v8487
      %8943 = vmatmul.mubr.bf16.gmra.mrb[0].mxu0 %v8486
      %v8944 = vpop.f32.mrb[0].mxu0
      %v8945 = vadd.f32 %v8637, %v8944
      %v8946 = vpop.f32.mrb[0].mxu0
      %v8947 = vpop.f32.mrb[0].mxu0
      %v8948 = vadd.f32 %v8637, %v8947
      %v8949 = vpop.f32.mrb[0].mxu0
      %8950 = vmatprep.mubr.bf16.mxu0 %v8492
      %8951 = vmatmul.mubr.bf16.gmra.mrb[0].mxu0 %v8491
      %v8952 = vpop.f32.mrb[0].mxu0
      %v8953 = vadd.f32 %v8637, %v8952
      %v8954 = vpop.f32.mrb[0].mxu0
      %v8955 = vpop.f32.mrb[0].mxu0
      %v8956 = vadd.f32 %v8637, %v8955
      %v8957 = vpop.f32.mrb[0].mxu0
      %8958 = vmatprep.mubr.bf16.mxu0 %v8497
      %8959 = vmatmul.mubr.bf16.gmra.mrb[0].mxu0 %v8496
      %v8960 = vpop.f32.mrb[0].mxu0
      %v8961 = vadd.f32 %v8637, %v8960
      %v8962 = vpop.f32.mrb[0].mxu0
      %v8963 = vpop.f32.mrb[0].mxu0
      %v8964 = vadd.f32 %v8637, %v8963
      %v8965 = vpop.f32.mrb[0].mxu0
      %8966 = vmatprep.mubr.bf16.mxu0 %v8502
      %8967 = vmatmul.mubr.bf16.gmra.mrb[0].mxu0 %v8501
      %v8968 = vpop.f32.mrb[0].mxu0
      %v8969 = vadd.f32 %v8637, %v8968
      %v8970 = vpop.f32.mrb[0].mxu0
      %v8971 = vpop.f32.mrb[0].mxu0
      %v8972 = vadd.f32 %v8637, %v8971
      %v8973 = vpop.f32.mrb[0].mxu0
      %8974 = vmatprep.mubr.bf16.mxu0 %v8507
      %8975 = vmatmul.mubr.bf16.gmra.mrb[0].mxu0 %v8506
      %v8976 = vpop.f32.mrb[0].mxu0
      %v8977 = vadd.f32 %v8637, %v8976
      %v8978 = vpop.f32.mrb[0].mxu0
      %v8979 = vpop.f32.mrb[0].mxu0
      %v8980 = vadd.f32 %v8637, %v8979
      %v8981 = vpop.f32.mrb[0].mxu0
      %8982 = vmatprep.mubr.bf16.mxu0 %v8512
      %8983 = vmatmul.mubr.bf16.gmra.mrb[0].mxu0 %v8511
      %v8984 = vpop.f32.mrb[0].mxu0
      %v8985 = vadd.f32 %v8637, %v8984
      %v8986 = vpop.f32.mrb[0].mxu0
      %v8987 = vpop.f32.mrb[0].mxu0
      %v8988 = vadd.f32 %v8637, %v8987
      %v8989 = vpop.f32.mrb[0].mxu0
      %8990 = vmatprep.mubr.bf16.mxu0 %v8517
      %8991 = vmatmul.mubr.bf16.gmra.mrb[0].mxu0 %v8516
      %v8992 = vpop.f32.mrb[0].mxu0
      %v8993 = vadd.f32 %v8637, %v8992
      %v8994 = vpop.f32.mrb[0].mxu0
      %v8995 = vpop.f32.mrb[0].mxu0
      %v8996 = vadd.f32 %v8637, %v8995
      %v8997 = vpop.f32.mrb[0].mxu0
      %8998 = vmatprep.mubr.bf16.mxu0 %v8522
      %8999 = vmatmul.mubr.bf16.gmra.mrb[0].mxu0 %v8521
      %v9000 = vpop.f32.mrb[0].mxu0
      %v9001 = vadd.f32 %v8637, %v9000
      %v9002 = vpop.f32.mrb[0].mxu0
      %v9003 = vpop.f32.mrb[0].mxu0
      %v9004 = vadd.f32 %v8637, %v9003
      %v9005 = vpop.f32.mrb[0].mxu0
      %9006 = vmatprep.mubr.bf16.mxu0 %v8527
      %9007 = vmatmul.mubr.bf16.gmra.mrb[0].mxu0 %v8526
      %v9008 = vpop.f32.mrb[0].mxu0
      %v9009 = vadd.f32 %v8637, %v9008
      %v9010 = vpop.f32.mrb[0].mxu0
      %v9011 = vpop.f32.mrb[0].mxu0
      %v9012 = vadd.f32 %v8637, %v9011
      %v9013 = vpop.f32.mrb[0].mxu0
      %9014 = vmatprep.mubr.bf16.mxu0 %v8532
      %9015 = vmatmul.mubr.bf16.gmra.mrb[0].mxu0 %v8531
      %v9016 = vpop.f32.mrb[0].mxu0
      %v9017 = vadd.f32 %v8637, %v9016
      %v9018 = vpop.f32.mrb[0].mxu0
      %v9019 = vpop.f32.mrb[0].mxu0
      %v9020 = vadd.f32 %v8637, %v9019
      %v9021 = vpop.f32.mrb[0].mxu0
      %9022 = vmatprep.mubr.bf16.mxu0 %v8537
      %9023 = vmatmul.mubr.bf16.gmra.mrb[0].mxu0 %v8536
      %v9024 = vpop.f32.mrb[0].mxu0
      %v9025 = vadd.f32 %v8637, %v9024
      %v9026 = vpop.f32.mrb[0].mxu0
      %v9027 = vpop.f32.mrb[0].mxu0
      %v9028 = vadd.f32 %v8637, %v9027
      %v9029 = vpop.f32.mrb[0].mxu0
      %9030 = vmatprep.mubr.bf16.mxu0 %v8542
      %9031 = vmatmul.mubr.bf16.gmra.mrb[0].mxu0 %v8541
      %v9032 = vpop.f32.mrb[0].mxu0
      %v9033 = vadd.f32 %v8637, %v9032
      %v9034 = vpop.f32.mrb[0].mxu0
      %v9035 = vpop.f32.mrb[0].mxu0
      %v9036 = vadd.f32 %v8637, %v9035
      %v9037 = vpop.f32.mrb[0].mxu0
      %9038 = vmatprep.mubr.bf16.mxu0 %v8547
      %9039 = vmatmul.mubr.bf16.gmra.mrb[0].mxu0 %v8546
      %v9040 = vpop.f32.mrb[0].mxu0
      %v9041 = vadd.f32 %v8637, %v9040
      %v9042 = vpop.f32.mrb[0].mxu0
      %v9043 = vpop.f32.mrb[0].mxu0
      %v9044 = vadd.f32 %v8637, %v9043
      %v9045 = vpop.f32.mrb[0].mxu0
      %9046 = vmatprep.mubr.bf16.mxu0 %v8552
      %9047 = vmatmul.mubr.bf16.gmra.mrb[0].mxu0 %v8551
      %v9048 = vpop.f32.mrb[0].mxu0
      %v9049 = vadd.f32 %v8637, %v9048
      %v9050 = vpop.f32.mrb[0].mxu0
      %v9051 = vpop.f32.mrb[0].mxu0
      %v9052 = vadd.f32 %v8637, %v9051
      %v9053 = vpop.f32.mrb[0].mxu0
      %9054 = vmatprep.mubr.bf16.mxu0 %v8557
      %9055 = vmatmul.mubr.bf16.gmra.mrb[0].mxu0 %v8556
      %v9056 = vpop.f32.mrb[0].mxu0
      %v9057 = vadd.f32 %v8637, %v9056
      %v9058 = vpop.f32.mrb[0].mxu0
      %v9059 = vpop.f32.mrb[0].mxu0
      %v9060 = vadd.f32 %v8637, %v9059
      %v9061 = vpop.f32.mrb[0].mxu0
      %9062 = vdwg.mxu0
      %9063 = vmatprep.subr.bf16.mxu0 0
      %9064 = vmatpush1.bf16.msra.mxu0 %v8798
      %9065 = vmatprep.subr.bf16.mxu0 0
      %9066 = vmatpush1.bf16.msra.mxu0 %v8799
      %9067 = vmatprep.subr.bf16.mxu0 0
      %9068 = vmatpush1.bf16.msra.mxu0 %v8800
      %9069 = vmatprep.subr.bf16.mxu0 0
      %9070 = vmatpush1.bf16.msra.mxu0 %v8801
      %9071 = vmatprep.subr.bf16.mxu0 0
      %9072 = vmatpush1.bf16.msra.mxu0 %v8802
      %9073 = vmatprep.subr.bf16.mxu0 0
      %9074 = vmatpush1.bf16.msra.mxu0 %v8803
      %9075 = vmatprep.subr.bf16.mxu0 0
      %9076 = vmatpush1.bf16.msra.mxu0 %v8804
      %9077 = vmatprep.subr.bf16.mxu0 0
      %9078 = vmatpush1.bf16.msra.mxu0 %v8805
      %9079 = vmatprep.subr.bf16.mxu0 0
      %9080 = vmatpush1.bf16.msra.mxu0 %v8806
      %9081 = vmatprep.subr.bf16.mxu0 0
      %9082 = vmatpush1.bf16.msra.mxu0 %v8807
      %9083 = vmatprep.subr.bf16.mxu0 0
      %9084 = vmatpush1.bf16.msra.mxu0 %v8808
      %9085 = vmatprep.subr.bf16.mxu0 0
      %9086 = vmatpush1.bf16.msra.mxu0 %v8809
      %9087 = vmatprep.subr.bf16.mxu0 0
      %9088 = vmatpush1.bf16.msra.mxu0 %v8810
      %9089 = vmatprep.subr.bf16.mxu0 0
      %9090 = vmatpush1.bf16.msra.mxu0 %v8811
      %9091 = vmatprep.subr.bf16.mxu0 0
      %9092 = vmatpush1.bf16.msra.mxu0 %v8812
      %9093 = vmatprep.subr.bf16.mxu0 0
      %9094 = vmatpush1.bf16.msra.mxu0 %v8813
      %9095 = vmatprep.mubr.bf16.mxu0 %v8484
      %9096 = vmatmul.mubr.bf16.gmra.mrb[0].mxu0 %v8483
      %v9097 = vpop.f32.mrb[0].mxu0
      %v9098 = vadd.f32 %v8937, %v9097
      %v9099 = vpop.f32.mrb[0].mxu0
      %v9100 = vpop.f32.mrb[0].mxu0
      %v9101 = vadd.f32 %v8940, %v9100
      %v9102 = vpop.f32.mrb[0].mxu0
      %9103 = vmatprep.mubr.bf16.mxu0 %v8489
      %9104 = vmatmul.mubr.bf16.gmra.mrb[0].mxu0 %v8488
      %v9105 = vpop.f32.mrb[0].mxu0
      %v9106 = vadd.f32 %v8945, %v9105
      %v9107 = vpop.f32.mrb[0].mxu0
      %v9108 = vpop.f32.mrb[0].mxu0
      %v9109 = vadd.f32 %v8948, %v9108
      %v9110 = vpop.f32.mrb[0].mxu0
      %9111 = vmatprep.mubr.bf16.mxu0 %v8494
      %9112 = vmatmul.mubr.bf16.gmra.mrb[0].mxu0 %v8493
      %v9113 = vpop.f32.mrb[0].mxu0
      %v9114 = vadd.f32 %v8953, %v9113
      %v9115 = vpop.f32.mrb[0].mxu0
      %v9116 = vpop.f32.mrb[0].mxu0
      %v9117 = vadd.f32 %v8956, %v9116
      %v9118 = vpop.f32.mrb[0].mxu0
      %9119 = vmatprep.mubr.bf16.mxu0 %v8499
      %9120 = vmatmul.mubr.bf16.gmra.mrb[0].mxu0 %v8498
      %v9121 = vpop.f32.mrb[0].mxu0
      %v9122 = vadd.f32 %v8961, %v9121
      %v9123 = vpop.f32.mrb[0].mxu0
      %v9124 = vpop.f32.mrb[0].mxu0
      %v9125 = vadd.f32 %v8964, %v9124
      %v9126 = vpop.f32.mrb[0].mxu0
      %9127 = vmatprep.mubr.bf16.mxu0 %v8504
      %9128 = vmatmul.mubr.bf16.gmra.mrb[0].mxu0 %v8503
      %v9129 = vpop.f32.mrb[0].mxu0
      %v9130 = vadd.f32 %v8969, %v9129
      %v9131 = vpop.f32.mrb[0].mxu0
      %v9132 = vpop.f32.mrb[0].mxu0
      %v9133 = vadd.f32 %v8972, %v9132
      %v9134 = vpop.f32.mrb[0].mxu0
      %9135 = vmatprep.mubr.bf16.mxu0 %v8509
      %9136 = vmatmul.mubr.bf16.gmra.mrb[0].mxu0 %v8508
      %v9137 = vpop.f32.mrb[0].mxu0
      %v9138 = vadd.f32 %v8977, %v9137
      %v9139 = vpop.f32.mrb[0].mxu0
      %v9140 = vpop.f32.mrb[0].mxu0
      %v9141 = vadd.f32 %v8980, %v9140
      %v9142 = vpop.f32.mrb[0].mxu0
      %9143 = vmatprep.mubr.bf16.mxu0 %v8514
      %9144 = vmatmul.mubr.bf16.gmra.mrb[0].mxu0 %v8513
      %v9145 = vpop.f32.mrb[0].mxu0
      %v9146 = vadd.f32 %v8985, %v9145
      %v9147 = vpop.f32.mrb[0].mxu0
      %v9148 = vpop.f32.mrb[0].mxu0
      %v9149 = vadd.f32 %v8988, %v9148
      %v9150 = vpop.f32.mrb[0].mxu0
      %9151 = vmatprep.mubr.bf16.mxu0 %v8519
      %9152 = vmatmul.mubr.bf16.gmra.mrb[0].mxu0 %v8518
      %v9153 = vpop.f32.mrb[0].mxu0
      %v9154 = vadd.f32 %v8993, %v9153
      %v9155 = vpop.f32.mrb[0].mxu0
      %v9156 = vpop.f32.mrb[0].mxu0
      %v9157 = vadd.f32 %v8996, %v9156
      %v9158 = vpop.f32.mrb[0].mxu0
      %9159 = vmatprep.mubr.bf16.mxu0 %v8524
      %9160 = vmatmul.mubr.bf16.gmra.mrb[0].mxu0 %v8523
      %v9161 = vpop.f32.mrb[0].mxu0
      %v9162 = vadd.f32 %v9001, %v9161
      %v9163 = vpop.f32.mrb[0].mxu0
      %v9164 = vpop.f32.mrb[0].mxu0
      %v9165 = vadd.f32 %v9004, %v9164
      %v9166 = vpop.f32.mrb[0].mxu0
      %9167 = vmatprep.mubr.bf16.mxu0 %v8529
      %9168 = vmatmul.mubr.bf16.gmra.mrb[0].mxu0 %v8528
      %v9169 = vpop.f32.mrb[0].mxu0
      %v9170 = vadd.f32 %v9009, %v9169
      %v9171 = vpop.f32.mrb[0].mxu0
      %v9172 = vpop.f32.mrb[0].mxu0
      %v9173 = vadd.f32 %v9012, %v9172
      %v9174 = vpop.f32.mrb[0].mxu0
      %9175 = vmatprep.mubr.bf16.mxu0 %v8534
      %9176 = vmatmul.mubr.bf16.gmra.mrb[0].mxu0 %v8533
      %v9177 = vpop.f32.mrb[0].mxu0
      %v9178 = vadd.f32 %v9017, %v9177
      %v9179 = vpop.f32.mrb[0].mxu0
      %v9180 = vpop.f32.mrb[0].mxu0
      %v9181 = vadd.f32 %v9020, %v9180
      %v9182 = vpop.f32.mrb[0].mxu0
      %9183 = vmatprep.mubr.bf16.mxu0 %v8539
      %9184 = vmatmul.mubr.bf16.gmra.mrb[0].mxu0 %v8538
      %v9185 = vpop.f32.mrb[0].mxu0
      %v9186 = vadd.f32 %v9025, %v9185
      %v9187 = vpop.f32.mrb[0].mxu0
      %v9188 = vpop.f32.mrb[0].mxu0
      %v9189 = vadd.f32 %v9028, %v9188
      %v9190 = vpop.f32.mrb[0].mxu0
      %9191 = vmatprep.mubr.bf16.mxu0 %v8544
      %9192 = vmatmul.mubr.bf16.gmra.mrb[0].mxu0 %v8543
      %v9193 = vpop.f32.mrb[0].mxu0
      %v9194 = vadd.f32 %v9033, %v9193
      %v9195 = vpop.f32.mrb[0].mxu0
      %v9196 = vpop.f32.mrb[0].mxu0
      %v9197 = vadd.f32 %v9036, %v9196
      %v9198 = vpop.f32.mrb[0].mxu0
      %9199 = vmatprep.mubr.bf16.mxu0 %v8549
      %9200 = vmatmul.mubr.bf16.gmra.mrb[0].mxu0 %v8548
      %v9201 = vpop.f32.mrb[0].mxu0
      %v9202 = vadd.f32 %v9041, %v9201
      %v9203 = vpop.f32.mrb[0].mxu0
      %v9204 = vpop.f32.mrb[0].mxu0
      %v9205 = vadd.f32 %v9044, %v9204
      %v9206 = vpop.f32.mrb[0].mxu0
      %9207 = vmatprep.mubr.bf16.mxu0 %v8554
      %9208 = vmatmul.mubr.bf16.gmra.mrb[0].mxu0 %v8553
      %v9209 = vpop.f32.mrb[0].mxu0
      %v9210 = vadd.f32 %v9049, %v9209
      %v9211 = vpop.f32.mrb[0].mxu0
      %v9212 = vpop.f32.mrb[0].mxu0
      %v9213 = vadd.f32 %v9052, %v9212
      %v9214 = vpop.f32.mrb[0].mxu0
      %9215 = vmatprep.mubr.bf16.mxu0 %v8559
      %9216 = vmatmul.mubr.bf16.gmra.mrb[0].mxu0 %v8558
      %v9217 = vpop.f32.mrb[0].mxu0
      %v9218 = vadd.f32 %v9057, %v9217
      %v9219 = vpop.f32.mrb[0].mxu0
      %v9220 = vpop.f32.mrb[0].mxu0
      %v9221 = vadd.f32 %v9060, %v9220
      %v9222 = vpop.f32.mrb[0].mxu0
      %9223 = vdwg.mxu0
      %9224 = vmatprep.subr.bf16.mxu0 0
      %9225 = vmatpush1.bf16.msra.mxu0 %v8814
      %9226 = vmatprep.subr.bf16.mxu0 0
      %9227 = vmatpush1.bf16.msra.mxu0 %v8815
      %9228 = vmatprep.subr.bf16.mxu0 0
      %9229 = vmatpush1.bf16.msra.mxu0 %v8816
      %9230 = vmatprep.subr.bf16.mxu0 0
      %9231 = vmatpush1.bf16.msra.mxu0 %v8817
      %9232 = vmatprep.subr.bf16.mxu0 0
      %9233 = vmatpush1.bf16.msra.mxu0 0
      %9234 = vmatprep.subr.bf16.mxu0 0
      %9235 = vmatpush1.bf16.msra.mxu0 0
      %9236 = vmatprep.subr.bf16.mxu0 0
      %9237 = vmatpush1.bf16.msra.mxu0 0
      %9238 = vmatprep.subr.bf16.mxu0 0
      %9239 = vmatpush1.bf16.msra.mxu0 0
      %9240 = vmatprep.subr.bf16.mxu0 0
      %9241 = vmatpush1.bf16.msra.mxu0 0
      %9242 = vmatprep.subr.bf16.mxu0 0
      %9243 = vmatpush1.bf16.msra.mxu0 0
      %9244 = vmatprep.subr.bf16.mxu0 0
      %9245 = vmatpush1.bf16.msra.mxu0 0
      %9246 = vmatprep.subr.bf16.mxu0 0
      %9247 = vmatpush1.bf16.msra.mxu0 0
      %9248 = vmatprep.subr.bf16.mxu0 0
      %9249 = vmatpush1.bf16.msra.mxu0 0
      %9250 = vmatprep.subr.bf16.mxu0 0
      %9251 = vmatpush1.bf16.msra.mxu0 0
      %9252 = vmatprep.subr.bf16.mxu0 0
      %9253 = vmatpush1.bf16.msra.mxu0 0
      %9254 = vmatprep.subr.bf16.mxu0 0
      %9255 = vmatpush1.bf16.msra.mxu0 0
      %9256 = vmatprep.mubr.bf16.mxu0 0
      %9257 = vmatmul.mubr.bf16.gmra.mrb[0].mxu0 %v8855
      %v9258 = vpop.f32.mrb[0].mxu0
      %v9259 = vadd.f32 %v9098, %v9258
      %v9260 = vpop.f32.mrb[0].mxu0
      %v9261 = vpop.f32.mrb[0].mxu0
      %v9262 = vadd.f32 %v9101, %v9261
      %v9263 = vpop.f32.mrb[0].mxu0
      %9264 = vmatprep.mubr.bf16.mxu0 0
      %9265 = vmatmul.mubr.bf16.gmra.mrb[0].mxu0 %v8858
      %v9266 = vpop.f32.mrb[0].mxu0
      %v9267 = vadd.f32 %v9106, %v9266
      %v9268 = vpop.f32.mrb[0].mxu0
      %v9269 = vpop.f32.mrb[0].mxu0
      %v9270 = vadd.f32 %v9109, %v9269
      %v9271 = vpop.f32.mrb[0].mxu0
      %9272 = vmatprep.mubr.bf16.mxu0 0
      %9273 = vmatmul.mubr.bf16.gmra.mrb[0].mxu0 %v8861
      %v9274 = vpop.f32.mrb[0].mxu0
      %v9275 = vadd.f32 %v9114, %v9274
      %v9276 = vpop.f32.mrb[0].mxu0
      %v9277 = vpop.f32.mrb[0].mxu0
      %v9278 = vadd.f32 %v9117, %v9277
      %v9279 = vpop.f32.mrb[0].mxu0
      %9280 = vmatprep.mubr.bf16.mxu0 0
      %9281 = vmatmul.mubr.bf16.gmra.mrb[0].mxu0 %v8864
      %v9282 = vpop.f32.mrb[0].mxu0
      %v9283 = vadd.f32 %v9122, %v9282
      %v9284 = vpop.f32.mrb[0].mxu0
      %v9285 = vpop.f32.mrb[0].mxu0
      %v9286 = vadd.f32 %v9125, %v9285
      %v9287 = vpop.f32.mrb[0].mxu0
      %9288 = vmatprep.mubr.bf16.mxu0 0
      %9289 = vmatmul.mubr.bf16.gmra.mrb[0].mxu0 %v8867
      %v9290 = vpop.f32.mrb[0].mxu0
      %v9291 = vadd.f32 %v9130, %v9290
      %v9292 = vpop.f32.mrb[0].mxu0
      %v9293 = vpop.f32.mrb[0].mxu0
      %v9294 = vadd.f32 %v9133, %v9293
      %v9295 = vpop.f32.mrb[0].mxu0
      %9296 = vmatprep.mubr.bf16.mxu0 0
      %9297 = vmatmul.mubr.bf16.gmra.mrb[0].mxu0 %v8870
      %v9298 = vpop.f32.mrb[0].mxu0
      %v9299 = vadd.f32 %v9138, %v9298
      %v9300 = vpop.f32.mrb[0].mxu0
      %v9301 = vpop.f32.mrb[0].mxu0
      %v9302 = vadd.f32 %v9141, %v9301
      %v9303 = vpop.f32.mrb[0].mxu0
      %9304 = vmatprep.mubr.bf16.mxu0 0
      %9305 = vmatmul.mubr.bf16.gmra.mrb[0].mxu0 %v8873
      %v9306 = vpop.f32.mrb[0].mxu0
      %v9307 = vadd.f32 %v9146, %v9306
      %v9308 = vpop.f32.mrb[0].mxu0
      %v9309 = vpop.f32.mrb[0].mxu0
      %v9310 = vadd.f32 %v9149, %v9309
      %v9311 = vpop.f32.mrb[0].mxu0
      %9312 = vmatprep.mubr.bf16.mxu0 0
      %9313 = vmatmul.mubr.bf16.gmra.mrb[0].mxu0 %v8876
      %v9314 = vpop.f32.mrb[0].mxu0
      %v9315 = vadd.f32 %v9154, %v9314
      %v9316 = vpop.f32.mrb[0].mxu0
      %v9317 = vpop.f32.mrb[0].mxu0
      %v9318 = vadd.f32 %v9157, %v9317
      %v9319 = vpop.f32.mrb[0].mxu0
      %9320 = vmatprep.mubr.bf16.mxu0 0
      %9321 = vmatmul.mubr.bf16.gmra.mrb[0].mxu0 %v8879
      %v9322 = vpop.f32.mrb[0].mxu0
      %v9323 = vadd.f32 %v9162, %v9322
      %v9324 = vpop.f32.mrb[0].mxu0
      %v9325 = vpop.f32.mrb[0].mxu0
      %v9326 = vadd.f32 %v9165, %v9325
      %v9327 = vpop.f32.mrb[0].mxu0
      %9328 = vmatprep.mubr.bf16.mxu0 0
      %9329 = vmatmul.mubr.bf16.gmra.mrb[0].mxu0 %v8882
      %v9330 = vpop.f32.mrb[0].mxu0
      %v9331 = vadd.f32 %v9170, %v9330
      %v9332 = vpop.f32.mrb[0].mxu0
      %v9333 = vpop.f32.mrb[0].mxu0
      %v9334 = vadd.f32 %v9173, %v9333
      %v9335 = vpop.f32.mrb[0].mxu0
      %9336 = vmatprep.mubr.bf16.mxu0 0
      %9337 = vmatmul.mubr.bf16.gmra.mrb[0].mxu0 %v8885
      %v9338 = vpop.f32.mrb[0].mxu0
      %v9339 = vadd.f32 %v9178, %v9338
      %v9340 = vpop.f32.mrb[0].mxu0
      %v9341 = vpop.f32.mrb[0].mxu0
      %v9342 = vadd.f32 %v9181, %v9341
      %v9343 = vpop.f32.mrb[0].mxu0
      %9344 = vmatprep.mubr.bf16.mxu0 0
      %9345 = vmatmul.mubr.bf16.gmra.mrb[0].mxu0 %v8888
      %v9346 = vpop.f32.mrb[0].mxu0
      %v9347 = vadd.f32 %v9186, %v9346
      %v9348 = vpop.f32.mrb[0].mxu0
      %v9349 = vpop.f32.mrb[0].mxu0
      %v9350 = vadd.f32 %v9189, %v9349
      %v9351 = vpop.f32.mrb[0].mxu0
      %9352 = vmatprep.mubr.bf16.mxu0 0
      %9353 = vmatmul.mubr.bf16.gmra.mrb[0].mxu0 %v8891
      %v9354 = vpop.f32.mrb[0].mxu0
      %v9355 = vadd.f32 %v9194, %v9354
      %v9356 = vpop.f32.mrb[0].mxu0
      %v9357 = vpop.f32.mrb[0].mxu0
      %v9358 = vadd.f32 %v9197, %v9357
      %v9359 = vpop.f32.mrb[0].mxu0
      %9360 = vmatprep.mubr.bf16.mxu0 0
      %9361 = vmatmul.mubr.bf16.gmra.mrb[0].mxu0 %v8894
      %v9362 = vpop.f32.mrb[0].mxu0
      %v9363 = vadd.f32 %v9202, %v9362
      %v9364 = vpop.f32.mrb[0].mxu0
      %v9365 = vpop.f32.mrb[0].mxu0
      %v9366 = vadd.f32 %v9205, %v9365
      %v9367 = vpop.f32.mrb[0].mxu0
      %9368 = vmatprep.mubr.bf16.mxu0 0
      %9369 = vmatmul.mubr.bf16.gmra.mrb[0].mxu0 %v8897
      %v9370 = vpop.f32.mrb[0].mxu0
      %v9371 = vadd.f32 %v9210, %v9370
      %v9372 = vpop.f32.mrb[0].mxu0
      %v9373 = vpop.f32.mrb[0].mxu0
      %v9374 = vadd.f32 %v9213, %v9373
      %v9375 = vpop.f32.mrb[0].mxu0
      %9376 = vmatprep.mubr.bf16.mxu0 0
      %9377 = vmatmul.mubr.bf16.gmra.mrb[0].mxu0 %v8900
      %v9378 = vpop.f32.mrb[0].mxu0
      %v9379 = vadd.f32 %v9218, %v9378
      %v9380 = vpop.f32.mrb[0].mxu0
      %v9381 = vpop.f32.mrb[0].mxu0
      %v9382 = vadd.f32 %v9221, %v9381
      %v9383 = vpop.f32.mrb[0].mxu0
      %9384 = vdwg.mxu0
      %v9385 = vld [vmem:[%s5 + $0x2] sm:$0x1]
      %v9386 = vxor.u32 %v9259, 2147483648
      %v9387 = vxor.u32 %v9262, 2147483648
      %v9388 = vxor.u32 %v9267, 2147483648
      %v9389 = vxor.u32 %v9270, 2147483648
      %v9390 = vxor.u32 %v9275, 2147483648
      %v9391 = vxor.u32 %v9278, 2147483648
      %v9392 = vxor.u32 %v9283, 2147483648
      %v9393 = vxor.u32 %v9286, 2147483648
      %v9394 = vxor.u32 %v9291, 2147483648
      %v9395 = vxor.u32 %v9294, 2147483648
      %v9396 = vxor.u32 %v9299, 2147483648
      %v9397 = vxor.u32 %v9302, 2147483648
      %v9398 = vxor.u32 %v9307, 2147483648
      %v9399 = vxor.u32 %v9310, 2147483648
      %v9400 = vxor.u32 %v9315, 2147483648
      %v9401 = vxor.u32 %v9318, 2147483648
      %v9402 = vxor.u32 %v9323, 2147483648
      %v9403 = vxor.u32 %v9326, 2147483648
      %v9404 = vxor.u32 %v9331, 2147483648
      %v9405 = vxor.u32 %v9334, 2147483648
      %v9406 = vxor.u32 %v9339, 2147483648
      %v9407 = vxor.u32 %v9342, 2147483648
      %v9408 = vxor.u32 %v9347, 2147483648
      %v9409 = vxor.u32 %v9350, 2147483648
      %v9410 = vxor.u32 %v9355, 2147483648
      %v9411 = vxor.u32 %v9358, 2147483648
      %v9412 = vxor.u32 %v9363, 2147483648
      %v9413 = vxor.u32 %v9366, 2147483648
      %v9414 = vxor.u32 %v9371, 2147483648
      %v9415 = vxor.u32 %v9374, 2147483648
      %v9416 = vxor.u32 %v9379, 2147483648
      %v9417 = vxor.u32 %v9382, 2147483648
      %v9418 = vmul.f32 %v9386, 1.442695
      %v9419 = vpow.pop %v9418
      %v9420 = vmul.f32 %v9387, 1.442695
      %v9421 = vpow.pop %v9420
      %v9422 = vmul.f32 %v9388, 1.442695
      %v9423 = vpow.pop %v9422
      %v9424 = vmul.f32 %v9389, 1.442695
      %v9425 = vpow.pop %v9424
      %v9426 = vmul.f32 %v9390, 1.442695
      %v9427 = vpow.pop %v9426
      %v9428 = vmul.f32 %v9391, 1.442695
      %v9429 = vpow.pop %v9428
      %v9430 = vmul.f32 %v9392, 1.442695
      %v9431 = vpow.pop %v9430
      %v9432 = vmul.f32 %v9393, 1.442695
      %v9433 = vpow.pop %v9432
      %v9434 = vmul.f32 %v9394, 1.442695
      %v9435 = vpow.pop %v9434
      %v9436 = vmul.f32 %v9395, 1.442695
      %v9437 = vpow.pop %v9436
      %v9438 = vmul.f32 %v9396, 1.442695
      %v9439 = vpow.pop %v9438
      %v9440 = vmul.f32 %v9397, 1.442695
      %v9441 = vpow.pop %v9440
      %v9442 = vmul.f32 %v9398, 1.442695
      %v9443 = vpow.pop %v9442
      %v9444 = vmul.f32 %v9399, 1.442695
      %v9445 = vpow.pop %v9444
      %v9446 = vmul.f32 %v9400, 1.442695
      %v9447 = vpow.pop %v9446
      %v9448 = vmul.f32 %v9401, 1.442695
      %v9449 = vpow.pop %v9448
      %v9450 = vmul.f32 %v9402, 1.442695
      %v9451 = vpow.pop %v9450
      %v9452 = vmul.f32 %v9403, 1.442695
      %v9453 = vpow.pop %v9452
      %v9454 = vmul.f32 %v9404, 1.442695
      %v9455 = vpow.pop %v9454
      %v9456 = vmul.f32 %v9405, 1.442695
      %v9457 = vpow.pop %v9456
      %v9458 = vmul.f32 %v9406, 1.442695
      %v9459 = vpow.pop %v9458
      %v9460 = vmul.f32 %v9407, 1.442695
      %v9461 = vpow.pop %v9460
      %v9462 = vmul.f32 %v9408, 1.442695
      %v9463 = vpow.pop %v9462
      %v9464 = vmul.f32 %v9409, 1.442695
      %v9465 = vpow.pop %v9464
      %v9466 = vmul.f32 %v9410, 1.442695
      %v9467 = vpow.pop %v9466
      %v9468 = vmul.f32 %v9411, 1.442695
      %v9469 = vpow.pop %v9468
      %v9470 = vmul.f32 %v9412, 1.442695
      %v9471 = vpow.pop %v9470
      %v9472 = vmul.f32 %v9413, 1.442695
      %v9473 = vpow.pop %v9472
      %v9474 = vmul.f32 %v9414, 1.442695
      %v9475 = vpow.pop %v9474
      %v9476 = vmul.f32 %v9415, 1.442695
      %v9477 = vpow.pop %v9476
      %v9478 = vmul.f32 %v9416, 1.442695
      %v9479 = vpow.pop %v9478
      %v9480 = vmul.f32 %v9417, 1.442695
      %v9481 = vpow.pop %v9480
      %v9482 = vadd.f32 %v9419, 1.0
      %v9483 = vadd.f32 %v9421, 1.0
      %v9484 = vadd.f32 %v9423, 1.0
      %v9485 = vadd.f32 %v9425, 1.0
      %v9486 = vadd.f32 %v9427, 1.0
      %v9487 = vadd.f32 %v9429, 1.0
      %v9488 = vadd.f32 %v9431, 1.0
      %v9489 = vadd.f32 %v9433, 1.0
      %v9490 = vadd.f32 %v9435, 1.0
      %v9491 = vadd.f32 %v9437, 1.0
      %v9492 = vadd.f32 %v9439, 1.0
      %v9493 = vadd.f32 %v9441, 1.0
      %v9494 = vadd.f32 %v9443, 1.0
      %v9495 = vadd.f32 %v9445, 1.0
      %v9496 = vadd.f32 %v9447, 1.0
      %v9497 = vadd.f32 %v9449, 1.0
      %v9498 = vadd.f32 %v9451, 1.0
      %v9499 = vadd.f32 %v9453, 1.0
      %v9500 = vadd.f32 %v9455, 1.0
      %v9501 = vadd.f32 %v9457, 1.0
      %v9502 = vadd.f32 %v9459, 1.0
      %v9503 = vadd.f32 %v9461, 1.0
      %v9504 = vadd.f32 %v9463, 1.0
      %v9505 = vadd.f32 %v9465, 1.0
      %v9506 = vadd.f32 %v9467, 1.0
      %v9507 = vadd.f32 %v9469, 1.0
      %v9508 = vadd.f32 %v9471, 1.0
      %v9509 = vadd.f32 %v9473, 1.0
      %v9510 = vadd.f32 %v9475, 1.0
      %v9511 = vadd.f32 %v9477, 1.0
      %v9512 = vadd.f32 %v9479, 1.0
      %v9513 = vadd.f32 %v9481, 1.0
      %v9514 = vrcp.pop %v9482
      %v9515 = vmul.f32 1.0, %v9514
      %v9516 = vrcp.pop %v9483
      %v9517 = vmul.f32 1.0, %v9516
      %v9518 = vrcp.pop %v9484
      %v9519 = vmul.f32 1.0, %v9518
      %v9520 = vrcp.pop %v9485
      %v9521 = vmul.f32 1.0, %v9520
      %v9522 = vrcp.pop %v9486
      %v9523 = vmul.f32 1.0, %v9522
      %v9524 = vrcp.pop %v9487
      %v9525 = vmul.f32 1.0, %v9524
      %v9526 = vrcp.pop %v9488
      %v9527 = vmul.f32 1.0, %v9526
      %v9528 = vrcp.pop %v9489
      %v9529 = vmul.f32 1.0, %v9528
      %v9530 = vrcp.pop %v9490
      %v9531 = vmul.f32 1.0, %v9530
      %v9532 = vrcp.pop %v9491
      %v9533 = vmul.f32 1.0, %v9532
      %v9534 = vrcp.pop %v9492
      %v9535 = vmul.f32 1.0, %v9534
      %v9536 = vrcp.pop %v9493
      %v9537 = vmul.f32 1.0, %v9536
      %v9538 = vrcp.pop %v9494
      %v9539 = vmul.f32 1.0, %v9538
      %v9540 = vrcp.pop %v9495
      %v9541 = vmul.f32 1.0, %v9540
      %v9542 = vrcp.pop %v9496
      %v9543 = vmul.f32 1.0, %v9542
      %v9544 = vrcp.pop %v9497
      %v9545 = vmul.f32 1.0, %v9544
      %v9546 = vrcp.pop %v9498
      %v9547 = vmul.f32 1.0, %v9546
      %v9548 = vrcp.pop %v9499
      %v9549 = vmul.f32 1.0, %v9548
      %v9550 = vrcp.pop %v9500
      %v9551 = vmul.f32 1.0, %v9550
      %v9552 = vrcp.pop %v9501
      %v9553 = vmul.f32 1.0, %v9552
      %v9554 = vrcp.pop %v9502
      %v9555 = vmul.f32 1.0, %v9554
      %v9556 = vrcp.pop %v9503
      %v9557 = vmul.f32 1.0, %v9556
      %v9558 = vrcp.pop %v9504
      %v9559 = vmul.f32 1.0, %v9558
      %v9560 = vrcp.pop %v9505
      %v9561 = vmul.f32 1.0, %v9560
      %v9562 = vrcp.pop %v9506
      %v9563 = vmul.f32 1.0, %v9562
      %v9564 = vrcp.pop %v9507
      %v9565 = vmul.f32 1.0, %v9564
      %v9566 = vrcp.pop %v9508
      %v9567 = vmul.f32 1.0, %v9566
      %v9568 = vrcp.pop %v9509
      %v9569 = vmul.f32 1.0, %v9568
      %v9570 = vrcp.pop %v9510
      %v9571 = vmul.f32 1.0, %v9570
      %v9572 = vrcp.pop %v9511
      %v9573 = vmul.f32 1.0, %v9572
      %v9574 = vrcp.pop %v9512
      %v9575 = vmul.f32 1.0, %v9574
      %v9576 = vrcp.pop %v9513
      %v9577 = vmul.f32 1.0, %v9576
      %v9578 = vlaneseq
      %v9579 = vshrl.u32 %v9578, 7
      %v9580 = vsub.s32 0, %v9579
      %v9581 = vrot.slane %v9385, %v9580
      %v9582 = vmul.f32 %v9581, %v9515
      %v9583 = vmul.f32 %v9581, %v9517
      %v9584 = vmul.f32 %v9581, %v9519
      %v9585 = vmul.f32 %v9581, %v9521
      %v9586 = vmul.f32 %v9581, %v9523
      %v9587 = vmul.f32 %v9581, %v9525
      %v9588 = vmul.f32 %v9581, %v9527
      %v9589 = vmul.f32 %v9581, %v9529
      %v9590 = vmul.f32 %v9581, %v9531
      %v9591 = vmul.f32 %v9581, %v9533
      %v9592 = vmul.f32 %v9581, %v9535
      %v9593 = vmul.f32 %v9581, %v9537
      %v9594 = vmul.f32 %v9581, %v9539
      %v9595 = vmul.f32 %v9581, %v9541
      %v9596 = vmul.f32 %v9581, %v9543
      %v9597 = vmul.f32 %v9581, %v9545
      %v9598 = vmul.f32 %v9581, %v9547
      %v9599 = vmul.f32 %v9581, %v9549
      %v9600 = vmul.f32 %v9581, %v9551
      %v9601 = vmul.f32 %v9581, %v9553
      %v9602 = vmul.f32 %v9581, %v9555
      %v9603 = vmul.f32 %v9581, %v9557
      %v9604 = vmul.f32 %v9581, %v9559
      %v9605 = vmul.f32 %v9581, %v9561
      %v9606 = vmul.f32 %v9581, %v9563
      %v9607 = vmul.f32 %v9581, %v9565
      %v9608 = vmul.f32 %v9581, %v9567
      %v9609 = vmul.f32 %v9581, %v9569
      %v9610 = vmul.f32 %v9581, %v9571
      %v9611 = vmul.f32 %v9581, %v9573
      %v9612 = vmul.f32 %v9581, %v9575
      %v9613 = vmul.f32 %v9581, %v9577
      %v9614 = vld [vmem:[%s5 + $0x3] sm:$0x1]
      %v9615 = vlaneseq
      %v9616 = vshrl.u32 %v9615, 7
      %v9617 = vsub.s32 0, %v9616
      %v9618 = vrot.slane %v9614, %v9617
      %v9619 = vadd.f32 %v9582, %v9618
      %v9620 = vadd.f32 %v9583, %v9618
      %v9621 = vadd.f32 %v9584, %v9618
      %v9622 = vadd.f32 %v9585, %v9618
      %v9623 = vadd.f32 %v9586, %v9618
      %v9624 = vadd.f32 %v9587, %v9618
      %v9625 = vadd.f32 %v9588, %v9618
      %v9626 = vadd.f32 %v9589, %v9618
      %v9627 = vadd.f32 %v9590, %v9618
      %v9628 = vadd.f32 %v9591, %v9618
      %v9629 = vadd.f32 %v9592, %v9618
      %v9630 = vadd.f32 %v9593, %v9618
      %v9631 = vadd.f32 %v9594, %v9618
      %v9632 = vadd.f32 %v9595, %v9618
      %v9633 = vadd.f32 %v9596, %v9618
      %v9634 = vadd.f32 %v9597, %v9618
      %v9635 = vadd.f32 %v9598, %v9618
      %v9636 = vadd.f32 %v9599, %v9618
      %v9637 = vadd.f32 %v9600, %v9618
      %v9638 = vadd.f32 %v9601, %v9618
      %v9639 = vadd.f32 %v9602, %v9618
      %v9640 = vadd.f32 %v9603, %v9618
      %v9641 = vadd.f32 %v9604, %v9618
      %v9642 = vadd.f32 %v9605, %v9618
      %v9643 = vadd.f32 %v9606, %v9618
      %v9644 = vadd.f32 %v9607, %v9618
      %v9645 = vadd.f32 %v9608, %v9618
      %v9646 = vadd.f32 %v9609, %v9618
      %v9647 = vadd.f32 %v9610, %v9618
      %v9648 = vadd.f32 %v9611, %v9618
      %v9649 = vadd.f32 %v9612, %v9618
      %v9650 = vadd.f32 %v9613, %v9618
      %9651 = vst [vmem:[%s251] sm:$0xff] %v9619
      %9652 = vst [vmem:[%s251 + $0x8] sm:$0xff] %v9620
      %9653 = vst [vmem:[%s251 + $0x10] sm:$0xff] %v9621
      %9654 = vst [vmem:[%s251 + $0x18] sm:$0xff] %v9622
      %9655 = vst [vmem:[%s251 + $0x20] sm:$0xff] %v9623
      %9656 = vst [vmem:[%s251 + $0x28] sm:$0xff] %v9624
      %9657 = vst [vmem:[%s251 + $0x30] sm:$0xff] %v9625
      %9658 = vst [vmem:[%s251 + $0x38] sm:$0xff] %v9626
      %9659 = vst [vmem:[%s251 + $0x40] sm:$0xff] %v9627
      %9660 = vst [vmem:[%s251 + $0x48] sm:$0xff] %v9628
      %9661 = vst [vmem:[%s251 + $0x50] sm:$0xff] %v9629
      %9662 = vst [vmem:[%s251 + $0x58] sm:$0xff] %v9630
      %9663 = vst [vmem:[%s251 + $0x60] sm:$0xff] %v9631
      %9664 = vst [vmem:[%s251 + $0x68] sm:$0xff] %v9632
      %9665 = vst [vmem:[%s251 + $0x70] sm:$0xff] %v9633
      %9666 = vst [vmem:[%s251 + $0x78] sm:$0xff] %v9634
      %9667 = vst [vmem:[%s251 + $0x80] sm:$0xff] %v9635
      %9668 = vst [vmem:[%s251 + $0x88] sm:$0xff] %v9636
      %9669 = vst [vmem:[%s251 + $0x90] sm:$0xff] %v9637
      %9670 = vst [vmem:[%s251 + $0x98] sm:$0xff] %v9638
      %9671 = vst [vmem:[%s251 + $0xa0] sm:$0xff] %v9639
      %9672 = vst [vmem:[%s251 + $0xa8] sm:$0xff] %v9640
      %9673 = vst [vmem:[%s251 + $0xb0] sm:$0xff] %v9641
      %9674 = vst [vmem:[%s251 + $0xb8] sm:$0xff] %v9642
      %9675 = vst [vmem:[%s251 + $0xc0] sm:$0xff] %v9643
      %9676 = vst [vmem:[%s251 + $0xc8] sm:$0xff] %v9644
      %9677 = vst [vmem:[%s251 + $0xd0] sm:$0xff] %v9645
      %9678 = vst [vmem:[%s251 + $0xd8] sm:$0xff] %v9646
      %9679 = vst [vmem:[%s251 + $0xe0] sm:$0xff] %v9647
      %9680 = vst [vmem:[%s251 + $0xe8] sm:$0xff] %v9648
      %9681 = vst [vmem:[%s251 + $0xf0] sm:$0xff] %v9649
      %9682 = vst [vmem:[%s251 + $0xf8] sm:$0xff] %v9650
      %p9683 = scmp.lt.s32.totalorder %s17, 1
      %s9684 = scalar_select %p9683, %s17, 1
      %s9685 = smul.addr %s9684, 32
      %s9686 = smul.addr %s9685, 8
      %s9687 = scalar_lea.vmem %s6, %s9686
      // Predicated region
      $region45: #{_lambda_.1} parent=43 // pred_check
        %p9688 = pneg %p166
      $region46: #{_lambda_.1} parent=43 // pred_check_branch
        %9690 = sbr.rel (%p9688) target = $region48
      $region47: #{_lambda_.1} parent=43 // pred_region
        _
      $region48: #{_lambda_.1} parent=43 // pred_fallthru
        _
    $region44: #{_lambda_.1} parent=5 // pred_fallthru
      _
    %p9691 = scmp.le.s32.totalorder 2, %s12
    // Predicated region
    $region49: #{_lambda_.1} parent=5 // pred_check
      %p9692 = pneg %p9691
    $region50: #{_lambda_.1} parent=5 // pred_check_branch
      %9694 = sbr.rel (%p9692) target = $region52
    $region51: #{_lambda_.1} parent=5 // pred_region
      %s9695 = ssub.s32 %s12, 2
      // Predicated region
      $region53: #{_lambda_.1} parent=51 // pred_check
        %p9696 = pneg %p172
      $region54: #{_lambda_.1} parent=51 // pred_check_branch
        %9698 = sbr.rel (%p9696) target = $region56
      $region55: #{_lambda_.1} parent=51 // pred_region
        %p9699 = scmp.lt.s32.totalorder %s18, 1
        %s9700 = scalar_select %p9699, %s18, 1
        %s9701 = smul.addr %s9700, 32
        %s9702 = smul.addr %s9701, 8
        %s9703 = scalar_lea.vmem %s6, %s9702
      $region56: #{_lambda_.1} parent=51 // pred_fallthru
        _
    $region52: #{_lambda_.1} parent=5 // pred_fallthru
      _
  $region6: #{_lambda_.1} parent=0 // loop_footer
    %s16 = sadd.s32 1, %s12
  $region7: #{_lambda_.1} parent=0 // loop_footer_branch
    %11 = sbr.rel target = $region3
  $region8: #{_lambda_.1} parent=0 // loop_exit
    _

</llo_original>
